<compile_context>
chip_gen: v6e
topology: v6e:2x2x1
jax: 0.10.0
libtpu: 0.0.40
codegen_flags: <defaults>
</compile_context>

<pallas_src>
import functools

import jax
import jax.numpy as jnp
import numpy as np
from jax import lax
from jax.experimental import pallas as pl
from jax.experimental.pallas import tpu as pltpu

KERNEL_SIZE = 4
LEAKY_SLOPE = 0.2
IN_EPS = 1e-5          # InstanceNorm2d default eps


# ----------------------------------------------------------------------------
# in-kernel conv building block
# ----------------------------------------------------------------------------
def _conv_from_padded_ref(in_ref, w_ref, b_ref, *, n, oh, ow, cin, cout,
                          stride, lrelu, norm):
    """k=4 conv + optional LeakyReLU + optional InstanceNorm.

    in_ref : (n, hp, wp, cin)  zero-padded activation in VMEM (padding ring = 1)
    w_ref  : (k*k, cin, cout)  weights, (kh, kw)-major flattening
    b_ref  : (1, cout)
    returns: (n, oh, ow, cout) f32 value
    """
    k = KERNEL_SIZE
    p = n * oh * ow                      # batch folded into matmul M dimension
    acc = jnp.zeros((p, cout), jnp.float32)
    for kh in range(k):
        for kw in range(k):
            if stride == 1:
                xs = in_ref[:, pl.ds(kh, oh), pl.ds(kw, ow), :]
            else:
                xs = in_ref[:, pl.ds(kh, oh, stride), pl.ds(kw, ow, stride), :]
            acc = acc + jnp.dot(xs.reshape(p, cin), w_ref[kh * k + kw],
                                preferred_element_type=jnp.float32)
    y = acc + b_ref[...]
    if lrelu:
        y = jnp.where(y >= 0.0, y, LEAKY_SLOPE * y)          # LeakyReLU(0.2)
    if norm:
        # InstanceNorm2d: per-sample, per-channel stats over spatial positions
        yg = y.reshape(n, oh * ow, cout)
        mu = jnp.mean(yg, axis=1, keepdims=True)
        var = jnp.mean(yg * yg, axis=1, keepdims=True) - mu * mu   # one-pass var
        y = ((yg - mu) * lax.rsqrt(var + IN_EPS)).reshape(p, cout)
    return y.reshape(n, oh, ow, cout)


# ----------------------------------------------------------------------------
# fused whole-network kernel
# ----------------------------------------------------------------------------
def _discriminator_kernel(*refs, n, layer_dims):
    # refs layout: x_pad, (w, b) per conv layer, out, padded-activation scratch
    nl = len(layer_dims)
    x_ref = refs[0]
    wb_refs = refs[1:1 + 2 * nl]
    o_ref = refs[1 + 2 * nl]
    pad_refs = refs[2 + 2 * nl:]          # nl - 1 zero-padded activation buffers

    cur = x_ref
    for li, (oh, ow, cin, cout, stride, lrelu, norm) in enumerate(layer_dims):
        y = _conv_from_padded_ref(cur, wb_refs[2 * li], wb_refs[2 * li + 1],
                                  n=n, oh=oh, ow=ow, cin=cin, cout=cout,
                                  stride=stride, lrelu=lrelu, norm=norm)
        if li < nl - 1:
            nxt = pad_refs[li]
            nxt[...] = jnp.zeros(nxt.shape, nxt.dtype)      # zero padding ring
            nxt[:, 1:oh + 1, 1:ow + 1, :] = y               # write interior
            cur = nxt
        else:
            # final conv (cout == 1) + global average pool over spatial dims
            o_ref[...] = jnp.mean(y.reshape(n, oh * ow), axis=1, keepdims=True)


# ----------------------------------------------------------------------------
# wrapper
# ----------------------------------------------------------------------------
@jax.jit
def discriminator_forward(x_nchw, params):
    # accepts NCHW like PyTorch; kernel works in NHWC with channels on lanes
    x = jnp.transpose(x_nchw, (0, 2, 3, 1)).astype(jnp.float32)
    n, h, w, c0 = x.shape
    x_pad = jnp.pad(x, ((0, 0), (1, 1), (1, 1), (0, 0)))

    k = KERNEL_SIZE
    layer_dims = []
    flat_params = []
    hp, wp, cin = h + 2, w + 2, c0
    n_strided = len(params) - 1
    for i, (wgt, bias) in enumerate(params):
        cout = wgt.shape[-1]
        is_final = (i == n_strided)
        stride = 1 if is_final else 2
        oh = (hp - k) // stride + 1
        ow = (wp - k) // stride + 1
        layer_dims.append((oh, ow, cin, cout, stride,
                           not is_final,                  # LeakyReLU except final
                           (not is_final) and i != 0))    # InstanceNorm if i != 0
        flat_params += [wgt.reshape(k * k, cin, cout), bias.reshape(1, cout)]
        hp, wp, cin = oh + 2, ow + 2, cout

    scratch = [pltpu.VMEM((n, oh + 2, ow + 2, cout), jnp.float32)
               for (oh, ow, _, cout, _, _, _) in layer_dims[:-1]]

    kernel = functools.partial(_discriminator_kernel, n=n,
                               layer_dims=tuple(layer_dims))
    return pl.pallas_call(
        kernel,
        out_shape=jax.ShapeDtypeStruct((n, 1), jnp.float32),
        scratch_shapes=scratch,
    )(x_pad, *flat_params)


# ----------------------------------------------------------------------------
# parameters (deterministic, mimicking weights_init_normal: conv w ~ N(0, 0.02))
# ----------------------------------------------------------------------------
def init_params(key, input_channels, channels_list, kernel_size):
    params = []
    prev = input_channels
    for c in channels_list + [1]:
        key, kw_, kb_ = jax.random.split(key, 3)
        wgt = 0.02 * jax.random.normal(kw_, (kernel_size, kernel_size, prev, c),
                                       jnp.float32)
        bound = 1.0 / np.sqrt(prev * kernel_size * kernel_size)
        bias = jax.random.uniform(kb_, (c,), jnp.float32, -bound, bound)
        params.append((wgt, bias))
        prev = c
    return params


# ----------------------------------------------------------------------------
# pure-JAX reference for validation
# ----------------------------------------------------------------------------
def reference_forward(x_nchw, params):
    x = x_nchw
    n_layers = len(params) - 1
    for i in range(n_layers):
        w, b = params[i]
        w_oihw = jnp.transpose(w, (3, 2, 0, 1))
        x = lax.conv_general_dilated(x, w_oihw, (2, 2), [(1, 1), (1, 1)],
                                     dimension_numbers=("NCHW", "OIHW", "NCHW"))
        x = x + b.reshape(1, -1, 1, 1)
        x = jnp.where(x >= 0, x, LEAKY_SLOPE * x)
        if i != 0:
            mu = jnp.mean(x, axis=(2, 3), keepdims=True)
            var = jnp.mean((x - mu) ** 2, axis=(2, 3), keepdims=True)
            x = (x - mu) / jnp.sqrt(var + IN_EPS)
    w, b = params[-1]
    w_oihw = jnp.transpose(w, (3, 2, 0, 1))
    x = lax.conv_general_dilated(x, w_oihw, (1, 1), [(1, 1), (1, 1)],
                                 dimension_numbers=("NCHW", "OIHW", "NCHW"))
    x = x + b.reshape(1, -1, 1, 1)
    return jnp.mean(x, axis=(2, 3)).reshape(x.shape[0], -1)


if __name__ == "__main__":
    key = jax.random.PRNGKey(0)
    kx, kp = jax.random.split(key)

    input_channels = 4
    channels_list = [8, 16, 32]
    x = jax.random.normal(kx, (2, input_channels, 16, 16), jnp.float32)  # NCHW
    params = init_params(kp, input_channels, channels_list, KERNEL_SIZE)

    out = discriminator_forward(x, params)
    out = jax.block_until_ready(out)

    ref = reference_forward(x, params)
    assert out.shape == (2, 1), out.shape
    np.testing.assert_allclose(np.asarray(out), np.asarray(ref),
                               rtol=1e-2, atol=1e-3)
    print("KERNEL_OK")
</pallas_src>

<mosaic_0001>
module attributes {stable_mosaic.version = 11 : i64} {
  func.func @_discriminator_kernel(%arg0: memref<2x18x18x4xf32, #tpu.memory_space<vmem>>, %arg1: memref<16x4x8xf32, #tpu.memory_space<vmem>>, %arg2: memref<1x8xf32, #tpu.memory_space<vmem>>, %arg3: memref<16x8x16xf32, #tpu.memory_space<vmem>>, %arg4: memref<1x16xf32, #tpu.memory_space<vmem>>, %arg5: memref<16x16x32xf32, #tpu.memory_space<vmem>>, %arg6: memref<1x32xf32, #tpu.memory_space<vmem>>, %arg7: memref<16x32x1xf32, #tpu.memory_space<vmem>>, %arg8: memref<1x1xf32, #tpu.memory_space<vmem>>, %arg9: memref<2x1xf32, #tpu.memory_space<vmem>>, %arg10: memref<2x10x10x8xf32, #tpu.memory_space<vmem>>, %arg11: memref<2x6x6x16xf32, #tpu.memory_space<vmem>>, %arg12: memref<2x4x4x32xf32, #tpu.memory_space<vmem>>) attributes {dimension_semantics = [], scalar_prefetch = 0 : i64, scratch_operands = 3 : i64, tpu.core_type = #tpu.core_type<tc>} {
    %cst = arith.constant 0.000000e+00 : f32
    %0 = vector.broadcast %cst : f32 to vector<128x8xf32>
    %c0 = arith.constant 0 : index
    %c0_0 = arith.constant 0 : index
    %c0_1 = arith.constant 0 : index
    %c0_2 = arith.constant 0 : index
    %1 = tpu.strided_load %arg0[%c0, %c0_0, %c0_1, %c0_2] {strides = array<i32: 1, 2, 2, 1>} : memref<2x18x18x4xf32, #tpu.memory_space<vmem>>, vector<2x8x8x4xf32>
    %2 = vector.shape_cast %1 : vector<2x8x8x4xf32> to vector<128x4xf32>
    %c0_3 = arith.constant 0 : index
    %c0_4 = arith.constant 0 : index
    %c0_5 = arith.constant 0 : index
    %3 = vector.load %arg1[%c0_3, %c0_4, %c0_5] : memref<16x4x8xf32, #tpu.memory_space<vmem>>, vector<1x4x8xf32>
    %4 = vector.shape_cast %3 : vector<1x4x8xf32> to vector<4x8xf32>
    %cst_6 = arith.constant dense<0.000000e+00> : vector<128x8xf32>
    %5 = tpu.matmul %2, %4, %cst_6 {dimension_numbers = #tpu.dot_dimension_numbers<[1], [0], [0], [1], [0, 0, 1, 1], [], []>} : vector<128x4xf32>, vector<4x8xf32>, vector<128x8xf32> -> vector<128x8xf32>
    %6 = arith.addf %0, %5 : vector<128x8xf32>
    %c0_7 = arith.constant 0 : index
    %c0_8 = arith.constant 0 : index
    %c1 = arith.constant 1 : index
    %c0_9 = arith.constant 0 : index
    %7 = tpu.strided_load %arg0[%c0_7, %c0_8, %c1, %c0_9] {strides = array<i32: 1, 2, 2, 1>} : memref<2x18x18x4xf32, #tpu.memory_space<vmem>>, vector<2x8x8x4xf32>
    %8 = vector.shape_cast %7 : vector<2x8x8x4xf32> to vector<128x4xf32>
    %c1_10 = arith.constant 1 : index
    %c0_11 = arith.constant 0 : index
    %c0_12 = arith.constant 0 : index
    %9 = vector.load %arg1[%c1_10, %c0_11, %c0_12] : memref<16x4x8xf32, #tpu.memory_space<vmem>>, vector<1x4x8xf32>
    %10 = vector.shape_cast %9 : vector<1x4x8xf32> to vector<4x8xf32>
    %cst_13 = arith.constant dense<0.000000e+00> : vector<128x8xf32>
    %11 = tpu.matmul %8, %10, %cst_13 {dimension_numbers = #tpu.dot_dimension_numbers<[1], [0], [0], [1], [0, 0, 1, 1], [], []>} : vector<128x4xf32>, vector<4x8xf32>, vector<128x8xf32> -> vector<128x8xf32>
    %12 = arith.addf %6, %11 : vector<128x8xf32>
    %c0_14 = arith.constant 0 : index
    %c0_15 = arith.constant 0 : index
    %c2 = arith.constant 2 : index
    %c0_16 = arith.constant 0 : index
    %13 = tpu.strided_load %arg0[%c0_14, %c0_15, %c2, %c0_16] {strides = array<i32: 1, 2, 2, 1>} : memref<2x18x18x4xf32, #tpu.memory_space<vmem>>, vector<2x8x8x4xf32>
    %14 = vector.shape_cast %13 : vector<2x8x8x4xf32> to vector<128x4xf32>
    %c2_17 = arith.constant 2 : index
    %c0_18 = arith.constant 0 : index
    %c0_19 = arith.constant 0 : index
    %15 = vector.load %arg1[%c2_17, %c0_18, %c0_19] : memref<16x4x8xf32, #tpu.memory_space<vmem>>, vector<1x4x8xf32>
    %16 = vector.shape_cast %15 : vector<1x4x8xf32> to vector<4x8xf32>
    %cst_20 = arith.constant dense<0.000000e+00> : vector<128x8xf32>
    %17 = tpu.matmul %14, %16, %cst_20 {dimension_numbers = #tpu.dot_dimension_numbers<[1], [0], [0], [1], [0, 0, 1, 1], [], []>} : vector<128x4xf32>, vector<4x8xf32>, vector<128x8xf32> -> vector<128x8xf32>
    %18 = arith.addf %12, %17 : vector<128x8xf32>
    %c0_21 = arith.constant 0 : index
    %c0_22 = arith.constant 0 : index
    %c3 = arith.constant 3 : index
    %c0_23 = arith.constant 0 : index
    %19 = tpu.strided_load %arg0[%c0_21, %c0_22, %c3, %c0_23] {strides = array<i32: 1, 2, 2, 1>} : memref<2x18x18x4xf32, #tpu.memory_space<vmem>>, vector<2x8x8x4xf32>
    %20 = vector.shape_cast %19 : vector<2x8x8x4xf32> to vector<128x4xf32>
    %c3_24 = arith.constant 3 : index
    %c0_25 = arith.constant 0 : index
    %c0_26 = arith.constant 0 : index
    %21 = vector.load %arg1[%c3_24, %c0_25, %c0_26] : memref<16x4x8xf32, #tpu.memory_space<vmem>>, vector<1x4x8xf32>
    %22 = vector.shape_cast %21 : vector<1x4x8xf32> to vector<4x8xf32>
    %cst_27 = arith.constant dense<0.000000e+00> : vector<128x8xf32>
    %23 = tpu.matmul %20, %22, %cst_27 {dimension_numbers = #tpu.dot_dimension_numbers<[1], [0], [0], [1], [0, 0, 1, 1], [], []>} : vector<128x4xf32>, vector<4x8xf32>, vector<128x8xf32> -> vector<128x8xf32>
    %24 = arith.addf %18, %23 : vector<128x8xf32>
    %c0_28 = arith.constant 0 : index
    %c1_29 = arith.constant 1 : index
    %c0_30 = arith.constant 0 : index
    %c0_31 = arith.constant 0 : index
    %25 = tpu.strided_load %arg0[%c0_28, %c1_29, %c0_30, %c0_31] {strides = array<i32: 1, 2, 2, 1>} : memref<2x18x18x4xf32, #tpu.memory_space<vmem>>, vector<2x8x8x4xf32>
    %26 = vector.shape_cast %25 : vector<2x8x8x4xf32> to vector<128x4xf32>
    %c4 = arith.constant 4 : index
    %c0_32 = arith.constant 0 : index
    %c0_33 = arith.constant 0 : index
    %27 = vector.load %arg1[%c4, %c0_32, %c0_33] : memref<16x4x8xf32, #tpu.memory_space<vmem>>, vector<1x4x8xf32>
    %28 = vector.shape_cast %27 : vector<1x4x8xf32> to vector<4x8xf32>
    %cst_34 = arith.constant dense<0.000000e+00> : vector<128x8xf32>
    %29 = tpu.matmul %26, %28, %cst_34 {dimension_numbers = #tpu.dot_dimension_numbers<[1], [0], [0], [1], [0, 0, 1, 1], [], []>} : vector<128x4xf32>, vector<4x8xf32>, vector<128x8xf32> -> vector<128x8xf32>
    %30 = arith.addf %24, %29 : vector<128x8xf32>
    %c0_35 = arith.constant 0 : index
    %c1_36 = arith.constant 1 : index
    %c1_37 = arith.constant 1 : index
    %c0_38 = arith.constant 0 : index
    %31 = tpu.strided_load %arg0[%c0_35, %c1_36, %c1_37, %c0_38] {strides = array<i32: 1, 2, 2, 1>} : memref<2x18x18x4xf32, #tpu.memory_space<vmem>>, vector<2x8x8x4xf32>
    %32 = vector.shape_cast %31 : vector<2x8x8x4xf32> to vector<128x4xf32>
    %c5 = arith.constant 5 : index
    %c0_39 = arith.constant 0 : index
    %c0_40 = arith.constant 0 : index
    %33 = vector.load %arg1[%c5, %c0_39, %c0_40] : memref<16x4x8xf32, #tpu.memory_space<vmem>>, vector<1x4x8xf32>
    %34 = vector.shape_cast %33 : vector<1x4x8xf32> to vector<4x8xf32>
    %cst_41 = arith.constant dense<0.000000e+00> : vector<128x8xf32>
    %35 = tpu.matmul %32, %34, %cst_41 {dimension_numbers = #tpu.dot_dimension_numbers<[1], [0], [0], [1], [0, 0, 1, 1], [], []>} : vector<128x4xf32>, vector<4x8xf32>, vector<128x8xf32> -> vector<128x8xf32>
    %36 = arith.addf %30, %35 : vector<128x8xf32>
    %c0_42 = arith.constant 0 : index
    %c1_43 = arith.constant 1 : index
    %c2_44 = arith.constant 2 : index
    %c0_45 = arith.constant 0 : index
    %37 = tpu.strided_load %arg0[%c0_42, %c1_43, %c2_44, %c0_45] {strides = array<i32: 1, 2, 2, 1>} : memref<2x18x18x4xf32, #tpu.memory_space<vmem>>, vector<2x8x8x4xf32>
    %38 = vector.shape_cast %37 : vector<2x8x8x4xf32> to vector<128x4xf32>
    %c6 = arith.constant 6 : index
    %c0_46 = arith.constant 0 : index
    %c0_47 = arith.constant 0 : index
    %39 = vector.load %arg1[%c6, %c0_46, %c0_47] : memref<16x4x8xf32, #tpu.memory_space<vmem>>, vector<1x4x8xf32>
    %40 = vector.shape_cast %39 : vector<1x4x8xf32> to vector<4x8xf32>
    %cst_48 = arith.constant dense<0.000000e+00> : vector<128x8xf32>
    %41 = tpu.matmul %38, %40, %cst_48 {dimension_numbers = #tpu.dot_dimension_numbers<[1], [0], [0], [1], [0, 0, 1, 1], [], []>} : vector<128x4xf32>, vector<4x8xf32>, vector<128x8xf32> -> vector<128x8xf32>
    %42 = arith.addf %36, %41 : vector<128x8xf32>
    %c0_49 = arith.constant 0 : index
    %c1_50 = arith.constant 1 : index
    %c3_51 = arith.constant 3 : index
    %c0_52 = arith.constant 0 : index
    %43 = tpu.strided_load %arg0[%c0_49, %c1_50, %c3_51, %c0_52] {strides = array<i32: 1, 2, 2, 1>} : memref<2x18x18x4xf32, #tpu.memory_space<vmem>>, vector<2x8x8x4xf32>
    %44 = vector.shape_cast %43 : vector<2x8x8x4xf32> to vector<128x4xf32>
    %c7 = arith.constant 7 : index
    %c0_53 = arith.constant 0 : index
    %c0_54 = arith.constant 0 : index
    %45 = vector.load %arg1[%c7, %c0_53, %c0_54] : memref<16x4x8xf32, #tpu.memory_space<vmem>>, vector<1x4x8xf32>
    %46 = vector.shape_cast %45 : vector<1x4x8xf32> to vector<4x8xf32>
    %cst_55 = arith.constant dense<0.000000e+00> : vector<128x8xf32>
    %47 = tpu.matmul %44, %46, %cst_55 {dimension_numbers = #tpu.dot_dimension_numbers<[1], [0], [0], [1], [0, 0, 1, 1], [], []>} : vector<128x4xf32>, vector<4x8xf32>, vector<128x8xf32> -> vector<128x8xf32>
    %48 = arith.addf %42, %47 : vector<128x8xf32>
    %c0_56 = arith.constant 0 : index
    %c2_57 = arith.constant 2 : index
    %c0_58 = arith.constant 0 : index
    %c0_59 = arith.constant 0 : index
    %49 = tpu.strided_load %arg0[%c0_56, %c2_57, %c0_58, %c0_59] {strides = array<i32: 1, 2, 2, 1>} : memref<2x18x18x4xf32, #tpu.memory_space<vmem>>, vector<2x8x8x4xf32>
    %50 = vector.shape_cast %49 : vector<2x8x8x4xf32> to vector<128x4xf32>
    %c8 = arith.constant 8 : index
    %c0_60 = arith.constant 0 : index
    %c0_61 = arith.constant 0 : index
    %51 = vector.load %arg1[%c8, %c0_60, %c0_61] : memref<16x4x8xf32, #tpu.memory_space<vmem>>, vector<1x4x8xf32>
    %52 = vector.shape_cast %51 : vector<1x4x8xf32> to vector<4x8xf32>
    %cst_62 = arith.constant dense<0.000000e+00> : vector<128x8xf32>
    %53 = tpu.matmul %50, %52, %cst_62 {dimension_numbers = #tpu.dot_dimension_numbers<[1], [0], [0], [1], [0, 0, 1, 1], [], []>} : vector<128x4xf32>, vector<4x8xf32>, vector<128x8xf32> -> vector<128x8xf32>
    %54 = arith.addf %48, %53 : vector<128x8xf32>
    %c0_63 = arith.constant 0 : index
    %c2_64 = arith.constant 2 : index
    %c1_65 = arith.constant 1 : index
    %c0_66 = arith.constant 0 : index
    %55 = tpu.strided_load %arg0[%c0_63, %c2_64, %c1_65, %c0_66] {strides = array<i32: 1, 2, 2, 1>} : memref<2x18x18x4xf32, #tpu.memory_space<vmem>>, vector<2x8x8x4xf32>
    %56 = vector.shape_cast %55 : vector<2x8x8x4xf32> to vector<128x4xf32>
    %c9 = arith.constant 9 : index
    %c0_67 = arith.constant 0 : index
    %c0_68 = arith.constant 0 : index
    %57 = vector.load %arg1[%c9, %c0_67, %c0_68] : memref<16x4x8xf32, #tpu.memory_space<vmem>>, vector<1x4x8xf32>
    %58 = vector.shape_cast %57 : vector<1x4x8xf32> to vector<4x8xf32>
    %cst_69 = arith.constant dense<0.000000e+00> : vector<128x8xf32>
    %59 = tpu.matmul %56, %58, %cst_69 {dimension_numbers = #tpu.dot_dimension_numbers<[1], [0], [0], [1], [0, 0, 1, 1], [], []>} : vector<128x4xf32>, vector<4x8xf32>, vector<128x8xf32> -> vector<128x8xf32>
    %60 = arith.addf %54, %59 : vector<128x8xf32>
    %c0_70 = arith.constant 0 : index
    %c2_71 = arith.constant 2 : index
    %c2_72 = arith.constant 2 : index
    %c0_73 = arith.constant 0 : index
    %61 = tpu.strided_load %arg0[%c0_70, %c2_71, %c2_72, %c0_73] {strides = array<i32: 1, 2, 2, 1>} : memref<2x18x18x4xf32, #tpu.memory_space<vmem>>, vector<2x8x8x4xf32>
    %62 = vector.shape_cast %61 : vector<2x8x8x4xf32> to vector<128x4xf32>
    %c10 = arith.constant 10 : index
    %c0_74 = arith.constant 0 : index
    %c0_75 = arith.constant 0 : index
    %63 = vector.load %arg1[%c10, %c0_74, %c0_75] : memref<16x4x8xf32, #tpu.memory_space<vmem>>, vector<1x4x8xf32>
    %64 = vector.shape_cast %63 : vector<1x4x8xf32> to vector<4x8xf32>
    %cst_76 = arith.constant dense<0.000000e+00> : vector<128x8xf32>
    %65 = tpu.matmul %62, %64, %cst_76 {dimension_numbers = #tpu.dot_dimension_numbers<[1], [0], [0], [1], [0, 0, 1, 1], [], []>} : vector<128x4xf32>, vector<4x8xf32>, vector<128x8xf32> -> vector<128x8xf32>
    %66 = arith.addf %60, %65 : vector<128x8xf32>
    %c0_77 = arith.constant 0 : index
    %c2_78 = arith.constant 2 : index
    %c3_79 = arith.constant 3 : index
    %c0_80 = arith.constant 0 : index
    %67 = tpu.strided_load %arg0[%c0_77, %c2_78, %c3_79, %c0_80] {strides = array<i32: 1, 2, 2, 1>} : memref<2x18x18x4xf32, #tpu.memory_space<vmem>>, vector<2x8x8x4xf32>
    %68 = vector.shape_cast %67 : vector<2x8x8x4xf32> to vector<128x4xf32>
    %c11 = arith.constant 11 : index
    %c0_81 = arith.constant 0 : index
    %c0_82 = arith.constant 0 : index
    %69 = vector.load %arg1[%c11, %c0_81, %c0_82] : memref<16x4x8xf32, #tpu.memory_space<vmem>>, vector<1x4x8xf32>
    %70 = vector.shape_cast %69 : vector<1x4x8xf32> to vector<4x8xf32>
    %cst_83 = arith.constant dense<0.000000e+00> : vector<128x8xf32>
    %71 = tpu.matmul %68, %70, %cst_83 {dimension_numbers = #tpu.dot_dimension_numbers<[1], [0], [0], [1], [0, 0, 1, 1], [], []>} : vector<128x4xf32>, vector<4x8xf32>, vector<128x8xf32> -> vector<128x8xf32>
    %72 = arith.addf %66, %71 : vector<128x8xf32>
    %c0_84 = arith.constant 0 : index
    %c3_85 = arith.constant 3 : index
    %c0_86 = arith.constant 0 : index
    %c0_87 = arith.constant 0 : index
    %73 = tpu.strided_load %arg0[%c0_84, %c3_85, %c0_86, %c0_87] {strides = array<i32: 1, 2, 2, 1>} : memref<2x18x18x4xf32, #tpu.memory_space<vmem>>, vector<2x8x8x4xf32>
    %74 = vector.shape_cast %73 : vector<2x8x8x4xf32> to vector<128x4xf32>
    %c12 = arith.constant 12 : index
    %c0_88 = arith.constant 0 : index
    %c0_89 = arith.constant 0 : index
    %75 = vector.load %arg1[%c12, %c0_88, %c0_89] : memref<16x4x8xf32, #tpu.memory_space<vmem>>, vector<1x4x8xf32>
    %76 = vector.shape_cast %75 : vector<1x4x8xf32> to vector<4x8xf32>
    %cst_90 = arith.constant dense<0.000000e+00> : vector<128x8xf32>
    %77 = tpu.matmul %74, %76, %cst_90 {dimension_numbers = #tpu.dot_dimension_numbers<[1], [0], [0], [1], [0, 0, 1, 1], [], []>} : vector<128x4xf32>, vector<4x8xf32>, vector<128x8xf32> -> vector<128x8xf32>
    %78 = arith.addf %72, %77 : vector<128x8xf32>
    %c0_91 = arith.constant 0 : index
    %c3_92 = arith.constant 3 : index
    %c1_93 = arith.constant 1 : index
    %c0_94 = arith.constant 0 : index
    %79 = tpu.strided_load %arg0[%c0_91, %c3_92, %c1_93, %c0_94] {strides = array<i32: 1, 2, 2, 1>} : memref<2x18x18x4xf32, #tpu.memory_space<vmem>>, vector<2x8x8x4xf32>
    %80 = vector.shape_cast %79 : vector<2x8x8x4xf32> to vector<128x4xf32>
    %c13 = arith.constant 13 : index
    %c0_95 = arith.constant 0 : index
    %c0_96 = arith.constant 0 : index
    %81 = vector.load %arg1[%c13, %c0_95, %c0_96] : memref<16x4x8xf32, #tpu.memory_space<vmem>>, vector<1x4x8xf32>
    %82 = vector.shape_cast %81 : vector<1x4x8xf32> to vector<4x8xf32>
    %cst_97 = arith.constant dense<0.000000e+00> : vector<128x8xf32>
    %83 = tpu.matmul %80, %82, %cst_97 {dimension_numbers = #tpu.dot_dimension_numbers<[1], [0], [0], [1], [0, 0, 1, 1], [], []>} : vector<128x4xf32>, vector<4x8xf32>, vector<128x8xf32> -> vector<128x8xf32>
    %84 = arith.addf %78, %83 : vector<128x8xf32>
    %c0_98 = arith.constant 0 : index
    %c3_99 = arith.constant 3 : index
    %c2_100 = arith.constant 2 : index
    %c0_101 = arith.constant 0 : index
    %85 = tpu.strided_load %arg0[%c0_98, %c3_99, %c2_100, %c0_101] {strides = array<i32: 1, 2, 2, 1>} : memref<2x18x18x4xf32, #tpu.memory_space<vmem>>, vector<2x8x8x4xf32>
    %86 = vector.shape_cast %85 : vector<2x8x8x4xf32> to vector<128x4xf32>
    %c14 = arith.constant 14 : index
    %c0_102 = arith.constant 0 : index
    %c0_103 = arith.constant 0 : index
    %87 = vector.load %arg1[%c14, %c0_102, %c0_103] : memref<16x4x8xf32, #tpu.memory_space<vmem>>, vector<1x4x8xf32>
    %88 = vector.shape_cast %87 : vector<1x4x8xf32> to vector<4x8xf32>
    %cst_104 = arith.constant dense<0.000000e+00> : vector<128x8xf32>
    %89 = tpu.matmul %86, %88, %cst_104 {dimension_numbers = #tpu.dot_dimension_numbers<[1], [0], [0], [1], [0, 0, 1, 1], [], []>} : vector<128x4xf32>, vector<4x8xf32>, vector<128x8xf32> -> vector<128x8xf32>
    %90 = arith.addf %84, %89 : vector<128x8xf32>
    %c0_105 = arith.constant 0 : index
    %c3_106 = arith.constant 3 : index
    %c3_107 = arith.constant 3 : index
    %c0_108 = arith.constant 0 : index
    %91 = tpu.strided_load %arg0[%c0_105, %c3_106, %c3_107, %c0_108] {strides = array<i32: 1, 2, 2, 1>} : memref<2x18x18x4xf32, #tpu.memory_space<vmem>>, vector<2x8x8x4xf32>
    %92 = vector.shape_cast %91 : vector<2x8x8x4xf32> to vector<128x4xf32>
    %c15 = arith.constant 15 : index
    %c0_109 = arith.constant 0 : index
    %c0_110 = arith.constant 0 : index
    %93 = vector.load %arg1[%c15, %c0_109, %c0_110] : memref<16x4x8xf32, #tpu.memory_space<vmem>>, vector<1x4x8xf32>
    %94 = vector.shape_cast %93 : vector<1x4x8xf32> to vector<4x8xf32>
    %cst_111 = arith.constant dense<0.000000e+00> : vector<128x8xf32>
    %95 = tpu.matmul %92, %94, %cst_111 {dimension_numbers = #tpu.dot_dimension_numbers<[1], [0], [0], [1], [0, 0, 1, 1], [], []>} : vector<128x4xf32>, vector<4x8xf32>, vector<128x8xf32> -> vector<128x8xf32>
    %96 = arith.addf %90, %95 : vector<128x8xf32>
    %c0_112 = arith.constant 0 : index
    %c0_113 = arith.constant 0 : index
    %97 = vector.load %arg2[%c0_112, %c0_113] : memref<1x8xf32, #tpu.memory_space<vmem>>, vector<1x8xf32>
    %98 = vector.broadcast %97 : vector<1x8xf32> to vector<128x8xf32>
    %99 = arith.addf %96, %98 : vector<128x8xf32>
    %cst_114 = arith.constant 0.000000e+00 : f32
    %100 = vector.broadcast %cst_114 : f32 to vector<128x8xf32>
    %101 = arith.cmpf oge, %99, %100 : vector<128x8xf32>
    %cst_115 = arith.constant 2.000000e-01 : f32
    %102 = vector.broadcast %cst_115 : f32 to vector<128x8xf32>
    %103 = arith.mulf %102, %99 : vector<128x8xf32>
    %104 = arith.select %101, %99, %103 : vector<128x8xi1>, vector<128x8xf32>
    %105 = vector.shape_cast %104 : vector<128x8xf32> to vector<2x8x8x8xf32>
    %cst_116 = arith.constant 0.000000e+00 : f32
    %106 = vector.broadcast %cst_116 : f32 to vector<2x10x10x8xf32>
    %c0_117 = arith.constant 0 : index
    %c0_118 = arith.constant 0 : index
    %c0_119 = arith.constant 0 : index
    %c0_120 = arith.constant 0 : index
    %107 = vector.load %arg10[%c0_117, %c0_118, %c0_119, %c0_120] : memref<2x10x10x8xf32, #tpu.memory_space<vmem>>, vector<2x10x10x8xf32>
    tpu.vector_store %arg10[%c0_117, %c0_118, %c0_119, %c0_120], %106 {strides = array<i32>} : memref<2x10x10x8xf32, #tpu.memory_space<vmem>>, vector<2x10x10x8xf32>,
    %c0_121 = arith.constant 0 : index
    %c1_122 = arith.constant 1 : index
    %c1_123 = arith.constant 1 : index
    %c0_124 = arith.constant 0 : index
    %108 = vector.load %arg10[%c0_121, %c1_122, %c1_123, %c0_124] : memref<2x10x10x8xf32, #tpu.memory_space<vmem>>, vector<2x8x8x8xf32>
    tpu.vector_store %arg10[%c0_121, %c1_122, %c1_123, %c0_124], %105 {strides = array<i32>} : memref<2x10x10x8xf32, #tpu.memory_space<vmem>>, vector<2x8x8x8xf32>,
    %cst_125 = arith.constant 0.000000e+00 : f32
    %109 = vector.broadcast %cst_125 : f32 to vector<32x16xf32>
    %c0_126 = arith.constant 0 : index
    %c0_127 = arith.constant 0 : index
    %c0_128 = arith.constant 0 : index
    %c0_129 = arith.constant 0 : index
    %110 = tpu.strided_load %arg10[%c0_126, %c0_127, %c0_128, %c0_129] {strides = array<i32: 1, 2, 2, 1>} : memref<2x10x10x8xf32, #tpu.memory_space<vmem>>, vector<2x4x4x8xf32>
    %111 = vector.shape_cast %110 : vector<2x4x4x8xf32> to vector<32x8xf32>
    %c0_130 = arith.constant 0 : index
    %c0_131 = arith.constant 0 : index
    %c0_132 = arith.constant 0 : index
    %112 = vector.load %arg3[%c0_130, %c0_131, %c0_132] : memref<16x8x16xf32, #tpu.memory_space<vmem>>, vector<1x8x16xf32>
    %113 = vector.shape_cast %112 : vector<1x8x16xf32> to vector<8x16xf32>
    %cst_133 = arith.constant dense<0.000000e+00> : vector<32x16xf32>
    %114 = tpu.matmul %111, %113, %cst_133 {dimension_numbers = #tpu.dot_dimension_numbers<[1], [0], [0], [1], [0, 0, 1, 1], [], []>} : vector<32x8xf32>, vector<8x16xf32>, vector<32x16xf32> -> vector<32x16xf32>
    %115 = arith.addf %109, %114 : vector<32x16xf32>
    %c0_134 = arith.constant 0 : index
    %c0_135 = arith.constant 0 : index
    %c1_136 = arith.constant 1 : index
    %c0_137 = arith.constant 0 : index
    %116 = tpu.strided_load %arg10[%c0_134, %c0_135, %c1_136, %c0_137] {strides = array<i32: 1, 2, 2, 1>} : memref<2x10x10x8xf32, #tpu.memory_space<vmem>>, vector<2x4x4x8xf32>
    %117 = vector.shape_cast %116 : vector<2x4x4x8xf32> to vector<32x8xf32>
    %c1_138 = arith.constant 1 : index
    %c0_139 = arith.constant 0 : index
    %c0_140 = arith.constant 0 : index
    %118 = vector.load %arg3[%c1_138, %c0_139, %c0_140] : memref<16x8x16xf32, #tpu.memory_space<vmem>>, vector<1x8x16xf32>
    %119 = vector.shape_cast %118 : vector<1x8x16xf32> to vector<8x16xf32>
    %cst_141 = arith.constant dense<0.000000e+00> : vector<32x16xf32>
    %120 = tpu.matmul %117, %119, %cst_141 {dimension_numbers = #tpu.dot_dimension_numbers<[1], [0], [0], [1], [0, 0, 1, 1], [], []>} : vector<32x8xf32>, vector<8x16xf32>, vector<32x16xf32> -> vector<32x16xf32>
    %121 = arith.addf %115, %120 : vector<32x16xf32>
    %c0_142 = arith.constant 0 : index
    %c0_143 = arith.constant 0 : index
    %c2_144 = arith.constant 2 : index
    %c0_145 = arith.constant 0 : index
    %122 = tpu.strided_load %arg10[%c0_142, %c0_143, %c2_144, %c0_145] {strides = array<i32: 1, 2, 2, 1>} : memref<2x10x10x8xf32, #tpu.memory_space<vmem>>, vector<2x4x4x8xf32>
    %123 = vector.shape_cast %122 : vector<2x4x4x8xf32> to vector<32x8xf32>
    %c2_146 = arith.constant 2 : index
    %c0_147 = arith.constant 0 : index
    %c0_148 = arith.constant 0 : index
    %124 = vector.load %arg3[%c2_146, %c0_147, %c0_148] : memref<16x8x16xf32, #tpu.memory_space<vmem>>, vector<1x8x16xf32>
    %125 = vector.shape_cast %124 : vector<1x8x16xf32> to vector<8x16xf32>
    %cst_149 = arith.constant dense<0.000000e+00> : vector<32x16xf32>
    %126 = tpu.matmul %123, %125, %cst_149 {dimension_numbers = #tpu.dot_dimension_numbers<[1], [0], [0], [1], [0, 0, 1, 1], [], []>} : vector<32x8xf32>, vector<8x16xf32>, vector<32x16xf32> -> vector<32x16xf32>
    %127 = arith.addf %121, %126 : vector<32x16xf32>
    %c0_150 = arith.constant 0 : index
    %c0_151 = arith.constant 0 : index
    %c3_152 = arith.constant 3 : index
    %c0_153 = arith.constant 0 : index
    %128 = tpu.strided_load %arg10[%c0_150, %c0_151, %c3_152, %c0_153] {strides = array<i32: 1, 2, 2, 1>} : memref<2x10x10x8xf32, #tpu.memory_space<vmem>>, vector<2x4x4x8xf32>
    %129 = vector.shape_cast %128 : vector<2x4x4x8xf32> to vector<32x8xf32>
    %c3_154 = arith.constant 3 : index
    %c0_155 = arith.constant 0 : index
    %c0_156 = arith.constant 0 : index
    %130 = vector.load %arg3[%c3_154, %c0_155, %c0_156] : memref<16x8x16xf32, #tpu.memory_space<vmem>>, vector<1x8x16xf32>
    %131 = vector.shape_cast %130 : vector<1x8x16xf32> to vector<8x16xf32>
    %cst_157 = arith.constant dense<0.000000e+00> : vector<32x16xf32>
    %132 = tpu.matmul %129, %131, %cst_157 {dimension_numbers = #tpu.dot_dimension_numbers<[1], [0], [0], [1], [0, 0, 1, 1], [], []>} : vector<32x8xf32>, vector<8x16xf32>, vector<32x16xf32> -> vector<32x16xf32>
    %133 = arith.addf %127, %132 : vector<32x16xf32>
    %c0_158 = arith.constant 0 : index
    %c1_159 = arith.constant 1 : index
    %c0_160 = arith.constant 0 : index
    %c0_161 = arith.constant 0 : index
    %134 = tpu.strided_load %arg10[%c0_158, %c1_159, %c0_160, %c0_161] {strides = array<i32: 1, 2, 2, 1>} : memref<2x10x10x8xf32, #tpu.memory_space<vmem>>, vector<2x4x4x8xf32>
    %135 = vector.shape_cast %134 : vector<2x4x4x8xf32> to vector<32x8xf32>
    %c4_162 = arith.constant 4 : index
    %c0_163 = arith.constant 0 : index
    %c0_164 = arith.constant 0 : index
    %136 = vector.load %arg3[%c4_162, %c0_163, %c0_164] : memref<16x8x16xf32, #tpu.memory_space<vmem>>, vector<1x8x16xf32>
    %137 = vector.shape_cast %136 : vector<1x8x16xf32> to vector<8x16xf32>
    %cst_165 = arith.constant dense<0.000000e+00> : vector<32x16xf32>
    %138 = tpu.matmul %135, %137, %cst_165 {dimension_numbers = #tpu.dot_dimension_numbers<[1], [0], [0], [1], [0, 0, 1, 1], [], []>} : vector<32x8xf32>, vector<8x16xf32>, vector<32x16xf32> -> vector<32x16xf32>
    %139 = arith.addf %133, %138 : vector<32x16xf32>
    %c0_166 = arith.constant 0 : index
    %c1_167 = arith.constant 1 : index
    %c1_168 = arith.constant 1 : index
    %c0_169 = arith.constant 0 : index
    %140 = tpu.strided_load %arg10[%c0_166, %c1_167, %c1_168, %c0_169] {strides = array<i32: 1, 2, 2, 1>} : memref<2x10x10x8xf32, #tpu.memory_space<vmem>>, vector<2x4x4x8xf32>
    %141 = vector.shape_cast %140 : vector<2x4x4x8xf32> to vector<32x8xf32>
    %c5_170 = arith.constant 5 : index
    %c0_171 = arith.constant 0 : index
    %c0_172 = arith.constant 0 : index
    %142 = vector.load %arg3[%c5_170, %c0_171, %c0_172] : memref<16x8x16xf32, #tpu.memory_space<vmem>>, vector<1x8x16xf32>
    %143 = vector.shape_cast %142 : vector<1x8x16xf32> to vector<8x16xf32>
    %cst_173 = arith.constant dense<0.000000e+00> : vector<32x16xf32>
    %144 = tpu.matmul %141, %143, %cst_173 {dimension_numbers = #tpu.dot_dimension_numbers<[1], [0], [0], [1], [0, 0, 1, 1], [], []>} : vector<32x8xf32>, vector<8x16xf32>, vector<32x16xf32> -> vector<32x16xf32>
    %145 = arith.addf %139, %144 : vector<32x16xf32>
    %c0_174 = arith.constant 0 : index
    %c1_175 = arith.constant 1 : index
    %c2_176 = arith.constant 2 : index
    %c0_177 = arith.constant 0 : index
    %146 = tpu.strided_load %arg10[%c0_174, %c1_175, %c2_176, %c0_177] {strides = array<i32: 1, 2, 2, 1>} : memref<2x10x10x8xf32, #tpu.memory_space<vmem>>, vector<2x4x4x8xf32>
    %147 = vector.shape_cast %146 : vector<2x4x4x8xf32> to vector<32x8xf32>
    %c6_178 = arith.constant 6 : index
    %c0_179 = arith.constant 0 : index
    %c0_180 = arith.constant 0 : index
    %148 = vector.load %arg3[%c6_178, %c0_179, %c0_180] : memref<16x8x16xf32, #tpu.memory_space<vmem>>, vector<1x8x16xf32>
    %149 = vector.shape_cast %148 : vector<1x8x16xf32> to vector<8x16xf32>
    %cst_181 = arith.constant dense<0.000000e+00> : vector<32x16xf32>
    %150 = tpu.matmul %147, %149, %cst_181 {dimension_numbers = #tpu.dot_dimension_numbers<[1], [0], [0], [1], [0, 0, 1, 1], [], []>} : vector<32x8xf32>, vector<8x16xf32>, vector<32x16xf32> -> vector<32x16xf32>
    %151 = arith.addf %145, %150 : vector<32x16xf32>
    %c0_182 = arith.constant 0 : index
    %c1_183 = arith.constant 1 : index
    %c3_184 = arith.constant 3 : index
    %c0_185 = arith.constant 0 : index
    %152 = tpu.strided_load %arg10[%c0_182, %c1_183, %c3_184, %c0_185] {strides = array<i32: 1, 2, 2, 1>} : memref<2x10x10x8xf32, #tpu.memory_space<vmem>>, vector<2x4x4x8xf32>
    %153 = vector.shape_cast %152 : vector<2x4x4x8xf32> to vector<32x8xf32>
    %c7_186 = arith.constant 7 : index
    %c0_187 = arith.constant 0 : index
    %c0_188 = arith.constant 0 : index
    %154 = vector.load %arg3[%c7_186, %c0_187, %c0_188] : memref<16x8x16xf32, #tpu.memory_space<vmem>>, vector<1x8x16xf32>
    %155 = vector.shape_cast %154 : vector<1x8x16xf32> to vector<8x16xf32>
    %cst_189 = arith.constant dense<0.000000e+00> : vector<32x16xf32>
    %156 = tpu.matmul %153, %155, %cst_189 {dimension_numbers = #tpu.dot_dimension_numbers<[1], [0], [0], [1], [0, 0, 1, 1], [], []>} : vector<32x8xf32>, vector<8x16xf32>, vector<32x16xf32> -> vector<32x16xf32>
    %157 = arith.addf %151, %156 : vector<32x16xf32>
    %c0_190 = arith.constant 0 : index
    %c2_191 = arith.constant 2 : index
    %c0_192 = arith.constant 0 : index
    %c0_193 = arith.constant 0 : index
    %158 = tpu.strided_load %arg10[%c0_190, %c2_191, %c0_192, %c0_193] {strides = array<i32: 1, 2, 2, 1>} : memref<2x10x10x8xf32, #tpu.memory_space<vmem>>, vector<2x4x4x8xf32>
    %159 = vector.shape_cast %158 : vector<2x4x4x8xf32> to vector<32x8xf32>
    %c8_194 = arith.constant 8 : index
    %c0_195 = arith.constant 0 : index
    %c0_196 = arith.constant 0 : index
    %160 = vector.load %arg3[%c8_194, %c0_195, %c0_196] : memref<16x8x16xf32, #tpu.memory_space<vmem>>, vector<1x8x16xf32>
    %161 = vector.shape_cast %160 : vector<1x8x16xf32> to vector<8x16xf32>
    %cst_197 = arith.constant dense<0.000000e+00> : vector<32x16xf32>
    %162 = tpu.matmul %159, %161, %cst_197 {dimension_numbers = #tpu.dot_dimension_numbers<[1], [0], [0], [1], [0, 0, 1, 1], [], []>} : vector<32x8xf32>, vector<8x16xf32>, vector<32x16xf32> -> vector<32x16xf32>
    %163 = arith.addf %157, %162 : vector<32x16xf32>
    %c0_198 = arith.constant 0 : index
    %c2_199 = arith.constant 2 : index
    %c1_200 = arith.constant 1 : index
    %c0_201 = arith.constant 0 : index
    %164 = tpu.strided_load %arg10[%c0_198, %c2_199, %c1_200, %c0_201] {strides = array<i32: 1, 2, 2, 1>} : memref<2x10x10x8xf32, #tpu.memory_space<vmem>>, vector<2x4x4x8xf32>
    %165 = vector.shape_cast %164 : vector<2x4x4x8xf32> to vector<32x8xf32>
    %c9_202 = arith.constant 9 : index
    %c0_203 = arith.constant 0 : index
    %c0_204 = arith.constant 0 : index
    %166 = vector.load %arg3[%c9_202, %c0_203, %c0_204] : memref<16x8x16xf32, #tpu.memory_space<vmem>>, vector<1x8x16xf32>
    %167 = vector.shape_cast %166 : vector<1x8x16xf32> to vector<8x16xf32>
    %cst_205 = arith.constant dense<0.000000e+00> : vector<32x16xf32>
    %168 = tpu.matmul %165, %167, %cst_205 {dimension_numbers = #tpu.dot_dimension_numbers<[1], [0], [0], [1], [0, 0, 1, 1], [], []>} : vector<32x8xf32>, vector<8x16xf32>, vector<32x16xf32> -> vector<32x16xf32>
    %169 = arith.addf %163, %168 : vector<32x16xf32>
    %c0_206 = arith.constant 0 : index
    %c2_207 = arith.constant 2 : index
    %c2_208 = arith.constant 2 : index
    %c0_209 = arith.constant 0 : index
    %170 = tpu.strided_load %arg10[%c0_206, %c2_207, %c2_208, %c0_209] {strides = array<i32: 1, 2, 2, 1>} : memref<2x10x10x8xf32, #tpu.memory_space<vmem>>, vector<2x4x4x8xf32>
    %171 = vector.shape_cast %170 : vector<2x4x4x8xf32> to vector<32x8xf32>
    %c10_210 = arith.constant 10 : index
    %c0_211 = arith.constant 0 : index
    %c0_212 = arith.constant 0 : index
    %172 = vector.load %arg3[%c10_210, %c0_211, %c0_212] : memref<16x8x16xf32, #tpu.memory_space<vmem>>, vector<1x8x16xf32>
    %173 = vector.shape_cast %172 : vector<1x8x16xf32> to vector<8x16xf32>
    %cst_213 = arith.constant dense<0.000000e+00> : vector<32x16xf32>
    %174 = tpu.matmul %171, %173, %cst_213 {dimension_numbers = #tpu.dot_dimension_numbers<[1], [0], [0], [1], [0, 0, 1, 1], [], []>} : vector<32x8xf32>, vector<8x16xf32>, vector<32x16xf32> -> vector<32x16xf32>
    %175 = arith.addf %169, %174 : vector<32x16xf32>
    %c0_214 = arith.constant 0 : index
    %c2_215 = arith.constant 2 : index
    %c3_216 = arith.constant 3 : index
    %c0_217 = arith.constant 0 : index
    %176 = tpu.strided_load %arg10[%c0_214, %c2_215, %c3_216, %c0_217] {strides = array<i32: 1, 2, 2, 1>} : memref<2x10x10x8xf32, #tpu.memory_space<vmem>>, vector<2x4x4x8xf32>
    %177 = vector.shape_cast %176 : vector<2x4x4x8xf32> to vector<32x8xf32>
    %c11_218 = arith.constant 11 : index
    %c0_219 = arith.constant 0 : index
    %c0_220 = arith.constant 0 : index
    %178 = vector.load %arg3[%c11_218, %c0_219, %c0_220] : memref<16x8x16xf32, #tpu.memory_space<vmem>>, vector<1x8x16xf32>
    %179 = vector.shape_cast %178 : vector<1x8x16xf32> to vector<8x16xf32>
    %cst_221 = arith.constant dense<0.000000e+00> : vector<32x16xf32>
    %180 = tpu.matmul %177, %179, %cst_221 {dimension_numbers = #tpu.dot_dimension_numbers<[1], [0], [0], [1], [0, 0, 1, 1], [], []>} : vector<32x8xf32>, vector<8x16xf32>, vector<32x16xf32> -> vector<32x16xf32>
    %181 = arith.addf %175, %180 : vector<32x16xf32>
    %c0_222 = arith.constant 0 : index
    %c3_223 = arith.constant 3 : index
    %c0_224 = arith.constant 0 : index
    %c0_225 = arith.constant 0 : index
    %182 = tpu.strided_load %arg10[%c0_222, %c3_223, %c0_224, %c0_225] {strides = array<i32: 1, 2, 2, 1>} : memref<2x10x10x8xf32, #tpu.memory_space<vmem>>, vector<2x4x4x8xf32>
    %183 = vector.shape_cast %182 : vector<2x4x4x8xf32> to vector<32x8xf32>
    %c12_226 = arith.constant 12 : index
    %c0_227 = arith.constant 0 : index
    %c0_228 = arith.constant 0 : index
    %184 = vector.load %arg3[%c12_226, %c0_227, %c0_228] : memref<16x8x16xf32, #tpu.memory_space<vmem>>, vector<1x8x16xf32>
    %185 = vector.shape_cast %184 : vector<1x8x16xf32> to vector<8x16xf32>
    %cst_229 = arith.constant dense<0.000000e+00> : vector<32x16xf32>
    %186 = tpu.matmul %183, %185, %cst_229 {dimension_numbers = #tpu.dot_dimension_numbers<[1], [0], [0], [1], [0, 0, 1, 1], [], []>} : vector<32x8xf32>, vector<8x16xf32>, vector<32x16xf32> -> vector<32x16xf32>
    %187 = arith.addf %181, %186 : vector<32x16xf32>
    %c0_230 = arith.constant 0 : index
    %c3_231 = arith.constant 3 : index
    %c1_232 = arith.constant 1 : index
    %c0_233 = arith.constant 0 : index
    %188 = tpu.strided_load %arg10[%c0_230, %c3_231, %c1_232, %c0_233] {strides = array<i32: 1, 2, 2, 1>} : memref<2x10x10x8xf32, #tpu.memory_space<vmem>>, vector<2x4x4x8xf32>
    %189 = vector.shape_cast %188 : vector<2x4x4x8xf32> to vector<32x8xf32>
    %c13_234 = arith.constant 13 : index
    %c0_235 = arith.constant 0 : index
    %c0_236 = arith.constant 0 : index
    %190 = vector.load %arg3[%c13_234, %c0_235, %c0_236] : memref<16x8x16xf32, #tpu.memory_space<vmem>>, vector<1x8x16xf32>
    %191 = vector.shape_cast %190 : vector<1x8x16xf32> to vector<8x16xf32>
    %cst_237 = arith.constant dense<0.000000e+00> : vector<32x16xf32>
    %192 = tpu.matmul %189, %191, %cst_237 {dimension_numbers = #tpu.dot_dimension_numbers<[1], [0], [0], [1], [0, 0, 1, 1], [], []>} : vector<32x8xf32>, vector<8x16xf32>, vector<32x16xf32> -> vector<32x16xf32>
    %193 = arith.addf %187, %192 : vector<32x16xf32>
    %c0_238 = arith.constant 0 : index
    %c3_239 = arith.constant 3 : index
    %c2_240 = arith.constant 2 : index
    %c0_241 = arith.constant 0 : index
    %194 = tpu.strided_load %arg10[%c0_238, %c3_239, %c2_240, %c0_241] {strides = array<i32: 1, 2, 2, 1>} : memref<2x10x10x8xf32, #tpu.memory_space<vmem>>, vector<2x4x4x8xf32>
    %195 = vector.shape_cast %194 : vector<2x4x4x8xf32> to vector<32x8xf32>
    %c14_242 = arith.constant 14 : index
    %c0_243 = arith.constant 0 : index
    %c0_244 = arith.constant 0 : index
    %196 = vector.load %arg3[%c14_242, %c0_243, %c0_244] : memref<16x8x16xf32, #tpu.memory_space<vmem>>, vector<1x8x16xf32>
    %197 = vector.shape_cast %196 : vector<1x8x16xf32> to vector<8x16xf32>
    %cst_245 = arith.constant dense<0.000000e+00> : vector<32x16xf32>
    %198 = tpu.matmul %195, %197, %cst_245 {dimension_numbers = #tpu.dot_dimension_numbers<[1], [0], [0], [1], [0, 0, 1, 1], [], []>} : vector<32x8xf32>, vector<8x16xf32>, vector<32x16xf32> -> vector<32x16xf32>
    %199 = arith.addf %193, %198 : vector<32x16xf32>
    %c0_246 = arith.constant 0 : index
    %c3_247 = arith.constant 3 : index
    %c3_248 = arith.constant 3 : index
    %c0_249 = arith.constant 0 : index
    %200 = tpu.strided_load %arg10[%c0_246, %c3_247, %c3_248, %c0_249] {strides = array<i32: 1, 2, 2, 1>} : memref<2x10x10x8xf32, #tpu.memory_space<vmem>>, vector<2x4x4x8xf32>
    %201 = vector.shape_cast %200 : vector<2x4x4x8xf32> to vector<32x8xf32>
    %c15_250 = arith.constant 15 : index
    %c0_251 = arith.constant 0 : index
    %c0_252 = arith.constant 0 : index
    %202 = vector.load %arg3[%c15_250, %c0_251, %c0_252] : memref<16x8x16xf32, #tpu.memory_space<vmem>>, vector<1x8x16xf32>
    %203 = vector.shape_cast %202 : vector<1x8x16xf32> to vector<8x16xf32>
    %cst_253 = arith.constant dense<0.000000e+00> : vector<32x16xf32>
    %204 = tpu.matmul %201, %203, %cst_253 {dimension_numbers = #tpu.dot_dimension_numbers<[1], [0], [0], [1], [0, 0, 1, 1], [], []>} : vector<32x8xf32>, vector<8x16xf32>, vector<32x16xf32> -> vector<32x16xf32>
    %205 = arith.addf %199, %204 : vector<32x16xf32>
    %c0_254 = arith.constant 0 : index
    %c0_255 = arith.constant 0 : index
    %206 = vector.load %arg4[%c0_254, %c0_255] : memref<1x16xf32, #tpu.memory_space<vmem>>, vector<1x16xf32>
    %207 = vector.broadcast %206 : vector<1x16xf32> to vector<32x16xf32>
    %208 = arith.addf %205, %207 : vector<32x16xf32>
    %cst_256 = arith.constant 0.000000e+00 : f32
    %209 = vector.broadcast %cst_256 : f32 to vector<32x16xf32>
    %210 = arith.cmpf oge, %208, %209 : vector<32x16xf32>
    %cst_257 = arith.constant 2.000000e-01 : f32
    %211 = vector.broadcast %cst_257 : f32 to vector<32x16xf32>
    %212 = arith.mulf %211, %208 : vector<32x16xf32>
    %213 = arith.select %210, %208, %212 : vector<32x16xi1>, vector<32x16xf32>
    %214 = vector.shape_cast %213 : vector<32x16xf32> to vector<2x16x16xf32>
    %cst_258 = arith.constant dense<0.000000e+00> : vector<2x16xf32>
    %215 = vector.multi_reduction <add>, %214, %cst_258 [1] : vector<2x16x16xf32> to vector<2x16xf32>
    %216 = vector.shape_cast %215 : vector<2x16xf32> to vector<2x1x16xf32>
    %cst_259 = arith.constant 1.600000e+01 : f32
    %217 = vector.broadcast %cst_259 : f32 to vector<2x1x16xf32>
    %218 = arith.divf %216, %217 : vector<2x1x16xf32>
    %219 = arith.mulf %214, %214 : vector<2x16x16xf32>
    %cst_260 = arith.constant dense<0.000000e+00> : vector<2x16xf32>
    %220 = vector.multi_reduction <add>, %219, %cst_260 [1] : vector<2x16x16xf32> to vector<2x16xf32>
    %221 = vector.shape_cast %220 : vector<2x16xf32> to vector<2x1x16xf32>
    %cst_261 = arith.constant 1.600000e+01 : f32
    %222 = vector.broadcast %cst_261 : f32 to vector<2x1x16xf32>
    %223 = arith.divf %221, %222 : vector<2x1x16xf32>
    %224 = arith.mulf %218, %218 : vector<2x1x16xf32>
    %225 = arith.subf %223, %224 : vector<2x1x16xf32>
    %226 = vector.broadcast %218 : vector<2x1x16xf32> to vector<2x16x16xf32>
    %227 = arith.subf %214, %226 : vector<2x16x16xf32>
    %cst_262 = arith.constant 9.99999974E-6 : f32
    %228 = vector.broadcast %cst_262 : f32 to vector<2x1x16xf32>
    %229 = arith.addf %225, %228 : vector<2x1x16xf32>
    %230 = math.rsqrt %229 : vector<2x1x16xf32>
    %231 = vector.broadcast %230 : vector<2x1x16xf32> to vector<2x16x16xf32>
    %232 = arith.mulf %227, %231 : vector<2x16x16xf32>
    %233 = vector.shape_cast %232 : vector<2x16x16xf32> to vector<32x16xf32>
    %234 = vector.shape_cast %233 : vector<32x16xf32> to vector<2x4x4x16xf32>
    %cst_263 = arith.constant 0.000000e+00 : f32
    %235 = vector.broadcast %cst_263 : f32 to vector<2x6x6x16xf32>
    %c0_264 = arith.constant 0 : index
    %c0_265 = arith.constant 0 : index
    %c0_266 = arith.constant 0 : index
    %c0_267 = arith.constant 0 : index
    %236 = vector.load %arg11[%c0_264, %c0_265, %c0_266, %c0_267] : memref<2x6x6x16xf32, #tpu.memory_space<vmem>>, vector<2x6x6x16xf32>
    tpu.vector_store %arg11[%c0_264, %c0_265, %c0_266, %c0_267], %235 {strides = array<i32>} : memref<2x6x6x16xf32, #tpu.memory_space<vmem>>, vector<2x6x6x16xf32>,
    %c0_268 = arith.constant 0 : index
    %c1_269 = arith.constant 1 : index
    %c1_270 = arith.constant 1 : index
    %c0_271 = arith.constant 0 : index
    %237 = vector.load %arg11[%c0_268, %c1_269, %c1_270, %c0_271] : memref<2x6x6x16xf32, #tpu.memory_space<vmem>>, vector<2x4x4x16xf32>
    tpu.vector_store %arg11[%c0_268, %c1_269, %c1_270, %c0_271], %234 {strides = array<i32>} : memref<2x6x6x16xf32, #tpu.memory_space<vmem>>, vector<2x4x4x16xf32>,
    %cst_272 = arith.constant 0.000000e+00 : f32
    %238 = vector.broadcast %cst_272 : f32 to vector<8x32xf32>
    %c0_273 = arith.constant 0 : index
    %c0_274 = arith.constant 0 : index
    %c0_275 = arith.constant 0 : index
    %c0_276 = arith.constant 0 : index
    %239 = tpu.strided_load %arg11[%c0_273, %c0_274, %c0_275, %c0_276] {strides = array<i32: 1, 2, 2, 1>} : memref<2x6x6x16xf32, #tpu.memory_space<vmem>>, vector<2x2x2x16xf32>
    %240 = vector.shape_cast %239 : vector<2x2x2x16xf32> to vector<8x16xf32>
    %c0_277 = arith.constant 0 : index
    %c0_278 = arith.constant 0 : index
    %c0_279 = arith.constant 0 : index
    %241 = vector.load %arg5[%c0_277, %c0_278, %c0_279] : memref<16x16x32xf32, #tpu.memory_space<vmem>>, vector<1x16x32xf32>
    %242 = vector.shape_cast %241 : vector<1x16x32xf32> to vector<16x32xf32>
    %cst_280 = arith.constant dense<0.000000e+00> : vector<8x32xf32>
    %243 = tpu.matmul %240, %242, %cst_280 {dimension_numbers = #tpu.dot_dimension_numbers<[1], [0], [0], [1], [0, 0, 1, 1], [], []>} : vector<8x16xf32>, vector<16x32xf32>, vector<8x32xf32> -> vector<8x32xf32>
    %244 = arith.addf %238, %243 : vector<8x32xf32>
    %c0_281 = arith.constant 0 : index
    %c0_282 = arith.constant 0 : index
    %c1_283 = arith.constant 1 : index
    %c0_284 = arith.constant 0 : index
    %245 = tpu.strided_load %arg11[%c0_281, %c0_282, %c1_283, %c0_284] {strides = array<i32: 1, 2, 2, 1>} : memref<2x6x6x16xf32, #tpu.memory_space<vmem>>, vector<2x2x2x16xf32>
    %246 = vector.shape_cast %245 : vector<2x2x2x16xf32> to vector<8x16xf32>
    %c1_285 = arith.constant 1 : index
    %c0_286 = arith.constant 0 : index
    %c0_287 = arith.constant 0 : index
    %247 = vector.load %arg5[%c1_285, %c0_286, %c0_287] : memref<16x16x32xf32, #tpu.memory_space<vmem>>, vector<1x16x32xf32>
    %248 = vector.shape_cast %247 : vector<1x16x32xf32> to vector<16x32xf32>
    %cst_288 = arith.constant dense<0.000000e+00> : vector<8x32xf32>
    %249 = tpu.matmul %246, %248, %cst_288 {dimension_numbers = #tpu.dot_dimension_numbers<[1], [0], [0], [1], [0, 0, 1, 1], [], []>} : vector<8x16xf32>, vector<16x32xf32>, vector<8x32xf32> -> vector<8x32xf32>
    %250 = arith.addf %244, %249 : vector<8x32xf32>
    %c0_289 = arith.constant 0 : index
    %c0_290 = arith.constant 0 : index
    %c2_291 = arith.constant 2 : index
    %c0_292 = arith.constant 0 : index
    %251 = tpu.strided_load %arg11[%c0_289, %c0_290, %c2_291, %c0_292] {strides = array<i32: 1, 2, 2, 1>} : memref<2x6x6x16xf32, #tpu.memory_space<vmem>>, vector<2x2x2x16xf32>
    %252 = vector.shape_cast %251 : vector<2x2x2x16xf32> to vector<8x16xf32>
    %c2_293 = arith.constant 2 : index
    %c0_294 = arith.constant 0 : index
    %c0_295 = arith.constant 0 : index
    %253 = vector.load %arg5[%c2_293, %c0_294, %c0_295] : memref<16x16x32xf32, #tpu.memory_space<vmem>>, vector<1x16x32xf32>
    %254 = vector.shape_cast %253 : vector<1x16x32xf32> to vector<16x32xf32>
    %cst_296 = arith.constant dense<0.000000e+00> : vector<8x32xf32>
    %255 = tpu.matmul %252, %254, %cst_296 {dimension_numbers = #tpu.dot_dimension_numbers<[1], [0], [0], [1], [0, 0, 1, 1], [], []>} : vector<8x16xf32>, vector<16x32xf32>, vector<8x32xf32> -> vector<8x32xf32>
    %256 = arith.addf %250, %255 : vector<8x32xf32>
    %c0_297 = arith.constant 0 : index
    %c0_298 = arith.constant 0 : index
    %c3_299 = arith.constant 3 : index
    %c0_300 = arith.constant 0 : index
    %257 = tpu.strided_load %arg11[%c0_297, %c0_298, %c3_299, %c0_300] {strides = array<i32: 1, 2, 2, 1>} : memref<2x6x6x16xf32, #tpu.memory_space<vmem>>, vector<2x2x2x16xf32>
    %258 = vector.shape_cast %257 : vector<2x2x2x16xf32> to vector<8x16xf32>
    %c3_301 = arith.constant 3 : index
    %c0_302 = arith.constant 0 : index
    %c0_303 = arith.constant 0 : index
    %259 = vector.load %arg5[%c3_301, %c0_302, %c0_303] : memref<16x16x32xf32, #tpu.memory_space<vmem>>, vector<1x16x32xf32>
    %260 = vector.shape_cast %259 : vector<1x16x32xf32> to vector<16x32xf32>
    %cst_304 = arith.constant dense<0.000000e+00> : vector<8x32xf32>
    %261 = tpu.matmul %258, %260, %cst_304 {dimension_numbers = #tpu.dot_dimension_numbers<[1], [0], [0], [1], [0, 0, 1, 1], [], []>} : vector<8x16xf32>, vector<16x32xf32>, vector<8x32xf32> -> vector<8x32xf32>
    %262 = arith.addf %256, %261 : vector<8x32xf32>
    %c0_305 = arith.constant 0 : index
    %c1_306 = arith.constant 1 : index
    %c0_307 = arith.constant 0 : index
    %c0_308 = arith.constant 0 : index
    %263 = tpu.strided_load %arg11[%c0_305, %c1_306, %c0_307, %c0_308] {strides = array<i32: 1, 2, 2, 1>} : memref<2x6x6x16xf32, #tpu.memory_space<vmem>>, vector<2x2x2x16xf32>
    %264 = vector.shape_cast %263 : vector<2x2x2x16xf32> to vector<8x16xf32>
    %c4_309 = arith.constant 4 : index
    %c0_310 = arith.constant 0 : index
    %c0_311 = arith.constant 0 : index
    %265 = vector.load %arg5[%c4_309, %c0_310, %c0_311] : memref<16x16x32xf32, #tpu.memory_space<vmem>>, vector<1x16x32xf32>
    %266 = vector.shape_cast %265 : vector<1x16x32xf32> to vector<16x32xf32>
    %cst_312 = arith.constant dense<0.000000e+00> : vector<8x32xf32>
    %267 = tpu.matmul %264, %266, %cst_312 {dimension_numbers = #tpu.dot_dimension_numbers<[1], [0], [0], [1], [0, 0, 1, 1], [], []>} : vector<8x16xf32>, vector<16x32xf32>, vector<8x32xf32> -> vector<8x32xf32>
    %268 = arith.addf %262, %267 : vector<8x32xf32>
    %c0_313 = arith.constant 0 : index
    %c1_314 = arith.constant 1 : index
    %c1_315 = arith.constant 1 : index
    %c0_316 = arith.constant 0 : index
    %269 = tpu.strided_load %arg11[%c0_313, %c1_314, %c1_315, %c0_316] {strides = array<i32: 1, 2, 2, 1>} : memref<2x6x6x16xf32, #tpu.memory_space<vmem>>, vector<2x2x2x16xf32>
    %270 = vector.shape_cast %269 : vector<2x2x2x16xf32> to vector<8x16xf32>
    %c5_317 = arith.constant 5 : index
    %c0_318 = arith.constant 0 : index
    %c0_319 = arith.constant 0 : index
    %271 = vector.load %arg5[%c5_317, %c0_318, %c0_319] : memref<16x16x32xf32, #tpu.memory_space<vmem>>, vector<1x16x32xf32>
    %272 = vector.shape_cast %271 : vector<1x16x32xf32> to vector<16x32xf32>
    %cst_320 = arith.constant dense<0.000000e+00> : vector<8x32xf32>
    %273 = tpu.matmul %270, %272, %cst_320 {dimension_numbers = #tpu.dot_dimension_numbers<[1], [0], [0], [1], [0, 0, 1, 1], [], []>} : vector<8x16xf32>, vector<16x32xf32>, vector<8x32xf32> -> vector<8x32xf32>
    %274 = arith.addf %268, %273 : vector<8x32xf32>
    %c0_321 = arith.constant 0 : index
    %c1_322 = arith.constant 1 : index
    %c2_323 = arith.constant 2 : index
    %c0_324 = arith.constant 0 : index
    %275 = tpu.strided_load %arg11[%c0_321, %c1_322, %c2_323, %c0_324] {strides = array<i32: 1, 2, 2, 1>} : memref<2x6x6x16xf32, #tpu.memory_space<vmem>>, vector<2x2x2x16xf32>
    %276 = vector.shape_cast %275 : vector<2x2x2x16xf32> to vector<8x16xf32>
    %c6_325 = arith.constant 6 : index
    %c0_326 = arith.constant 0 : index
    %c0_327 = arith.constant 0 : index
    %277 = vector.load %arg5[%c6_325, %c0_326, %c0_327] : memref<16x16x32xf32, #tpu.memory_space<vmem>>, vector<1x16x32xf32>
    %278 = vector.shape_cast %277 : vector<1x16x32xf32> to vector<16x32xf32>
    %cst_328 = arith.constant dense<0.000000e+00> : vector<8x32xf32>
    %279 = tpu.matmul %276, %278, %cst_328 {dimension_numbers = #tpu.dot_dimension_numbers<[1], [0], [0], [1], [0, 0, 1, 1], [], []>} : vector<8x16xf32>, vector<16x32xf32>, vector<8x32xf32> -> vector<8x32xf32>
    %280 = arith.addf %274, %279 : vector<8x32xf32>
    %c0_329 = arith.constant 0 : index
    %c1_330 = arith.constant 1 : index
    %c3_331 = arith.constant 3 : index
    %c0_332 = arith.constant 0 : index
    %281 = tpu.strided_load %arg11[%c0_329, %c1_330, %c3_331, %c0_332] {strides = array<i32: 1, 2, 2, 1>} : memref<2x6x6x16xf32, #tpu.memory_space<vmem>>, vector<2x2x2x16xf32>
    %282 = vector.shape_cast %281 : vector<2x2x2x16xf32> to vector<8x16xf32>
    %c7_333 = arith.constant 7 : index
    %c0_334 = arith.constant 0 : index
    %c0_335 = arith.constant 0 : index
    %283 = vector.load %arg5[%c7_333, %c0_334, %c0_335] : memref<16x16x32xf32, #tpu.memory_space<vmem>>, vector<1x16x32xf32>
    %284 = vector.shape_cast %283 : vector<1x16x32xf32> to vector<16x32xf32>
    %cst_336 = arith.constant dense<0.000000e+00> : vector<8x32xf32>
    %285 = tpu.matmul %282, %284, %cst_336 {dimension_numbers = #tpu.dot_dimension_numbers<[1], [0], [0], [1], [0, 0, 1, 1], [], []>} : vector<8x16xf32>, vector<16x32xf32>, vector<8x32xf32> -> vector<8x32xf32>
    %286 = arith.addf %280, %285 : vector<8x32xf32>
    %c0_337 = arith.constant 0 : index
    %c2_338 = arith.constant 2 : index
    %c0_339 = arith.constant 0 : index
    %c0_340 = arith.constant 0 : index
    %287 = tpu.strided_load %arg11[%c0_337, %c2_338, %c0_339, %c0_340] {strides = array<i32: 1, 2, 2, 1>} : memref<2x6x6x16xf32, #tpu.memory_space<vmem>>, vector<2x2x2x16xf32>
    %288 = vector.shape_cast %287 : vector<2x2x2x16xf32> to vector<8x16xf32>
    %c8_341 = arith.constant 8 : index
    %c0_342 = arith.constant 0 : index
    %c0_343 = arith.constant 0 : index
    %289 = vector.load %arg5[%c8_341, %c0_342, %c0_343] : memref<16x16x32xf32, #tpu.memory_space<vmem>>, vector<1x16x32xf32>
    %290 = vector.shape_cast %289 : vector<1x16x32xf32> to vector<16x32xf32>
    %cst_344 = arith.constant dense<0.000000e+00> : vector<8x32xf32>
    %291 = tpu.matmul %288, %290, %cst_344 {dimension_numbers = #tpu.dot_dimension_numbers<[1], [0], [0], [1], [0, 0, 1, 1], [], []>} : vector<8x16xf32>, vector<16x32xf32>, vector<8x32xf32> -> vector<8x32xf32>
    %292 = arith.addf %286, %291 : vector<8x32xf32>
    %c0_345 = arith.constant 0 : index
    %c2_346 = arith.constant 2 : index
    %c1_347 = arith.constant 1 : index
    %c0_348 = arith.constant 0 : index
    %293 = tpu.strided_load %arg11[%c0_345, %c2_346, %c1_347, %c0_348] {strides = array<i32: 1, 2, 2, 1>} : memref<2x6x6x16xf32, #tpu.memory_space<vmem>>, vector<2x2x2x16xf32>
    %294 = vector.shape_cast %293 : vector<2x2x2x16xf32> to vector<8x16xf32>
    %c9_349 = arith.constant 9 : index
    %c0_350 = arith.constant 0 : index
    %c0_351 = arith.constant 0 : index
    %295 = vector.load %arg5[%c9_349, %c0_350, %c0_351] : memref<16x16x32xf32, #tpu.memory_space<vmem>>, vector<1x16x32xf32>
    %296 = vector.shape_cast %295 : vector<1x16x32xf32> to vector<16x32xf32>
    %cst_352 = arith.constant dense<0.000000e+00> : vector<8x32xf32>
    %297 = tpu.matmul %294, %296, %cst_352 {dimension_numbers = #tpu.dot_dimension_numbers<[1], [0], [0], [1], [0, 0, 1, 1], [], []>} : vector<8x16xf32>, vector<16x32xf32>, vector<8x32xf32> -> vector<8x32xf32>
    %298 = arith.addf %292, %297 : vector<8x32xf32>
    %c0_353 = arith.constant 0 : index
    %c2_354 = arith.constant 2 : index
    %c2_355 = arith.constant 2 : index
    %c0_356 = arith.constant 0 : index
    %299 = tpu.strided_load %arg11[%c0_353, %c2_354, %c2_355, %c0_356] {strides = array<i32: 1, 2, 2, 1>} : memref<2x6x6x16xf32, #tpu.memory_space<vmem>>, vector<2x2x2x16xf32>
    %300 = vector.shape_cast %299 : vector<2x2x2x16xf32> to vector<8x16xf32>
    %c10_357 = arith.constant 10 : index
    %c0_358 = arith.constant 0 : index
    %c0_359 = arith.constant 0 : index
    %301 = vector.load %arg5[%c10_357, %c0_358, %c0_359] : memref<16x16x32xf32, #tpu.memory_space<vmem>>, vector<1x16x32xf32>
    %302 = vector.shape_cast %301 : vector<1x16x32xf32> to vector<16x32xf32>
    %cst_360 = arith.constant dense<0.000000e+00> : vector<8x32xf32>
    %303 = tpu.matmul %300, %302, %cst_360 {dimension_numbers = #tpu.dot_dimension_numbers<[1], [0], [0], [1], [0, 0, 1, 1], [], []>} : vector<8x16xf32>, vector<16x32xf32>, vector<8x32xf32> -> vector<8x32xf32>
    %304 = arith.addf %298, %303 : vector<8x32xf32>
    %c0_361 = arith.constant 0 : index
    %c2_362 = arith.constant 2 : index
    %c3_363 = arith.constant 3 : index
    %c0_364 = arith.constant 0 : index
    %305 = tpu.strided_load %arg11[%c0_361, %c2_362, %c3_363, %c0_364] {strides = array<i32: 1, 2, 2, 1>} : memref<2x6x6x16xf32, #tpu.memory_space<vmem>>, vector<2x2x2x16xf32>
    %306 = vector.shape_cast %305 : vector<2x2x2x16xf32> to vector<8x16xf32>
    %c11_365 = arith.constant 11 : index
    %c0_366 = arith.constant 0 : index
    %c0_367 = arith.constant 0 : index
    %307 = vector.load %arg5[%c11_365, %c0_366, %c0_367] : memref<16x16x32xf32, #tpu.memory_space<vmem>>, vector<1x16x32xf32>
    %308 = vector.shape_cast %307 : vector<1x16x32xf32> to vector<16x32xf32>
    %cst_368 = arith.constant dense<0.000000e+00> : vector<8x32xf32>
    %309 = tpu.matmul %306, %308, %cst_368 {dimension_numbers = #tpu.dot_dimension_numbers<[1], [0], [0], [1], [0, 0, 1, 1], [], []>} : vector<8x16xf32>, vector<16x32xf32>, vector<8x32xf32> -> vector<8x32xf32>
    %310 = arith.addf %304, %309 : vector<8x32xf32>
    %c0_369 = arith.constant 0 : index
    %c3_370 = arith.constant 3 : index
    %c0_371 = arith.constant 0 : index
    %c0_372 = arith.constant 0 : index
    %311 = tpu.strided_load %arg11[%c0_369, %c3_370, %c0_371, %c0_372] {strides = array<i32: 1, 2, 2, 1>} : memref<2x6x6x16xf32, #tpu.memory_space<vmem>>, vector<2x2x2x16xf32>
    %312 = vector.shape_cast %311 : vector<2x2x2x16xf32> to vector<8x16xf32>
    %c12_373 = arith.constant 12 : index
    %c0_374 = arith.constant 0 : index
    %c0_375 = arith.constant 0 : index
    %313 = vector.load %arg5[%c12_373, %c0_374, %c0_375] : memref<16x16x32xf32, #tpu.memory_space<vmem>>, vector<1x16x32xf32>
    %314 = vector.shape_cast %313 : vector<1x16x32xf32> to vector<16x32xf32>
    %cst_376 = arith.constant dense<0.000000e+00> : vector<8x32xf32>
    %315 = tpu.matmul %312, %314, %cst_376 {dimension_numbers = #tpu.dot_dimension_numbers<[1], [0], [0], [1], [0, 0, 1, 1], [], []>} : vector<8x16xf32>, vector<16x32xf32>, vector<8x32xf32> -> vector<8x32xf32>
    %316 = arith.addf %310, %315 : vector<8x32xf32>
    %c0_377 = arith.constant 0 : index
    %c3_378 = arith.constant 3 : index
    %c1_379 = arith.constant 1 : index
    %c0_380 = arith.constant 0 : index
    %317 = tpu.strided_load %arg11[%c0_377, %c3_378, %c1_379, %c0_380] {strides = array<i32: 1, 2, 2, 1>} : memref<2x6x6x16xf32, #tpu.memory_space<vmem>>, vector<2x2x2x16xf32>
    %318 = vector.shape_cast %317 : vector<2x2x2x16xf32> to vector<8x16xf32>
    %c13_381 = arith.constant 13 : index
    %c0_382 = arith.constant 0 : index
    %c0_383 = arith.constant 0 : index
    %319 = vector.load %arg5[%c13_381, %c0_382, %c0_383] : memref<16x16x32xf32, #tpu.memory_space<vmem>>, vector<1x16x32xf32>
    %320 = vector.shape_cast %319 : vector<1x16x32xf32> to vector<16x32xf32>
    %cst_384 = arith.constant dense<0.000000e+00> : vector<8x32xf32>
    %321 = tpu.matmul %318, %320, %cst_384 {dimension_numbers = #tpu.dot_dimension_numbers<[1], [0], [0], [1], [0, 0, 1, 1], [], []>} : vector<8x16xf32>, vector<16x32xf32>, vector<8x32xf32> -> vector<8x32xf32>
    %322 = arith.addf %316, %321 : vector<8x32xf32>
    %c0_385 = arith.constant 0 : index
    %c3_386 = arith.constant 3 : index
    %c2_387 = arith.constant 2 : index
    %c0_388 = arith.constant 0 : index
    %323 = tpu.strided_load %arg11[%c0_385, %c3_386, %c2_387, %c0_388] {strides = array<i32: 1, 2, 2, 1>} : memref<2x6x6x16xf32, #tpu.memory_space<vmem>>, vector<2x2x2x16xf32>
    %324 = vector.shape_cast %323 : vector<2x2x2x16xf32> to vector<8x16xf32>
    %c14_389 = arith.constant 14 : index
    %c0_390 = arith.constant 0 : index
    %c0_391 = arith.constant 0 : index
    %325 = vector.load %arg5[%c14_389, %c0_390, %c0_391] : memref<16x16x32xf32, #tpu.memory_space<vmem>>, vector<1x16x32xf32>
    %326 = vector.shape_cast %325 : vector<1x16x32xf32> to vector<16x32xf32>
    %cst_392 = arith.constant dense<0.000000e+00> : vector<8x32xf32>
    %327 = tpu.matmul %324, %326, %cst_392 {dimension_numbers = #tpu.dot_dimension_numbers<[1], [0], [0], [1], [0, 0, 1, 1], [], []>} : vector<8x16xf32>, vector<16x32xf32>, vector<8x32xf32> -> vector<8x32xf32>
    %328 = arith.addf %322, %327 : vector<8x32xf32>
    %c0_393 = arith.constant 0 : index
    %c3_394 = arith.constant 3 : index
    %c3_395 = arith.constant 3 : index
    %c0_396 = arith.constant 0 : index
    %329 = tpu.strided_load %arg11[%c0_393, %c3_394, %c3_395, %c0_396] {strides = array<i32: 1, 2, 2, 1>} : memref<2x6x6x16xf32, #tpu.memory_space<vmem>>, vector<2x2x2x16xf32>
    %330 = vector.shape_cast %329 : vector<2x2x2x16xf32> to vector<8x16xf32>
    %c15_397 = arith.constant 15 : index
    %c0_398 = arith.constant 0 : index
    %c0_399 = arith.constant 0 : index
    %331 = vector.load %arg5[%c15_397, %c0_398, %c0_399] : memref<16x16x32xf32, #tpu.memory_space<vmem>>, vector<1x16x32xf32>
    %332 = vector.shape_cast %331 : vector<1x16x32xf32> to vector<16x32xf32>
    %cst_400 = arith.constant dense<0.000000e+00> : vector<8x32xf32>
    %333 = tpu.matmul %330, %332, %cst_400 {dimension_numbers = #tpu.dot_dimension_numbers<[1], [0], [0], [1], [0, 0, 1, 1], [], []>} : vector<8x16xf32>, vector<16x32xf32>, vector<8x32xf32> -> vector<8x32xf32>
    %334 = arith.addf %328, %333 : vector<8x32xf32>
    %c0_401 = arith.constant 0 : index
    %c0_402 = arith.constant 0 : index
    %335 = vector.load %arg6[%c0_401, %c0_402] : memref<1x32xf32, #tpu.memory_space<vmem>>, vector<1x32xf32>
    %336 = vector.broadcast %335 : vector<1x32xf32> to vector<8x32xf32>
    %337 = arith.addf %334, %336 : vector<8x32xf32>
    %cst_403 = arith.constant 0.000000e+00 : f32
    %338 = vector.broadcast %cst_403 : f32 to vector<8x32xf32>
    %339 = arith.cmpf oge, %337, %338 : vector<8x32xf32>
    %cst_404 = arith.constant 2.000000e-01 : f32
    %340 = vector.broadcast %cst_404 : f32 to vector<8x32xf32>
    %341 = arith.mulf %340, %337 : vector<8x32xf32>
    %342 = arith.select %339, %337, %341 : vector<8x32xi1>, vector<8x32xf32>
    %343 = vector.shape_cast %342 : vector<8x32xf32> to vector<2x4x32xf32>
    %cst_405 = arith.constant dense<0.000000e+00> : vector<2x32xf32>
    %344 = vector.multi_reduction <add>, %343, %cst_405 [1] : vector<2x4x32xf32> to vector<2x32xf32>
    %345 = vector.shape_cast %344 : vector<2x32xf32> to vector<2x1x32xf32>
    %cst_406 = arith.constant 4.000000e+00 : f32
    %346 = vector.broadcast %cst_406 : f32 to vector<2x1x32xf32>
    %347 = arith.divf %345, %346 : vector<2x1x32xf32>
    %348 = arith.mulf %343, %343 : vector<2x4x32xf32>
    %cst_407 = arith.constant dense<0.000000e+00> : vector<2x32xf32>
    %349 = vector.multi_reduction <add>, %348, %cst_407 [1] : vector<2x4x32xf32> to vector<2x32xf32>
    %350 = vector.shape_cast %349 : vector<2x32xf32> to vector<2x1x32xf32>
    %cst_408 = arith.constant 4.000000e+00 : f32
    %351 = vector.broadcast %cst_408 : f32 to vector<2x1x32xf32>
    %352 = arith.divf %350, %351 : vector<2x1x32xf32>
    %353 = arith.mulf %347, %347 : vector<2x1x32xf32>
    %354 = arith.subf %352, %353 : vector<2x1x32xf32>
    %355 = vector.broadcast %347 : vector<2x1x32xf32> to vector<2x4x32xf32>
    %356 = arith.subf %343, %355 : vector<2x4x32xf32>
    %cst_409 = arith.constant 9.99999974E-6 : f32
    %357 = vector.broadcast %cst_409 : f32 to vector<2x1x32xf32>
    %358 = arith.addf %354, %357 : vector<2x1x32xf32>
    %359 = math.rsqrt %358 : vector<2x1x32xf32>
    %360 = vector.broadcast %359 : vector<2x1x32xf32> to vector<2x4x32xf32>
    %361 = arith.mulf %356, %360 : vector<2x4x32xf32>
    %362 = vector.shape_cast %361 : vector<2x4x32xf32> to vector<8x32xf32>
    %363 = vector.shape_cast %362 : vector<8x32xf32> to vector<2x2x2x32xf32>
    %cst_410 = arith.constant 0.000000e+00 : f32
    %364 = vector.broadcast %cst_410 : f32 to vector<2x4x4x32xf32>
    %c0_411 = arith.constant 0 : index
    %c0_412 = arith.constant 0 : index
    %c0_413 = arith.constant 0 : index
    %c0_414 = arith.constant 0 : index
    %365 = vector.load %arg12[%c0_411, %c0_412, %c0_413, %c0_414] : memref<2x4x4x32xf32, #tpu.memory_space<vmem>>, vector<2x4x4x32xf32>
    tpu.vector_store %arg12[%c0_411, %c0_412, %c0_413, %c0_414], %364 {strides = array<i32>} : memref<2x4x4x32xf32, #tpu.memory_space<vmem>>, vector<2x4x4x32xf32>,
    %c0_415 = arith.constant 0 : index
    %c1_416 = arith.constant 1 : index
    %c1_417 = arith.constant 1 : index
    %c0_418 = arith.constant 0 : index
    %366 = vector.load %arg12[%c0_415, %c1_416, %c1_417, %c0_418] : memref<2x4x4x32xf32, #tpu.memory_space<vmem>>, vector<2x2x2x32xf32>
    tpu.vector_store %arg12[%c0_415, %c1_416, %c1_417, %c0_418], %363 {strides = array<i32>} : memref<2x4x4x32xf32, #tpu.memory_space<vmem>>, vector<2x2x2x32xf32>,
    %cst_419 = arith.constant 0.000000e+00 : f32
    %367 = vector.broadcast %cst_419 : f32 to vector<2x1xf32>
    %c0_420 = arith.constant 0 : index
    %c0_421 = arith.constant 0 : index
    %c0_422 = arith.constant 0 : index
    %c0_423 = arith.constant 0 : index
    %368 = vector.load %arg12[%c0_420, %c0_421, %c0_422, %c0_423] : memref<2x4x4x32xf32, #tpu.memory_space<vmem>>, vector<2x1x1x32xf32>
    %369 = vector.shape_cast %368 : vector<2x1x1x32xf32> to vector<2x32xf32>
    %c0_424 = arith.constant 0 : index
    %c0_425 = arith.constant 0 : index
    %c0_426 = arith.constant 0 : index
    %370 = vector.load %arg7[%c0_424, %c0_425, %c0_426] : memref<16x32x1xf32, #tpu.memory_space<vmem>>, vector<1x32x1xf32>
    %371 = vector.shape_cast %370 : vector<1x32x1xf32> to vector<32x1xf32>
    %cst_427 = arith.constant dense<0.000000e+00> : vector<2x1xf32>
    %372 = tpu.matmul %369, %371, %cst_427 {dimension_numbers = #tpu.dot_dimension_numbers<[1], [0], [0], [1], [0, 0, 1, 1], [], []>} : vector<2x32xf32>, vector<32x1xf32>, vector<2x1xf32> -> vector<2x1xf32>
    %373 = arith.addf %367, %372 : vector<2x1xf32>
    %c0_428 = arith.constant 0 : index
    %c0_429 = arith.constant 0 : index
    %c1_430 = arith.constant 1 : index
    %c0_431 = arith.constant 0 : index
    %374 = vector.load %arg12[%c0_428, %c0_429, %c1_430, %c0_431] : memref<2x4x4x32xf32, #tpu.memory_space<vmem>>, vector<2x1x1x32xf32>
    %375 = vector.shape_cast %374 : vector<2x1x1x32xf32> to vector<2x32xf32>
    %c1_432 = arith.constant 1 : index
    %c0_433 = arith.constant 0 : index
    %c0_434 = arith.constant 0 : index
    %376 = vector.load %arg7[%c1_432, %c0_433, %c0_434] : memref<16x32x1xf32, #tpu.memory_space<vmem>>, vector<1x32x1xf32>
    %377 = vector.shape_cast %376 : vector<1x32x1xf32> to vector<32x1xf32>
    %cst_435 = arith.constant dense<0.000000e+00> : vector<2x1xf32>
    %378 = tpu.matmul %375, %377, %cst_435 {dimension_numbers = #tpu.dot_dimension_numbers<[1], [0], [0], [1], [0, 0, 1, 1], [], []>} : vector<2x32xf32>, vector<32x1xf32>, vector<2x1xf32> -> vector<2x1xf32>
    %379 = arith.addf %373, %378 : vector<2x1xf32>
    %c0_436 = arith.constant 0 : index
    %c0_437 = arith.constant 0 : index
    %c2_438 = arith.constant 2 : index
    %c0_439 = arith.constant 0 : index
    %380 = vector.load %arg12[%c0_436, %c0_437, %c2_438, %c0_439] : memref<2x4x4x32xf32, #tpu.memory_space<vmem>>, vector<2x1x1x32xf32>
    %381 = vector.shape_cast %380 : vector<2x1x1x32xf32> to vector<2x32xf32>
    %c2_440 = arith.constant 2 : index
    %c0_441 = arith.constant 0 : index
    %c0_442 = arith.constant 0 : index
    %382 = vector.load %arg7[%c2_440, %c0_441, %c0_442] : memref<16x32x1xf32, #tpu.memory_space<vmem>>, vector<1x32x1xf32>
    %383 = vector.shape_cast %382 : vector<1x32x1xf32> to vector<32x1xf32>
    %cst_443 = arith.constant dense<0.000000e+00> : vector<2x1xf32>
    %384 = tpu.matmul %381, %383, %cst_443 {dimension_numbers = #tpu.dot_dimension_numbers<[1], [0], [0], [1], [0, 0, 1, 1], [], []>} : vector<2x32xf32>, vector<32x1xf32>, vector<2x1xf32> -> vector<2x1xf32>
    %385 = arith.addf %379, %384 : vector<2x1xf32>
    %c0_444 = arith.constant 0 : index
    %c0_445 = arith.constant 0 : index
    %c3_446 = arith.constant 3 : index
    %c0_447 = arith.constant 0 : index
    %386 = vector.load %arg12[%c0_444, %c0_445, %c3_446, %c0_447] : memref<2x4x4x32xf32, #tpu.memory_space<vmem>>, vector<2x1x1x32xf32>
    %387 = vector.shape_cast %386 : vector<2x1x1x32xf32> to vector<2x32xf32>
    %c3_448 = arith.constant 3 : index
    %c0_449 = arith.constant 0 : index
    %c0_450 = arith.constant 0 : index
    %388 = vector.load %arg7[%c3_448, %c0_449, %c0_450] : memref<16x32x1xf32, #tpu.memory_space<vmem>>, vector<1x32x1xf32>
    %389 = vector.shape_cast %388 : vector<1x32x1xf32> to vector<32x1xf32>
    %cst_451 = arith.constant dense<0.000000e+00> : vector<2x1xf32>
    %390 = tpu.matmul %387, %389, %cst_451 {dimension_numbers = #tpu.dot_dimension_numbers<[1], [0], [0], [1], [0, 0, 1, 1], [], []>} : vector<2x32xf32>, vector<32x1xf32>, vector<2x1xf32> -> vector<2x1xf32>
    %391 = arith.addf %385, %390 : vector<2x1xf32>
    %c0_452 = arith.constant 0 : index
    %c1_453 = arith.constant 1 : index
    %c0_454 = arith.constant 0 : index
    %c0_455 = arith.constant 0 : index
    %392 = vector.load %arg12[%c0_452, %c1_453, %c0_454, %c0_455] : memref<2x4x4x32xf32, #tpu.memory_space<vmem>>, vector<2x1x1x32xf32>
    %393 = vector.shape_cast %392 : vector<2x1x1x32xf32> to vector<2x32xf32>
    %c4_456 = arith.constant 4 : index
    %c0_457 = arith.constant 0 : index
    %c0_458 = arith.constant 0 : index
    %394 = vector.load %arg7[%c4_456, %c0_457, %c0_458] : memref<16x32x1xf32, #tpu.memory_space<vmem>>, vector<1x32x1xf32>
    %395 = vector.shape_cast %394 : vector<1x32x1xf32> to vector<32x1xf32>
    %cst_459 = arith.constant dense<0.000000e+00> : vector<2x1xf32>
    %396 = tpu.matmul %393, %395, %cst_459 {dimension_numbers = #tpu.dot_dimension_numbers<[1], [0], [0], [1], [0, 0, 1, 1], [], []>} : vector<2x32xf32>, vector<32x1xf32>, vector<2x1xf32> -> vector<2x1xf32>
    %397 = arith.addf %391, %396 : vector<2x1xf32>
    %c0_460 = arith.constant 0 : index
    %c1_461 = arith.constant 1 : index
    %c1_462 = arith.constant 1 : index
    %c0_463 = arith.constant 0 : index
    %398 = vector.load %arg12[%c0_460, %c1_461, %c1_462, %c0_463] : memref<2x4x4x32xf32, #tpu.memory_space<vmem>>, vector<2x1x1x32xf32>
    %399 = vector.shape_cast %398 : vector<2x1x1x32xf32> to vector<2x32xf32>
    %c5_464 = arith.constant 5 : index
    %c0_465 = arith.constant 0 : index
    %c0_466 = arith.constant 0 : index
    %400 = vector.load %arg7[%c5_464, %c0_465, %c0_466] : memref<16x32x1xf32, #tpu.memory_space<vmem>>, vector<1x32x1xf32>
    %401 = vector.shape_cast %400 : vector<1x32x1xf32> to vector<32x1xf32>
    %cst_467 = arith.constant dense<0.000000e+00> : vector<2x1xf32>
    %402 = tpu.matmul %399, %401, %cst_467 {dimension_numbers = #tpu.dot_dimension_numbers<[1], [0], [0], [1], [0, 0, 1, 1], [], []>} : vector<2x32xf32>, vector<32x1xf32>, vector<2x1xf32> -> vector<2x1xf32>
    %403 = arith.addf %397, %402 : vector<2x1xf32>
    %c0_468 = arith.constant 0 : index
    %c1_469 = arith.constant 1 : index
    %c2_470 = arith.constant 2 : index
    %c0_471 = arith.constant 0 : index
    %404 = vector.load %arg12[%c0_468, %c1_469, %c2_470, %c0_471] : memref<2x4x4x32xf32, #tpu.memory_space<vmem>>, vector<2x1x1x32xf32>
    %405 = vector.shape_cast %404 : vector<2x1x1x32xf32> to vector<2x32xf32>
    %c6_472 = arith.constant 6 : index
    %c0_473 = arith.constant 0 : index
    %c0_474 = arith.constant 0 : index
    %406 = vector.load %arg7[%c6_472, %c0_473, %c0_474] : memref<16x32x1xf32, #tpu.memory_space<vmem>>, vector<1x32x1xf32>
    %407 = vector.shape_cast %406 : vector<1x32x1xf32> to vector<32x1xf32>
    %cst_475 = arith.constant dense<0.000000e+00> : vector<2x1xf32>
    %408 = tpu.matmul %405, %407, %cst_475 {dimension_numbers = #tpu.dot_dimension_numbers<[1], [0], [0], [1], [0, 0, 1, 1], [], []>} : vector<2x32xf32>, vector<32x1xf32>, vector<2x1xf32> -> vector<2x1xf32>
    %409 = arith.addf %403, %408 : vector<2x1xf32>
    %c0_476 = arith.constant 0 : index
    %c1_477 = arith.constant 1 : index
    %c3_478 = arith.constant 3 : index
    %c0_479 = arith.constant 0 : index
    %410 = vector.load %arg12[%c0_476, %c1_477, %c3_478, %c0_479] : memref<2x4x4x32xf32, #tpu.memory_space<vmem>>, vector<2x1x1x32xf32>
    %411 = vector.shape_cast %410 : vector<2x1x1x32xf32> to vector<2x32xf32>
    %c7_480 = arith.constant 7 : index
    %c0_481 = arith.constant 0 : index
    %c0_482 = arith.constant 0 : index
    %412 = vector.load %arg7[%c7_480, %c0_481, %c0_482] : memref<16x32x1xf32, #tpu.memory_space<vmem>>, vector<1x32x1xf32>
    %413 = vector.shape_cast %412 : vector<1x32x1xf32> to vector<32x1xf32>
    %cst_483 = arith.constant dense<0.000000e+00> : vector<2x1xf32>
    %414 = tpu.matmul %411, %413, %cst_483 {dimension_numbers = #tpu.dot_dimension_numbers<[1], [0], [0], [1], [0, 0, 1, 1], [], []>} : vector<2x32xf32>, vector<32x1xf32>, vector<2x1xf32> -> vector<2x1xf32>
    %415 = arith.addf %409, %414 : vector<2x1xf32>
    %c0_484 = arith.constant 0 : index
    %c2_485 = arith.constant 2 : index
    %c0_486 = arith.constant 0 : index
    %c0_487 = arith.constant 0 : index
    %416 = vector.load %arg12[%c0_484, %c2_485, %c0_486, %c0_487] : memref<2x4x4x32xf32, #tpu.memory_space<vmem>>, vector<2x1x1x32xf32>
    %417 = vector.shape_cast %416 : vector<2x1x1x32xf32> to vector<2x32xf32>
    %c8_488 = arith.constant 8 : index
    %c0_489 = arith.constant 0 : index
    %c0_490 = arith.constant 0 : index
    %418 = vector.load %arg7[%c8_488, %c0_489, %c0_490] : memref<16x32x1xf32, #tpu.memory_space<vmem>>, vector<1x32x1xf32>
    %419 = vector.shape_cast %418 : vector<1x32x1xf32> to vector<32x1xf32>
    %cst_491 = arith.constant dense<0.000000e+00> : vector<2x1xf32>
    %420 = tpu.matmul %417, %419, %cst_491 {dimension_numbers = #tpu.dot_dimension_numbers<[1], [0], [0], [1], [0, 0, 1, 1], [], []>} : vector<2x32xf32>, vector<32x1xf32>, vector<2x1xf32> -> vector<2x1xf32>
    %421 = arith.addf %415, %420 : vector<2x1xf32>
    %c0_492 = arith.constant 0 : index
    %c2_493 = arith.constant 2 : index
    %c1_494 = arith.constant 1 : index
    %c0_495 = arith.constant 0 : index
    %422 = vector.load %arg12[%c0_492, %c2_493, %c1_494, %c0_495] : memref<2x4x4x32xf32, #tpu.memory_space<vmem>>, vector<2x1x1x32xf32>
    %423 = vector.shape_cast %422 : vector<2x1x1x32xf32> to vector<2x32xf32>
    %c9_496 = arith.constant 9 : index
    %c0_497 = arith.constant 0 : index
    %c0_498 = arith.constant 0 : index
    %424 = vector.load %arg7[%c9_496, %c0_497, %c0_498] : memref<16x32x1xf32, #tpu.memory_space<vmem>>, vector<1x32x1xf32>
    %425 = vector.shape_cast %424 : vector<1x32x1xf32> to vector<32x1xf32>
    %cst_499 = arith.constant dense<0.000000e+00> : vector<2x1xf32>
    %426 = tpu.matmul %423, %425, %cst_499 {dimension_numbers = #tpu.dot_dimension_numbers<[1], [0], [0], [1], [0, 0, 1, 1], [], []>} : vector<2x32xf32>, vector<32x1xf32>, vector<2x1xf32> -> vector<2x1xf32>
    %427 = arith.addf %421, %426 : vector<2x1xf32>
    %c0_500 = arith.constant 0 : index
    %c2_501 = arith.constant 2 : index
    %c2_502 = arith.constant 2 : index
    %c0_503 = arith.constant 0 : index
    %428 = vector.load %arg12[%c0_500, %c2_501, %c2_502, %c0_503] : memref<2x4x4x32xf32, #tpu.memory_space<vmem>>, vector<2x1x1x32xf32>
    %429 = vector.shape_cast %428 : vector<2x1x1x32xf32> to vector<2x32xf32>
    %c10_504 = arith.constant 10 : index
    %c0_505 = arith.constant 0 : index
    %c0_506 = arith.constant 0 : index
    %430 = vector.load %arg7[%c10_504, %c0_505, %c0_506] : memref<16x32x1xf32, #tpu.memory_space<vmem>>, vector<1x32x1xf32>
    %431 = vector.shape_cast %430 : vector<1x32x1xf32> to vector<32x1xf32>
    %cst_507 = arith.constant dense<0.000000e+00> : vector<2x1xf32>
    %432 = tpu.matmul %429, %431, %cst_507 {dimension_numbers = #tpu.dot_dimension_numbers<[1], [0], [0], [1], [0, 0, 1, 1], [], []>} : vector<2x32xf32>, vector<32x1xf32>, vector<2x1xf32> -> vector<2x1xf32>
    %433 = arith.addf %427, %432 : vector<2x1xf32>
    %c0_508 = arith.constant 0 : index
    %c2_509 = arith.constant 2 : index
    %c3_510 = arith.constant 3 : index
    %c0_511 = arith.constant 0 : index
    %434 = vector.load %arg12[%c0_508, %c2_509, %c3_510, %c0_511] : memref<2x4x4x32xf32, #tpu.memory_space<vmem>>, vector<2x1x1x32xf32>
    %435 = vector.shape_cast %434 : vector<2x1x1x32xf32> to vector<2x32xf32>
    %c11_512 = arith.constant 11 : index
    %c0_513 = arith.constant 0 : index
    %c0_514 = arith.constant 0 : index
    %436 = vector.load %arg7[%c11_512, %c0_513, %c0_514] : memref<16x32x1xf32, #tpu.memory_space<vmem>>, vector<1x32x1xf32>
    %437 = vector.shape_cast %436 : vector<1x32x1xf32> to vector<32x1xf32>
    %cst_515 = arith.constant dense<0.000000e+00> : vector<2x1xf32>
    %438 = tpu.matmul %435, %437, %cst_515 {dimension_numbers = #tpu.dot_dimension_numbers<[1], [0], [0], [1], [0, 0, 1, 1], [], []>} : vector<2x32xf32>, vector<32x1xf32>, vector<2x1xf32> -> vector<2x1xf32>
    %439 = arith.addf %433, %438 : vector<2x1xf32>
    %c0_516 = arith.constant 0 : index
    %c3_517 = arith.constant 3 : index
    %c0_518 = arith.constant 0 : index
    %c0_519 = arith.constant 0 : index
    %440 = vector.load %arg12[%c0_516, %c3_517, %c0_518, %c0_519] : memref<2x4x4x32xf32, #tpu.memory_space<vmem>>, vector<2x1x1x32xf32>
    %441 = vector.shape_cast %440 : vector<2x1x1x32xf32> to vector<2x32xf32>
    %c12_520 = arith.constant 12 : index
    %c0_521 = arith.constant 0 : index
    %c0_522 = arith.constant 0 : index
    %442 = vector.load %arg7[%c12_520, %c0_521, %c0_522] : memref<16x32x1xf32, #tpu.memory_space<vmem>>, vector<1x32x1xf32>
    %443 = vector.shape_cast %442 : vector<1x32x1xf32> to vector<32x1xf32>
    %cst_523 = arith.constant dense<0.000000e+00> : vector<2x1xf32>
    %444 = tpu.matmul %441, %443, %cst_523 {dimension_numbers = #tpu.dot_dimension_numbers<[1], [0], [0], [1], [0, 0, 1, 1], [], []>} : vector<2x32xf32>, vector<32x1xf32>, vector<2x1xf32> -> vector<2x1xf32>
    %445 = arith.addf %439, %444 : vector<2x1xf32>
    %c0_524 = arith.constant 0 : index
    %c3_525 = arith.constant 3 : index
    %c1_526 = arith.constant 1 : index
    %c0_527 = arith.constant 0 : index
    %446 = vector.load %arg12[%c0_524, %c3_525, %c1_526, %c0_527] : memref<2x4x4x32xf32, #tpu.memory_space<vmem>>, vector<2x1x1x32xf32>
    %447 = vector.shape_cast %446 : vector<2x1x1x32xf32> to vector<2x32xf32>
    %c13_528 = arith.constant 13 : index
    %c0_529 = arith.constant 0 : index
    %c0_530 = arith.constant 0 : index
    %448 = vector.load %arg7[%c13_528, %c0_529, %c0_530] : memref<16x32x1xf32, #tpu.memory_space<vmem>>, vector<1x32x1xf32>
    %449 = vector.shape_cast %448 : vector<1x32x1xf32> to vector<32x1xf32>
    %cst_531 = arith.constant dense<0.000000e+00> : vector<2x1xf32>
    %450 = tpu.matmul %447, %449, %cst_531 {dimension_numbers = #tpu.dot_dimension_numbers<[1], [0], [0], [1], [0, 0, 1, 1], [], []>} : vector<2x32xf32>, vector<32x1xf32>, vector<2x1xf32> -> vector<2x1xf32>
    %451 = arith.addf %445, %450 : vector<2x1xf32>
    %c0_532 = arith.constant 0 : index
    %c3_533 = arith.constant 3 : index
    %c2_534 = arith.constant 2 : index
    %c0_535 = arith.constant 0 : index
    %452 = vector.load %arg12[%c0_532, %c3_533, %c2_534, %c0_535] : memref<2x4x4x32xf32, #tpu.memory_space<vmem>>, vector<2x1x1x32xf32>
    %453 = vector.shape_cast %452 : vector<2x1x1x32xf32> to vector<2x32xf32>
    %c14_536 = arith.constant 14 : index
    %c0_537 = arith.constant 0 : index
    %c0_538 = arith.constant 0 : index
    %454 = vector.load %arg7[%c14_536, %c0_537, %c0_538] : memref<16x32x1xf32, #tpu.memory_space<vmem>>, vector<1x32x1xf32>
    %455 = vector.shape_cast %454 : vector<1x32x1xf32> to vector<32x1xf32>
    %cst_539 = arith.constant dense<0.000000e+00> : vector<2x1xf32>
    %456 = tpu.matmul %453, %455, %cst_539 {dimension_numbers = #tpu.dot_dimension_numbers<[1], [0], [0], [1], [0, 0, 1, 1], [], []>} : vector<2x32xf32>, vector<32x1xf32>, vector<2x1xf32> -> vector<2x1xf32>
    %457 = arith.addf %451, %456 : vector<2x1xf32>
    %c0_540 = arith.constant 0 : index
    %c3_541 = arith.constant 3 : index
    %c3_542 = arith.constant 3 : index
    %c0_543 = arith.constant 0 : index
    %458 = vector.load %arg12[%c0_540, %c3_541, %c3_542, %c0_543] : memref<2x4x4x32xf32, #tpu.memory_space<vmem>>, vector<2x1x1x32xf32>
    %459 = vector.shape_cast %458 : vector<2x1x1x32xf32> to vector<2x32xf32>
    %c15_544 = arith.constant 15 : index
    %c0_545 = arith.constant 0 : index
    %c0_546 = arith.constant 0 : index
    %460 = vector.load %arg7[%c15_544, %c0_545, %c0_546] : memref<16x32x1xf32, #tpu.memory_space<vmem>>, vector<1x32x1xf32>
    %461 = vector.shape_cast %460 : vector<1x32x1xf32> to vector<32x1xf32>
    %cst_547 = arith.constant dense<0.000000e+00> : vector<2x1xf32>
    %462 = tpu.matmul %459, %461, %cst_547 {dimension_numbers = #tpu.dot_dimension_numbers<[1], [0], [0], [1], [0, 0, 1, 1], [], []>} : vector<2x32xf32>, vector<32x1xf32>, vector<2x1xf32> -> vector<2x1xf32>
    %463 = arith.addf %457, %462 : vector<2x1xf32>
    %c0_548 = arith.constant 0 : index
    %c0_549 = arith.constant 0 : index
    %464 = vector.load %arg8[%c0_548, %c0_549] : memref<1x1xf32, #tpu.memory_space<vmem>>, vector<1x1xf32>
    %465 = vector.broadcast %464 : vector<1x1xf32> to vector<2x1xf32>
    %466 = arith.addf %463, %465 : vector<2x1xf32>
    %467 = vector.shape_cast %466 : vector<2x1xf32> to vector<2x1x1x1xf32>
    %468 = vector.shape_cast %467 : vector<2x1x1x1xf32> to vector<2x1xf32>
    %cst_550 = arith.constant dense<0.000000e+00> : vector<2xf32>
    %469 = vector.multi_reduction <add>, %468, %cst_550 [1] : vector<2x1xf32> to vector<2xf32>
    %470 = vector.shape_cast %469 : vector<2xf32> to vector<2x1xf32>
    %cst_551 = arith.constant 1.000000e+00 : f32
    %471 = vector.broadcast %cst_551 : f32 to vector<2x1xf32>
    %472 = arith.divf %470, %471 : vector<2x1xf32>
    %c0_552 = arith.constant 0 : index
    %c0_553 = arith.constant 0 : index
    %473 = vector.load %arg9[%c0_552, %c0_553] : memref<2x1xf32, #tpu.memory_space<vmem>>, vector<2x1xf32>
    tpu.vector_store %arg9[%c0_552, %c0_553], %472 {strides = array<i32>} : memref<2x1xf32, #tpu.memory_space<vmem>>, vector<2x1xf32>,
    return
  }
}

</mosaic_0001>

<llo_original>
// kernel: discriminator_forward.1
$region0: #{discriminator_forward.1}
  #allocation0 [shape = 'u32[]', space=smem, size = 0x4, offset = 0x4, fixed_abs, tag = 'smem constant byte address 0x4 - core index']
  #allocation1 [shape = 'u32[144,128]{1,0:T(1,128)}', space=vmem, size = 0x12000, scoped, tag = 'internal scratch']
  #allocation2 [shape = 'f32[2,10,10,8]{3,2,1,0:T(8,128)}', space=vmem, size = 0x28000, scoped, tag = 'scratch operand']
  #allocation3 [shape = 'f32[2,6,6,16]{3,2,1,0:T(8,128)}', space=vmem, size = 0xc000, scoped, tag = 'scratch operand']
  #allocation4 [shape = 'f32[2,4,4,32]{3,2,1,0:T(4,128)}', space=vmem, size = 0x4000, scoped, tag = 'scratch operand']
  #allocation5 [shape = 'f32[1,1]{1,0:T(1,128)S(1)}', space=vmem, size = 0x200, scoped, tag = 'scoped memory for discriminator_forward.1']
  %s0 = inlined_call_operand.vmem [shape: f32[2,18,18,4], index: 0, kind: input, shape index: {}]
  %s1 = inlined_call_operand.vmem [shape: f32[16,4,8], index: 1, kind: input, shape index: {}]
  %s2 = inlined_call_operand.vmem [shape: f32[1,8], index: 2, kind: input, shape index: {}]
  %s3 = inlined_call_operand.vmem [shape: f32[16,8,16], index: 3, kind: input, shape index: {}]
  %s4 = inlined_call_operand.vmem [shape: f32[1,16], index: 4, kind: input, shape index: {}]
  %s5 = inlined_call_operand.vmem [shape: f32[16,16,32], index: 5, kind: input, shape index: {}]
  %s6 = inlined_call_operand.vmem [shape: f32[1,32], index: 6, kind: input, shape index: {}]
  %s7 = inlined_call_operand.vmem [shape: f32[16,32,1], index: 7, kind: input, shape index: {}]
  %s8 = inlined_call_operand.<no memory space> [shape: f32[1,1], index: 8, kind: input, shape index: {}]
  %s9 = inlined_call_operand.vmem [shape: f32[2,1], index: 9, kind: output, shape index: {}]
  %s10 = sld [smem:[#allocation0]]
  $region46: #{discriminator_forward.1} parent=0
    _
  %s12 = ssub.s32 1, %s10
  %s13 = scalar_select 0, %s12, %s10
  %v14 = vstv %s8
  %15 = vst [vmem:[#allocation5] sm:$0x1] %v14
  // Predicated region
  $region2: #{discriminator_forward.1} parent=0 // pred_check
    _
  $region3: #{discriminator_forward.1} parent=0 // pred_check_branch
    %17 = sbr.rel (0) target = $region5
  $region4: #{discriminator_forward.1} parent=0 // pred_region
    _
  $region5: #{discriminator_forward.1} parent=0 // pred_fallthru
    _
  // Predicated region
  $region6: #{discriminator_forward.1} parent=0 // pred_check
    _
  $region7: #{discriminator_forward.1} parent=0 // pred_check_branch
    %19 = sbr.rel (0) target = $region9
  $region8: #{discriminator_forward.1} parent=0 // pred_region
    _
  $region9: #{discriminator_forward.1} parent=0 // pred_fallthru
    _
  // Predicated region
  $region10: #{discriminator_forward.1} parent=0 // pred_check
    _
  $region11: #{discriminator_forward.1} parent=0 // pred_check_branch
    %21 = sbr.rel (0) target = $region13
  $region12: #{discriminator_forward.1} parent=0 // pred_region
    _
  $region13: #{discriminator_forward.1} parent=0 // pred_fallthru
    _
  // Predicated region
  $region14: #{discriminator_forward.1} parent=0 // pred_check
    _
  $region15: #{discriminator_forward.1} parent=0 // pred_check_branch
    %23 = sbr.rel (0) target = $region17
  $region16: #{discriminator_forward.1} parent=0 // pred_region
    _
  $region17: #{discriminator_forward.1} parent=0 // pred_fallthru
    _
  // Predicated region
  $region18: #{discriminator_forward.1} parent=0 // pred_check
    _
  $region19: #{discriminator_forward.1} parent=0 // pred_check_branch
    %25 = sbr.rel (0) target = $region21
  $region20: #{discriminator_forward.1} parent=0 // pred_region
    _
  $region21: #{discriminator_forward.1} parent=0 // pred_fallthru
    _
  // Predicated region
  $region22: #{discriminator_forward.1} parent=0 // pred_check
    _
  $region23: #{discriminator_forward.1} parent=0 // pred_check_branch
    %27 = sbr.rel (0) target = $region25
  $region24: #{discriminator_forward.1} parent=0 // pred_region
    _
  $region25: #{discriminator_forward.1} parent=0 // pred_fallthru
    _
  // Predicated region
  $region26: #{discriminator_forward.1} parent=0 // pred_check
    _
  $region27: #{discriminator_forward.1} parent=0 // pred_check_branch
    %29 = sbr.rel (0) target = $region29
  $region28: #{discriminator_forward.1} parent=0 // pred_region
    _
  $region29: #{discriminator_forward.1} parent=0 // pred_fallthru
    _
  // Predicated region
  $region30: #{discriminator_forward.1} parent=0 // pred_check
    _
  $region31: #{discriminator_forward.1} parent=0 // pred_check_branch
    %31 = sbr.rel (0) target = $region33
  $region32: #{discriminator_forward.1} parent=0 // pred_region
    _
  $region33: #{discriminator_forward.1} parent=0 // pred_fallthru
    _
  // Predicated region
  $region34: #{discriminator_forward.1} parent=0 // pred_check
    _
  $region35: #{discriminator_forward.1} parent=0 // pred_check_branch
    %33 = sbr.rel (0) target = $region37
  $region36: #{discriminator_forward.1} parent=0 // pred_region
    _
  $region37: #{discriminator_forward.1} parent=0 // pred_fallthru
    _
  %v34 = vld [vmem:[%s0] ss:$2 sm:$0xff]
  %s35 = scalar_lea.vmem %s0, 48
  %v36 = vld [vmem:[%s35] ss:$2 sm:$0xff]
  %s37 = scalar_lea.vmem %s0, 96
  %v38 = vld [vmem:[%s37] ss:$2 sm:$0xff]
  %s39 = scalar_lea.vmem %s0, 144
  %v40 = vld [vmem:[%s39] ss:$2 sm:$0xff]
  %s41 = scalar_lea.vmem %s0, 192
  %v42 = vld [vmem:[%s41] ss:$2 sm:$0xff]
  %s43 = scalar_lea.vmem %s0, 240
  %v44 = vld [vmem:[%s43] ss:$2 sm:$0xff]
  %s45 = scalar_lea.vmem %s0, 288
  %v46 = vld [vmem:[%s45] ss:$2 sm:$0xff]
  %s47 = scalar_lea.vmem %s0, 336
  %v48 = vld [vmem:[%s47] ss:$2 sm:$0xff]
  %s49 = scalar_lea.vmem %s0, 432
  %v50 = vld [vmem:[%s49] ss:$2 sm:$0xff]
  %s51 = scalar_lea.vmem %s0, 480
  %v52 = vld [vmem:[%s51] ss:$2 sm:$0xff]
  %s53 = scalar_lea.vmem %s0, 528
  %v54 = vld [vmem:[%s53] ss:$2 sm:$0xff]
  %s55 = scalar_lea.vmem %s0, 576
  %v56 = vld [vmem:[%s55] ss:$2 sm:$0xff]
  %s57 = scalar_lea.vmem %s0, 624
  %v58 = vld [vmem:[%s57] ss:$2 sm:$0xff]
  %s59 = scalar_lea.vmem %s0, 672
  %v60 = vld [vmem:[%s59] ss:$2 sm:$0xff]
  %s61 = scalar_lea.vmem %s0, 720
  %v62 = vld [vmem:[%s61] ss:$2 sm:$0xff]
  %s63 = scalar_lea.vmem %s0, 768
  %v64 = vld [vmem:[%s63] ss:$2 sm:$0xff]
  %v65 = vld [vmem:[%s1] sm:$0xf]
  %s66 = scalar_lea.vmem %s0, 1
  %v67 = vld [vmem:[%s66] ss:$2 sm:$0xff]
  %s68 = scalar_lea.vmem %s0, 49
  %v69 = vld [vmem:[%s68] ss:$2 sm:$0xff]
  %s70 = scalar_lea.vmem %s0, 97
  %v71 = vld [vmem:[%s70] ss:$2 sm:$0xff]
  %s72 = scalar_lea.vmem %s0, 145
  %v73 = vld [vmem:[%s72] ss:$2 sm:$0xff]
  %s74 = scalar_lea.vmem %s0, 193
  %v75 = vld [vmem:[%s74] ss:$2 sm:$0xff]
  %s76 = scalar_lea.vmem %s0, 241
  %v77 = vld [vmem:[%s76] ss:$2 sm:$0xff]
  %s78 = scalar_lea.vmem %s0, 289
  %v79 = vld [vmem:[%s78] ss:$2 sm:$0xff]
  %s80 = scalar_lea.vmem %s0, 337
  %v81 = vld [vmem:[%s80] ss:$2 sm:$0xff]
  %s82 = scalar_lea.vmem %s0, 433
  %v83 = vld [vmem:[%s82] ss:$2 sm:$0xff]
  %s84 = scalar_lea.vmem %s0, 481
  %v85 = vld [vmem:[%s84] ss:$2 sm:$0xff]
  %s86 = scalar_lea.vmem %s0, 529
  %v87 = vld [vmem:[%s86] ss:$2 sm:$0xff]
  %s88 = scalar_lea.vmem %s0, 577
  %v89 = vld [vmem:[%s88] ss:$2 sm:$0xff]
  %s90 = scalar_lea.vmem %s0, 625
  %v91 = vld [vmem:[%s90] ss:$2 sm:$0xff]
  %s92 = scalar_lea.vmem %s0, 673
  %v93 = vld [vmem:[%s92] ss:$2 sm:$0xff]
  %s94 = scalar_lea.vmem %s0, 721
  %v95 = vld [vmem:[%s94] ss:$2 sm:$0xff]
  %s96 = scalar_lea.vmem %s0, 769
  %v97 = vld [vmem:[%s96] ss:$2 sm:$0xff]
  %s98 = scalar_lea.vmem %s1, 4
  %v99 = vld [vmem:[%s98] sm:$0xf]
  %vm100 = vcmask 31744
  %v102 = vsel %vm100, %v67, 0
  %v105 = vsel %vm100, %v69, 0
  %v108 = vsel %vm100, %v71, 0
  %v111 = vsel %vm100, %v73, 0
  %v114 = vsel %vm100, %v75, 0
  %v117 = vsel %vm100, %v77, 0
  %v120 = vsel %vm100, %v79, 0
  %v123 = vsel %vm100, %v81, 0
  %v126 = vsel %vm100, %v83, 0
  %v129 = vsel %vm100, %v85, 0
  %v132 = vsel %vm100, %v87, 0
  %v135 = vsel %vm100, %v89, 0
  %v138 = vsel %vm100, %v91, 0
  %v141 = vsel %vm100, %v93, 0
  %v144 = vsel %vm100, %v95, 0
  %v147 = vsel %vm100, %v97, 0
  %vm149 = vcmask 1043456
  %v151 = vsel %vm149, %v99, 0
  %153 = vmatprep.subr.mxu0 0.0
  %154 = vmatpush1.msra.mxu0 0.0
  %155 = vmatprep.subr.mxu0 0.0
  %156 = vmatpush1.msra.mxu0 0.0
  %157 = vmatprep.subr.mxu0 0.0
  %158 = vmatpush1.msra.mxu0 0.0
  %159 = vmatprep.subr.mxu0 0.0
  %160 = vmatpush1.msra.mxu0 0.0
  %161 = vmatprep.subr.mxu0 0.0
  %162 = vmatpush1.msra.mxu0 0.0
  %163 = vmatprep.subr.mxu0 0.0
  %164 = vmatpush1.msra.mxu0 0.0
  %165 = vmatprep.subr.mxu0 0.0
  %166 = vmatpush1.msra.mxu0 0.0
  %167 = vmatprep.subr.mxu0 0.0
  %168 = vmatpush1.msra.mxu0 0.0
  %169 = vmatprep.subr.mxu0 0.0
  %170 = vmatpush1.msra.mxu0 0.0
  %171 = vmatprep.subr.mxu0 0.0
  %172 = vmatpush1.msra.mxu0 0.0
  %173 = vmatprep.subr.mxu0 0.0
  %174 = vmatpush1.msra.mxu0 0.0
  %175 = vmatprep.subr.mxu0 0.0
  %176 = vmatpush1.msra.mxu0 0.0
  %177 = vmatprep.subr.mxu0 0.0
  %178 = vmatpush1.msra.mxu0 0.0
  %179 = vmatprep.subr.mxu0 0.0
  %180 = vmatpush1.msra.mxu0 0.0
  %181 = vmatprep.subr.mxu0 0.0
  %182 = vmatpush1.msra.mxu0 0.0
  %183 = vmatprep.subr.mxu0 0.0
  %184 = vmatpush1.msra.mxu0 %v151
  %185 = vmatprep.subr.mxu0 0.0
  %186 = vmatpush2.msra.mxu0 0.0
  %187 = vmatprep.subr.mxu0 0.0
  %188 = vmatpush2.msra.mxu0 0.0
  %189 = vmatprep.subr.mxu0 0.0
  %190 = vmatpush2.msra.mxu0 0.0
  %191 = vmatprep.subr.mxu0 0.0
  %192 = vmatpush2.msra.mxu0 0.0
  %193 = vmatprep.subr.mxu0 0.0
  %194 = vmatpush2.msra.mxu0 0.0
  %195 = vmatprep.subr.mxu0 0.0
  %196 = vmatpush2.msra.mxu0 0.0
  %197 = vmatprep.subr.mxu0 0.0
  %198 = vmatpush2.msra.mxu0 0.0
  %199 = vmatprep.subr.mxu0 0.0
  %200 = vmatpush2.msra.mxu0 0.0
  %201 = vmatprep.subr.mxu0 0.0
  %202 = vmatpush2.msra.mxu0 0.0
  %203 = vmatprep.subr.mxu0 0.0
  %204 = vmatpush2.msra.mxu0 0.0
  %205 = vmatprep.subr.mxu0 0.0
  %206 = vmatpush2.msra.mxu0 0.0
  %207 = vmatprep.subr.mxu0 0.0
  %208 = vmatpush2.msra.mxu0 0.0
  %209 = vmatprep.subr.mxu0 0.0
  %210 = vmatpush2.msra.mxu0 0.0
  %211 = vmatprep.subr.mxu0 0.0
  %212 = vmatpush2.msra.mxu0 0.0
  %213 = vmatprep.subr.mxu0 0.0
  %214 = vmatpush2.msra.mxu0 0.0
  %215 = vmatprep.subr.mxu0 0.0
  %216 = vmatpush2.msra.mxu0 0.0
  %217 = vmatprep.mubr.f32.mxu0 0.0
  %218 = vmatmul.mubr.f32.gmra.mxu0 %v102
  %v219 = vpop.f32.mrf.mxu0
  %v220 = vadd.f32 0.0, %v219
  %v221 = vpop.f32.mrf.mxu0
  %222 = vmatprep.mubr.f32.mxu0 0.0
  %223 = vmatmul.mubr.f32.gmra.mxu0 %v105
  %v224 = vpop.f32.mrf.mxu0
  %v225 = vadd.f32 0.0, %v224
  %v226 = vpop.f32.mrf.mxu0
  %227 = vmatprep.mubr.f32.mxu0 0.0
  %228 = vmatmul.mubr.f32.gmra.mxu0 %v108
  %v229 = vpop.f32.mrf.mxu0
  %v230 = vadd.f32 0.0, %v229
  %v231 = vpop.f32.mrf.mxu0
  %232 = vmatprep.mubr.f32.mxu0 0.0
  %233 = vmatmul.mubr.f32.gmra.mxu0 %v111
  %v234 = vpop.f32.mrf.mxu0
  %v235 = vadd.f32 0.0, %v234
  %v236 = vpop.f32.mrf.mxu0
  %237 = vmatprep.mubr.f32.mxu0 0.0
  %238 = vmatmul.mubr.f32.gmra.mxu0 %v114
  %v239 = vpop.f32.mrf.mxu0
  %v240 = vadd.f32 0.0, %v239
  %v241 = vpop.f32.mrf.mxu0
  %242 = vmatprep.mubr.f32.mxu0 0.0
  %243 = vmatmul.mubr.f32.gmra.mxu0 %v117
  %v244 = vpop.f32.mrf.mxu0
  %v245 = vadd.f32 0.0, %v244
  %v246 = vpop.f32.mrf.mxu0
  %247 = vmatprep.mubr.f32.mxu0 0.0
  %248 = vmatmul.mubr.f32.gmra.mxu0 %v120
  %v249 = vpop.f32.mrf.mxu0
  %v250 = vadd.f32 0.0, %v249
  %v251 = vpop.f32.mrf.mxu0
  %252 = vmatprep.mubr.f32.mxu0 0.0
  %253 = vmatmul.mubr.f32.gmra.mxu0 %v123
  %v254 = vpop.f32.mrf.mxu0
  %v255 = vadd.f32 0.0, %v254
  %v256 = vpop.f32.mrf.mxu0
  %257 = vmatprep.mubr.f32.mxu0 0.0
  %258 = vmatmul.mubr.f32.gmra.mxu0 %v126
  %v259 = vpop.f32.mrf.mxu0
  %v260 = vadd.f32 0.0, %v259
  %v261 = vpop.f32.mrf.mxu0
  %262 = vmatprep.mubr.f32.mxu0 0.0
  %263 = vmatmul.mubr.f32.gmra.mxu0 %v129
  %v264 = vpop.f32.mrf.mxu0
  %v265 = vadd.f32 0.0, %v264
  %v266 = vpop.f32.mrf.mxu0
  %267 = vmatprep.mubr.f32.mxu0 0.0
  %268 = vmatmul.mubr.f32.gmra.mxu0 %v132
  %v269 = vpop.f32.mrf.mxu0
  %v270 = vadd.f32 0.0, %v269
  %v271 = vpop.f32.mrf.mxu0
  %272 = vmatprep.mubr.f32.mxu0 0.0
  %273 = vmatmul.mubr.f32.gmra.mxu0 %v135
  %v274 = vpop.f32.mrf.mxu0
  %v275 = vadd.f32 0.0, %v274
  %v276 = vpop.f32.mrf.mxu0
  %277 = vmatprep.mubr.f32.mxu0 0.0
  %278 = vmatmul.mubr.f32.gmra.mxu0 %v138
  %v279 = vpop.f32.mrf.mxu0
  %v280 = vadd.f32 0.0, %v279
  %v281 = vpop.f32.mrf.mxu0
  %282 = vmatprep.mubr.f32.mxu0 0.0
  %283 = vmatmul.mubr.f32.gmra.mxu0 %v141
  %v284 = vpop.f32.mrf.mxu0
  %v285 = vadd.f32 0.0, %v284
  %v286 = vpop.f32.mrf.mxu0
  %287 = vmatprep.mubr.f32.mxu0 0.0
  %288 = vmatmul.mubr.f32.gmra.mxu0 %v144
  %v289 = vpop.f32.mrf.mxu0
  %v290 = vadd.f32 0.0, %v289
  %v291 = vpop.f32.mrf.mxu0
  %292 = vmatprep.mubr.f32.mxu0 0.0
  %293 = vmatmul.mubr.f32.gmra.mxu0 %v147
  %v294 = vpop.f32.mrf.mxu0
  %v295 = vadd.f32 0.0, %v294
  %v296 = vpop.f32.mrf.mxu0
  %297 = vdwg.mxu0
  %v299 = vsel %vm100, %v34, 0
  %v302 = vsel %vm100, %v36, 0
  %v305 = vsel %vm100, %v38, 0
  %v308 = vsel %vm100, %v40, 0
  %v311 = vsel %vm100, %v42, 0
  %v314 = vsel %vm100, %v44, 0
  %v317 = vsel %vm100, %v46, 0
  %v320 = vsel %vm100, %v48, 0
  %v323 = vsel %vm100, %v50, 0
  %v326 = vsel %vm100, %v52, 0
  %v329 = vsel %vm100, %v54, 0
  %v332 = vsel %vm100, %v56, 0
  %v335 = vsel %vm100, %v58, 0
  %v338 = vsel %vm100, %v60, 0
  %v341 = vsel %vm100, %v62, 0
  %v344 = vsel %vm100, %v64, 0
  %v347 = vsel %vm149, %v65, 0
  %349 = vmatprep.subr.mxu0 0.0
  %350 = vmatpush1.msra.mxu0 0.0
  %351 = vmatprep.subr.mxu0 0.0
  %352 = vmatpush1.msra.mxu0 0.0
  %353 = vmatprep.subr.mxu0 0.0
  %354 = vmatpush1.msra.mxu0 0.0
  %355 = vmatprep.subr.mxu0 0.0
  %356 = vmatpush1.msra.mxu0 0.0
  %357 = vmatprep.subr.mxu0 0.0
  %358 = vmatpush1.msra.mxu0 0.0
  %359 = vmatprep.subr.mxu0 0.0
  %360 = vmatpush1.msra.mxu0 0.0
  %361 = vmatprep.subr.mxu0 0.0
  %362 = vmatpush1.msra.mxu0 0.0
  %363 = vmatprep.subr.mxu0 0.0
  %364 = vmatpush1.msra.mxu0 0.0
  %365 = vmatprep.subr.mxu0 0.0
  %366 = vmatpush1.msra.mxu0 0.0
  %367 = vmatprep.subr.mxu0 0.0
  %368 = vmatpush1.msra.mxu0 0.0
  %369 = vmatprep.subr.mxu0 0.0
  %370 = vmatpush1.msra.mxu0 0.0
  %371 = vmatprep.subr.mxu0 0.0
  %372 = vmatpush1.msra.mxu0 0.0
  %373 = vmatprep.subr.mxu0 0.0
  %374 = vmatpush1.msra.mxu0 0.0
  %375 = vmatprep.subr.mxu0 0.0
  %376 = vmatpush1.msra.mxu0 0.0
  %377 = vmatprep.subr.mxu0 0.0
  %378 = vmatpush1.msra.mxu0 0.0
  %379 = vmatprep.subr.mxu0 0.0
  %380 = vmatpush1.msra.mxu0 %v347
  %381 = vmatprep.subr.mxu0 0.0
  %382 = vmatpush2.msra.mxu0 0.0
  %383 = vmatprep.subr.mxu0 0.0
  %384 = vmatpush2.msra.mxu0 0.0
  %385 = vmatprep.subr.mxu0 0.0
  %386 = vmatpush2.msra.mxu0 0.0
  %387 = vmatprep.subr.mxu0 0.0
  %388 = vmatpush2.msra.mxu0 0.0
  %389 = vmatprep.subr.mxu0 0.0
  %390 = vmatpush2.msra.mxu0 0.0
  %391 = vmatprep.subr.mxu0 0.0
  %392 = vmatpush2.msra.mxu0 0.0
  %393 = vmatprep.subr.mxu0 0.0
  %394 = vmatpush2.msra.mxu0 0.0
  %395 = vmatprep.subr.mxu0 0.0
  %396 = vmatpush2.msra.mxu0 0.0
  %397 = vmatprep.subr.mxu0 0.0
  %398 = vmatpush2.msra.mxu0 0.0
  %399 = vmatprep.subr.mxu0 0.0
  %400 = vmatpush2.msra.mxu0 0.0
  %401 = vmatprep.subr.mxu0 0.0
  %402 = vmatpush2.msra.mxu0 0.0
  %403 = vmatprep.subr.mxu0 0.0
  %404 = vmatpush2.msra.mxu0 0.0
  %405 = vmatprep.subr.mxu0 0.0
  %406 = vmatpush2.msra.mxu0 0.0
  %407 = vmatprep.subr.mxu0 0.0
  %408 = vmatpush2.msra.mxu0 0.0
  %409 = vmatprep.subr.mxu0 0.0
  %410 = vmatpush2.msra.mxu0 0.0
  %411 = vmatprep.subr.mxu0 0.0
  %412 = vmatpush2.msra.mxu0 0.0
  %413 = vmatprep.mubr.f32.mxu0 0.0
  %414 = vmatmul.mubr.f32.gmra.mxu0 %v299
  %v415 = vpop.f32.mrf.mxu0
  %v416 = vadd.f32 %v220, %v415
  %v417 = vpop.f32.mrf.mxu0
  %418 = vmatprep.mubr.f32.mxu0 0.0
  %419 = vmatmul.mubr.f32.gmra.mxu0 %v302
  %v420 = vpop.f32.mrf.mxu0
  %v421 = vadd.f32 %v225, %v420
  %v422 = vpop.f32.mrf.mxu0
  %423 = vmatprep.mubr.f32.mxu0 0.0
  %424 = vmatmul.mubr.f32.gmra.mxu0 %v305
  %v425 = vpop.f32.mrf.mxu0
  %v426 = vadd.f32 %v230, %v425
  %v427 = vpop.f32.mrf.mxu0
  %428 = vmatprep.mubr.f32.mxu0 0.0
  %429 = vmatmul.mubr.f32.gmra.mxu0 %v308
  %v430 = vpop.f32.mrf.mxu0
  %v431 = vadd.f32 %v235, %v430
  %v432 = vpop.f32.mrf.mxu0
  %433 = vmatprep.mubr.f32.mxu0 0.0
  %434 = vmatmul.mubr.f32.gmra.mxu0 %v311
  %v435 = vpop.f32.mrf.mxu0
  %v436 = vadd.f32 %v240, %v435
  %v437 = vpop.f32.mrf.mxu0
  %438 = vmatprep.mubr.f32.mxu0 0.0
  %439 = vmatmul.mubr.f32.gmra.mxu0 %v314
  %v440 = vpop.f32.mrf.mxu0
  %v441 = vadd.f32 %v245, %v440
  %v442 = vpop.f32.mrf.mxu0
  %443 = vmatprep.mubr.f32.mxu0 0.0
  %444 = vmatmul.mubr.f32.gmra.mxu0 %v317
  %v445 = vpop.f32.mrf.mxu0
  %v446 = vadd.f32 %v250, %v445
  %v447 = vpop.f32.mrf.mxu0
  %448 = vmatprep.mubr.f32.mxu0 0.0
  %449 = vmatmul.mubr.f32.gmra.mxu0 %v320
  %v450 = vpop.f32.mrf.mxu0
  %v451 = vadd.f32 %v255, %v450
  %v452 = vpop.f32.mrf.mxu0
  %453 = vmatprep.mubr.f32.mxu0 0.0
  %454 = vmatmul.mubr.f32.gmra.mxu0 %v323
  %v455 = vpop.f32.mrf.mxu0
  %v456 = vadd.f32 %v260, %v455
  %v457 = vpop.f32.mrf.mxu0
  %458 = vmatprep.mubr.f32.mxu0 0.0
  %459 = vmatmul.mubr.f32.gmra.mxu0 %v326
  %v460 = vpop.f32.mrf.mxu0
  %v461 = vadd.f32 %v265, %v460
  %v462 = vpop.f32.mrf.mxu0
  %463 = vmatprep.mubr.f32.mxu0 0.0
  %464 = vmatmul.mubr.f32.gmra.mxu0 %v329
  %v465 = vpop.f32.mrf.mxu0
  %v466 = vadd.f32 %v270, %v465
  %v467 = vpop.f32.mrf.mxu0
  %468 = vmatprep.mubr.f32.mxu0 0.0
  %469 = vmatmul.mubr.f32.gmra.mxu0 %v332
  %v470 = vpop.f32.mrf.mxu0
  %v471 = vadd.f32 %v275, %v470
  %v472 = vpop.f32.mrf.mxu0
  %473 = vmatprep.mubr.f32.mxu0 0.0
  %474 = vmatmul.mubr.f32.gmra.mxu0 %v335
  %v475 = vpop.f32.mrf.mxu0
  %v476 = vadd.f32 %v280, %v475
  %v477 = vpop.f32.mrf.mxu0
  %478 = vmatprep.mubr.f32.mxu0 0.0
  %479 = vmatmul.mubr.f32.gmra.mxu0 %v338
  %v480 = vpop.f32.mrf.mxu0
  %v481 = vadd.f32 %v285, %v480
  %v482 = vpop.f32.mrf.mxu0
  %483 = vmatprep.mubr.f32.mxu0 0.0
  %484 = vmatmul.mubr.f32.gmra.mxu0 %v341
  %v485 = vpop.f32.mrf.mxu0
  %v486 = vadd.f32 %v290, %v485
  %v487 = vpop.f32.mrf.mxu0
  %488 = vmatprep.mubr.f32.mxu0 0.0
  %489 = vmatmul.mubr.f32.gmra.mxu0 %v344
  %v490 = vpop.f32.mrf.mxu0
  %v491 = vadd.f32 %v295, %v490
  %v492 = vpop.f32.mrf.mxu0
  %493 = vdwg.mxu0
  %s494 = scalar_lea.vmem %s0, 2
  %v495 = vld [vmem:[%s494] ss:$2 sm:$0xff]
  %s496 = scalar_lea.vmem %s0, 50
  %v497 = vld [vmem:[%s496] ss:$2 sm:$0xff]
  %s498 = scalar_lea.vmem %s0, 98
  %v499 = vld [vmem:[%s498] ss:$2 sm:$0xff]
  %s500 = scalar_lea.vmem %s0, 146
  %v501 = vld [vmem:[%s500] ss:$2 sm:$0xff]
  %s502 = scalar_lea.vmem %s0, 194
  %v503 = vld [vmem:[%s502] ss:$2 sm:$0xff]
  %s504 = scalar_lea.vmem %s0, 242
  %v505 = vld [vmem:[%s504] ss:$2 sm:$0xff]
  %s506 = scalar_lea.vmem %s0, 290
  %v507 = vld [vmem:[%s506] ss:$2 sm:$0xff]
  %s508 = scalar_lea.vmem %s0, 338
  %v509 = vld [vmem:[%s508] ss:$2 sm:$0xff]
  %s510 = scalar_lea.vmem %s0, 434
  %v511 = vld [vmem:[%s510] ss:$2 sm:$0xff]
  %s512 = scalar_lea.vmem %s0, 482
  %v513 = vld [vmem:[%s512] ss:$2 sm:$0xff]
  %s514 = scalar_lea.vmem %s0, 530
  %v515 = vld [vmem:[%s514] ss:$2 sm:$0xff]
  %s516 = scalar_lea.vmem %s0, 578
  %v517 = vld [vmem:[%s516] ss:$2 sm:$0xff]
  %s518 = scalar_lea.vmem %s0, 626
  %v519 = vld [vmem:[%s518] ss:$2 sm:$0xff]
  %s520 = scalar_lea.vmem %s0, 674
  %v521 = vld [vmem:[%s520] ss:$2 sm:$0xff]
  %s522 = scalar_lea.vmem %s0, 722
  %v523 = vld [vmem:[%s522] ss:$2 sm:$0xff]
  %s524 = scalar_lea.vmem %s0, 770
  %v525 = vld [vmem:[%s524] ss:$2 sm:$0xff]
  %s526 = scalar_lea.vmem %s1, 8
  %v527 = vld [vmem:[%s526] sm:$0xf]
  %v529 = vsel %vm100, %v495, 0
  %v532 = vsel %vm100, %v497, 0
  %v535 = vsel %vm100, %v499, 0
  %v538 = vsel %vm100, %v501, 0
  %v541 = vsel %vm100, %v503, 0
  %v544 = vsel %vm100, %v505, 0
  %v547 = vsel %vm100, %v507, 0
  %v550 = vsel %vm100, %v509, 0
  %v553 = vsel %vm100, %v511, 0
  %v556 = vsel %vm100, %v513, 0
  %v559 = vsel %vm100, %v515, 0
  %v562 = vsel %vm100, %v517, 0
  %v565 = vsel %vm100, %v519, 0
  %v568 = vsel %vm100, %v521, 0
  %v571 = vsel %vm100, %v523, 0
  %v574 = vsel %vm100, %v525, 0
  %v577 = vsel %vm149, %v527, 0
  %579 = vmatprep.subr.mxu0 0.0
  %580 = vmatpush1.msra.mxu0 0.0
  %581 = vmatprep.subr.mxu0 0.0
  %582 = vmatpush1.msra.mxu0 0.0
  %583 = vmatprep.subr.mxu0 0.0
  %584 = vmatpush1.msra.mxu0 0.0
  %585 = vmatprep.subr.mxu0 0.0
  %586 = vmatpush1.msra.mxu0 0.0
  %587 = vmatprep.subr.mxu0 0.0
  %588 = vmatpush1.msra.mxu0 0.0
  %589 = vmatprep.subr.mxu0 0.0
  %590 = vmatpush1.msra.mxu0 0.0
  %591 = vmatprep.subr.mxu0 0.0
  %592 = vmatpush1.msra.mxu0 0.0
  %593 = vmatprep.subr.mxu0 0.0
  %594 = vmatpush1.msra.mxu0 0.0
  %595 = vmatprep.subr.mxu0 0.0
  %596 = vmatpush1.msra.mxu0 0.0
  %597 = vmatprep.subr.mxu0 0.0
  %598 = vmatpush1.msra.mxu0 0.0
  %599 = vmatprep.subr.mxu0 0.0
  %600 = vmatpush1.msra.mxu0 0.0
  %601 = vmatprep.subr.mxu0 0.0
  %602 = vmatpush1.msra.mxu0 0.0
  %603 = vmatprep.subr.mxu0 0.0
  %604 = vmatpush1.msra.mxu0 0.0
  %605 = vmatprep.subr.mxu0 0.0
  %606 = vmatpush1.msra.mxu0 0.0
  %607 = vmatprep.subr.mxu0 0.0
  %608 = vmatpush1.msra.mxu0 0.0
  %609 = vmatprep.subr.mxu0 0.0
  %610 = vmatpush1.msra.mxu0 %v577
  %611 = vmatprep.subr.mxu0 0.0
  %612 = vmatpush2.msra.mxu0 0.0
  %613 = vmatprep.subr.mxu0 0.0
  %614 = vmatpush2.msra.mxu0 0.0
  %615 = vmatprep.subr.mxu0 0.0
  %616 = vmatpush2.msra.mxu0 0.0
  %617 = vmatprep.subr.mxu0 0.0
  %618 = vmatpush2.msra.mxu0 0.0
  %619 = vmatprep.subr.mxu0 0.0
  %620 = vmatpush2.msra.mxu0 0.0
  %621 = vmatprep.subr.mxu0 0.0
  %622 = vmatpush2.msra.mxu0 0.0
  %623 = vmatprep.subr.mxu0 0.0
  %624 = vmatpush2.msra.mxu0 0.0
  %625 = vmatprep.subr.mxu0 0.0
  %626 = vmatpush2.msra.mxu0 0.0
  %627 = vmatprep.subr.mxu0 0.0
  %628 = vmatpush2.msra.mxu0 0.0
  %629 = vmatprep.subr.mxu0 0.0
  %630 = vmatpush2.msra.mxu0 0.0
  %631 = vmatprep.subr.mxu0 0.0
  %632 = vmatpush2.msra.mxu0 0.0
  %633 = vmatprep.subr.mxu0 0.0
  %634 = vmatpush2.msra.mxu0 0.0
  %635 = vmatprep.subr.mxu0 0.0
  %636 = vmatpush2.msra.mxu0 0.0
  %637 = vmatprep.subr.mxu0 0.0
  %638 = vmatpush2.msra.mxu0 0.0
  %639 = vmatprep.subr.mxu0 0.0
  %640 = vmatpush2.msra.mxu0 0.0
  %641 = vmatprep.subr.mxu0 0.0
  %642 = vmatpush2.msra.mxu0 0.0
  %643 = vmatprep.mubr.f32.mxu0 0.0
  %644 = vmatmul.mubr.f32.gmra.mxu0 %v529
  %v645 = vpop.f32.mrf.mxu0
  %v646 = vadd.f32 0.0, %v645
  %v647 = vpop.f32.mrf.mxu0
  %648 = vmatprep.mubr.f32.mxu0 0.0
  %649 = vmatmul.mubr.f32.gmra.mxu0 %v532
  %v650 = vpop.f32.mrf.mxu0
  %v651 = vadd.f32 0.0, %v650
  %v652 = vpop.f32.mrf.mxu0
  %653 = vmatprep.mubr.f32.mxu0 0.0
  %654 = vmatmul.mubr.f32.gmra.mxu0 %v535
  %v655 = vpop.f32.mrf.mxu0
  %v656 = vadd.f32 0.0, %v655
  %v657 = vpop.f32.mrf.mxu0
  %658 = vmatprep.mubr.f32.mxu0 0.0
  %659 = vmatmul.mubr.f32.gmra.mxu0 %v538
  %v660 = vpop.f32.mrf.mxu0
  %v661 = vadd.f32 0.0, %v660
  %v662 = vpop.f32.mrf.mxu0
  %663 = vmatprep.mubr.f32.mxu0 0.0
  %664 = vmatmul.mubr.f32.gmra.mxu0 %v541
  %v665 = vpop.f32.mrf.mxu0
  %v666 = vadd.f32 0.0, %v665
  %v667 = vpop.f32.mrf.mxu0
  %668 = vmatprep.mubr.f32.mxu0 0.0
  %669 = vmatmul.mubr.f32.gmra.mxu0 %v544
  %v670 = vpop.f32.mrf.mxu0
  %v671 = vadd.f32 0.0, %v670
  %v672 = vpop.f32.mrf.mxu0
  %673 = vmatprep.mubr.f32.mxu0 0.0
  %674 = vmatmul.mubr.f32.gmra.mxu0 %v547
  %v675 = vpop.f32.mrf.mxu0
  %v676 = vadd.f32 0.0, %v675
  %v677 = vpop.f32.mrf.mxu0
  %678 = vmatprep.mubr.f32.mxu0 0.0
  %679 = vmatmul.mubr.f32.gmra.mxu0 %v550
  %v680 = vpop.f32.mrf.mxu0
  %v681 = vadd.f32 0.0, %v680
  %v682 = vpop.f32.mrf.mxu0
  %683 = vmatprep.mubr.f32.mxu0 0.0
  %684 = vmatmul.mubr.f32.gmra.mxu0 %v553
  %v685 = vpop.f32.mrf.mxu0
  %v686 = vadd.f32 0.0, %v685
  %v687 = vpop.f32.mrf.mxu0
  %688 = vmatprep.mubr.f32.mxu0 0.0
  %689 = vmatmul.mubr.f32.gmra.mxu0 %v556
  %v690 = vpop.f32.mrf.mxu0
  %v691 = vadd.f32 0.0, %v690
  %v692 = vpop.f32.mrf.mxu0
  %693 = vmatprep.mubr.f32.mxu0 0.0
  %694 = vmatmul.mubr.f32.gmra.mxu0 %v559
  %v695 = vpop.f32.mrf.mxu0
  %v696 = vadd.f32 0.0, %v695
  %v697 = vpop.f32.mrf.mxu0
  %698 = vmatprep.mubr.f32.mxu0 0.0
  %699 = vmatmul.mubr.f32.gmra.mxu0 %v562
  %v700 = vpop.f32.mrf.mxu0
  %v701 = vadd.f32 0.0, %v700
  %v702 = vpop.f32.mrf.mxu0
  %703 = vmatprep.mubr.f32.mxu0 0.0
  %704 = vmatmul.mubr.f32.gmra.mxu0 %v565
  %v705 = vpop.f32.mrf.mxu0
  %v706 = vadd.f32 0.0, %v705
  %v707 = vpop.f32.mrf.mxu0
  %708 = vmatprep.mubr.f32.mxu0 0.0
  %709 = vmatmul.mubr.f32.gmra.mxu0 %v568
  %v710 = vpop.f32.mrf.mxu0
  %v711 = vadd.f32 0.0, %v710
  %v712 = vpop.f32.mrf.mxu0
  %713 = vmatprep.mubr.f32.mxu0 0.0
  %714 = vmatmul.mubr.f32.gmra.mxu0 %v571
  %v715 = vpop.f32.mrf.mxu0
  %v716 = vadd.f32 0.0, %v715
  %v717 = vpop.f32.mrf.mxu0
  %718 = vmatprep.mubr.f32.mxu0 0.0
  %719 = vmatmul.mubr.f32.gmra.mxu0 %v574
  %v720 = vpop.f32.mrf.mxu0
  %v721 = vadd.f32 0.0, %v720
  %v722 = vpop.f32.mrf.mxu0
  %723 = vdwg.mxu0
  %v724 = vadd.f32 %v416, %v646
  %v725 = vadd.f32 %v421, %v651
  %v726 = vadd.f32 %v426, %v656
  %v727 = vadd.f32 %v431, %v661
  %v728 = vadd.f32 %v436, %v666
  %v729 = vadd.f32 %v441, %v671
  %v730 = vadd.f32 %v446, %v676
  %v731 = vadd.f32 %v451, %v681
  %v732 = vadd.f32 %v456, %v686
  %v733 = vadd.f32 %v461, %v691
  %v734 = vadd.f32 %v466, %v696
  %v735 = vadd.f32 %v471, %v701
  %v736 = vadd.f32 %v476, %v706
  %v737 = vadd.f32 %v481, %v711
  %v738 = vadd.f32 %v486, %v716
  %v739 = vadd.f32 %v491, %v721
  %s740 = scalar_lea.vmem %s0, 3
  %v741 = vld [vmem:[%s740] ss:$2 sm:$0xff]
  %s742 = scalar_lea.vmem %s0, 51
  %v743 = vld [vmem:[%s742] ss:$2 sm:$0xff]
  %s744 = scalar_lea.vmem %s0, 99
  %v745 = vld [vmem:[%s744] ss:$2 sm:$0xff]
  %s746 = scalar_lea.vmem %s0, 147
  %v747 = vld [vmem:[%s746] ss:$2 sm:$0xff]
  %s748 = scalar_lea.vmem %s0, 195
  %v749 = vld [vmem:[%s748] ss:$2 sm:$0xff]
  %s750 = scalar_lea.vmem %s0, 243
  %v751 = vld [vmem:[%s750] ss:$2 sm:$0xff]
  %s752 = scalar_lea.vmem %s0, 291
  %v753 = vld [vmem:[%s752] ss:$2 sm:$0xff]
  %s754 = scalar_lea.vmem %s0, 339
  %v755 = vld [vmem:[%s754] ss:$2 sm:$0xff]
  %s756 = scalar_lea.vmem %s0, 435
  %v757 = vld [vmem:[%s756] ss:$2 sm:$0xff]
  %s758 = scalar_lea.vmem %s0, 483
  %v759 = vld [vmem:[%s758] ss:$2 sm:$0xff]
  %s760 = scalar_lea.vmem %s0, 531
  %v761 = vld [vmem:[%s760] ss:$2 sm:$0xff]
  %s762 = scalar_lea.vmem %s0, 579
  %v763 = vld [vmem:[%s762] ss:$2 sm:$0xff]
  %s764 = scalar_lea.vmem %s0, 627
  %v765 = vld [vmem:[%s764] ss:$2 sm:$0xff]
  %s766 = scalar_lea.vmem %s0, 675
  %v767 = vld [vmem:[%s766] ss:$2 sm:$0xff]
  %s768 = scalar_lea.vmem %s0, 723
  %v769 = vld [vmem:[%s768] ss:$2 sm:$0xff]
  %s770 = scalar_lea.vmem %s0, 771
  %v771 = vld [vmem:[%s770] ss:$2 sm:$0xff]
  %s772 = scalar_lea.vmem %s1, 12
  %v773 = vld [vmem:[%s772] sm:$0xf]
  %v775 = vsel %vm100, %v741, 0
  %v778 = vsel %vm100, %v743, 0
  %v781 = vsel %vm100, %v745, 0
  %v784 = vsel %vm100, %v747, 0
  %v787 = vsel %vm100, %v749, 0
  %v790 = vsel %vm100, %v751, 0
  %v793 = vsel %vm100, %v753, 0
  %v796 = vsel %vm100, %v755, 0
  %v799 = vsel %vm100, %v757, 0
  %v802 = vsel %vm100, %v759, 0
  %v805 = vsel %vm100, %v761, 0
  %v808 = vsel %vm100, %v763, 0
  %v811 = vsel %vm100, %v765, 0
  %v814 = vsel %vm100, %v767, 0
  %v817 = vsel %vm100, %v769, 0
  %v820 = vsel %vm100, %v771, 0
  %v823 = vsel %vm149, %v773, 0
  %825 = vmatprep.subr.mxu0 0.0
  %826 = vmatpush1.msra.mxu0 0.0
  %827 = vmatprep.subr.mxu0 0.0
  %828 = vmatpush1.msra.mxu0 0.0
  %829 = vmatprep.subr.mxu0 0.0
  %830 = vmatpush1.msra.mxu0 0.0
  %831 = vmatprep.subr.mxu0 0.0
  %832 = vmatpush1.msra.mxu0 0.0
  %833 = vmatprep.subr.mxu0 0.0
  %834 = vmatpush1.msra.mxu0 0.0
  %835 = vmatprep.subr.mxu0 0.0
  %836 = vmatpush1.msra.mxu0 0.0
  %837 = vmatprep.subr.mxu0 0.0
  %838 = vmatpush1.msra.mxu0 0.0
  %839 = vmatprep.subr.mxu0 0.0
  %840 = vmatpush1.msra.mxu0 0.0
  %841 = vmatprep.subr.mxu0 0.0
  %842 = vmatpush1.msra.mxu0 0.0
  %843 = vmatprep.subr.mxu0 0.0
  %844 = vmatpush1.msra.mxu0 0.0
  %845 = vmatprep.subr.mxu0 0.0
  %846 = vmatpush1.msra.mxu0 0.0
  %847 = vmatprep.subr.mxu0 0.0
  %848 = vmatpush1.msra.mxu0 0.0
  %849 = vmatprep.subr.mxu0 0.0
  %850 = vmatpush1.msra.mxu0 0.0
  %851 = vmatprep.subr.mxu0 0.0
  %852 = vmatpush1.msra.mxu0 0.0
  %853 = vmatprep.subr.mxu0 0.0
  %854 = vmatpush1.msra.mxu0 0.0
  %855 = vmatprep.subr.mxu0 0.0
  %856 = vmatpush1.msra.mxu0 %v823
  %857 = vmatprep.subr.mxu0 0.0
  %858 = vmatpush2.msra.mxu0 0.0
  %859 = vmatprep.subr.mxu0 0.0
  %860 = vmatpush2.msra.mxu0 0.0
  %861 = vmatprep.subr.mxu0 0.0
  %862 = vmatpush2.msra.mxu0 0.0
  %863 = vmatprep.subr.mxu0 0.0
  %864 = vmatpush2.msra.mxu0 0.0
  %865 = vmatprep.subr.mxu0 0.0
  %866 = vmatpush2.msra.mxu0 0.0
  %867 = vmatprep.subr.mxu0 0.0
  %868 = vmatpush2.msra.mxu0 0.0
  %869 = vmatprep.subr.mxu0 0.0
  %870 = vmatpush2.msra.mxu0 0.0
  %871 = vmatprep.subr.mxu0 0.0
  %872 = vmatpush2.msra.mxu0 0.0
  %873 = vmatprep.subr.mxu0 0.0
  %874 = vmatpush2.msra.mxu0 0.0
  %875 = vmatprep.subr.mxu0 0.0
  %876 = vmatpush2.msra.mxu0 0.0
  %877 = vmatprep.subr.mxu0 0.0
  %878 = vmatpush2.msra.mxu0 0.0
  %879 = vmatprep.subr.mxu0 0.0
  %880 = vmatpush2.msra.mxu0 0.0
  %881 = vmatprep.subr.mxu0 0.0
  %882 = vmatpush2.msra.mxu0 0.0
  %883 = vmatprep.subr.mxu0 0.0
  %884 = vmatpush2.msra.mxu0 0.0
  %885 = vmatprep.subr.mxu0 0.0
  %886 = vmatpush2.msra.mxu0 0.0
  %887 = vmatprep.subr.mxu0 0.0
  %888 = vmatpush2.msra.mxu0 0.0
  %889 = vmatprep.mubr.f32.mxu0 0.0
  %890 = vmatmul.mubr.f32.gmra.mxu0 %v775
  %v891 = vpop.f32.mrf.mxu0
  %v892 = vadd.f32 0.0, %v891
  %v893 = vpop.f32.mrf.mxu0
  %894 = vmatprep.mubr.f32.mxu0 0.0
  %895 = vmatmul.mubr.f32.gmra.mxu0 %v778
  %v896 = vpop.f32.mrf.mxu0
  %v897 = vadd.f32 0.0, %v896
  %v898 = vpop.f32.mrf.mxu0
  %899 = vmatprep.mubr.f32.mxu0 0.0
  %900 = vmatmul.mubr.f32.gmra.mxu0 %v781
  %v901 = vpop.f32.mrf.mxu0
  %v902 = vadd.f32 0.0, %v901
  %v903 = vpop.f32.mrf.mxu0
  %904 = vmatprep.mubr.f32.mxu0 0.0
  %905 = vmatmul.mubr.f32.gmra.mxu0 %v784
  %v906 = vpop.f32.mrf.mxu0
  %v907 = vadd.f32 0.0, %v906
  %v908 = vpop.f32.mrf.mxu0
  %909 = vmatprep.mubr.f32.mxu0 0.0
  %910 = vmatmul.mubr.f32.gmra.mxu0 %v787
  %v911 = vpop.f32.mrf.mxu0
  %v912 = vadd.f32 0.0, %v911
  %v913 = vpop.f32.mrf.mxu0
  %914 = vmatprep.mubr.f32.mxu0 0.0
  %915 = vmatmul.mubr.f32.gmra.mxu0 %v790
  %v916 = vpop.f32.mrf.mxu0
  %v917 = vadd.f32 0.0, %v916
  %v918 = vpop.f32.mrf.mxu0
  %919 = vmatprep.mubr.f32.mxu0 0.0
  %920 = vmatmul.mubr.f32.gmra.mxu0 %v793
  %v921 = vpop.f32.mrf.mxu0
  %v922 = vadd.f32 0.0, %v921
  %v923 = vpop.f32.mrf.mxu0
  %924 = vmatprep.mubr.f32.mxu0 0.0
  %925 = vmatmul.mubr.f32.gmra.mxu0 %v796
  %v926 = vpop.f32.mrf.mxu0
  %v927 = vadd.f32 0.0, %v926
  %v928 = vpop.f32.mrf.mxu0
  %929 = vmatprep.mubr.f32.mxu0 0.0
  %930 = vmatmul.mubr.f32.gmra.mxu0 %v799
  %v931 = vpop.f32.mrf.mxu0
  %v932 = vadd.f32 0.0, %v931
  %v933 = vpop.f32.mrf.mxu0
  %934 = vmatprep.mubr.f32.mxu0 0.0
  %935 = vmatmul.mubr.f32.gmra.mxu0 %v802
  %v936 = vpop.f32.mrf.mxu0
  %v937 = vadd.f32 0.0, %v936
  %v938 = vpop.f32.mrf.mxu0
  %939 = vmatprep.mubr.f32.mxu0 0.0
  %940 = vmatmul.mubr.f32.gmra.mxu0 %v805
  %v941 = vpop.f32.mrf.mxu0
  %v942 = vadd.f32 0.0, %v941
  %v943 = vpop.f32.mrf.mxu0
  %944 = vmatprep.mubr.f32.mxu0 0.0
  %945 = vmatmul.mubr.f32.gmra.mxu0 %v808
  %v946 = vpop.f32.mrf.mxu0
  %v947 = vadd.f32 0.0, %v946
  %v948 = vpop.f32.mrf.mxu0
  %949 = vmatprep.mubr.f32.mxu0 0.0
  %950 = vmatmul.mubr.f32.gmra.mxu0 %v811
  %v951 = vpop.f32.mrf.mxu0
  %v952 = vadd.f32 0.0, %v951
  %v953 = vpop.f32.mrf.mxu0
  %954 = vmatprep.mubr.f32.mxu0 0.0
  %955 = vmatmul.mubr.f32.gmra.mxu0 %v814
  %v956 = vpop.f32.mrf.mxu0
  %v957 = vadd.f32 0.0, %v956
  %v958 = vpop.f32.mrf.mxu0
  %959 = vmatprep.mubr.f32.mxu0 0.0
  %960 = vmatmul.mubr.f32.gmra.mxu0 %v817
  %v961 = vpop.f32.mrf.mxu0
  %v962 = vadd.f32 0.0, %v961
  %v963 = vpop.f32.mrf.mxu0
  %964 = vmatprep.mubr.f32.mxu0 0.0
  %965 = vmatmul.mubr.f32.gmra.mxu0 %v820
  %v966 = vpop.f32.mrf.mxu0
  %v967 = vadd.f32 0.0, %v966
  %v968 = vpop.f32.mrf.mxu0
  %969 = vdwg.mxu0
  %v970 = vadd.f32 %v724, %v892
  %v971 = vadd.f32 %v725, %v897
  %v972 = vadd.f32 %v726, %v902
  %v973 = vadd.f32 %v727, %v907
  %v974 = vadd.f32 %v728, %v912
  %v975 = vadd.f32 %v729, %v917
  %v976 = vadd.f32 %v730, %v922
  %v977 = vadd.f32 %v731, %v927
  %v978 = vadd.f32 %v732, %v932
  %v979 = vadd.f32 %v733, %v937
  %v980 = vadd.f32 %v734, %v942
  %v981 = vadd.f32 %v735, %v947
  %v982 = vadd.f32 %v736, %v952
  %v983 = vadd.f32 %v737, %v957
  %v984 = vadd.f32 %v738, %v962
  %v985 = vadd.f32 %v739, %v967
  %s986 = scalar_lea.vmem %s0, 24
  %v987 = vld [vmem:[%s986] ss:$2 sm:$0xff]
  %s988 = scalar_lea.vmem %s986, 48
  %v989 = vld [vmem:[%s988] ss:$2 sm:$0xff]
  %s990 = scalar_lea.vmem %s986, 96
  %v991 = vld [vmem:[%s990] ss:$2 sm:$0xff]
  %s992 = scalar_lea.vmem %s986, 144
  %v993 = vld [vmem:[%s992] ss:$2 sm:$0xff]
  %s994 = scalar_lea.vmem %s986, 192
  %v995 = vld [vmem:[%s994] ss:$2 sm:$0xff]
  %s996 = scalar_lea.vmem %s986, 240
  %v997 = vld [vmem:[%s996] ss:$2 sm:$0xff]
  %s998 = scalar_lea.vmem %s986, 288
  %v999 = vld [vmem:[%s998] ss:$2 sm:$0xff]
  %s1000 = scalar_lea.vmem %s986, 336
  %v1001 = vld [vmem:[%s1000] ss:$2 sm:$0xff]
  %s1002 = scalar_lea.vmem %s986, 432
  %v1003 = vld [vmem:[%s1002] ss:$2 sm:$0xff]
  %s1004 = scalar_lea.vmem %s986, 480
  %v1005 = vld [vmem:[%s1004] ss:$2 sm:$0xff]
  %s1006 = scalar_lea.vmem %s986, 528
  %v1007 = vld [vmem:[%s1006] ss:$2 sm:$0xff]
  %s1008 = scalar_lea.vmem %s986, 576
  %v1009 = vld [vmem:[%s1008] ss:$2 sm:$0xff]
  %s1010 = scalar_lea.vmem %s986, 624
  %v1011 = vld [vmem:[%s1010] ss:$2 sm:$0xff]
  %s1012 = scalar_lea.vmem %s986, 672
  %v1013 = vld [vmem:[%s1012] ss:$2 sm:$0xff]
  %s1014 = scalar_lea.vmem %s986, 720
  %v1015 = vld [vmem:[%s1014] ss:$2 sm:$0xff]
  %s1016 = scalar_lea.vmem %s986, 768
  %v1017 = vld [vmem:[%s1016] ss:$2 sm:$0xff]
  %s1018 = scalar_lea.vmem %s1, 16
  %v1019 = vld [vmem:[%s1018] sm:$0xf]
  %v1021 = vsel %vm100, %v987, 0
  %v1024 = vsel %vm100, %v989, 0
  %v1027 = vsel %vm100, %v991, 0
  %v1030 = vsel %vm100, %v993, 0
  %v1033 = vsel %vm100, %v995, 0
  %v1036 = vsel %vm100, %v997, 0
  %v1039 = vsel %vm100, %v999, 0
  %v1042 = vsel %vm100, %v1001, 0
  %v1045 = vsel %vm100, %v1003, 0
  %v1048 = vsel %vm100, %v1005, 0
  %v1051 = vsel %vm100, %v1007, 0
  %v1054 = vsel %vm100, %v1009, 0
  %v1057 = vsel %vm100, %v1011, 0
  %v1060 = vsel %vm100, %v1013, 0
  %v1063 = vsel %vm100, %v1015, 0
  %v1066 = vsel %vm100, %v1017, 0
  %v1069 = vsel %vm149, %v1019, 0
  %1071 = vmatprep.subr.mxu0 0.0
  %1072 = vmatpush1.msra.mxu0 0.0
  %1073 = vmatprep.subr.mxu0 0.0
  %1074 = vmatpush1.msra.mxu0 0.0
  %1075 = vmatprep.subr.mxu0 0.0
  %1076 = vmatpush1.msra.mxu0 0.0
  %1077 = vmatprep.subr.mxu0 0.0
  %1078 = vmatpush1.msra.mxu0 0.0
  %1079 = vmatprep.subr.mxu0 0.0
  %1080 = vmatpush1.msra.mxu0 0.0
  %1081 = vmatprep.subr.mxu0 0.0
  %1082 = vmatpush1.msra.mxu0 0.0
  %1083 = vmatprep.subr.mxu0 0.0
  %1084 = vmatpush1.msra.mxu0 0.0
  %1085 = vmatprep.subr.mxu0 0.0
  %1086 = vmatpush1.msra.mxu0 0.0
  %1087 = vmatprep.subr.mxu0 0.0
  %1088 = vmatpush1.msra.mxu0 0.0
  %1089 = vmatprep.subr.mxu0 0.0
  %1090 = vmatpush1.msra.mxu0 0.0
  %1091 = vmatprep.subr.mxu0 0.0
  %1092 = vmatpush1.msra.mxu0 0.0
  %1093 = vmatprep.subr.mxu0 0.0
  %1094 = vmatpush1.msra.mxu0 0.0
  %1095 = vmatprep.subr.mxu0 0.0
  %1096 = vmatpush1.msra.mxu0 0.0
  %1097 = vmatprep.subr.mxu0 0.0
  %1098 = vmatpush1.msra.mxu0 0.0
  %1099 = vmatprep.subr.mxu0 0.0
  %1100 = vmatpush1.msra.mxu0 0.0
  %1101 = vmatprep.subr.mxu0 0.0
  %1102 = vmatpush1.msra.mxu0 %v1069
  %1103 = vmatprep.subr.mxu0 0.0
  %1104 = vmatpush2.msra.mxu0 0.0
  %1105 = vmatprep.subr.mxu0 0.0
  %1106 = vmatpush2.msra.mxu0 0.0
  %1107 = vmatprep.subr.mxu0 0.0
  %1108 = vmatpush2.msra.mxu0 0.0
  %1109 = vmatprep.subr.mxu0 0.0
  %1110 = vmatpush2.msra.mxu0 0.0
  %1111 = vmatprep.subr.mxu0 0.0
  %1112 = vmatpush2.msra.mxu0 0.0
  %1113 = vmatprep.subr.mxu0 0.0
  %1114 = vmatpush2.msra.mxu0 0.0
  %1115 = vmatprep.subr.mxu0 0.0
  %1116 = vmatpush2.msra.mxu0 0.0
  %1117 = vmatprep.subr.mxu0 0.0
  %1118 = vmatpush2.msra.mxu0 0.0
  %1119 = vmatprep.subr.mxu0 0.0
  %1120 = vmatpush2.msra.mxu0 0.0
  %1121 = vmatprep.subr.mxu0 0.0
  %1122 = vmatpush2.msra.mxu0 0.0
  %1123 = vmatprep.subr.mxu0 0.0
  %1124 = vmatpush2.msra.mxu0 0.0
  %1125 = vmatprep.subr.mxu0 0.0
  %1126 = vmatpush2.msra.mxu0 0.0
  %1127 = vmatprep.subr.mxu0 0.0
  %1128 = vmatpush2.msra.mxu0 0.0
  %1129 = vmatprep.subr.mxu0 0.0
  %1130 = vmatpush2.msra.mxu0 0.0
  %1131 = vmatprep.subr.mxu0 0.0
  %1132 = vmatpush2.msra.mxu0 0.0
  %1133 = vmatprep.subr.mxu0 0.0
  %1134 = vmatpush2.msra.mxu0 0.0
  %1135 = vmatprep.mubr.f32.mxu0 0.0
  %1136 = vmatmul.mubr.f32.gmra.mxu0 %v1021
  %v1137 = vpop.f32.mrf.mxu0
  %v1138 = vadd.f32 0.0, %v1137
  %v1139 = vpop.f32.mrf.mxu0
  %1140 = vmatprep.mubr.f32.mxu0 0.0
  %1141 = vmatmul.mubr.f32.gmra.mxu0 %v1024
  %v1142 = vpop.f32.mrf.mxu0
  %v1143 = vadd.f32 0.0, %v1142
  %v1144 = vpop.f32.mrf.mxu0
  %1145 = vmatprep.mubr.f32.mxu0 0.0
  %1146 = vmatmul.mubr.f32.gmra.mxu0 %v1027
  %v1147 = vpop.f32.mrf.mxu0
  %v1148 = vadd.f32 0.0, %v1147
  %v1149 = vpop.f32.mrf.mxu0
  %1150 = vmatprep.mubr.f32.mxu0 0.0
  %1151 = vmatmul.mubr.f32.gmra.mxu0 %v1030
  %v1152 = vpop.f32.mrf.mxu0
  %v1153 = vadd.f32 0.0, %v1152
  %v1154 = vpop.f32.mrf.mxu0
  %1155 = vmatprep.mubr.f32.mxu0 0.0
  %1156 = vmatmul.mubr.f32.gmra.mxu0 %v1033
  %v1157 = vpop.f32.mrf.mxu0
  %v1158 = vadd.f32 0.0, %v1157
  %v1159 = vpop.f32.mrf.mxu0
  %1160 = vmatprep.mubr.f32.mxu0 0.0
  %1161 = vmatmul.mubr.f32.gmra.mxu0 %v1036
  %v1162 = vpop.f32.mrf.mxu0
  %v1163 = vadd.f32 0.0, %v1162
  %v1164 = vpop.f32.mrf.mxu0
  %1165 = vmatprep.mubr.f32.mxu0 0.0
  %1166 = vmatmul.mubr.f32.gmra.mxu0 %v1039
  %v1167 = vpop.f32.mrf.mxu0
  %v1168 = vadd.f32 0.0, %v1167
  %v1169 = vpop.f32.mrf.mxu0
  %1170 = vmatprep.mubr.f32.mxu0 0.0
  %1171 = vmatmul.mubr.f32.gmra.mxu0 %v1042
  %v1172 = vpop.f32.mrf.mxu0
  %v1173 = vadd.f32 0.0, %v1172
  %v1174 = vpop.f32.mrf.mxu0
  %1175 = vmatprep.mubr.f32.mxu0 0.0
  %1176 = vmatmul.mubr.f32.gmra.mxu0 %v1045
  %v1177 = vpop.f32.mrf.mxu0
  %v1178 = vadd.f32 0.0, %v1177
  %v1179 = vpop.f32.mrf.mxu0
  %1180 = vmatprep.mubr.f32.mxu0 0.0
  %1181 = vmatmul.mubr.f32.gmra.mxu0 %v1048
  %v1182 = vpop.f32.mrf.mxu0
  %v1183 = vadd.f32 0.0, %v1182
  %v1184 = vpop.f32.mrf.mxu0
  %1185 = vmatprep.mubr.f32.mxu0 0.0
  %1186 = vmatmul.mubr.f32.gmra.mxu0 %v1051
  %v1187 = vpop.f32.mrf.mxu0
  %v1188 = vadd.f32 0.0, %v1187
  %v1189 = vpop.f32.mrf.mxu0
  %1190 = vmatprep.mubr.f32.mxu0 0.0
  %1191 = vmatmul.mubr.f32.gmra.mxu0 %v1054
  %v1192 = vpop.f32.mrf.mxu0
  %v1193 = vadd.f32 0.0, %v1192
  %v1194 = vpop.f32.mrf.mxu0
  %1195 = vmatprep.mubr.f32.mxu0 0.0
  %1196 = vmatmul.mubr.f32.gmra.mxu0 %v1057
  %v1197 = vpop.f32.mrf.mxu0
  %v1198 = vadd.f32 0.0, %v1197
  %v1199 = vpop.f32.mrf.mxu0
  %1200 = vmatprep.mubr.f32.mxu0 0.0
  %1201 = vmatmul.mubr.f32.gmra.mxu0 %v1060
  %v1202 = vpop.f32.mrf.mxu0
  %v1203 = vadd.f32 0.0, %v1202
  %v1204 = vpop.f32.mrf.mxu0
  %1205 = vmatprep.mubr.f32.mxu0 0.0
  %1206 = vmatmul.mubr.f32.gmra.mxu0 %v1063
  %v1207 = vpop.f32.mrf.mxu0
  %v1208 = vadd.f32 0.0, %v1207
  %v1209 = vpop.f32.mrf.mxu0
  %1210 = vmatprep.mubr.f32.mxu0 0.0
  %1211 = vmatmul.mubr.f32.gmra.mxu0 %v1066
  %v1212 = vpop.f32.mrf.mxu0
  %v1213 = vadd.f32 0.0, %v1212
  %v1214 = vpop.f32.mrf.mxu0
  %1215 = vdwg.mxu0
  %v1216 = vadd.f32 %v970, %v1138
  %v1217 = vadd.f32 %v971, %v1143
  %v1218 = vadd.f32 %v972, %v1148
  %v1219 = vadd.f32 %v973, %v1153
  %v1220 = vadd.f32 %v974, %v1158
  %v1221 = vadd.f32 %v975, %v1163
  %v1222 = vadd.f32 %v976, %v1168
  %v1223 = vadd.f32 %v977, %v1173
  %v1224 = vadd.f32 %v978, %v1178
  %v1225 = vadd.f32 %v979, %v1183
  %v1226 = vadd.f32 %v980, %v1188
  %v1227 = vadd.f32 %v981, %v1193
  %v1228 = vadd.f32 %v982, %v1198
  %v1229 = vadd.f32 %v983, %v1203
  %v1230 = vadd.f32 %v984, %v1208
  %v1231 = vadd.f32 %v985, %v1213
  %s1232 = scalar_lea.vmem %s986, 1
  %v1233 = vld [vmem:[%s1232] ss:$2 sm:$0xff]
  %s1234 = scalar_lea.vmem %s986, 49
  %v1235 = vld [vmem:[%s1234] ss:$2 sm:$0xff]
  %s1236 = scalar_lea.vmem %s986, 97
  %v1237 = vld [vmem:[%s1236] ss:$2 sm:$0xff]
  %s1238 = scalar_lea.vmem %s986, 145
  %v1239 = vld [vmem:[%s1238] ss:$2 sm:$0xff]
  %s1240 = scalar_lea.vmem %s986, 193
  %v1241 = vld [vmem:[%s1240] ss:$2 sm:$0xff]
  %s1242 = scalar_lea.vmem %s986, 241
  %v1243 = vld [vmem:[%s1242] ss:$2 sm:$0xff]
  %s1244 = scalar_lea.vmem %s986, 289
  %v1245 = vld [vmem:[%s1244] ss:$2 sm:$0xff]
  %s1246 = scalar_lea.vmem %s986, 337
  %v1247 = vld [vmem:[%s1246] ss:$2 sm:$0xff]
  %s1248 = scalar_lea.vmem %s986, 433
  %v1249 = vld [vmem:[%s1248] ss:$2 sm:$0xff]
  %s1250 = scalar_lea.vmem %s986, 481
  %v1251 = vld [vmem:[%s1250] ss:$2 sm:$0xff]
  %s1252 = scalar_lea.vmem %s986, 529
  %v1253 = vld [vmem:[%s1252] ss:$2 sm:$0xff]
  %s1254 = scalar_lea.vmem %s986, 577
  %v1255 = vld [vmem:[%s1254] ss:$2 sm:$0xff]
  %s1256 = scalar_lea.vmem %s986, 625
  %v1257 = vld [vmem:[%s1256] ss:$2 sm:$0xff]
  %s1258 = scalar_lea.vmem %s986, 673
  %v1259 = vld [vmem:[%s1258] ss:$2 sm:$0xff]
  %s1260 = scalar_lea.vmem %s986, 721
  %v1261 = vld [vmem:[%s1260] ss:$2 sm:$0xff]
  %s1262 = scalar_lea.vmem %s986, 769
  %v1263 = vld [vmem:[%s1262] ss:$2 sm:$0xff]
  %s1264 = scalar_lea.vmem %s1, 20
  %v1265 = vld [vmem:[%s1264] sm:$0xf]
  %v1267 = vsel %vm100, %v1233, 0
  %v1270 = vsel %vm100, %v1235, 0
  %v1273 = vsel %vm100, %v1237, 0
  %v1276 = vsel %vm100, %v1239, 0
  %v1279 = vsel %vm100, %v1241, 0
  %v1282 = vsel %vm100, %v1243, 0
  %v1285 = vsel %vm100, %v1245, 0
  %v1288 = vsel %vm100, %v1247, 0
  %v1291 = vsel %vm100, %v1249, 0
  %v1294 = vsel %vm100, %v1251, 0
  %v1297 = vsel %vm100, %v1253, 0
  %v1300 = vsel %vm100, %v1255, 0
  %v1303 = vsel %vm100, %v1257, 0
  %v1306 = vsel %vm100, %v1259, 0
  %v1309 = vsel %vm100, %v1261, 0
  %v1312 = vsel %vm100, %v1263, 0
  %v1315 = vsel %vm149, %v1265, 0
  %1317 = vmatprep.subr.mxu0 0.0
  %1318 = vmatpush1.msra.mxu0 0.0
  %1319 = vmatprep.subr.mxu0 0.0
  %1320 = vmatpush1.msra.mxu0 0.0
  %1321 = vmatprep.subr.mxu0 0.0
  %1322 = vmatpush1.msra.mxu0 0.0
  %1323 = vmatprep.subr.mxu0 0.0
  %1324 = vmatpush1.msra.mxu0 0.0
  %1325 = vmatprep.subr.mxu0 0.0
  %1326 = vmatpush1.msra.mxu0 0.0
  %1327 = vmatprep.subr.mxu0 0.0
  %1328 = vmatpush1.msra.mxu0 0.0
  %1329 = vmatprep.subr.mxu0 0.0
  %1330 = vmatpush1.msra.mxu0 0.0
  %1331 = vmatprep.subr.mxu0 0.0
  %1332 = vmatpush1.msra.mxu0 0.0
  %1333 = vmatprep.subr.mxu0 0.0
  %1334 = vmatpush1.msra.mxu0 0.0
  %1335 = vmatprep.subr.mxu0 0.0
  %1336 = vmatpush1.msra.mxu0 0.0
  %1337 = vmatprep.subr.mxu0 0.0
  %1338 = vmatpush1.msra.mxu0 0.0
  %1339 = vmatprep.subr.mxu0 0.0
  %1340 = vmatpush1.msra.mxu0 0.0
  %1341 = vmatprep.subr.mxu0 0.0
  %1342 = vmatpush1.msra.mxu0 0.0
  %1343 = vmatprep.subr.mxu0 0.0
  %1344 = vmatpush1.msra.mxu0 0.0
  %1345 = vmatprep.subr.mxu0 0.0
  %1346 = vmatpush1.msra.mxu0 0.0
  %1347 = vmatprep.subr.mxu0 0.0
  %1348 = vmatpush1.msra.mxu0 %v1315
  %1349 = vmatprep.subr.mxu0 0.0
  %1350 = vmatpush2.msra.mxu0 0.0
  %1351 = vmatprep.subr.mxu0 0.0
  %1352 = vmatpush2.msra.mxu0 0.0
  %1353 = vmatprep.subr.mxu0 0.0
  %1354 = vmatpush2.msra.mxu0 0.0
  %1355 = vmatprep.subr.mxu0 0.0
  %1356 = vmatpush2.msra.mxu0 0.0
  %1357 = vmatprep.subr.mxu0 0.0
  %1358 = vmatpush2.msra.mxu0 0.0
  %1359 = vmatprep.subr.mxu0 0.0
  %1360 = vmatpush2.msra.mxu0 0.0
  %1361 = vmatprep.subr.mxu0 0.0
  %1362 = vmatpush2.msra.mxu0 0.0
  %1363 = vmatprep.subr.mxu0 0.0
  %1364 = vmatpush2.msra.mxu0 0.0
  %1365 = vmatprep.subr.mxu0 0.0
  %1366 = vmatpush2.msra.mxu0 0.0
  %1367 = vmatprep.subr.mxu0 0.0
  %1368 = vmatpush2.msra.mxu0 0.0
  %1369 = vmatprep.subr.mxu0 0.0
  %1370 = vmatpush2.msra.mxu0 0.0
  %1371 = vmatprep.subr.mxu0 0.0
  %1372 = vmatpush2.msra.mxu0 0.0
  %1373 = vmatprep.subr.mxu0 0.0
  %1374 = vmatpush2.msra.mxu0 0.0
  %1375 = vmatprep.subr.mxu0 0.0
  %1376 = vmatpush2.msra.mxu0 0.0
  %1377 = vmatprep.subr.mxu0 0.0
  %1378 = vmatpush2.msra.mxu0 0.0
  %1379 = vmatprep.subr.mxu0 0.0
  %1380 = vmatpush2.msra.mxu0 0.0
  %1381 = vmatprep.mubr.f32.mxu0 0.0
  %1382 = vmatmul.mubr.f32.gmra.mxu0 %v1267
  %v1383 = vpop.f32.mrf.mxu0
  %v1384 = vadd.f32 0.0, %v1383
  %v1385 = vpop.f32.mrf.mxu0
  %1386 = vmatprep.mubr.f32.mxu0 0.0
  %1387 = vmatmul.mubr.f32.gmra.mxu0 %v1270
  %v1388 = vpop.f32.mrf.mxu0
  %v1389 = vadd.f32 0.0, %v1388
  %v1390 = vpop.f32.mrf.mxu0
  %1391 = vmatprep.mubr.f32.mxu0 0.0
  %1392 = vmatmul.mubr.f32.gmra.mxu0 %v1273
  %v1393 = vpop.f32.mrf.mxu0
  %v1394 = vadd.f32 0.0, %v1393
  %v1395 = vpop.f32.mrf.mxu0
  %1396 = vmatprep.mubr.f32.mxu0 0.0
  %1397 = vmatmul.mubr.f32.gmra.mxu0 %v1276
  %v1398 = vpop.f32.mrf.mxu0
  %v1399 = vadd.f32 0.0, %v1398
  %v1400 = vpop.f32.mrf.mxu0
  %1401 = vmatprep.mubr.f32.mxu0 0.0
  %1402 = vmatmul.mubr.f32.gmra.mxu0 %v1279
  %v1403 = vpop.f32.mrf.mxu0
  %v1404 = vadd.f32 0.0, %v1403
  %v1405 = vpop.f32.mrf.mxu0
  %1406 = vmatprep.mubr.f32.mxu0 0.0
  %1407 = vmatmul.mubr.f32.gmra.mxu0 %v1282
  %v1408 = vpop.f32.mrf.mxu0
  %v1409 = vadd.f32 0.0, %v1408
  %v1410 = vpop.f32.mrf.mxu0
  %1411 = vmatprep.mubr.f32.mxu0 0.0
  %1412 = vmatmul.mubr.f32.gmra.mxu0 %v1285
  %v1413 = vpop.f32.mrf.mxu0
  %v1414 = vadd.f32 0.0, %v1413
  %v1415 = vpop.f32.mrf.mxu0
  %1416 = vmatprep.mubr.f32.mxu0 0.0
  %1417 = vmatmul.mubr.f32.gmra.mxu0 %v1288
  %v1418 = vpop.f32.mrf.mxu0
  %v1419 = vadd.f32 0.0, %v1418
  %v1420 = vpop.f32.mrf.mxu0
  %1421 = vmatprep.mubr.f32.mxu0 0.0
  %1422 = vmatmul.mubr.f32.gmra.mxu0 %v1291
  %v1423 = vpop.f32.mrf.mxu0
  %v1424 = vadd.f32 0.0, %v1423
  %v1425 = vpop.f32.mrf.mxu0
  %1426 = vmatprep.mubr.f32.mxu0 0.0
  %1427 = vmatmul.mubr.f32.gmra.mxu0 %v1294
  %v1428 = vpop.f32.mrf.mxu0
  %v1429 = vadd.f32 0.0, %v1428
  %v1430 = vpop.f32.mrf.mxu0
  %1431 = vmatprep.mubr.f32.mxu0 0.0
  %1432 = vmatmul.mubr.f32.gmra.mxu0 %v1297
  %v1433 = vpop.f32.mrf.mxu0
  %v1434 = vadd.f32 0.0, %v1433
  %v1435 = vpop.f32.mrf.mxu0
  %1436 = vmatprep.mubr.f32.mxu0 0.0
  %1437 = vmatmul.mubr.f32.gmra.mxu0 %v1300
  %v1438 = vpop.f32.mrf.mxu0
  %v1439 = vadd.f32 0.0, %v1438
  %v1440 = vpop.f32.mrf.mxu0
  %1441 = vmatprep.mubr.f32.mxu0 0.0
  %1442 = vmatmul.mubr.f32.gmra.mxu0 %v1303
  %v1443 = vpop.f32.mrf.mxu0
  %v1444 = vadd.f32 0.0, %v1443
  %v1445 = vpop.f32.mrf.mxu0
  %1446 = vmatprep.mubr.f32.mxu0 0.0
  %1447 = vmatmul.mubr.f32.gmra.mxu0 %v1306
  %v1448 = vpop.f32.mrf.mxu0
  %v1449 = vadd.f32 0.0, %v1448
  %v1450 = vpop.f32.mrf.mxu0
  %1451 = vmatprep.mubr.f32.mxu0 0.0
  %1452 = vmatmul.mubr.f32.gmra.mxu0 %v1309
  %v1453 = vpop.f32.mrf.mxu0
  %v1454 = vadd.f32 0.0, %v1453
  %v1455 = vpop.f32.mrf.mxu0
  %1456 = vmatprep.mubr.f32.mxu0 0.0
  %1457 = vmatmul.mubr.f32.gmra.mxu0 %v1312
  %v1458 = vpop.f32.mrf.mxu0
  %v1459 = vadd.f32 0.0, %v1458
  %v1460 = vpop.f32.mrf.mxu0
  %1461 = vdwg.mxu0
  %v1462 = vadd.f32 %v1216, %v1384
  %v1463 = vadd.f32 %v1217, %v1389
  %v1464 = vadd.f32 %v1218, %v1394
  %v1465 = vadd.f32 %v1219, %v1399
  %v1466 = vadd.f32 %v1220, %v1404
  %v1467 = vadd.f32 %v1221, %v1409
  %v1468 = vadd.f32 %v1222, %v1414
  %v1469 = vadd.f32 %v1223, %v1419
  %v1470 = vadd.f32 %v1224, %v1424
  %v1471 = vadd.f32 %v1225, %v1429
  %v1472 = vadd.f32 %v1226, %v1434
  %v1473 = vadd.f32 %v1227, %v1439
  %v1474 = vadd.f32 %v1228, %v1444
  %v1475 = vadd.f32 %v1229, %v1449
  %v1476 = vadd.f32 %v1230, %v1454
  %v1477 = vadd.f32 %v1231, %v1459
  %s1478 = scalar_lea.vmem %s986, 2
  %v1479 = vld [vmem:[%s1478] ss:$2 sm:$0xff]
  %s1480 = scalar_lea.vmem %s986, 50
  %v1481 = vld [vmem:[%s1480] ss:$2 sm:$0xff]
  %s1482 = scalar_lea.vmem %s986, 98
  %v1483 = vld [vmem:[%s1482] ss:$2 sm:$0xff]
  %s1484 = scalar_lea.vmem %s986, 146
  %v1485 = vld [vmem:[%s1484] ss:$2 sm:$0xff]
  %s1486 = scalar_lea.vmem %s986, 194
  %v1487 = vld [vmem:[%s1486] ss:$2 sm:$0xff]
  %s1488 = scalar_lea.vmem %s986, 242
  %v1489 = vld [vmem:[%s1488] ss:$2 sm:$0xff]
  %s1490 = scalar_lea.vmem %s986, 290
  %v1491 = vld [vmem:[%s1490] ss:$2 sm:$0xff]
  %s1492 = scalar_lea.vmem %s986, 338
  %v1493 = vld [vmem:[%s1492] ss:$2 sm:$0xff]
  %s1494 = scalar_lea.vmem %s986, 434
  %v1495 = vld [vmem:[%s1494] ss:$2 sm:$0xff]
  %s1496 = scalar_lea.vmem %s986, 482
  %v1497 = vld [vmem:[%s1496] ss:$2 sm:$0xff]
  %s1498 = scalar_lea.vmem %s986, 530
  %v1499 = vld [vmem:[%s1498] ss:$2 sm:$0xff]
  %s1500 = scalar_lea.vmem %s986, 578
  %v1501 = vld [vmem:[%s1500] ss:$2 sm:$0xff]
  %s1502 = scalar_lea.vmem %s986, 626
  %v1503 = vld [vmem:[%s1502] ss:$2 sm:$0xff]
  %s1504 = scalar_lea.vmem %s986, 674
  %v1505 = vld [vmem:[%s1504] ss:$2 sm:$0xff]
  %s1506 = scalar_lea.vmem %s986, 722
  %v1507 = vld [vmem:[%s1506] ss:$2 sm:$0xff]
  %s1508 = scalar_lea.vmem %s986, 770
  %v1509 = vld [vmem:[%s1508] ss:$2 sm:$0xff]
  %s1510 = scalar_lea.vmem %s1, 24
  %v1511 = vld [vmem:[%s1510] sm:$0xf]
  %v1513 = vsel %vm100, %v1479, 0
  %v1516 = vsel %vm100, %v1481, 0
  %v1519 = vsel %vm100, %v1483, 0
  %v1522 = vsel %vm100, %v1485, 0
  %v1525 = vsel %vm100, %v1487, 0
  %v1528 = vsel %vm100, %v1489, 0
  %v1531 = vsel %vm100, %v1491, 0
  %v1534 = vsel %vm100, %v1493, 0
  %v1537 = vsel %vm100, %v1495, 0
  %v1540 = vsel %vm100, %v1497, 0
  %v1543 = vsel %vm100, %v1499, 0
  %v1546 = vsel %vm100, %v1501, 0
  %v1549 = vsel %vm100, %v1503, 0
  %v1552 = vsel %vm100, %v1505, 0
  %v1555 = vsel %vm100, %v1507, 0
  %v1558 = vsel %vm100, %v1509, 0
  %v1561 = vsel %vm149, %v1511, 0
  %1563 = vmatprep.subr.mxu0 0.0
  %1564 = vmatpush1.msra.mxu0 0.0
  %1565 = vmatprep.subr.mxu0 0.0
  %1566 = vmatpush1.msra.mxu0 0.0
  %1567 = vmatprep.subr.mxu0 0.0
  %1568 = vmatpush1.msra.mxu0 0.0
  %1569 = vmatprep.subr.mxu0 0.0
  %1570 = vmatpush1.msra.mxu0 0.0
  %1571 = vmatprep.subr.mxu0 0.0
  %1572 = vmatpush1.msra.mxu0 0.0
  %1573 = vmatprep.subr.mxu0 0.0
  %1574 = vmatpush1.msra.mxu0 0.0
  %1575 = vmatprep.subr.mxu0 0.0
  %1576 = vmatpush1.msra.mxu0 0.0
  %1577 = vmatprep.subr.mxu0 0.0
  %1578 = vmatpush1.msra.mxu0 0.0
  %1579 = vmatprep.subr.mxu0 0.0
  %1580 = vmatpush1.msra.mxu0 0.0
  %1581 = vmatprep.subr.mxu0 0.0
  %1582 = vmatpush1.msra.mxu0 0.0
  %1583 = vmatprep.subr.mxu0 0.0
  %1584 = vmatpush1.msra.mxu0 0.0
  %1585 = vmatprep.subr.mxu0 0.0
  %1586 = vmatpush1.msra.mxu0 0.0
  %1587 = vmatprep.subr.mxu0 0.0
  %1588 = vmatpush1.msra.mxu0 0.0
  %1589 = vmatprep.subr.mxu0 0.0
  %1590 = vmatpush1.msra.mxu0 0.0
  %1591 = vmatprep.subr.mxu0 0.0
  %1592 = vmatpush1.msra.mxu0 0.0
  %1593 = vmatprep.subr.mxu0 0.0
  %1594 = vmatpush1.msra.mxu0 %v1561
  %1595 = vmatprep.subr.mxu0 0.0
  %1596 = vmatpush2.msra.mxu0 0.0
  %1597 = vmatprep.subr.mxu0 0.0
  %1598 = vmatpush2.msra.mxu0 0.0
  %1599 = vmatprep.subr.mxu0 0.0
  %1600 = vmatpush2.msra.mxu0 0.0
  %1601 = vmatprep.subr.mxu0 0.0
  %1602 = vmatpush2.msra.mxu0 0.0
  %1603 = vmatprep.subr.mxu0 0.0
  %1604 = vmatpush2.msra.mxu0 0.0
  %1605 = vmatprep.subr.mxu0 0.0
  %1606 = vmatpush2.msra.mxu0 0.0
  %1607 = vmatprep.subr.mxu0 0.0
  %1608 = vmatpush2.msra.mxu0 0.0
  %1609 = vmatprep.subr.mxu0 0.0
  %1610 = vmatpush2.msra.mxu0 0.0
  %1611 = vmatprep.subr.mxu0 0.0
  %1612 = vmatpush2.msra.mxu0 0.0
  %1613 = vmatprep.subr.mxu0 0.0
  %1614 = vmatpush2.msra.mxu0 0.0
  %1615 = vmatprep.subr.mxu0 0.0
  %1616 = vmatpush2.msra.mxu0 0.0
  %1617 = vmatprep.subr.mxu0 0.0
  %1618 = vmatpush2.msra.mxu0 0.0
  %1619 = vmatprep.subr.mxu0 0.0
  %1620 = vmatpush2.msra.mxu0 0.0
  %1621 = vmatprep.subr.mxu0 0.0
  %1622 = vmatpush2.msra.mxu0 0.0
  %1623 = vmatprep.subr.mxu0 0.0
  %1624 = vmatpush2.msra.mxu0 0.0
  %1625 = vmatprep.subr.mxu0 0.0
  %1626 = vmatpush2.msra.mxu0 0.0
  %1627 = vmatprep.mubr.f32.mxu0 0.0
  %1628 = vmatmul.mubr.f32.gmra.mxu0 %v1513
  %v1629 = vpop.f32.mrf.mxu0
  %v1630 = vadd.f32 0.0, %v1629
  %v1631 = vpop.f32.mrf.mxu0
  %1632 = vmatprep.mubr.f32.mxu0 0.0
  %1633 = vmatmul.mubr.f32.gmra.mxu0 %v1516
  %v1634 = vpop.f32.mrf.mxu0
  %v1635 = vadd.f32 0.0, %v1634
  %v1636 = vpop.f32.mrf.mxu0
  %1637 = vmatprep.mubr.f32.mxu0 0.0
  %1638 = vmatmul.mubr.f32.gmra.mxu0 %v1519
  %v1639 = vpop.f32.mrf.mxu0
  %v1640 = vadd.f32 0.0, %v1639
  %v1641 = vpop.f32.mrf.mxu0
  %1642 = vmatprep.mubr.f32.mxu0 0.0
  %1643 = vmatmul.mubr.f32.gmra.mxu0 %v1522
  %v1644 = vpop.f32.mrf.mxu0
  %v1645 = vadd.f32 0.0, %v1644
  %v1646 = vpop.f32.mrf.mxu0
  %1647 = vmatprep.mubr.f32.mxu0 0.0
  %1648 = vmatmul.mubr.f32.gmra.mxu0 %v1525
  %v1649 = vpop.f32.mrf.mxu0
  %v1650 = vadd.f32 0.0, %v1649
  %v1651 = vpop.f32.mrf.mxu0
  %1652 = vmatprep.mubr.f32.mxu0 0.0
  %1653 = vmatmul.mubr.f32.gmra.mxu0 %v1528
  %v1654 = vpop.f32.mrf.mxu0
  %v1655 = vadd.f32 0.0, %v1654
  %v1656 = vpop.f32.mrf.mxu0
  %1657 = vmatprep.mubr.f32.mxu0 0.0
  %1658 = vmatmul.mubr.f32.gmra.mxu0 %v1531
  %v1659 = vpop.f32.mrf.mxu0
  %v1660 = vadd.f32 0.0, %v1659
  %v1661 = vpop.f32.mrf.mxu0
  %1662 = vmatprep.mubr.f32.mxu0 0.0
  %1663 = vmatmul.mubr.f32.gmra.mxu0 %v1534
  %v1664 = vpop.f32.mrf.mxu0
  %v1665 = vadd.f32 0.0, %v1664
  %v1666 = vpop.f32.mrf.mxu0
  %1667 = vmatprep.mubr.f32.mxu0 0.0
  %1668 = vmatmul.mubr.f32.gmra.mxu0 %v1537
  %v1669 = vpop.f32.mrf.mxu0
  %v1670 = vadd.f32 0.0, %v1669
  %v1671 = vpop.f32.mrf.mxu0
  %1672 = vmatprep.mubr.f32.mxu0 0.0
  %1673 = vmatmul.mubr.f32.gmra.mxu0 %v1540
  %v1674 = vpop.f32.mrf.mxu0
  %v1675 = vadd.f32 0.0, %v1674
  %v1676 = vpop.f32.mrf.mxu0
  %1677 = vmatprep.mubr.f32.mxu0 0.0
  %1678 = vmatmul.mubr.f32.gmra.mxu0 %v1543
  %v1679 = vpop.f32.mrf.mxu0
  %v1680 = vadd.f32 0.0, %v1679
  %v1681 = vpop.f32.mrf.mxu0
  %1682 = vmatprep.mubr.f32.mxu0 0.0
  %1683 = vmatmul.mubr.f32.gmra.mxu0 %v1546
  %v1684 = vpop.f32.mrf.mxu0
  %v1685 = vadd.f32 0.0, %v1684
  %v1686 = vpop.f32.mrf.mxu0
  %1687 = vmatprep.mubr.f32.mxu0 0.0
  %1688 = vmatmul.mubr.f32.gmra.mxu0 %v1549
  %v1689 = vpop.f32.mrf.mxu0
  %v1690 = vadd.f32 0.0, %v1689
  %v1691 = vpop.f32.mrf.mxu0
  %1692 = vmatprep.mubr.f32.mxu0 0.0
  %1693 = vmatmul.mubr.f32.gmra.mxu0 %v1552
  %v1694 = vpop.f32.mrf.mxu0
  %v1695 = vadd.f32 0.0, %v1694
  %v1696 = vpop.f32.mrf.mxu0
  %1697 = vmatprep.mubr.f32.mxu0 0.0
  %1698 = vmatmul.mubr.f32.gmra.mxu0 %v1555
  %v1699 = vpop.f32.mrf.mxu0
  %v1700 = vadd.f32 0.0, %v1699
  %v1701 = vpop.f32.mrf.mxu0
  %1702 = vmatprep.mubr.f32.mxu0 0.0
  %1703 = vmatmul.mubr.f32.gmra.mxu0 %v1558
  %v1704 = vpop.f32.mrf.mxu0
  %v1705 = vadd.f32 0.0, %v1704
  %v1706 = vpop.f32.mrf.mxu0
  %1707 = vdwg.mxu0
  %v1708 = vadd.f32 %v1462, %v1630
  %v1709 = vadd.f32 %v1463, %v1635
  %v1710 = vadd.f32 %v1464, %v1640
  %v1711 = vadd.f32 %v1465, %v1645
  %v1712 = vadd.f32 %v1466, %v1650
  %v1713 = vadd.f32 %v1467, %v1655
  %v1714 = vadd.f32 %v1468, %v1660
  %v1715 = vadd.f32 %v1469, %v1665
  %v1716 = vadd.f32 %v1470, %v1670
  %v1717 = vadd.f32 %v1471, %v1675
  %v1718 = vadd.f32 %v1472, %v1680
  %v1719 = vadd.f32 %v1473, %v1685
  %v1720 = vadd.f32 %v1474, %v1690
  %v1721 = vadd.f32 %v1475, %v1695
  %v1722 = vadd.f32 %v1476, %v1700
  %v1723 = vadd.f32 %v1477, %v1705
  %s1724 = scalar_lea.vmem %s986, 3
  %v1725 = vld [vmem:[%s1724] ss:$2 sm:$0xff]
  %s1726 = scalar_lea.vmem %s986, 51
  %v1727 = vld [vmem:[%s1726] ss:$2 sm:$0xff]
  %s1728 = scalar_lea.vmem %s986, 99
  %v1729 = vld [vmem:[%s1728] ss:$2 sm:$0xff]
  %s1730 = scalar_lea.vmem %s986, 147
  %v1731 = vld [vmem:[%s1730] ss:$2 sm:$0xff]
  %s1732 = scalar_lea.vmem %s986, 195
  %v1733 = vld [vmem:[%s1732] ss:$2 sm:$0xff]
  %s1734 = scalar_lea.vmem %s986, 243
  %v1735 = vld [vmem:[%s1734] ss:$2 sm:$0xff]
  %s1736 = scalar_lea.vmem %s986, 291
  %v1737 = vld [vmem:[%s1736] ss:$2 sm:$0xff]
  %s1738 = scalar_lea.vmem %s986, 339
  %v1739 = vld [vmem:[%s1738] ss:$2 sm:$0xff]
  %s1740 = scalar_lea.vmem %s986, 435
  %v1741 = vld [vmem:[%s1740] ss:$2 sm:$0xff]
  %s1742 = scalar_lea.vmem %s986, 483
  %v1743 = vld [vmem:[%s1742] ss:$2 sm:$0xff]
  %s1744 = scalar_lea.vmem %s986, 531
  %v1745 = vld [vmem:[%s1744] ss:$2 sm:$0xff]
  %s1746 = scalar_lea.vmem %s986, 579
  %v1747 = vld [vmem:[%s1746] ss:$2 sm:$0xff]
  %s1748 = scalar_lea.vmem %s986, 627
  %v1749 = vld [vmem:[%s1748] ss:$2 sm:$0xff]
  %s1750 = scalar_lea.vmem %s986, 675
  %v1751 = vld [vmem:[%s1750] ss:$2 sm:$0xff]
  %s1752 = scalar_lea.vmem %s986, 723
  %v1753 = vld [vmem:[%s1752] ss:$2 sm:$0xff]
  %s1754 = scalar_lea.vmem %s986, 771
  %v1755 = vld [vmem:[%s1754] ss:$2 sm:$0xff]
  %s1756 = scalar_lea.vmem %s1, 28
  %v1757 = vld [vmem:[%s1756] sm:$0xf]
  %v1759 = vsel %vm100, %v1725, 0
  %v1762 = vsel %vm100, %v1727, 0
  %v1765 = vsel %vm100, %v1729, 0
  %v1768 = vsel %vm100, %v1731, 0
  %v1771 = vsel %vm100, %v1733, 0
  %v1774 = vsel %vm100, %v1735, 0
  %v1777 = vsel %vm100, %v1737, 0
  %v1780 = vsel %vm100, %v1739, 0
  %v1783 = vsel %vm100, %v1741, 0
  %v1786 = vsel %vm100, %v1743, 0
  %v1789 = vsel %vm100, %v1745, 0
  %v1792 = vsel %vm100, %v1747, 0
  %v1795 = vsel %vm100, %v1749, 0
  %v1798 = vsel %vm100, %v1751, 0
  %v1801 = vsel %vm100, %v1753, 0
  %v1804 = vsel %vm100, %v1755, 0
  %v1807 = vsel %vm149, %v1757, 0
  %1809 = vmatprep.subr.mxu0 0.0
  %1810 = vmatpush1.msra.mxu0 0.0
  %1811 = vmatprep.subr.mxu0 0.0
  %1812 = vmatpush1.msra.mxu0 0.0
  %1813 = vmatprep.subr.mxu0 0.0
  %1814 = vmatpush1.msra.mxu0 0.0
  %1815 = vmatprep.subr.mxu0 0.0
  %1816 = vmatpush1.msra.mxu0 0.0
  %1817 = vmatprep.subr.mxu0 0.0
  %1818 = vmatpush1.msra.mxu0 0.0
  %1819 = vmatprep.subr.mxu0 0.0
  %1820 = vmatpush1.msra.mxu0 0.0
  %1821 = vmatprep.subr.mxu0 0.0
  %1822 = vmatpush1.msra.mxu0 0.0
  %1823 = vmatprep.subr.mxu0 0.0
  %1824 = vmatpush1.msra.mxu0 0.0
  %1825 = vmatprep.subr.mxu0 0.0
  %1826 = vmatpush1.msra.mxu0 0.0
  %1827 = vmatprep.subr.mxu0 0.0
  %1828 = vmatpush1.msra.mxu0 0.0
  %1829 = vmatprep.subr.mxu0 0.0
  %1830 = vmatpush1.msra.mxu0 0.0
  %1831 = vmatprep.subr.mxu0 0.0
  %1832 = vmatpush1.msra.mxu0 0.0
  %1833 = vmatprep.subr.mxu0 0.0
  %1834 = vmatpush1.msra.mxu0 0.0
  %1835 = vmatprep.subr.mxu0 0.0
  %1836 = vmatpush1.msra.mxu0 0.0
  %1837 = vmatprep.subr.mxu0 0.0
  %1838 = vmatpush1.msra.mxu0 0.0
  %1839 = vmatprep.subr.mxu0 0.0
  %1840 = vmatpush1.msra.mxu0 %v1807
  %1841 = vmatprep.subr.mxu0 0.0
  %1842 = vmatpush2.msra.mxu0 0.0
  %1843 = vmatprep.subr.mxu0 0.0
  %1844 = vmatpush2.msra.mxu0 0.0
  %1845 = vmatprep.subr.mxu0 0.0
  %1846 = vmatpush2.msra.mxu0 0.0
  %1847 = vmatprep.subr.mxu0 0.0
  %1848 = vmatpush2.msra.mxu0 0.0
  %1849 = vmatprep.subr.mxu0 0.0
  %1850 = vmatpush2.msra.mxu0 0.0
  %1851 = vmatprep.subr.mxu0 0.0
  %1852 = vmatpush2.msra.mxu0 0.0
  %1853 = vmatprep.subr.mxu0 0.0
  %1854 = vmatpush2.msra.mxu0 0.0
  %1855 = vmatprep.subr.mxu0 0.0
  %1856 = vmatpush2.msra.mxu0 0.0
  %1857 = vmatprep.subr.mxu0 0.0
  %1858 = vmatpush2.msra.mxu0 0.0
  %1859 = vmatprep.subr.mxu0 0.0
  %1860 = vmatpush2.msra.mxu0 0.0
  %1861 = vmatprep.subr.mxu0 0.0
  %1862 = vmatpush2.msra.mxu0 0.0
  %1863 = vmatprep.subr.mxu0 0.0
  %1864 = vmatpush2.msra.mxu0 0.0
  %1865 = vmatprep.subr.mxu0 0.0
  %1866 = vmatpush2.msra.mxu0 0.0
  %1867 = vmatprep.subr.mxu0 0.0
  %1868 = vmatpush2.msra.mxu0 0.0
  %1869 = vmatprep.subr.mxu0 0.0
  %1870 = vmatpush2.msra.mxu0 0.0
  %1871 = vmatprep.subr.mxu0 0.0
  %1872 = vmatpush2.msra.mxu0 0.0
  %1873 = vmatprep.mubr.f32.mxu0 0.0
  %1874 = vmatmul.mubr.f32.gmra.mxu0 %v1759
  %v1875 = vpop.f32.mrf.mxu0
  %v1876 = vadd.f32 0.0, %v1875
  %v1877 = vpop.f32.mrf.mxu0
  %1878 = vmatprep.mubr.f32.mxu0 0.0
  %1879 = vmatmul.mubr.f32.gmra.mxu0 %v1762
  %v1880 = vpop.f32.mrf.mxu0
  %v1881 = vadd.f32 0.0, %v1880
  %v1882 = vpop.f32.mrf.mxu0
  %1883 = vmatprep.mubr.f32.mxu0 0.0
  %1884 = vmatmul.mubr.f32.gmra.mxu0 %v1765
  %v1885 = vpop.f32.mrf.mxu0
  %v1886 = vadd.f32 0.0, %v1885
  %v1887 = vpop.f32.mrf.mxu0
  %1888 = vmatprep.mubr.f32.mxu0 0.0
  %1889 = vmatmul.mubr.f32.gmra.mxu0 %v1768
  %v1890 = vpop.f32.mrf.mxu0
  %v1891 = vadd.f32 0.0, %v1890
  %v1892 = vpop.f32.mrf.mxu0
  %1893 = vmatprep.mubr.f32.mxu0 0.0
  %1894 = vmatmul.mubr.f32.gmra.mxu0 %v1771
  %v1895 = vpop.f32.mrf.mxu0
  %v1896 = vadd.f32 0.0, %v1895
  %v1897 = vpop.f32.mrf.mxu0
  %1898 = vmatprep.mubr.f32.mxu0 0.0
  %1899 = vmatmul.mubr.f32.gmra.mxu0 %v1774
  %v1900 = vpop.f32.mrf.mxu0
  %v1901 = vadd.f32 0.0, %v1900
  %v1902 = vpop.f32.mrf.mxu0
  %1903 = vmatprep.mubr.f32.mxu0 0.0
  %1904 = vmatmul.mubr.f32.gmra.mxu0 %v1777
  %v1905 = vpop.f32.mrf.mxu0
  %v1906 = vadd.f32 0.0, %v1905
  %v1907 = vpop.f32.mrf.mxu0
  %1908 = vmatprep.mubr.f32.mxu0 0.0
  %1909 = vmatmul.mubr.f32.gmra.mxu0 %v1780
  %v1910 = vpop.f32.mrf.mxu0
  %v1911 = vadd.f32 0.0, %v1910
  %v1912 = vpop.f32.mrf.mxu0
  %1913 = vmatprep.mubr.f32.mxu0 0.0
  %1914 = vmatmul.mubr.f32.gmra.mxu0 %v1783
  %v1915 = vpop.f32.mrf.mxu0
  %v1916 = vadd.f32 0.0, %v1915
  %v1917 = vpop.f32.mrf.mxu0
  %1918 = vmatprep.mubr.f32.mxu0 0.0
  %1919 = vmatmul.mubr.f32.gmra.mxu0 %v1786
  %v1920 = vpop.f32.mrf.mxu0
  %v1921 = vadd.f32 0.0, %v1920
  %v1922 = vpop.f32.mrf.mxu0
  %1923 = vmatprep.mubr.f32.mxu0 0.0
  %1924 = vmatmul.mubr.f32.gmra.mxu0 %v1789
  %v1925 = vpop.f32.mrf.mxu0
  %v1926 = vadd.f32 0.0, %v1925
  %v1927 = vpop.f32.mrf.mxu0
  %1928 = vmatprep.mubr.f32.mxu0 0.0
  %1929 = vmatmul.mubr.f32.gmra.mxu0 %v1792
  %v1930 = vpop.f32.mrf.mxu0
  %v1931 = vadd.f32 0.0, %v1930
  %v1932 = vpop.f32.mrf.mxu0
  %1933 = vmatprep.mubr.f32.mxu0 0.0
  %1934 = vmatmul.mubr.f32.gmra.mxu0 %v1795
  %v1935 = vpop.f32.mrf.mxu0
  %v1936 = vadd.f32 0.0, %v1935
  %v1937 = vpop.f32.mrf.mxu0
  %1938 = vmatprep.mubr.f32.mxu0 0.0
  %1939 = vmatmul.mubr.f32.gmra.mxu0 %v1798
  %v1940 = vpop.f32.mrf.mxu0
  %v1941 = vadd.f32 0.0, %v1940
  %v1942 = vpop.f32.mrf.mxu0
  %1943 = vmatprep.mubr.f32.mxu0 0.0
  %1944 = vmatmul.mubr.f32.gmra.mxu0 %v1801
  %v1945 = vpop.f32.mrf.mxu0
  %v1946 = vadd.f32 0.0, %v1945
  %v1947 = vpop.f32.mrf.mxu0
  %1948 = vmatprep.mubr.f32.mxu0 0.0
  %1949 = vmatmul.mubr.f32.gmra.mxu0 %v1804
  %v1950 = vpop.f32.mrf.mxu0
  %v1951 = vadd.f32 0.0, %v1950
  %v1952 = vpop.f32.mrf.mxu0
  %1953 = vdwg.mxu0
  %v1954 = vadd.f32 %v1708, %v1876
  %v1955 = vadd.f32 %v1709, %v1881
  %v1956 = vadd.f32 %v1710, %v1886
  %v1957 = vadd.f32 %v1711, %v1891
  %v1958 = vadd.f32 %v1712, %v1896
  %v1959 = vadd.f32 %v1713, %v1901
  %v1960 = vadd.f32 %v1714, %v1906
  %v1961 = vadd.f32 %v1715, %v1911
  %v1962 = vadd.f32 %v1716, %v1916
  %v1963 = vadd.f32 %v1717, %v1921
  %v1964 = vadd.f32 %v1718, %v1926
  %v1965 = vadd.f32 %v1719, %v1931
  %v1966 = vadd.f32 %v1720, %v1936
  %v1967 = vadd.f32 %v1721, %v1941
  %v1968 = vadd.f32 %v1722, %v1946
  %v1969 = vadd.f32 %v1723, %v1951
  %s1970 = scalar_lea.vmem %s0, 48
  %v1971 = vld [vmem:[%s1970] ss:$2 sm:$0xff]
  %s1972 = scalar_lea.vmem %s1970, 48
  %v1973 = vld [vmem:[%s1972] ss:$2 sm:$0xff]
  %s1974 = scalar_lea.vmem %s1970, 96
  %v1975 = vld [vmem:[%s1974] ss:$2 sm:$0xff]
  %s1976 = scalar_lea.vmem %s1970, 144
  %v1977 = vld [vmem:[%s1976] ss:$2 sm:$0xff]
  %s1978 = scalar_lea.vmem %s1970, 192
  %v1979 = vld [vmem:[%s1978] ss:$2 sm:$0xff]
  %s1980 = scalar_lea.vmem %s1970, 240
  %v1981 = vld [vmem:[%s1980] ss:$2 sm:$0xff]
  %s1982 = scalar_lea.vmem %s1970, 288
  %v1983 = vld [vmem:[%s1982] ss:$2 sm:$0xff]
  %s1984 = scalar_lea.vmem %s1970, 336
  %v1985 = vld [vmem:[%s1984] ss:$2 sm:$0xff]
  %s1986 = scalar_lea.vmem %s1970, 432
  %v1987 = vld [vmem:[%s1986] ss:$2 sm:$0xff]
  %s1988 = scalar_lea.vmem %s1970, 480
  %v1989 = vld [vmem:[%s1988] ss:$2 sm:$0xff]
  %s1990 = scalar_lea.vmem %s1970, 528
  %v1991 = vld [vmem:[%s1990] ss:$2 sm:$0xff]
  %s1992 = scalar_lea.vmem %s1970, 576
  %v1993 = vld [vmem:[%s1992] ss:$2 sm:$0xff]
  %s1994 = scalar_lea.vmem %s1970, 624
  %v1995 = vld [vmem:[%s1994] ss:$2 sm:$0xff]
  %s1996 = scalar_lea.vmem %s1970, 672
  %v1997 = vld [vmem:[%s1996] ss:$2 sm:$0xff]
  %s1998 = scalar_lea.vmem %s1970, 720
  %v1999 = vld [vmem:[%s1998] ss:$2 sm:$0xff]
  %s2000 = scalar_lea.vmem %s1970, 768
  %v2001 = vld [vmem:[%s2000] ss:$2 sm:$0xff]
  %s2002 = scalar_lea.vmem %s1, 32
  %v2003 = vld [vmem:[%s2002] sm:$0xf]
  %v2005 = vsel %vm100, %v1971, 0
  %v2008 = vsel %vm100, %v1973, 0
  %v2011 = vsel %vm100, %v1975, 0
  %v2014 = vsel %vm100, %v1977, 0
  %v2017 = vsel %vm100, %v1979, 0
  %v2020 = vsel %vm100, %v1981, 0
  %v2023 = vsel %vm100, %v1983, 0
  %v2026 = vsel %vm100, %v1985, 0
  %v2029 = vsel %vm100, %v1987, 0
  %v2032 = vsel %vm100, %v1989, 0
  %v2035 = vsel %vm100, %v1991, 0
  %v2038 = vsel %vm100, %v1993, 0
  %v2041 = vsel %vm100, %v1995, 0
  %v2044 = vsel %vm100, %v1997, 0
  %v2047 = vsel %vm100, %v1999, 0
  %v2050 = vsel %vm100, %v2001, 0
  %v2053 = vsel %vm149, %v2003, 0
  %2055 = vmatprep.subr.mxu0 0.0
  %2056 = vmatpush1.msra.mxu0 0.0
  %2057 = vmatprep.subr.mxu0 0.0
  %2058 = vmatpush1.msra.mxu0 0.0
  %2059 = vmatprep.subr.mxu0 0.0
  %2060 = vmatpush1.msra.mxu0 0.0
  %2061 = vmatprep.subr.mxu0 0.0
  %2062 = vmatpush1.msra.mxu0 0.0
  %2063 = vmatprep.subr.mxu0 0.0
  %2064 = vmatpush1.msra.mxu0 0.0
  %2065 = vmatprep.subr.mxu0 0.0
  %2066 = vmatpush1.msra.mxu0 0.0
  %2067 = vmatprep.subr.mxu0 0.0
  %2068 = vmatpush1.msra.mxu0 0.0
  %2069 = vmatprep.subr.mxu0 0.0
  %2070 = vmatpush1.msra.mxu0 0.0
  %2071 = vmatprep.subr.mxu0 0.0
  %2072 = vmatpush1.msra.mxu0 0.0
  %2073 = vmatprep.subr.mxu0 0.0
  %2074 = vmatpush1.msra.mxu0 0.0
  %2075 = vmatprep.subr.mxu0 0.0
  %2076 = vmatpush1.msra.mxu0 0.0
  %2077 = vmatprep.subr.mxu0 0.0
  %2078 = vmatpush1.msra.mxu0 0.0
  %2079 = vmatprep.subr.mxu0 0.0
  %2080 = vmatpush1.msra.mxu0 0.0
  %2081 = vmatprep.subr.mxu0 0.0
  %2082 = vmatpush1.msra.mxu0 0.0
  %2083 = vmatprep.subr.mxu0 0.0
  %2084 = vmatpush1.msra.mxu0 0.0
  %2085 = vmatprep.subr.mxu0 0.0
  %2086 = vmatpush1.msra.mxu0 %v2053
  %2087 = vmatprep.subr.mxu0 0.0
  %2088 = vmatpush2.msra.mxu0 0.0
  %2089 = vmatprep.subr.mxu0 0.0
  %2090 = vmatpush2.msra.mxu0 0.0
  %2091 = vmatprep.subr.mxu0 0.0
  %2092 = vmatpush2.msra.mxu0 0.0
  %2093 = vmatprep.subr.mxu0 0.0
  %2094 = vmatpush2.msra.mxu0 0.0
  %2095 = vmatprep.subr.mxu0 0.0
  %2096 = vmatpush2.msra.mxu0 0.0
  %2097 = vmatprep.subr.mxu0 0.0
  %2098 = vmatpush2.msra.mxu0 0.0
  %2099 = vmatprep.subr.mxu0 0.0
  %2100 = vmatpush2.msra.mxu0 0.0
  %2101 = vmatprep.subr.mxu0 0.0
  %2102 = vmatpush2.msra.mxu0 0.0
  %2103 = vmatprep.subr.mxu0 0.0
  %2104 = vmatpush2.msra.mxu0 0.0
  %2105 = vmatprep.subr.mxu0 0.0
  %2106 = vmatpush2.msra.mxu0 0.0
  %2107 = vmatprep.subr.mxu0 0.0
  %2108 = vmatpush2.msra.mxu0 0.0
  %2109 = vmatprep.subr.mxu0 0.0
  %2110 = vmatpush2.msra.mxu0 0.0
  %2111 = vmatprep.subr.mxu0 0.0
  %2112 = vmatpush2.msra.mxu0 0.0
  %2113 = vmatprep.subr.mxu0 0.0
  %2114 = vmatpush2.msra.mxu0 0.0
  %2115 = vmatprep.subr.mxu0 0.0
  %2116 = vmatpush2.msra.mxu0 0.0
  %2117 = vmatprep.subr.mxu0 0.0
  %2118 = vmatpush2.msra.mxu0 0.0
  %2119 = vmatprep.mubr.f32.mxu0 0.0
  %2120 = vmatmul.mubr.f32.gmra.mxu0 %v2005
  %v2121 = vpop.f32.mrf.mxu0
  %v2122 = vadd.f32 0.0, %v2121
  %v2123 = vpop.f32.mrf.mxu0
  %2124 = vmatprep.mubr.f32.mxu0 0.0
  %2125 = vmatmul.mubr.f32.gmra.mxu0 %v2008
  %v2126 = vpop.f32.mrf.mxu0
  %v2127 = vadd.f32 0.0, %v2126
  %v2128 = vpop.f32.mrf.mxu0
  %2129 = vmatprep.mubr.f32.mxu0 0.0
  %2130 = vmatmul.mubr.f32.gmra.mxu0 %v2011
  %v2131 = vpop.f32.mrf.mxu0
  %v2132 = vadd.f32 0.0, %v2131
  %v2133 = vpop.f32.mrf.mxu0
  %2134 = vmatprep.mubr.f32.mxu0 0.0
  %2135 = vmatmul.mubr.f32.gmra.mxu0 %v2014
  %v2136 = vpop.f32.mrf.mxu0
  %v2137 = vadd.f32 0.0, %v2136
  %v2138 = vpop.f32.mrf.mxu0
  %2139 = vmatprep.mubr.f32.mxu0 0.0
  %2140 = vmatmul.mubr.f32.gmra.mxu0 %v2017
  %v2141 = vpop.f32.mrf.mxu0
  %v2142 = vadd.f32 0.0, %v2141
  %v2143 = vpop.f32.mrf.mxu0
  %2144 = vmatprep.mubr.f32.mxu0 0.0
  %2145 = vmatmul.mubr.f32.gmra.mxu0 %v2020
  %v2146 = vpop.f32.mrf.mxu0
  %v2147 = vadd.f32 0.0, %v2146
  %v2148 = vpop.f32.mrf.mxu0
  %2149 = vmatprep.mubr.f32.mxu0 0.0
  %2150 = vmatmul.mubr.f32.gmra.mxu0 %v2023
  %v2151 = vpop.f32.mrf.mxu0
  %v2152 = vadd.f32 0.0, %v2151
  %v2153 = vpop.f32.mrf.mxu0
  %2154 = vmatprep.mubr.f32.mxu0 0.0
  %2155 = vmatmul.mubr.f32.gmra.mxu0 %v2026
  %v2156 = vpop.f32.mrf.mxu0
  %v2157 = vadd.f32 0.0, %v2156
  %v2158 = vpop.f32.mrf.mxu0
  %2159 = vmatprep.mubr.f32.mxu0 0.0
  %2160 = vmatmul.mubr.f32.gmra.mxu0 %v2029
  %v2161 = vpop.f32.mrf.mxu0
  %v2162 = vadd.f32 0.0, %v2161
  %v2163 = vpop.f32.mrf.mxu0
  %2164 = vmatprep.mubr.f32.mxu0 0.0
  %2165 = vmatmul.mubr.f32.gmra.mxu0 %v2032
  %v2166 = vpop.f32.mrf.mxu0
  %v2167 = vadd.f32 0.0, %v2166
  %v2168 = vpop.f32.mrf.mxu0
  %2169 = vmatprep.mubr.f32.mxu0 0.0
  %2170 = vmatmul.mubr.f32.gmra.mxu0 %v2035
  %v2171 = vpop.f32.mrf.mxu0
  %v2172 = vadd.f32 0.0, %v2171
  %v2173 = vpop.f32.mrf.mxu0
  %2174 = vmatprep.mubr.f32.mxu0 0.0
  %2175 = vmatmul.mubr.f32.gmra.mxu0 %v2038
  %v2176 = vpop.f32.mrf.mxu0
  %v2177 = vadd.f32 0.0, %v2176
  %v2178 = vpop.f32.mrf.mxu0
  %2179 = vmatprep.mubr.f32.mxu0 0.0
  %2180 = vmatmul.mubr.f32.gmra.mxu0 %v2041
  %v2181 = vpop.f32.mrf.mxu0
  %v2182 = vadd.f32 0.0, %v2181
  %v2183 = vpop.f32.mrf.mxu0
  %2184 = vmatprep.mubr.f32.mxu0 0.0
  %2185 = vmatmul.mubr.f32.gmra.mxu0 %v2044
  %v2186 = vpop.f32.mrf.mxu0
  %v2187 = vadd.f32 0.0, %v2186
  %v2188 = vpop.f32.mrf.mxu0
  %2189 = vmatprep.mubr.f32.mxu0 0.0
  %2190 = vmatmul.mubr.f32.gmra.mxu0 %v2047
  %v2191 = vpop.f32.mrf.mxu0
  %v2192 = vadd.f32 0.0, %v2191
  %v2193 = vpop.f32.mrf.mxu0
  %2194 = vmatprep.mubr.f32.mxu0 0.0
  %2195 = vmatmul.mubr.f32.gmra.mxu0 %v2050
  %v2196 = vpop.f32.mrf.mxu0
  %v2197 = vadd.f32 0.0, %v2196
  %v2198 = vpop.f32.mrf.mxu0
  %2199 = vdwg.mxu0
  %v2200 = vadd.f32 %v1954, %v2122
  %v2201 = vadd.f32 %v1955, %v2127
  %v2202 = vadd.f32 %v1956, %v2132
  %v2203 = vadd.f32 %v1957, %v2137
  %v2204 = vadd.f32 %v1958, %v2142
  %v2205 = vadd.f32 %v1959, %v2147
  %v2206 = vadd.f32 %v1960, %v2152
  %v2207 = vadd.f32 %v1961, %v2157
  %v2208 = vadd.f32 %v1962, %v2162
  %v2209 = vadd.f32 %v1963, %v2167
  %v2210 = vadd.f32 %v1964, %v2172
  %v2211 = vadd.f32 %v1965, %v2177
  %v2212 = vadd.f32 %v1966, %v2182
  %v2213 = vadd.f32 %v1967, %v2187
  %v2214 = vadd.f32 %v1968, %v2192
  %v2215 = vadd.f32 %v1969, %v2197
  %s2216 = scalar_lea.vmem %s1970, 1
  %v2217 = vld [vmem:[%s2216] ss:$2 sm:$0xff]
  %s2218 = scalar_lea.vmem %s1970, 49
  %v2219 = vld [vmem:[%s2218] ss:$2 sm:$0xff]
  %s2220 = scalar_lea.vmem %s1970, 97
  %v2221 = vld [vmem:[%s2220] ss:$2 sm:$0xff]
  %s2222 = scalar_lea.vmem %s1970, 145
  %v2223 = vld [vmem:[%s2222] ss:$2 sm:$0xff]
  %s2224 = scalar_lea.vmem %s1970, 193
  %v2225 = vld [vmem:[%s2224] ss:$2 sm:$0xff]
  %s2226 = scalar_lea.vmem %s1970, 241
  %v2227 = vld [vmem:[%s2226] ss:$2 sm:$0xff]
  %s2228 = scalar_lea.vmem %s1970, 289
  %v2229 = vld [vmem:[%s2228] ss:$2 sm:$0xff]
  %s2230 = scalar_lea.vmem %s1970, 337
  %v2231 = vld [vmem:[%s2230] ss:$2 sm:$0xff]
  %s2232 = scalar_lea.vmem %s1970, 433
  %v2233 = vld [vmem:[%s2232] ss:$2 sm:$0xff]
  %s2234 = scalar_lea.vmem %s1970, 481
  %v2235 = vld [vmem:[%s2234] ss:$2 sm:$0xff]
  %s2236 = scalar_lea.vmem %s1970, 529
  %v2237 = vld [vmem:[%s2236] ss:$2 sm:$0xff]
  %s2238 = scalar_lea.vmem %s1970, 577
  %v2239 = vld [vmem:[%s2238] ss:$2 sm:$0xff]
  %s2240 = scalar_lea.vmem %s1970, 625
  %v2241 = vld [vmem:[%s2240] ss:$2 sm:$0xff]
  %s2242 = scalar_lea.vmem %s1970, 673
  %v2243 = vld [vmem:[%s2242] ss:$2 sm:$0xff]
  %s2244 = scalar_lea.vmem %s1970, 721
  %v2245 = vld [vmem:[%s2244] ss:$2 sm:$0xff]
  %s2246 = scalar_lea.vmem %s1970, 769
  %v2247 = vld [vmem:[%s2246] ss:$2 sm:$0xff]
  %s2248 = scalar_lea.vmem %s1, 36
  %v2249 = vld [vmem:[%s2248] sm:$0xf]
  %v2251 = vsel %vm100, %v2217, 0
  %v2254 = vsel %vm100, %v2219, 0
  %v2257 = vsel %vm100, %v2221, 0
  %v2260 = vsel %vm100, %v2223, 0
  %v2263 = vsel %vm100, %v2225, 0
  %v2266 = vsel %vm100, %v2227, 0
  %v2269 = vsel %vm100, %v2229, 0
  %v2272 = vsel %vm100, %v2231, 0
  %v2275 = vsel %vm100, %v2233, 0
  %v2278 = vsel %vm100, %v2235, 0
  %v2281 = vsel %vm100, %v2237, 0
  %v2284 = vsel %vm100, %v2239, 0
  %v2287 = vsel %vm100, %v2241, 0
  %v2290 = vsel %vm100, %v2243, 0
  %v2293 = vsel %vm100, %v2245, 0
  %v2296 = vsel %vm100, %v2247, 0
  %v2299 = vsel %vm149, %v2249, 0
  %2301 = vmatprep.subr.mxu0 0.0
  %2302 = vmatpush1.msra.mxu0 0.0
  %2303 = vmatprep.subr.mxu0 0.0
  %2304 = vmatpush1.msra.mxu0 0.0
  %2305 = vmatprep.subr.mxu0 0.0
  %2306 = vmatpush1.msra.mxu0 0.0
  %2307 = vmatprep.subr.mxu0 0.0
  %2308 = vmatpush1.msra.mxu0 0.0
  %2309 = vmatprep.subr.mxu0 0.0
  %2310 = vmatpush1.msra.mxu0 0.0
  %2311 = vmatprep.subr.mxu0 0.0
  %2312 = vmatpush1.msra.mxu0 0.0
  %2313 = vmatprep.subr.mxu0 0.0
  %2314 = vmatpush1.msra.mxu0 0.0
  %2315 = vmatprep.subr.mxu0 0.0
  %2316 = vmatpush1.msra.mxu0 0.0
  %2317 = vmatprep.subr.mxu0 0.0
  %2318 = vmatpush1.msra.mxu0 0.0
  %2319 = vmatprep.subr.mxu0 0.0
  %2320 = vmatpush1.msra.mxu0 0.0
  %2321 = vmatprep.subr.mxu0 0.0
  %2322 = vmatpush1.msra.mxu0 0.0
  %2323 = vmatprep.subr.mxu0 0.0
  %2324 = vmatpush1.msra.mxu0 0.0
  %2325 = vmatprep.subr.mxu0 0.0
  %2326 = vmatpush1.msra.mxu0 0.0
  %2327 = vmatprep.subr.mxu0 0.0
  %2328 = vmatpush1.msra.mxu0 0.0
  %2329 = vmatprep.subr.mxu0 0.0
  %2330 = vmatpush1.msra.mxu0 0.0
  %2331 = vmatprep.subr.mxu0 0.0
  %2332 = vmatpush1.msra.mxu0 %v2299
  %2333 = vmatprep.subr.mxu0 0.0
  %2334 = vmatpush2.msra.mxu0 0.0
  %2335 = vmatprep.subr.mxu0 0.0
  %2336 = vmatpush2.msra.mxu0 0.0
  %2337 = vmatprep.subr.mxu0 0.0
  %2338 = vmatpush2.msra.mxu0 0.0
  %2339 = vmatprep.subr.mxu0 0.0
  %2340 = vmatpush2.msra.mxu0 0.0
  %2341 = vmatprep.subr.mxu0 0.0
  %2342 = vmatpush2.msra.mxu0 0.0
  %2343 = vmatprep.subr.mxu0 0.0
  %2344 = vmatpush2.msra.mxu0 0.0
  %2345 = vmatprep.subr.mxu0 0.0
  %2346 = vmatpush2.msra.mxu0 0.0
  %2347 = vmatprep.subr.mxu0 0.0
  %2348 = vmatpush2.msra.mxu0 0.0
  %2349 = vmatprep.subr.mxu0 0.0
  %2350 = vmatpush2.msra.mxu0 0.0
  %2351 = vmatprep.subr.mxu0 0.0
  %2352 = vmatpush2.msra.mxu0 0.0
  %2353 = vmatprep.subr.mxu0 0.0
  %2354 = vmatpush2.msra.mxu0 0.0
  %2355 = vmatprep.subr.mxu0 0.0
  %2356 = vmatpush2.msra.mxu0 0.0
  %2357 = vmatprep.subr.mxu0 0.0
  %2358 = vmatpush2.msra.mxu0 0.0
  %2359 = vmatprep.subr.mxu0 0.0
  %2360 = vmatpush2.msra.mxu0 0.0
  %2361 = vmatprep.subr.mxu0 0.0
  %2362 = vmatpush2.msra.mxu0 0.0
  %2363 = vmatprep.subr.mxu0 0.0
  %2364 = vmatpush2.msra.mxu0 0.0
  %2365 = vmatprep.mubr.f32.mxu0 0.0
  %2366 = vmatmul.mubr.f32.gmra.mxu0 %v2251
  %v2367 = vpop.f32.mrf.mxu0
  %v2368 = vadd.f32 0.0, %v2367
  %v2369 = vpop.f32.mrf.mxu0
  %2370 = vmatprep.mubr.f32.mxu0 0.0
  %2371 = vmatmul.mubr.f32.gmra.mxu0 %v2254
  %v2372 = vpop.f32.mrf.mxu0
  %v2373 = vadd.f32 0.0, %v2372
  %v2374 = vpop.f32.mrf.mxu0
  %2375 = vmatprep.mubr.f32.mxu0 0.0
  %2376 = vmatmul.mubr.f32.gmra.mxu0 %v2257
  %v2377 = vpop.f32.mrf.mxu0
  %v2378 = vadd.f32 0.0, %v2377
  %v2379 = vpop.f32.mrf.mxu0
  %2380 = vmatprep.mubr.f32.mxu0 0.0
  %2381 = vmatmul.mubr.f32.gmra.mxu0 %v2260
  %v2382 = vpop.f32.mrf.mxu0
  %v2383 = vadd.f32 0.0, %v2382
  %v2384 = vpop.f32.mrf.mxu0
  %2385 = vmatprep.mubr.f32.mxu0 0.0
  %2386 = vmatmul.mubr.f32.gmra.mxu0 %v2263
  %v2387 = vpop.f32.mrf.mxu0
  %v2388 = vadd.f32 0.0, %v2387
  %v2389 = vpop.f32.mrf.mxu0
  %2390 = vmatprep.mubr.f32.mxu0 0.0
  %2391 = vmatmul.mubr.f32.gmra.mxu0 %v2266
  %v2392 = vpop.f32.mrf.mxu0
  %v2393 = vadd.f32 0.0, %v2392
  %v2394 = vpop.f32.mrf.mxu0
  %2395 = vmatprep.mubr.f32.mxu0 0.0
  %2396 = vmatmul.mubr.f32.gmra.mxu0 %v2269
  %v2397 = vpop.f32.mrf.mxu0
  %v2398 = vadd.f32 0.0, %v2397
  %v2399 = vpop.f32.mrf.mxu0
  %2400 = vmatprep.mubr.f32.mxu0 0.0
  %2401 = vmatmul.mubr.f32.gmra.mxu0 %v2272
  %v2402 = vpop.f32.mrf.mxu0
  %v2403 = vadd.f32 0.0, %v2402
  %v2404 = vpop.f32.mrf.mxu0
  %2405 = vmatprep.mubr.f32.mxu0 0.0
  %2406 = vmatmul.mubr.f32.gmra.mxu0 %v2275
  %v2407 = vpop.f32.mrf.mxu0
  %v2408 = vadd.f32 0.0, %v2407
  %v2409 = vpop.f32.mrf.mxu0
  %2410 = vmatprep.mubr.f32.mxu0 0.0
  %2411 = vmatmul.mubr.f32.gmra.mxu0 %v2278
  %v2412 = vpop.f32.mrf.mxu0
  %v2413 = vadd.f32 0.0, %v2412
  %v2414 = vpop.f32.mrf.mxu0
  %2415 = vmatprep.mubr.f32.mxu0 0.0
  %2416 = vmatmul.mubr.f32.gmra.mxu0 %v2281
  %v2417 = vpop.f32.mrf.mxu0
  %v2418 = vadd.f32 0.0, %v2417
  %v2419 = vpop.f32.mrf.mxu0
  %2420 = vmatprep.mubr.f32.mxu0 0.0
  %2421 = vmatmul.mubr.f32.gmra.mxu0 %v2284
  %v2422 = vpop.f32.mrf.mxu0
  %v2423 = vadd.f32 0.0, %v2422
  %v2424 = vpop.f32.mrf.mxu0
  %2425 = vmatprep.mubr.f32.mxu0 0.0
  %2426 = vmatmul.mubr.f32.gmra.mxu0 %v2287
  %v2427 = vpop.f32.mrf.mxu0
  %v2428 = vadd.f32 0.0, %v2427
  %v2429 = vpop.f32.mrf.mxu0
  %2430 = vmatprep.mubr.f32.mxu0 0.0
  %2431 = vmatmul.mubr.f32.gmra.mxu0 %v2290
  %v2432 = vpop.f32.mrf.mxu0
  %v2433 = vadd.f32 0.0, %v2432
  %v2434 = vpop.f32.mrf.mxu0
  %2435 = vmatprep.mubr.f32.mxu0 0.0
  %2436 = vmatmul.mubr.f32.gmra.mxu0 %v2293
  %v2437 = vpop.f32.mrf.mxu0
  %v2438 = vadd.f32 0.0, %v2437
  %v2439 = vpop.f32.mrf.mxu0
  %2440 = vmatprep.mubr.f32.mxu0 0.0
  %2441 = vmatmul.mubr.f32.gmra.mxu0 %v2296
  %v2442 = vpop.f32.mrf.mxu0
  %v2443 = vadd.f32 0.0, %v2442
  %v2444 = vpop.f32.mrf.mxu0
  %2445 = vdwg.mxu0
  %v2446 = vadd.f32 %v2200, %v2368
  %v2447 = vadd.f32 %v2201, %v2373
  %v2448 = vadd.f32 %v2202, %v2378
  %v2449 = vadd.f32 %v2203, %v2383
  %v2450 = vadd.f32 %v2204, %v2388
  %v2451 = vadd.f32 %v2205, %v2393
  %v2452 = vadd.f32 %v2206, %v2398
  %v2453 = vadd.f32 %v2207, %v2403
  %v2454 = vadd.f32 %v2208, %v2408
  %v2455 = vadd.f32 %v2209, %v2413
  %v2456 = vadd.f32 %v2210, %v2418
  %v2457 = vadd.f32 %v2211, %v2423
  %v2458 = vadd.f32 %v2212, %v2428
  %v2459 = vadd.f32 %v2213, %v2433
  %v2460 = vadd.f32 %v2214, %v2438
  %v2461 = vadd.f32 %v2215, %v2443
  %s2462 = scalar_lea.vmem %s1970, 2
  %v2463 = vld [vmem:[%s2462] ss:$2 sm:$0xff]
  %s2464 = scalar_lea.vmem %s1970, 50
  %v2465 = vld [vmem:[%s2464] ss:$2 sm:$0xff]
  %s2466 = scalar_lea.vmem %s1970, 98
  %v2467 = vld [vmem:[%s2466] ss:$2 sm:$0xff]
  %s2468 = scalar_lea.vmem %s1970, 146
  %v2469 = vld [vmem:[%s2468] ss:$2 sm:$0xff]
  %s2470 = scalar_lea.vmem %s1970, 194
  %v2471 = vld [vmem:[%s2470] ss:$2 sm:$0xff]
  %s2472 = scalar_lea.vmem %s1970, 242
  %v2473 = vld [vmem:[%s2472] ss:$2 sm:$0xff]
  %s2474 = scalar_lea.vmem %s1970, 290
  %v2475 = vld [vmem:[%s2474] ss:$2 sm:$0xff]
  %s2476 = scalar_lea.vmem %s1970, 338
  %v2477 = vld [vmem:[%s2476] ss:$2 sm:$0xff]
  %s2478 = scalar_lea.vmem %s1970, 434
  %v2479 = vld [vmem:[%s2478] ss:$2 sm:$0xff]
  %s2480 = scalar_lea.vmem %s1970, 482
  %v2481 = vld [vmem:[%s2480] ss:$2 sm:$0xff]
  %s2482 = scalar_lea.vmem %s1970, 530
  %v2483 = vld [vmem:[%s2482] ss:$2 sm:$0xff]
  %s2484 = scalar_lea.vmem %s1970, 578
  %v2485 = vld [vmem:[%s2484] ss:$2 sm:$0xff]
  %s2486 = scalar_lea.vmem %s1970, 626
  %v2487 = vld [vmem:[%s2486] ss:$2 sm:$0xff]
  %s2488 = scalar_lea.vmem %s1970, 674
  %v2489 = vld [vmem:[%s2488] ss:$2 sm:$0xff]
  %s2490 = scalar_lea.vmem %s1970, 722
  %v2491 = vld [vmem:[%s2490] ss:$2 sm:$0xff]
  %s2492 = scalar_lea.vmem %s1970, 770
  %v2493 = vld [vmem:[%s2492] ss:$2 sm:$0xff]
  %s2494 = scalar_lea.vmem %s1, 40
  %v2495 = vld [vmem:[%s2494] sm:$0xf]
  %v2497 = vsel %vm100, %v2463, 0
  %v2500 = vsel %vm100, %v2465, 0
  %v2503 = vsel %vm100, %v2467, 0
  %v2506 = vsel %vm100, %v2469, 0
  %v2509 = vsel %vm100, %v2471, 0
  %v2512 = vsel %vm100, %v2473, 0
  %v2515 = vsel %vm100, %v2475, 0
  %v2518 = vsel %vm100, %v2477, 0
  %v2521 = vsel %vm100, %v2479, 0
  %v2524 = vsel %vm100, %v2481, 0
  %v2527 = vsel %vm100, %v2483, 0
  %v2530 = vsel %vm100, %v2485, 0
  %v2533 = vsel %vm100, %v2487, 0
  %v2536 = vsel %vm100, %v2489, 0
  %v2539 = vsel %vm100, %v2491, 0
  %v2542 = vsel %vm100, %v2493, 0
  %v2545 = vsel %vm149, %v2495, 0
  %2547 = vmatprep.subr.mxu0 0.0
  %2548 = vmatpush1.msra.mxu0 0.0
  %2549 = vmatprep.subr.mxu0 0.0
  %2550 = vmatpush1.msra.mxu0 0.0
  %2551 = vmatprep.subr.mxu0 0.0
  %2552 = vmatpush1.msra.mxu0 0.0
  %2553 = vmatprep.subr.mxu0 0.0
  %2554 = vmatpush1.msra.mxu0 0.0
  %2555 = vmatprep.subr.mxu0 0.0
  %2556 = vmatpush1.msra.mxu0 0.0
  %2557 = vmatprep.subr.mxu0 0.0
  %2558 = vmatpush1.msra.mxu0 0.0
  %2559 = vmatprep.subr.mxu0 0.0
  %2560 = vmatpush1.msra.mxu0 0.0
  %2561 = vmatprep.subr.mxu0 0.0
  %2562 = vmatpush1.msra.mxu0 0.0
  %2563 = vmatprep.subr.mxu0 0.0
  %2564 = vmatpush1.msra.mxu0 0.0
  %2565 = vmatprep.subr.mxu0 0.0
  %2566 = vmatpush1.msra.mxu0 0.0
  %2567 = vmatprep.subr.mxu0 0.0
  %2568 = vmatpush1.msra.mxu0 0.0
  %2569 = vmatprep.subr.mxu0 0.0
  %2570 = vmatpush1.msra.mxu0 0.0
  %2571 = vmatprep.subr.mxu0 0.0
  %2572 = vmatpush1.msra.mxu0 0.0
  %2573 = vmatprep.subr.mxu0 0.0
  %2574 = vmatpush1.msra.mxu0 0.0
  %2575 = vmatprep.subr.mxu0 0.0
  %2576 = vmatpush1.msra.mxu0 0.0
  %2577 = vmatprep.subr.mxu0 0.0
  %2578 = vmatpush1.msra.mxu0 %v2545
  %2579 = vmatprep.subr.mxu0 0.0
  %2580 = vmatpush2.msra.mxu0 0.0
  %2581 = vmatprep.subr.mxu0 0.0
  %2582 = vmatpush2.msra.mxu0 0.0
  %2583 = vmatprep.subr.mxu0 0.0
  %2584 = vmatpush2.msra.mxu0 0.0
  %2585 = vmatprep.subr.mxu0 0.0
  %2586 = vmatpush2.msra.mxu0 0.0
  %2587 = vmatprep.subr.mxu0 0.0
  %2588 = vmatpush2.msra.mxu0 0.0
  %2589 = vmatprep.subr.mxu0 0.0
  %2590 = vmatpush2.msra.mxu0 0.0
  %2591 = vmatprep.subr.mxu0 0.0
  %2592 = vmatpush2.msra.mxu0 0.0
  %2593 = vmatprep.subr.mxu0 0.0
  %2594 = vmatpush2.msra.mxu0 0.0
  %2595 = vmatprep.subr.mxu0 0.0
  %2596 = vmatpush2.msra.mxu0 0.0
  %2597 = vmatprep.subr.mxu0 0.0
  %2598 = vmatpush2.msra.mxu0 0.0
  %2599 = vmatprep.subr.mxu0 0.0
  %2600 = vmatpush2.msra.mxu0 0.0
  %2601 = vmatprep.subr.mxu0 0.0
  %2602 = vmatpush2.msra.mxu0 0.0
  %2603 = vmatprep.subr.mxu0 0.0
  %2604 = vmatpush2.msra.mxu0 0.0
  %2605 = vmatprep.subr.mxu0 0.0
  %2606 = vmatpush2.msra.mxu0 0.0
  %2607 = vmatprep.subr.mxu0 0.0
  %2608 = vmatpush2.msra.mxu0 0.0
  %2609 = vmatprep.subr.mxu0 0.0
  %2610 = vmatpush2.msra.mxu0 0.0
  %2611 = vmatprep.mubr.f32.mxu0 0.0
  %2612 = vmatmul.mubr.f32.gmra.mxu0 %v2497
  %v2613 = vpop.f32.mrf.mxu0
  %v2614 = vadd.f32 0.0, %v2613
  %v2615 = vpop.f32.mrf.mxu0
  %2616 = vmatprep.mubr.f32.mxu0 0.0
  %2617 = vmatmul.mubr.f32.gmra.mxu0 %v2500
  %v2618 = vpop.f32.mrf.mxu0
  %v2619 = vadd.f32 0.0, %v2618
  %v2620 = vpop.f32.mrf.mxu0
  %2621 = vmatprep.mubr.f32.mxu0 0.0
  %2622 = vmatmul.mubr.f32.gmra.mxu0 %v2503
  %v2623 = vpop.f32.mrf.mxu0
  %v2624 = vadd.f32 0.0, %v2623
  %v2625 = vpop.f32.mrf.mxu0
  %2626 = vmatprep.mubr.f32.mxu0 0.0
  %2627 = vmatmul.mubr.f32.gmra.mxu0 %v2506
  %v2628 = vpop.f32.mrf.mxu0
  %v2629 = vadd.f32 0.0, %v2628
  %v2630 = vpop.f32.mrf.mxu0
  %2631 = vmatprep.mubr.f32.mxu0 0.0
  %2632 = vmatmul.mubr.f32.gmra.mxu0 %v2509
  %v2633 = vpop.f32.mrf.mxu0
  %v2634 = vadd.f32 0.0, %v2633
  %v2635 = vpop.f32.mrf.mxu0
  %2636 = vmatprep.mubr.f32.mxu0 0.0
  %2637 = vmatmul.mubr.f32.gmra.mxu0 %v2512
  %v2638 = vpop.f32.mrf.mxu0
  %v2639 = vadd.f32 0.0, %v2638
  %v2640 = vpop.f32.mrf.mxu0
  %2641 = vmatprep.mubr.f32.mxu0 0.0
  %2642 = vmatmul.mubr.f32.gmra.mxu0 %v2515
  %v2643 = vpop.f32.mrf.mxu0
  %v2644 = vadd.f32 0.0, %v2643
  %v2645 = vpop.f32.mrf.mxu0
  %2646 = vmatprep.mubr.f32.mxu0 0.0
  %2647 = vmatmul.mubr.f32.gmra.mxu0 %v2518
  %v2648 = vpop.f32.mrf.mxu0
  %v2649 = vadd.f32 0.0, %v2648
  %v2650 = vpop.f32.mrf.mxu0
  %2651 = vmatprep.mubr.f32.mxu0 0.0
  %2652 = vmatmul.mubr.f32.gmra.mxu0 %v2521
  %v2653 = vpop.f32.mrf.mxu0
  %v2654 = vadd.f32 0.0, %v2653
  %v2655 = vpop.f32.mrf.mxu0
  %2656 = vmatprep.mubr.f32.mxu0 0.0
  %2657 = vmatmul.mubr.f32.gmra.mxu0 %v2524
  %v2658 = vpop.f32.mrf.mxu0
  %v2659 = vadd.f32 0.0, %v2658
  %v2660 = vpop.f32.mrf.mxu0
  %2661 = vmatprep.mubr.f32.mxu0 0.0
  %2662 = vmatmul.mubr.f32.gmra.mxu0 %v2527
  %v2663 = vpop.f32.mrf.mxu0
  %v2664 = vadd.f32 0.0, %v2663
  %v2665 = vpop.f32.mrf.mxu0
  %2666 = vmatprep.mubr.f32.mxu0 0.0
  %2667 = vmatmul.mubr.f32.gmra.mxu0 %v2530
  %v2668 = vpop.f32.mrf.mxu0
  %v2669 = vadd.f32 0.0, %v2668
  %v2670 = vpop.f32.mrf.mxu0
  %2671 = vmatprep.mubr.f32.mxu0 0.0
  %2672 = vmatmul.mubr.f32.gmra.mxu0 %v2533
  %v2673 = vpop.f32.mrf.mxu0
  %v2674 = vadd.f32 0.0, %v2673
  %v2675 = vpop.f32.mrf.mxu0
  %2676 = vmatprep.mubr.f32.mxu0 0.0
  %2677 = vmatmul.mubr.f32.gmra.mxu0 %v2536
  %v2678 = vpop.f32.mrf.mxu0
  %v2679 = vadd.f32 0.0, %v2678
  %v2680 = vpop.f32.mrf.mxu0
  %2681 = vmatprep.mubr.f32.mxu0 0.0
  %2682 = vmatmul.mubr.f32.gmra.mxu0 %v2539
  %v2683 = vpop.f32.mrf.mxu0
  %v2684 = vadd.f32 0.0, %v2683
  %v2685 = vpop.f32.mrf.mxu0
  %2686 = vmatprep.mubr.f32.mxu0 0.0
  %2687 = vmatmul.mubr.f32.gmra.mxu0 %v2542
  %v2688 = vpop.f32.mrf.mxu0
  %v2689 = vadd.f32 0.0, %v2688
  %v2690 = vpop.f32.mrf.mxu0
  %2691 = vdwg.mxu0
  %v2692 = vadd.f32 %v2446, %v2614
  %v2693 = vadd.f32 %v2447, %v2619
  %v2694 = vadd.f32 %v2448, %v2624
  %v2695 = vadd.f32 %v2449, %v2629
  %v2696 = vadd.f32 %v2450, %v2634
  %v2697 = vadd.f32 %v2451, %v2639
  %v2698 = vadd.f32 %v2452, %v2644
  %v2699 = vadd.f32 %v2453, %v2649
  %v2700 = vadd.f32 %v2454, %v2654
  %v2701 = vadd.f32 %v2455, %v2659
  %v2702 = vadd.f32 %v2456, %v2664
  %v2703 = vadd.f32 %v2457, %v2669
  %v2704 = vadd.f32 %v2458, %v2674
  %v2705 = vadd.f32 %v2459, %v2679
  %v2706 = vadd.f32 %v2460, %v2684
  %v2707 = vadd.f32 %v2461, %v2689
  %s2708 = scalar_lea.vmem %s1970, 3
  %v2709 = vld [vmem:[%s2708] ss:$2 sm:$0xff]
  %s2710 = scalar_lea.vmem %s1970, 51
  %v2711 = vld [vmem:[%s2710] ss:$2 sm:$0xff]
  %s2712 = scalar_lea.vmem %s1970, 99
  %v2713 = vld [vmem:[%s2712] ss:$2 sm:$0xff]
  %s2714 = scalar_lea.vmem %s1970, 147
  %v2715 = vld [vmem:[%s2714] ss:$2 sm:$0xff]
  %s2716 = scalar_lea.vmem %s1970, 195
  %v2717 = vld [vmem:[%s2716] ss:$2 sm:$0xff]
  %s2718 = scalar_lea.vmem %s1970, 243
  %v2719 = vld [vmem:[%s2718] ss:$2 sm:$0xff]
  %s2720 = scalar_lea.vmem %s1970, 291
  %v2721 = vld [vmem:[%s2720] ss:$2 sm:$0xff]
  %s2722 = scalar_lea.vmem %s1970, 339
  %v2723 = vld [vmem:[%s2722] ss:$2 sm:$0xff]
  %s2724 = scalar_lea.vmem %s1970, 435
  %v2725 = vld [vmem:[%s2724] ss:$2 sm:$0xff]
  %s2726 = scalar_lea.vmem %s1970, 483
  %v2727 = vld [vmem:[%s2726] ss:$2 sm:$0xff]
  %s2728 = scalar_lea.vmem %s1970, 531
  %v2729 = vld [vmem:[%s2728] ss:$2 sm:$0xff]
  %s2730 = scalar_lea.vmem %s1970, 579
  %v2731 = vld [vmem:[%s2730] ss:$2 sm:$0xff]
  %s2732 = scalar_lea.vmem %s1970, 627
  %v2733 = vld [vmem:[%s2732] ss:$2 sm:$0xff]
  %s2734 = scalar_lea.vmem %s1970, 675
  %v2735 = vld [vmem:[%s2734] ss:$2 sm:$0xff]
  %s2736 = scalar_lea.vmem %s1970, 723
  %v2737 = vld [vmem:[%s2736] ss:$2 sm:$0xff]
  %s2738 = scalar_lea.vmem %s1970, 771
  %v2739 = vld [vmem:[%s2738] ss:$2 sm:$0xff]
  %s2740 = scalar_lea.vmem %s1, 44
  %v2741 = vld [vmem:[%s2740] sm:$0xf]
  %v2743 = vsel %vm100, %v2709, 0
  %v2746 = vsel %vm100, %v2711, 0
  %v2749 = vsel %vm100, %v2713, 0
  %v2752 = vsel %vm100, %v2715, 0
  %v2755 = vsel %vm100, %v2717, 0
  %v2758 = vsel %vm100, %v2719, 0
  %v2761 = vsel %vm100, %v2721, 0
  %v2764 = vsel %vm100, %v2723, 0
  %v2767 = vsel %vm100, %v2725, 0
  %v2770 = vsel %vm100, %v2727, 0
  %v2773 = vsel %vm100, %v2729, 0
  %v2776 = vsel %vm100, %v2731, 0
  %v2779 = vsel %vm100, %v2733, 0
  %v2782 = vsel %vm100, %v2735, 0
  %v2785 = vsel %vm100, %v2737, 0
  %v2788 = vsel %vm100, %v2739, 0
  %v2791 = vsel %vm149, %v2741, 0
  %2793 = vmatprep.subr.mxu0 0.0
  %2794 = vmatpush1.msra.mxu0 0.0
  %2795 = vmatprep.subr.mxu0 0.0
  %2796 = vmatpush1.msra.mxu0 0.0
  %2797 = vmatprep.subr.mxu0 0.0
  %2798 = vmatpush1.msra.mxu0 0.0
  %2799 = vmatprep.subr.mxu0 0.0
  %2800 = vmatpush1.msra.mxu0 0.0
  %2801 = vmatprep.subr.mxu0 0.0
  %2802 = vmatpush1.msra.mxu0 0.0
  %2803 = vmatprep.subr.mxu0 0.0
  %2804 = vmatpush1.msra.mxu0 0.0
  %2805 = vmatprep.subr.mxu0 0.0
  %2806 = vmatpush1.msra.mxu0 0.0
  %2807 = vmatprep.subr.mxu0 0.0
  %2808 = vmatpush1.msra.mxu0 0.0
  %2809 = vmatprep.subr.mxu0 0.0
  %2810 = vmatpush1.msra.mxu0 0.0
  %2811 = vmatprep.subr.mxu0 0.0
  %2812 = vmatpush1.msra.mxu0 0.0
  %2813 = vmatprep.subr.mxu0 0.0
  %2814 = vmatpush1.msra.mxu0 0.0
  %2815 = vmatprep.subr.mxu0 0.0
  %2816 = vmatpush1.msra.mxu0 0.0
  %2817 = vmatprep.subr.mxu0 0.0
  %2818 = vmatpush1.msra.mxu0 0.0
  %2819 = vmatprep.subr.mxu0 0.0
  %2820 = vmatpush1.msra.mxu0 0.0
  %2821 = vmatprep.subr.mxu0 0.0
  %2822 = vmatpush1.msra.mxu0 0.0
  %2823 = vmatprep.subr.mxu0 0.0
  %2824 = vmatpush1.msra.mxu0 %v2791
  %2825 = vmatprep.subr.mxu0 0.0
  %2826 = vmatpush2.msra.mxu0 0.0
  %2827 = vmatprep.subr.mxu0 0.0
  %2828 = vmatpush2.msra.mxu0 0.0
  %2829 = vmatprep.subr.mxu0 0.0
  %2830 = vmatpush2.msra.mxu0 0.0
  %2831 = vmatprep.subr.mxu0 0.0
  %2832 = vmatpush2.msra.mxu0 0.0
  %2833 = vmatprep.subr.mxu0 0.0
  %2834 = vmatpush2.msra.mxu0 0.0
  %2835 = vmatprep.subr.mxu0 0.0
  %2836 = vmatpush2.msra.mxu0 0.0
  %2837 = vmatprep.subr.mxu0 0.0
  %2838 = vmatpush2.msra.mxu0 0.0
  %2839 = vmatprep.subr.mxu0 0.0
  %2840 = vmatpush2.msra.mxu0 0.0
  %2841 = vmatprep.subr.mxu0 0.0
  %2842 = vmatpush2.msra.mxu0 0.0
  %2843 = vmatprep.subr.mxu0 0.0
  %2844 = vmatpush2.msra.mxu0 0.0
  %2845 = vmatprep.subr.mxu0 0.0
  %2846 = vmatpush2.msra.mxu0 0.0
  %2847 = vmatprep.subr.mxu0 0.0
  %2848 = vmatpush2.msra.mxu0 0.0
  %2849 = vmatprep.subr.mxu0 0.0
  %2850 = vmatpush2.msra.mxu0 0.0
  %2851 = vmatprep.subr.mxu0 0.0
  %2852 = vmatpush2.msra.mxu0 0.0
  %2853 = vmatprep.subr.mxu0 0.0
  %2854 = vmatpush2.msra.mxu0 0.0
  %2855 = vmatprep.subr.mxu0 0.0
  %2856 = vmatpush2.msra.mxu0 0.0
  %2857 = vmatprep.mubr.f32.mxu0 0.0
  %2858 = vmatmul.mubr.f32.gmra.mxu0 %v2743
  %v2859 = vpop.f32.mrf.mxu0
  %v2860 = vadd.f32 0.0, %v2859
  %v2861 = vpop.f32.mrf.mxu0
  %2862 = vmatprep.mubr.f32.mxu0 0.0
  %2863 = vmatmul.mubr.f32.gmra.mxu0 %v2746
  %v2864 = vpop.f32.mrf.mxu0
  %v2865 = vadd.f32 0.0, %v2864
  %v2866 = vpop.f32.mrf.mxu0
  %2867 = vmatprep.mubr.f32.mxu0 0.0
  %2868 = vmatmul.mubr.f32.gmra.mxu0 %v2749
  %v2869 = vpop.f32.mrf.mxu0
  %v2870 = vadd.f32 0.0, %v2869
  %v2871 = vpop.f32.mrf.mxu0
  %2872 = vmatprep.mubr.f32.mxu0 0.0
  %2873 = vmatmul.mubr.f32.gmra.mxu0 %v2752
  %v2874 = vpop.f32.mrf.mxu0
  %v2875 = vadd.f32 0.0, %v2874
  %v2876 = vpop.f32.mrf.mxu0
  %2877 = vmatprep.mubr.f32.mxu0 0.0
  %2878 = vmatmul.mubr.f32.gmra.mxu0 %v2755
  %v2879 = vpop.f32.mrf.mxu0
  %v2880 = vadd.f32 0.0, %v2879
  %v2881 = vpop.f32.mrf.mxu0
  %2882 = vmatprep.mubr.f32.mxu0 0.0
  %2883 = vmatmul.mubr.f32.gmra.mxu0 %v2758
  %v2884 = vpop.f32.mrf.mxu0
  %v2885 = vadd.f32 0.0, %v2884
  %v2886 = vpop.f32.mrf.mxu0
  %2887 = vmatprep.mubr.f32.mxu0 0.0
  %2888 = vmatmul.mubr.f32.gmra.mxu0 %v2761
  %v2889 = vpop.f32.mrf.mxu0
  %v2890 = vadd.f32 0.0, %v2889
  %v2891 = vpop.f32.mrf.mxu0
  %2892 = vmatprep.mubr.f32.mxu0 0.0
  %2893 = vmatmul.mubr.f32.gmra.mxu0 %v2764
  %v2894 = vpop.f32.mrf.mxu0
  %v2895 = vadd.f32 0.0, %v2894
  %v2896 = vpop.f32.mrf.mxu0
  %2897 = vmatprep.mubr.f32.mxu0 0.0
  %2898 = vmatmul.mubr.f32.gmra.mxu0 %v2767
  %v2899 = vpop.f32.mrf.mxu0
  %v2900 = vadd.f32 0.0, %v2899
  %v2901 = vpop.f32.mrf.mxu0
  %2902 = vmatprep.mubr.f32.mxu0 0.0
  %2903 = vmatmul.mubr.f32.gmra.mxu0 %v2770
  %v2904 = vpop.f32.mrf.mxu0
  %v2905 = vadd.f32 0.0, %v2904
  %v2906 = vpop.f32.mrf.mxu0
  %2907 = vmatprep.mubr.f32.mxu0 0.0
  %2908 = vmatmul.mubr.f32.gmra.mxu0 %v2773
  %v2909 = vpop.f32.mrf.mxu0
  %v2910 = vadd.f32 0.0, %v2909
  %v2911 = vpop.f32.mrf.mxu0
  %2912 = vmatprep.mubr.f32.mxu0 0.0
  %2913 = vmatmul.mubr.f32.gmra.mxu0 %v2776
  %v2914 = vpop.f32.mrf.mxu0
  %v2915 = vadd.f32 0.0, %v2914
  %v2916 = vpop.f32.mrf.mxu0
  %2917 = vmatprep.mubr.f32.mxu0 0.0
  %2918 = vmatmul.mubr.f32.gmra.mxu0 %v2779
  %v2919 = vpop.f32.mrf.mxu0
  %v2920 = vadd.f32 0.0, %v2919
  %v2921 = vpop.f32.mrf.mxu0
  %2922 = vmatprep.mubr.f32.mxu0 0.0
  %2923 = vmatmul.mubr.f32.gmra.mxu0 %v2782
  %v2924 = vpop.f32.mrf.mxu0
  %v2925 = vadd.f32 0.0, %v2924
  %v2926 = vpop.f32.mrf.mxu0
  %2927 = vmatprep.mubr.f32.mxu0 0.0
  %2928 = vmatmul.mubr.f32.gmra.mxu0 %v2785
  %v2929 = vpop.f32.mrf.mxu0
  %v2930 = vadd.f32 0.0, %v2929
  %v2931 = vpop.f32.mrf.mxu0
  %2932 = vmatprep.mubr.f32.mxu0 0.0
  %2933 = vmatmul.mubr.f32.gmra.mxu0 %v2788
  %v2934 = vpop.f32.mrf.mxu0
  %v2935 = vadd.f32 0.0, %v2934
  %v2936 = vpop.f32.mrf.mxu0
  %2937 = vdwg.mxu0
  %v2938 = vadd.f32 %v2692, %v2860
  %v2939 = vadd.f32 %v2693, %v2865
  %v2940 = vadd.f32 %v2694, %v2870
  %v2941 = vadd.f32 %v2695, %v2875
  %v2942 = vadd.f32 %v2696, %v2880
  %v2943 = vadd.f32 %v2697, %v2885
  %v2944 = vadd.f32 %v2698, %v2890
  %v2945 = vadd.f32 %v2699, %v2895
  %v2946 = vadd.f32 %v2700, %v2900
  %v2947 = vadd.f32 %v2701, %v2905
  %v2948 = vadd.f32 %v2702, %v2910
  %v2949 = vadd.f32 %v2703, %v2915
  %v2950 = vadd.f32 %v2704, %v2920
  %v2951 = vadd.f32 %v2705, %v2925
  %v2952 = vadd.f32 %v2706, %v2930
  %v2953 = vadd.f32 %v2707, %v2935
  %s2954 = scalar_lea.vmem %s0, 72
  %v2955 = vld [vmem:[%s2954] ss:$2 sm:$0xff]
  %s2956 = scalar_lea.vmem %s2954, 48
  %v2957 = vld [vmem:[%s2956] ss:$2 sm:$0xff]
  %s2958 = scalar_lea.vmem %s2954, 96
  %v2959 = vld [vmem:[%s2958] ss:$2 sm:$0xff]
  %s2960 = scalar_lea.vmem %s2954, 144
  %v2961 = vld [vmem:[%s2960] ss:$2 sm:$0xff]
  %s2962 = scalar_lea.vmem %s2954, 192
  %v2963 = vld [vmem:[%s2962] ss:$2 sm:$0xff]
  %s2964 = scalar_lea.vmem %s2954, 240
  %v2965 = vld [vmem:[%s2964] ss:$2 sm:$0xff]
  %s2966 = scalar_lea.vmem %s2954, 288
  %v2967 = vld [vmem:[%s2966] ss:$2 sm:$0xff]
  %s2968 = scalar_lea.vmem %s2954, 336
  %v2969 = vld [vmem:[%s2968] ss:$2 sm:$0xff]
  %s2970 = scalar_lea.vmem %s2954, 432
  %v2971 = vld [vmem:[%s2970] ss:$2 sm:$0xff]
  %s2972 = scalar_lea.vmem %s2954, 480
  %v2973 = vld [vmem:[%s2972] ss:$2 sm:$0xff]
  %s2974 = scalar_lea.vmem %s2954, 528
  %v2975 = vld [vmem:[%s2974] ss:$2 sm:$0xff]
  %s2976 = scalar_lea.vmem %s2954, 576
  %v2977 = vld [vmem:[%s2976] ss:$2 sm:$0xff]
  %s2978 = scalar_lea.vmem %s2954, 624
  %v2979 = vld [vmem:[%s2978] ss:$2 sm:$0xff]
  %s2980 = scalar_lea.vmem %s2954, 672
  %v2981 = vld [vmem:[%s2980] ss:$2 sm:$0xff]
  %s2982 = scalar_lea.vmem %s2954, 720
  %v2983 = vld [vmem:[%s2982] ss:$2 sm:$0xff]
  %s2984 = scalar_lea.vmem %s2954, 768
  %v2985 = vld [vmem:[%s2984] ss:$2 sm:$0xff]
  %s2986 = scalar_lea.vmem %s1, 48
  %v2987 = vld [vmem:[%s2986] sm:$0xf]
  %v2989 = vsel %vm100, %v2955, 0
  %v2992 = vsel %vm100, %v2957, 0
  %v2995 = vsel %vm100, %v2959, 0
  %v2998 = vsel %vm100, %v2961, 0
  %v3001 = vsel %vm100, %v2963, 0
  %v3004 = vsel %vm100, %v2965, 0
  %v3007 = vsel %vm100, %v2967, 0
  %v3010 = vsel %vm100, %v2969, 0
  %v3013 = vsel %vm100, %v2971, 0
  %v3016 = vsel %vm100, %v2973, 0
  %v3019 = vsel %vm100, %v2975, 0
  %v3022 = vsel %vm100, %v2977, 0
  %v3025 = vsel %vm100, %v2979, 0
  %v3028 = vsel %vm100, %v2981, 0
  %v3031 = vsel %vm100, %v2983, 0
  %v3034 = vsel %vm100, %v2985, 0
  %v3037 = vsel %vm149, %v2987, 0
  %3039 = vmatprep.subr.mxu0 0.0
  %3040 = vmatpush1.msra.mxu0 0.0
  %3041 = vmatprep.subr.mxu0 0.0
  %3042 = vmatpush1.msra.mxu0 0.0
  %3043 = vmatprep.subr.mxu0 0.0
  %3044 = vmatpush1.msra.mxu0 0.0
  %3045 = vmatprep.subr.mxu0 0.0
  %3046 = vmatpush1.msra.mxu0 0.0
  %3047 = vmatprep.subr.mxu0 0.0
  %3048 = vmatpush1.msra.mxu0 0.0
  %3049 = vmatprep.subr.mxu0 0.0
  %3050 = vmatpush1.msra.mxu0 0.0
  %3051 = vmatprep.subr.mxu0 0.0
  %3052 = vmatpush1.msra.mxu0 0.0
  %3053 = vmatprep.subr.mxu0 0.0
  %3054 = vmatpush1.msra.mxu0 0.0
  %3055 = vmatprep.subr.mxu0 0.0
  %3056 = vmatpush1.msra.mxu0 0.0
  %3057 = vmatprep.subr.mxu0 0.0
  %3058 = vmatpush1.msra.mxu0 0.0
  %3059 = vmatprep.subr.mxu0 0.0
  %3060 = vmatpush1.msra.mxu0 0.0
  %3061 = vmatprep.subr.mxu0 0.0
  %3062 = vmatpush1.msra.mxu0 0.0
  %3063 = vmatprep.subr.mxu0 0.0
  %3064 = vmatpush1.msra.mxu0 0.0
  %3065 = vmatprep.subr.mxu0 0.0
  %3066 = vmatpush1.msra.mxu0 0.0
  %3067 = vmatprep.subr.mxu0 0.0
  %3068 = vmatpush1.msra.mxu0 0.0
  %3069 = vmatprep.subr.mxu0 0.0
  %3070 = vmatpush1.msra.mxu0 %v3037
  %3071 = vmatprep.subr.mxu0 0.0
  %3072 = vmatpush2.msra.mxu0 0.0
  %3073 = vmatprep.subr.mxu0 0.0
  %3074 = vmatpush2.msra.mxu0 0.0
  %3075 = vmatprep.subr.mxu0 0.0
  %3076 = vmatpush2.msra.mxu0 0.0
  %3077 = vmatprep.subr.mxu0 0.0
  %3078 = vmatpush2.msra.mxu0 0.0
  %3079 = vmatprep.subr.mxu0 0.0
  %3080 = vmatpush2.msra.mxu0 0.0
  %3081 = vmatprep.subr.mxu0 0.0
  %3082 = vmatpush2.msra.mxu0 0.0
  %3083 = vmatprep.subr.mxu0 0.0
  %3084 = vmatpush2.msra.mxu0 0.0
  %3085 = vmatprep.subr.mxu0 0.0
  %3086 = vmatpush2.msra.mxu0 0.0
  %3087 = vmatprep.subr.mxu0 0.0
  %3088 = vmatpush2.msra.mxu0 0.0
  %3089 = vmatprep.subr.mxu0 0.0
  %3090 = vmatpush2.msra.mxu0 0.0
  %3091 = vmatprep.subr.mxu0 0.0
  %3092 = vmatpush2.msra.mxu0 0.0
  %3093 = vmatprep.subr.mxu0 0.0
  %3094 = vmatpush2.msra.mxu0 0.0
  %3095 = vmatprep.subr.mxu0 0.0
  %3096 = vmatpush2.msra.mxu0 0.0
  %3097 = vmatprep.subr.mxu0 0.0
  %3098 = vmatpush2.msra.mxu0 0.0
  %3099 = vmatprep.subr.mxu0 0.0
  %3100 = vmatpush2.msra.mxu0 0.0
  %3101 = vmatprep.subr.mxu0 0.0
  %3102 = vmatpush2.msra.mxu0 0.0
  %3103 = vmatprep.mubr.f32.mxu0 0.0
  %3104 = vmatmul.mubr.f32.gmra.mxu0 %v2989
  %v3105 = vpop.f32.mrf.mxu0
  %v3106 = vadd.f32 0.0, %v3105
  %v3107 = vpop.f32.mrf.mxu0
  %3108 = vmatprep.mubr.f32.mxu0 0.0
  %3109 = vmatmul.mubr.f32.gmra.mxu0 %v2992
  %v3110 = vpop.f32.mrf.mxu0
  %v3111 = vadd.f32 0.0, %v3110
  %v3112 = vpop.f32.mrf.mxu0
  %3113 = vmatprep.mubr.f32.mxu0 0.0
  %3114 = vmatmul.mubr.f32.gmra.mxu0 %v2995
  %v3115 = vpop.f32.mrf.mxu0
  %v3116 = vadd.f32 0.0, %v3115
  %v3117 = vpop.f32.mrf.mxu0
  %3118 = vmatprep.mubr.f32.mxu0 0.0
  %3119 = vmatmul.mubr.f32.gmra.mxu0 %v2998
  %v3120 = vpop.f32.mrf.mxu0
  %v3121 = vadd.f32 0.0, %v3120
  %v3122 = vpop.f32.mrf.mxu0
  %3123 = vmatprep.mubr.f32.mxu0 0.0
  %3124 = vmatmul.mubr.f32.gmra.mxu0 %v3001
  %v3125 = vpop.f32.mrf.mxu0
  %v3126 = vadd.f32 0.0, %v3125
  %v3127 = vpop.f32.mrf.mxu0
  %3128 = vmatprep.mubr.f32.mxu0 0.0
  %3129 = vmatmul.mubr.f32.gmra.mxu0 %v3004
  %v3130 = vpop.f32.mrf.mxu0
  %v3131 = vadd.f32 0.0, %v3130
  %v3132 = vpop.f32.mrf.mxu0
  %3133 = vmatprep.mubr.f32.mxu0 0.0
  %3134 = vmatmul.mubr.f32.gmra.mxu0 %v3007
  %v3135 = vpop.f32.mrf.mxu0
  %v3136 = vadd.f32 0.0, %v3135
  %v3137 = vpop.f32.mrf.mxu0
  %3138 = vmatprep.mubr.f32.mxu0 0.0
  %3139 = vmatmul.mubr.f32.gmra.mxu0 %v3010
  %v3140 = vpop.f32.mrf.mxu0
  %v3141 = vadd.f32 0.0, %v3140
  %v3142 = vpop.f32.mrf.mxu0
  %3143 = vmatprep.mubr.f32.mxu0 0.0
  %3144 = vmatmul.mubr.f32.gmra.mxu0 %v3013
  %v3145 = vpop.f32.mrf.mxu0
  %v3146 = vadd.f32 0.0, %v3145
  %v3147 = vpop.f32.mrf.mxu0
  %3148 = vmatprep.mubr.f32.mxu0 0.0
  %3149 = vmatmul.mubr.f32.gmra.mxu0 %v3016
  %v3150 = vpop.f32.mrf.mxu0
  %v3151 = vadd.f32 0.0, %v3150
  %v3152 = vpop.f32.mrf.mxu0
  %3153 = vmatprep.mubr.f32.mxu0 0.0
  %3154 = vmatmul.mubr.f32.gmra.mxu0 %v3019
  %v3155 = vpop.f32.mrf.mxu0
  %v3156 = vadd.f32 0.0, %v3155
  %v3157 = vpop.f32.mrf.mxu0
  %3158 = vmatprep.mubr.f32.mxu0 0.0
  %3159 = vmatmul.mubr.f32.gmra.mxu0 %v3022
  %v3160 = vpop.f32.mrf.mxu0
  %v3161 = vadd.f32 0.0, %v3160
  %v3162 = vpop.f32.mrf.mxu0
  %3163 = vmatprep.mubr.f32.mxu0 0.0
  %3164 = vmatmul.mubr.f32.gmra.mxu0 %v3025
  %v3165 = vpop.f32.mrf.mxu0
  %v3166 = vadd.f32 0.0, %v3165
  %v3167 = vpop.f32.mrf.mxu0
  %3168 = vmatprep.mubr.f32.mxu0 0.0
  %3169 = vmatmul.mubr.f32.gmra.mxu0 %v3028
  %v3170 = vpop.f32.mrf.mxu0
  %v3171 = vadd.f32 0.0, %v3170
  %v3172 = vpop.f32.mrf.mxu0
  %3173 = vmatprep.mubr.f32.mxu0 0.0
  %3174 = vmatmul.mubr.f32.gmra.mxu0 %v3031
  %v3175 = vpop.f32.mrf.mxu0
  %v3176 = vadd.f32 0.0, %v3175
  %v3177 = vpop.f32.mrf.mxu0
  %3178 = vmatprep.mubr.f32.mxu0 0.0
  %3179 = vmatmul.mubr.f32.gmra.mxu0 %v3034
  %v3180 = vpop.f32.mrf.mxu0
  %v3181 = vadd.f32 0.0, %v3180
  %v3182 = vpop.f32.mrf.mxu0
  %3183 = vdwg.mxu0
  %v3184 = vadd.f32 %v2938, %v3106
  %v3185 = vadd.f32 %v2939, %v3111
  %v3186 = vadd.f32 %v2940, %v3116
  %v3187 = vadd.f32 %v2941, %v3121
  %v3188 = vadd.f32 %v2942, %v3126
  %v3189 = vadd.f32 %v2943, %v3131
  %v3190 = vadd.f32 %v2944, %v3136
  %v3191 = vadd.f32 %v2945, %v3141
  %v3192 = vadd.f32 %v2946, %v3146
  %v3193 = vadd.f32 %v2947, %v3151
  %v3194 = vadd.f32 %v2948, %v3156
  %v3195 = vadd.f32 %v2949, %v3161
  %v3196 = vadd.f32 %v2950, %v3166
  %v3197 = vadd.f32 %v2951, %v3171
  %v3198 = vadd.f32 %v2952, %v3176
  %v3199 = vadd.f32 %v2953, %v3181
  %s3200 = scalar_lea.vmem %s2954, 1
  %v3201 = vld [vmem:[%s3200] ss:$2 sm:$0xff]
  %s3202 = scalar_lea.vmem %s2954, 49
  %v3203 = vld [vmem:[%s3202] ss:$2 sm:$0xff]
  %s3204 = scalar_lea.vmem %s2954, 97
  %v3205 = vld [vmem:[%s3204] ss:$2 sm:$0xff]
  %s3206 = scalar_lea.vmem %s2954, 145
  %v3207 = vld [vmem:[%s3206] ss:$2 sm:$0xff]
  %s3208 = scalar_lea.vmem %s2954, 193
  %v3209 = vld [vmem:[%s3208] ss:$2 sm:$0xff]
  %s3210 = scalar_lea.vmem %s2954, 241
  %v3211 = vld [vmem:[%s3210] ss:$2 sm:$0xff]
  %s3212 = scalar_lea.vmem %s2954, 289
  %v3213 = vld [vmem:[%s3212] ss:$2 sm:$0xff]
  %s3214 = scalar_lea.vmem %s2954, 337
  %v3215 = vld [vmem:[%s3214] ss:$2 sm:$0xff]
  %s3216 = scalar_lea.vmem %s2954, 433
  %v3217 = vld [vmem:[%s3216] ss:$2 sm:$0xff]
  %s3218 = scalar_lea.vmem %s2954, 481
  %v3219 = vld [vmem:[%s3218] ss:$2 sm:$0xff]
  %s3220 = scalar_lea.vmem %s2954, 529
  %v3221 = vld [vmem:[%s3220] ss:$2 sm:$0xff]
  %s3222 = scalar_lea.vmem %s2954, 577
  %v3223 = vld [vmem:[%s3222] ss:$2 sm:$0xff]
  %s3224 = scalar_lea.vmem %s2954, 625
  %v3225 = vld [vmem:[%s3224] ss:$2 sm:$0xff]
  %s3226 = scalar_lea.vmem %s2954, 673
  %v3227 = vld [vmem:[%s3226] ss:$2 sm:$0xff]
  %s3228 = scalar_lea.vmem %s2954, 721
  %v3229 = vld [vmem:[%s3228] ss:$2 sm:$0xff]
  %s3230 = scalar_lea.vmem %s2954, 769
  %v3231 = vld [vmem:[%s3230] ss:$2 sm:$0xff]
  %s3232 = scalar_lea.vmem %s1, 52
  %v3233 = vld [vmem:[%s3232] sm:$0xf]
  %v3235 = vsel %vm100, %v3201, 0
  %v3238 = vsel %vm100, %v3203, 0
  %v3241 = vsel %vm100, %v3205, 0
  %v3244 = vsel %vm100, %v3207, 0
  %v3247 = vsel %vm100, %v3209, 0
  %v3250 = vsel %vm100, %v3211, 0
  %v3253 = vsel %vm100, %v3213, 0
  %v3256 = vsel %vm100, %v3215, 0
  %v3259 = vsel %vm100, %v3217, 0
  %v3262 = vsel %vm100, %v3219, 0
  %v3265 = vsel %vm100, %v3221, 0
  %v3268 = vsel %vm100, %v3223, 0
  %v3271 = vsel %vm100, %v3225, 0
  %v3274 = vsel %vm100, %v3227, 0
  %v3277 = vsel %vm100, %v3229, 0
  %v3280 = vsel %vm100, %v3231, 0
  %v3283 = vsel %vm149, %v3233, 0
  %3285 = vmatprep.subr.mxu0 0.0
  %3286 = vmatpush1.msra.mxu0 0.0
  %3287 = vmatprep.subr.mxu0 0.0
  %3288 = vmatpush1.msra.mxu0 0.0
  %3289 = vmatprep.subr.mxu0 0.0
  %3290 = vmatpush1.msra.mxu0 0.0
  %3291 = vmatprep.subr.mxu0 0.0
  %3292 = vmatpush1.msra.mxu0 0.0
  %3293 = vmatprep.subr.mxu0 0.0
  %3294 = vmatpush1.msra.mxu0 0.0
  %3295 = vmatprep.subr.mxu0 0.0
  %3296 = vmatpush1.msra.mxu0 0.0
  %3297 = vmatprep.subr.mxu0 0.0
  %3298 = vmatpush1.msra.mxu0 0.0
  %3299 = vmatprep.subr.mxu0 0.0
  %3300 = vmatpush1.msra.mxu0 0.0
  %3301 = vmatprep.subr.mxu0 0.0
  %3302 = vmatpush1.msra.mxu0 0.0
  %3303 = vmatprep.subr.mxu0 0.0
  %3304 = vmatpush1.msra.mxu0 0.0
  %3305 = vmatprep.subr.mxu0 0.0
  %3306 = vmatpush1.msra.mxu0 0.0
  %3307 = vmatprep.subr.mxu0 0.0
  %3308 = vmatpush1.msra.mxu0 0.0
  %3309 = vmatprep.subr.mxu0 0.0
  %3310 = vmatpush1.msra.mxu0 0.0
  %3311 = vmatprep.subr.mxu0 0.0
  %3312 = vmatpush1.msra.mxu0 0.0
  %3313 = vmatprep.subr.mxu0 0.0
  %3314 = vmatpush1.msra.mxu0 0.0
  %3315 = vmatprep.subr.mxu0 0.0
  %3316 = vmatpush1.msra.mxu0 %v3283
  %3317 = vmatprep.subr.mxu0 0.0
  %3318 = vmatpush2.msra.mxu0 0.0
  %3319 = vmatprep.subr.mxu0 0.0
  %3320 = vmatpush2.msra.mxu0 0.0
  %3321 = vmatprep.subr.mxu0 0.0
  %3322 = vmatpush2.msra.mxu0 0.0
  %3323 = vmatprep.subr.mxu0 0.0
  %3324 = vmatpush2.msra.mxu0 0.0
  %3325 = vmatprep.subr.mxu0 0.0
  %3326 = vmatpush2.msra.mxu0 0.0
  %3327 = vmatprep.subr.mxu0 0.0
  %3328 = vmatpush2.msra.mxu0 0.0
  %3329 = vmatprep.subr.mxu0 0.0
  %3330 = vmatpush2.msra.mxu0 0.0
  %3331 = vmatprep.subr.mxu0 0.0
  %3332 = vmatpush2.msra.mxu0 0.0
  %3333 = vmatprep.subr.mxu0 0.0
  %3334 = vmatpush2.msra.mxu0 0.0
  %3335 = vmatprep.subr.mxu0 0.0
  %3336 = vmatpush2.msra.mxu0 0.0
  %3337 = vmatprep.subr.mxu0 0.0
  %3338 = vmatpush2.msra.mxu0 0.0
  %3339 = vmatprep.subr.mxu0 0.0
  %3340 = vmatpush2.msra.mxu0 0.0
  %3341 = vmatprep.subr.mxu0 0.0
  %3342 = vmatpush2.msra.mxu0 0.0
  %3343 = vmatprep.subr.mxu0 0.0
  %3344 = vmatpush2.msra.mxu0 0.0
  %3345 = vmatprep.subr.mxu0 0.0
  %3346 = vmatpush2.msra.mxu0 0.0
  %3347 = vmatprep.subr.mxu0 0.0
  %3348 = vmatpush2.msra.mxu0 0.0
  %3349 = vmatprep.mubr.f32.mxu0 0.0
  %3350 = vmatmul.mubr.f32.gmra.mxu0 %v3235
  %v3351 = vpop.f32.mrf.mxu0
  %v3352 = vadd.f32 0.0, %v3351
  %v3353 = vpop.f32.mrf.mxu0
  %3354 = vmatprep.mubr.f32.mxu0 0.0
  %3355 = vmatmul.mubr.f32.gmra.mxu0 %v3238
  %v3356 = vpop.f32.mrf.mxu0
  %v3357 = vadd.f32 0.0, %v3356
  %v3358 = vpop.f32.mrf.mxu0
  %3359 = vmatprep.mubr.f32.mxu0 0.0
  %3360 = vmatmul.mubr.f32.gmra.mxu0 %v3241
  %v3361 = vpop.f32.mrf.mxu0
  %v3362 = vadd.f32 0.0, %v3361
  %v3363 = vpop.f32.mrf.mxu0
  %3364 = vmatprep.mubr.f32.mxu0 0.0
  %3365 = vmatmul.mubr.f32.gmra.mxu0 %v3244
  %v3366 = vpop.f32.mrf.mxu0
  %v3367 = vadd.f32 0.0, %v3366
  %v3368 = vpop.f32.mrf.mxu0
  %3369 = vmatprep.mubr.f32.mxu0 0.0
  %3370 = vmatmul.mubr.f32.gmra.mxu0 %v3247
  %v3371 = vpop.f32.mrf.mxu0
  %v3372 = vadd.f32 0.0, %v3371
  %v3373 = vpop.f32.mrf.mxu0
  %3374 = vmatprep.mubr.f32.mxu0 0.0
  %3375 = vmatmul.mubr.f32.gmra.mxu0 %v3250
  %v3376 = vpop.f32.mrf.mxu0
  %v3377 = vadd.f32 0.0, %v3376
  %v3378 = vpop.f32.mrf.mxu0
  %3379 = vmatprep.mubr.f32.mxu0 0.0
  %3380 = vmatmul.mubr.f32.gmra.mxu0 %v3253
  %v3381 = vpop.f32.mrf.mxu0
  %v3382 = vadd.f32 0.0, %v3381
  %v3383 = vpop.f32.mrf.mxu0
  %3384 = vmatprep.mubr.f32.mxu0 0.0
  %3385 = vmatmul.mubr.f32.gmra.mxu0 %v3256
  %v3386 = vpop.f32.mrf.mxu0
  %v3387 = vadd.f32 0.0, %v3386
  %v3388 = vpop.f32.mrf.mxu0
  %3389 = vmatprep.mubr.f32.mxu0 0.0
  %3390 = vmatmul.mubr.f32.gmra.mxu0 %v3259
  %v3391 = vpop.f32.mrf.mxu0
  %v3392 = vadd.f32 0.0, %v3391
  %v3393 = vpop.f32.mrf.mxu0
  %3394 = vmatprep.mubr.f32.mxu0 0.0
  %3395 = vmatmul.mubr.f32.gmra.mxu0 %v3262
  %v3396 = vpop.f32.mrf.mxu0
  %v3397 = vadd.f32 0.0, %v3396
  %v3398 = vpop.f32.mrf.mxu0
  %3399 = vmatprep.mubr.f32.mxu0 0.0
  %3400 = vmatmul.mubr.f32.gmra.mxu0 %v3265
  %v3401 = vpop.f32.mrf.mxu0
  %v3402 = vadd.f32 0.0, %v3401
  %v3403 = vpop.f32.mrf.mxu0
  %3404 = vmatprep.mubr.f32.mxu0 0.0
  %3405 = vmatmul.mubr.f32.gmra.mxu0 %v3268
  %v3406 = vpop.f32.mrf.mxu0
  %v3407 = vadd.f32 0.0, %v3406
  %v3408 = vpop.f32.mrf.mxu0
  %3409 = vmatprep.mubr.f32.mxu0 0.0
  %3410 = vmatmul.mubr.f32.gmra.mxu0 %v3271
  %v3411 = vpop.f32.mrf.mxu0
  %v3412 = vadd.f32 0.0, %v3411
  %v3413 = vpop.f32.mrf.mxu0
  %3414 = vmatprep.mubr.f32.mxu0 0.0
  %3415 = vmatmul.mubr.f32.gmra.mxu0 %v3274
  %v3416 = vpop.f32.mrf.mxu0
  %v3417 = vadd.f32 0.0, %v3416
  %v3418 = vpop.f32.mrf.mxu0
  %3419 = vmatprep.mubr.f32.mxu0 0.0
  %3420 = vmatmul.mubr.f32.gmra.mxu0 %v3277
  %v3421 = vpop.f32.mrf.mxu0
  %v3422 = vadd.f32 0.0, %v3421
  %v3423 = vpop.f32.mrf.mxu0
  %3424 = vmatprep.mubr.f32.mxu0 0.0
  %3425 = vmatmul.mubr.f32.gmra.mxu0 %v3280
  %v3426 = vpop.f32.mrf.mxu0
  %v3427 = vadd.f32 0.0, %v3426
  %v3428 = vpop.f32.mrf.mxu0
  %3429 = vdwg.mxu0
  %v3430 = vadd.f32 %v3184, %v3352
  %v3431 = vadd.f32 %v3185, %v3357
  %v3432 = vadd.f32 %v3186, %v3362
  %v3433 = vadd.f32 %v3187, %v3367
  %v3434 = vadd.f32 %v3188, %v3372
  %v3435 = vadd.f32 %v3189, %v3377
  %v3436 = vadd.f32 %v3190, %v3382
  %v3437 = vadd.f32 %v3191, %v3387
  %v3438 = vadd.f32 %v3192, %v3392
  %v3439 = vadd.f32 %v3193, %v3397
  %v3440 = vadd.f32 %v3194, %v3402
  %v3441 = vadd.f32 %v3195, %v3407
  %v3442 = vadd.f32 %v3196, %v3412
  %v3443 = vadd.f32 %v3197, %v3417
  %v3444 = vadd.f32 %v3198, %v3422
  %v3445 = vadd.f32 %v3199, %v3427
  %s3446 = scalar_lea.vmem %s2954, 2
  %v3447 = vld [vmem:[%s3446] ss:$2 sm:$0xff]
  %s3448 = scalar_lea.vmem %s2954, 50
  %v3449 = vld [vmem:[%s3448] ss:$2 sm:$0xff]
  %s3450 = scalar_lea.vmem %s2954, 98
  %v3451 = vld [vmem:[%s3450] ss:$2 sm:$0xff]
  %s3452 = scalar_lea.vmem %s2954, 146
  %v3453 = vld [vmem:[%s3452] ss:$2 sm:$0xff]
  %s3454 = scalar_lea.vmem %s2954, 194
  %v3455 = vld [vmem:[%s3454] ss:$2 sm:$0xff]
  %s3456 = scalar_lea.vmem %s2954, 242
  %v3457 = vld [vmem:[%s3456] ss:$2 sm:$0xff]
  %s3458 = scalar_lea.vmem %s2954, 290
  %v3459 = vld [vmem:[%s3458] ss:$2 sm:$0xff]
  %s3460 = scalar_lea.vmem %s2954, 338
  %v3461 = vld [vmem:[%s3460] ss:$2 sm:$0xff]
  %s3462 = scalar_lea.vmem %s2954, 434
  %v3463 = vld [vmem:[%s3462] ss:$2 sm:$0xff]
  %s3464 = scalar_lea.vmem %s2954, 482
  %v3465 = vld [vmem:[%s3464] ss:$2 sm:$0xff]
  %s3466 = scalar_lea.vmem %s2954, 530
  %v3467 = vld [vmem:[%s3466] ss:$2 sm:$0xff]
  %s3468 = scalar_lea.vmem %s2954, 578
  %v3469 = vld [vmem:[%s3468] ss:$2 sm:$0xff]
  %s3470 = scalar_lea.vmem %s2954, 626
  %v3471 = vld [vmem:[%s3470] ss:$2 sm:$0xff]
  %s3472 = scalar_lea.vmem %s2954, 674
  %v3473 = vld [vmem:[%s3472] ss:$2 sm:$0xff]
  %s3474 = scalar_lea.vmem %s2954, 722
  %v3475 = vld [vmem:[%s3474] ss:$2 sm:$0xff]
  %s3476 = scalar_lea.vmem %s2954, 770
  %v3477 = vld [vmem:[%s3476] ss:$2 sm:$0xff]
  %s3478 = scalar_lea.vmem %s1, 56
  %v3479 = vld [vmem:[%s3478] sm:$0xf]
  %v3481 = vsel %vm100, %v3447, 0
  %v3484 = vsel %vm100, %v3449, 0
  %v3487 = vsel %vm100, %v3451, 0
  %v3490 = vsel %vm100, %v3453, 0
  %v3493 = vsel %vm100, %v3455, 0
  %v3496 = vsel %vm100, %v3457, 0
  %v3499 = vsel %vm100, %v3459, 0
  %v3502 = vsel %vm100, %v3461, 0
  %v3505 = vsel %vm100, %v3463, 0
  %v3508 = vsel %vm100, %v3465, 0
  %v3511 = vsel %vm100, %v3467, 0
  %v3514 = vsel %vm100, %v3469, 0
  %v3517 = vsel %vm100, %v3471, 0
  %v3520 = vsel %vm100, %v3473, 0
  %v3523 = vsel %vm100, %v3475, 0
  %v3526 = vsel %vm100, %v3477, 0
  %v3529 = vsel %vm149, %v3479, 0
  %3531 = vmatprep.subr.mxu0 0.0
  %3532 = vmatpush1.msra.mxu0 0.0
  %3533 = vmatprep.subr.mxu0 0.0
  %3534 = vmatpush1.msra.mxu0 0.0
  %3535 = vmatprep.subr.mxu0 0.0
  %3536 = vmatpush1.msra.mxu0 0.0
  %3537 = vmatprep.subr.mxu0 0.0
  %3538 = vmatpush1.msra.mxu0 0.0
  %3539 = vmatprep.subr.mxu0 0.0
  %3540 = vmatpush1.msra.mxu0 0.0
  %3541 = vmatprep.subr.mxu0 0.0
  %3542 = vmatpush1.msra.mxu0 0.0
  %3543 = vmatprep.subr.mxu0 0.0
  %3544 = vmatpush1.msra.mxu0 0.0
  %3545 = vmatprep.subr.mxu0 0.0
  %3546 = vmatpush1.msra.mxu0 0.0
  %3547 = vmatprep.subr.mxu0 0.0
  %3548 = vmatpush1.msra.mxu0 0.0
  %3549 = vmatprep.subr.mxu0 0.0
  %3550 = vmatpush1.msra.mxu0 0.0
  %3551 = vmatprep.subr.mxu0 0.0
  %3552 = vmatpush1.msra.mxu0 0.0
  %3553 = vmatprep.subr.mxu0 0.0
  %3554 = vmatpush1.msra.mxu0 0.0
  %3555 = vmatprep.subr.mxu0 0.0
  %3556 = vmatpush1.msra.mxu0 0.0
  %3557 = vmatprep.subr.mxu0 0.0
  %3558 = vmatpush1.msra.mxu0 0.0
  %3559 = vmatprep.subr.mxu0 0.0
  %3560 = vmatpush1.msra.mxu0 0.0
  %3561 = vmatprep.subr.mxu0 0.0
  %3562 = vmatpush1.msra.mxu0 %v3529
  %3563 = vmatprep.subr.mxu0 0.0
  %3564 = vmatpush2.msra.mxu0 0.0
  %3565 = vmatprep.subr.mxu0 0.0
  %3566 = vmatpush2.msra.mxu0 0.0
  %3567 = vmatprep.subr.mxu0 0.0
  %3568 = vmatpush2.msra.mxu0 0.0
  %3569 = vmatprep.subr.mxu0 0.0
  %3570 = vmatpush2.msra.mxu0 0.0
  %3571 = vmatprep.subr.mxu0 0.0
  %3572 = vmatpush2.msra.mxu0 0.0
  %3573 = vmatprep.subr.mxu0 0.0
  %3574 = vmatpush2.msra.mxu0 0.0
  %3575 = vmatprep.subr.mxu0 0.0
  %3576 = vmatpush2.msra.mxu0 0.0
  %3577 = vmatprep.subr.mxu0 0.0
  %3578 = vmatpush2.msra.mxu0 0.0
  %3579 = vmatprep.subr.mxu0 0.0
  %3580 = vmatpush2.msra.mxu0 0.0
  %3581 = vmatprep.subr.mxu0 0.0
  %3582 = vmatpush2.msra.mxu0 0.0
  %3583 = vmatprep.subr.mxu0 0.0
  %3584 = vmatpush2.msra.mxu0 0.0
  %3585 = vmatprep.subr.mxu0 0.0
  %3586 = vmatpush2.msra.mxu0 0.0
  %3587 = vmatprep.subr.mxu0 0.0
  %3588 = vmatpush2.msra.mxu0 0.0
  %3589 = vmatprep.subr.mxu0 0.0
  %3590 = vmatpush2.msra.mxu0 0.0
  %3591 = vmatprep.subr.mxu0 0.0
  %3592 = vmatpush2.msra.mxu0 0.0
  %3593 = vmatprep.subr.mxu0 0.0
  %3594 = vmatpush2.msra.mxu0 0.0
  %3595 = vmatprep.mubr.f32.mxu0 0.0
  %3596 = vmatmul.mubr.f32.gmra.mxu0 %v3481
  %v3597 = vpop.f32.mrf.mxu0
  %v3598 = vadd.f32 0.0, %v3597
  %v3599 = vpop.f32.mrf.mxu0
  %3600 = vmatprep.mubr.f32.mxu0 0.0
  %3601 = vmatmul.mubr.f32.gmra.mxu0 %v3484
  %v3602 = vpop.f32.mrf.mxu0
  %v3603 = vadd.f32 0.0, %v3602
  %v3604 = vpop.f32.mrf.mxu0
  %3605 = vmatprep.mubr.f32.mxu0 0.0
  %3606 = vmatmul.mubr.f32.gmra.mxu0 %v3487
  %v3607 = vpop.f32.mrf.mxu0
  %v3608 = vadd.f32 0.0, %v3607
  %v3609 = vpop.f32.mrf.mxu0
  %3610 = vmatprep.mubr.f32.mxu0 0.0
  %3611 = vmatmul.mubr.f32.gmra.mxu0 %v3490
  %v3612 = vpop.f32.mrf.mxu0
  %v3613 = vadd.f32 0.0, %v3612
  %v3614 = vpop.f32.mrf.mxu0
  %3615 = vmatprep.mubr.f32.mxu0 0.0
  %3616 = vmatmul.mubr.f32.gmra.mxu0 %v3493
  %v3617 = vpop.f32.mrf.mxu0
  %v3618 = vadd.f32 0.0, %v3617
  %v3619 = vpop.f32.mrf.mxu0
  %3620 = vmatprep.mubr.f32.mxu0 0.0
  %3621 = vmatmul.mubr.f32.gmra.mxu0 %v3496
  %v3622 = vpop.f32.mrf.mxu0
  %v3623 = vadd.f32 0.0, %v3622
  %v3624 = vpop.f32.mrf.mxu0
  %3625 = vmatprep.mubr.f32.mxu0 0.0
  %3626 = vmatmul.mubr.f32.gmra.mxu0 %v3499
  %v3627 = vpop.f32.mrf.mxu0
  %v3628 = vadd.f32 0.0, %v3627
  %v3629 = vpop.f32.mrf.mxu0
  %3630 = vmatprep.mubr.f32.mxu0 0.0
  %3631 = vmatmul.mubr.f32.gmra.mxu0 %v3502
  %v3632 = vpop.f32.mrf.mxu0
  %v3633 = vadd.f32 0.0, %v3632
  %v3634 = vpop.f32.mrf.mxu0
  %3635 = vmatprep.mubr.f32.mxu0 0.0
  %3636 = vmatmul.mubr.f32.gmra.mxu0 %v3505
  %v3637 = vpop.f32.mrf.mxu0
  %v3638 = vadd.f32 0.0, %v3637
  %v3639 = vpop.f32.mrf.mxu0
  %3640 = vmatprep.mubr.f32.mxu0 0.0
  %3641 = vmatmul.mubr.f32.gmra.mxu0 %v3508
  %v3642 = vpop.f32.mrf.mxu0
  %v3643 = vadd.f32 0.0, %v3642
  %v3644 = vpop.f32.mrf.mxu0
  %3645 = vmatprep.mubr.f32.mxu0 0.0
  %3646 = vmatmul.mubr.f32.gmra.mxu0 %v3511
  %v3647 = vpop.f32.mrf.mxu0
  %v3648 = vadd.f32 0.0, %v3647
  %v3649 = vpop.f32.mrf.mxu0
  %3650 = vmatprep.mubr.f32.mxu0 0.0
  %3651 = vmatmul.mubr.f32.gmra.mxu0 %v3514
  %v3652 = vpop.f32.mrf.mxu0
  %v3653 = vadd.f32 0.0, %v3652
  %v3654 = vpop.f32.mrf.mxu0
  %3655 = vmatprep.mubr.f32.mxu0 0.0
  %3656 = vmatmul.mubr.f32.gmra.mxu0 %v3517
  %v3657 = vpop.f32.mrf.mxu0
  %v3658 = vadd.f32 0.0, %v3657
  %v3659 = vpop.f32.mrf.mxu0
  %3660 = vmatprep.mubr.f32.mxu0 0.0
  %3661 = vmatmul.mubr.f32.gmra.mxu0 %v3520
  %v3662 = vpop.f32.mrf.mxu0
  %v3663 = vadd.f32 0.0, %v3662
  %v3664 = vpop.f32.mrf.mxu0
  %3665 = vmatprep.mubr.f32.mxu0 0.0
  %3666 = vmatmul.mubr.f32.gmra.mxu0 %v3523
  %v3667 = vpop.f32.mrf.mxu0
  %v3668 = vadd.f32 0.0, %v3667
  %v3669 = vpop.f32.mrf.mxu0
  %3670 = vmatprep.mubr.f32.mxu0 0.0
  %3671 = vmatmul.mubr.f32.gmra.mxu0 %v3526
  %v3672 = vpop.f32.mrf.mxu0
  %v3673 = vadd.f32 0.0, %v3672
  %v3674 = vpop.f32.mrf.mxu0
  %3675 = vdwg.mxu0
  %v3676 = vadd.f32 %v3430, %v3598
  %v3677 = vadd.f32 %v3431, %v3603
  %v3678 = vadd.f32 %v3432, %v3608
  %v3679 = vadd.f32 %v3433, %v3613
  %v3680 = vadd.f32 %v3434, %v3618
  %v3681 = vadd.f32 %v3435, %v3623
  %v3682 = vadd.f32 %v3436, %v3628
  %v3683 = vadd.f32 %v3437, %v3633
  %v3684 = vadd.f32 %v3438, %v3638
  %v3685 = vadd.f32 %v3439, %v3643
  %v3686 = vadd.f32 %v3440, %v3648
  %v3687 = vadd.f32 %v3441, %v3653
  %v3688 = vadd.f32 %v3442, %v3658
  %v3689 = vadd.f32 %v3443, %v3663
  %v3690 = vadd.f32 %v3444, %v3668
  %v3691 = vadd.f32 %v3445, %v3673
  %s3692 = scalar_lea.vmem %s2954, 3
  %v3693 = vld [vmem:[%s3692] ss:$2 sm:$0xff]
  %s3694 = scalar_lea.vmem %s2954, 51
  %v3695 = vld [vmem:[%s3694] ss:$2 sm:$0xff]
  %s3696 = scalar_lea.vmem %s2954, 99
  %v3697 = vld [vmem:[%s3696] ss:$2 sm:$0xff]
  %s3698 = scalar_lea.vmem %s2954, 147
  %v3699 = vld [vmem:[%s3698] ss:$2 sm:$0xff]
  %s3700 = scalar_lea.vmem %s2954, 195
  %v3701 = vld [vmem:[%s3700] ss:$2 sm:$0xff]
  %s3702 = scalar_lea.vmem %s2954, 243
  %v3703 = vld [vmem:[%s3702] ss:$2 sm:$0xff]
  %s3704 = scalar_lea.vmem %s2954, 291
  %v3705 = vld [vmem:[%s3704] ss:$2 sm:$0xff]
  %s3706 = scalar_lea.vmem %s2954, 339
  %v3707 = vld [vmem:[%s3706] ss:$2 sm:$0xff]
  %s3708 = scalar_lea.vmem %s2954, 435
  %v3709 = vld [vmem:[%s3708] ss:$2 sm:$0xff]
  %s3710 = scalar_lea.vmem %s2954, 483
  %v3711 = vld [vmem:[%s3710] ss:$2 sm:$0xff]
  %s3712 = scalar_lea.vmem %s2954, 531
  %v3713 = vld [vmem:[%s3712] ss:$2 sm:$0xff]
  %s3714 = scalar_lea.vmem %s2954, 579
  %v3715 = vld [vmem:[%s3714] ss:$2 sm:$0xff]
  %s3716 = scalar_lea.vmem %s2954, 627
  %v3717 = vld [vmem:[%s3716] ss:$2 sm:$0xff]
  %s3718 = scalar_lea.vmem %s2954, 675
  %v3719 = vld [vmem:[%s3718] ss:$2 sm:$0xff]
  %s3720 = scalar_lea.vmem %s2954, 723
  %v3721 = vld [vmem:[%s3720] ss:$2 sm:$0xff]
  %s3722 = scalar_lea.vmem %s2954, 771
  %v3723 = vld [vmem:[%s3722] ss:$2 sm:$0xff]
  %s3724 = scalar_lea.vmem %s1, 60
  %v3725 = vld [vmem:[%s3724] sm:$0xf]
  %v3727 = vsel %vm100, %v3693, 0
  %v3730 = vsel %vm100, %v3695, 0
  %v3733 = vsel %vm100, %v3697, 0
  %v3736 = vsel %vm100, %v3699, 0
  %v3739 = vsel %vm100, %v3701, 0
  %v3742 = vsel %vm100, %v3703, 0
  %v3745 = vsel %vm100, %v3705, 0
  %v3748 = vsel %vm100, %v3707, 0
  %v3751 = vsel %vm100, %v3709, 0
  %v3754 = vsel %vm100, %v3711, 0
  %v3757 = vsel %vm100, %v3713, 0
  %v3760 = vsel %vm100, %v3715, 0
  %v3763 = vsel %vm100, %v3717, 0
  %v3766 = vsel %vm100, %v3719, 0
  %v3769 = vsel %vm100, %v3721, 0
  %v3772 = vsel %vm100, %v3723, 0
  %v3775 = vsel %vm149, %v3725, 0
  %3777 = vmatprep.subr.mxu0 0.0
  %3778 = vmatpush1.msra.mxu0 0.0
  %3779 = vmatprep.subr.mxu0 0.0
  %3780 = vmatpush1.msra.mxu0 0.0
  %3781 = vmatprep.subr.mxu0 0.0
  %3782 = vmatpush1.msra.mxu0 0.0
  %3783 = vmatprep.subr.mxu0 0.0
  %3784 = vmatpush1.msra.mxu0 0.0
  %3785 = vmatprep.subr.mxu0 0.0
  %3786 = vmatpush1.msra.mxu0 0.0
  %3787 = vmatprep.subr.mxu0 0.0
  %3788 = vmatpush1.msra.mxu0 0.0
  %3789 = vmatprep.subr.mxu0 0.0
  %3790 = vmatpush1.msra.mxu0 0.0
  %3791 = vmatprep.subr.mxu0 0.0
  %3792 = vmatpush1.msra.mxu0 0.0
  %3793 = vmatprep.subr.mxu0 0.0
  %3794 = vmatpush1.msra.mxu0 0.0
  %3795 = vmatprep.subr.mxu0 0.0
  %3796 = vmatpush1.msra.mxu0 0.0
  %3797 = vmatprep.subr.mxu0 0.0
  %3798 = vmatpush1.msra.mxu0 0.0
  %3799 = vmatprep.subr.mxu0 0.0
  %3800 = vmatpush1.msra.mxu0 0.0
  %3801 = vmatprep.subr.mxu0 0.0
  %3802 = vmatpush1.msra.mxu0 0.0
  %3803 = vmatprep.subr.mxu0 0.0
  %3804 = vmatpush1.msra.mxu0 0.0
  %3805 = vmatprep.subr.mxu0 0.0
  %3806 = vmatpush1.msra.mxu0 0.0
  %3807 = vmatprep.subr.mxu0 0.0
  %3808 = vmatpush1.msra.mxu0 %v3775
  %3809 = vmatprep.subr.mxu0 0.0
  %3810 = vmatpush2.msra.mxu0 0.0
  %3811 = vmatprep.subr.mxu0 0.0
  %3812 = vmatpush2.msra.mxu0 0.0
  %3813 = vmatprep.subr.mxu0 0.0
  %3814 = vmatpush2.msra.mxu0 0.0
  %3815 = vmatprep.subr.mxu0 0.0
  %3816 = vmatpush2.msra.mxu0 0.0
  %3817 = vmatprep.subr.mxu0 0.0
  %3818 = vmatpush2.msra.mxu0 0.0
  %3819 = vmatprep.subr.mxu0 0.0
  %3820 = vmatpush2.msra.mxu0 0.0
  %3821 = vmatprep.subr.mxu0 0.0
  %3822 = vmatpush2.msra.mxu0 0.0
  %3823 = vmatprep.subr.mxu0 0.0
  %3824 = vmatpush2.msra.mxu0 0.0
  %3825 = vmatprep.subr.mxu0 0.0
  %3826 = vmatpush2.msra.mxu0 0.0
  %3827 = vmatprep.subr.mxu0 0.0
  %3828 = vmatpush2.msra.mxu0 0.0
  %3829 = vmatprep.subr.mxu0 0.0
  %3830 = vmatpush2.msra.mxu0 0.0
  %3831 = vmatprep.subr.mxu0 0.0
  %3832 = vmatpush2.msra.mxu0 0.0
  %3833 = vmatprep.subr.mxu0 0.0
  %3834 = vmatpush2.msra.mxu0 0.0
  %3835 = vmatprep.subr.mxu0 0.0
  %3836 = vmatpush2.msra.mxu0 0.0
  %3837 = vmatprep.subr.mxu0 0.0
  %3838 = vmatpush2.msra.mxu0 0.0
  %3839 = vmatprep.subr.mxu0 0.0
  %3840 = vmatpush2.msra.mxu0 0.0
  %3841 = vmatprep.mubr.f32.mxu0 0.0
  %3842 = vmatmul.mubr.f32.gmra.mxu0 %v3727
  %v3843 = vpop.f32.mrf.mxu0
  %v3844 = vadd.f32 0.0, %v3843
  %v3845 = vpop.f32.mrf.mxu0
  %3846 = vmatprep.mubr.f32.mxu0 0.0
  %3847 = vmatmul.mubr.f32.gmra.mxu0 %v3730
  %v3848 = vpop.f32.mrf.mxu0
  %v3849 = vadd.f32 0.0, %v3848
  %v3850 = vpop.f32.mrf.mxu0
  %3851 = vmatprep.mubr.f32.mxu0 0.0
  %3852 = vmatmul.mubr.f32.gmra.mxu0 %v3733
  %v3853 = vpop.f32.mrf.mxu0
  %v3854 = vadd.f32 0.0, %v3853
  %v3855 = vpop.f32.mrf.mxu0
  %3856 = vmatprep.mubr.f32.mxu0 0.0
  %3857 = vmatmul.mubr.f32.gmra.mxu0 %v3736
  %v3858 = vpop.f32.mrf.mxu0
  %v3859 = vadd.f32 0.0, %v3858
  %v3860 = vpop.f32.mrf.mxu0
  %3861 = vmatprep.mubr.f32.mxu0 0.0
  %3862 = vmatmul.mubr.f32.gmra.mxu0 %v3739
  %v3863 = vpop.f32.mrf.mxu0
  %v3864 = vadd.f32 0.0, %v3863
  %v3865 = vpop.f32.mrf.mxu0
  %3866 = vmatprep.mubr.f32.mxu0 0.0
  %3867 = vmatmul.mubr.f32.gmra.mxu0 %v3742
  %v3868 = vpop.f32.mrf.mxu0
  %v3869 = vadd.f32 0.0, %v3868
  %v3870 = vpop.f32.mrf.mxu0
  %3871 = vmatprep.mubr.f32.mxu0 0.0
  %3872 = vmatmul.mubr.f32.gmra.mxu0 %v3745
  %v3873 = vpop.f32.mrf.mxu0
  %v3874 = vadd.f32 0.0, %v3873
  %v3875 = vpop.f32.mrf.mxu0
  %3876 = vmatprep.mubr.f32.mxu0 0.0
  %3877 = vmatmul.mubr.f32.gmra.mxu0 %v3748
  %v3878 = vpop.f32.mrf.mxu0
  %v3879 = vadd.f32 0.0, %v3878
  %v3880 = vpop.f32.mrf.mxu0
  %3881 = vmatprep.mubr.f32.mxu0 0.0
  %3882 = vmatmul.mubr.f32.gmra.mxu0 %v3751
  %v3883 = vpop.f32.mrf.mxu0
  %v3884 = vadd.f32 0.0, %v3883
  %v3885 = vpop.f32.mrf.mxu0
  %3886 = vmatprep.mubr.f32.mxu0 0.0
  %3887 = vmatmul.mubr.f32.gmra.mxu0 %v3754
  %v3888 = vpop.f32.mrf.mxu0
  %v3889 = vadd.f32 0.0, %v3888
  %v3890 = vpop.f32.mrf.mxu0
  %3891 = vmatprep.mubr.f32.mxu0 0.0
  %3892 = vmatmul.mubr.f32.gmra.mxu0 %v3757
  %v3893 = vpop.f32.mrf.mxu0
  %v3894 = vadd.f32 0.0, %v3893
  %v3895 = vpop.f32.mrf.mxu0
  %3896 = vmatprep.mubr.f32.mxu0 0.0
  %3897 = vmatmul.mubr.f32.gmra.mxu0 %v3760
  %v3898 = vpop.f32.mrf.mxu0
  %v3899 = vadd.f32 0.0, %v3898
  %v3900 = vpop.f32.mrf.mxu0
  %3901 = vmatprep.mubr.f32.mxu0 0.0
  %3902 = vmatmul.mubr.f32.gmra.mxu0 %v3763
  %v3903 = vpop.f32.mrf.mxu0
  %v3904 = vadd.f32 0.0, %v3903
  %v3905 = vpop.f32.mrf.mxu0
  %3906 = vmatprep.mubr.f32.mxu0 0.0
  %3907 = vmatmul.mubr.f32.gmra.mxu0 %v3766
  %v3908 = vpop.f32.mrf.mxu0
  %v3909 = vadd.f32 0.0, %v3908
  %v3910 = vpop.f32.mrf.mxu0
  %3911 = vmatprep.mubr.f32.mxu0 0.0
  %3912 = vmatmul.mubr.f32.gmra.mxu0 %v3769
  %v3913 = vpop.f32.mrf.mxu0
  %v3914 = vadd.f32 0.0, %v3913
  %v3915 = vpop.f32.mrf.mxu0
  %3916 = vmatprep.mubr.f32.mxu0 0.0
  %3917 = vmatmul.mubr.f32.gmra.mxu0 %v3772
  %v3918 = vpop.f32.mrf.mxu0
  %v3919 = vadd.f32 0.0, %v3918
  %v3920 = vpop.f32.mrf.mxu0
  %3921 = vdwg.mxu0
  %v3922 = vadd.f32 %v3676, %v3844
  %v3923 = vadd.f32 %v3677, %v3849
  %v3924 = vadd.f32 %v3678, %v3854
  %v3925 = vadd.f32 %v3679, %v3859
  %v3926 = vadd.f32 %v3680, %v3864
  %v3927 = vadd.f32 %v3681, %v3869
  %v3928 = vadd.f32 %v3682, %v3874
  %v3929 = vadd.f32 %v3683, %v3879
  %v3930 = vadd.f32 %v3684, %v3884
  %v3931 = vadd.f32 %v3685, %v3889
  %v3932 = vadd.f32 %v3686, %v3894
  %v3933 = vadd.f32 %v3687, %v3899
  %v3934 = vadd.f32 %v3688, %v3904
  %v3935 = vadd.f32 %v3689, %v3909
  %v3936 = vadd.f32 %v3690, %v3914
  %v3937 = vadd.f32 %v3691, %v3919
  %v3938 = vld [vmem:[%s2] sm:$0x1]
  %v3940 = vlaneseq
  %v3941 = vshrl.u32 %v3940, 7
  %v3942 = vsub.s32 0, %v3941
  %v3943 = vrot.slane %v3938, %v3942
  %v3945 = vadd.f32 %v3922, %v3943
  %v3946 = vadd.f32 %v3923, %v3943
  %v3947 = vadd.f32 %v3924, %v3943
  %v3948 = vadd.f32 %v3925, %v3943
  %v3949 = vadd.f32 %v3926, %v3943
  %v3950 = vadd.f32 %v3927, %v3943
  %v3951 = vadd.f32 %v3928, %v3943
  %v3952 = vadd.f32 %v3929, %v3943
  %v3953 = vadd.f32 %v3930, %v3943
  %v3954 = vadd.f32 %v3931, %v3943
  %v3955 = vadd.f32 %v3932, %v3943
  %v3956 = vadd.f32 %v3933, %v3943
  %v3957 = vadd.f32 %v3934, %v3943
  %v3958 = vadd.f32 %v3935, %v3943
  %v3959 = vadd.f32 %v3936, %v3943
  %v3960 = vadd.f32 %v3937, %v3943
  %vm3961 = vcmp.ge.f32.partialorder %v3945, 0.0
  %vm3962 = vcmp.ge.f32.partialorder %v3946, 0.0
  %vm3963 = vcmp.ge.f32.partialorder %v3947, 0.0
  %vm3964 = vcmp.ge.f32.partialorder %v3948, 0.0
  %vm3965 = vcmp.ge.f32.partialorder %v3949, 0.0
  %vm3966 = vcmp.ge.f32.partialorder %v3950, 0.0
  %vm3967 = vcmp.ge.f32.partialorder %v3951, 0.0
  %vm3968 = vcmp.ge.f32.partialorder %v3952, 0.0
  %vm3969 = vcmp.ge.f32.partialorder %v3953, 0.0
  %vm3970 = vcmp.ge.f32.partialorder %v3954, 0.0
  %vm3971 = vcmp.ge.f32.partialorder %v3955, 0.0
  %vm3972 = vcmp.ge.f32.partialorder %v3956, 0.0
  %vm3973 = vcmp.ge.f32.partialorder %v3957, 0.0
  %vm3974 = vcmp.ge.f32.partialorder %v3958, 0.0
  %vm3975 = vcmp.ge.f32.partialorder %v3959, 0.0
  %vm3976 = vcmp.ge.f32.partialorder %v3960, 0.0
  %v3977 = vmul.f32 %v3945, 0.2
  %v3978 = vmul.f32 %v3946, 0.2
  %v3979 = vmul.f32 %v3947, 0.2
  %v3980 = vmul.f32 %v3948, 0.2
  %v3981 = vmul.f32 %v3949, 0.2
  %v3982 = vmul.f32 %v3950, 0.2
  %v3983 = vmul.f32 %v3951, 0.2
  %v3984 = vmul.f32 %v3952, 0.2
  %v3985 = vmul.f32 %v3953, 0.2
  %v3986 = vmul.f32 %v3954, 0.2
  %v3987 = vmul.f32 %v3955, 0.2
  %v3988 = vmul.f32 %v3956, 0.2
  %v3989 = vmul.f32 %v3957, 0.2
  %v3990 = vmul.f32 %v3958, 0.2
  %v3991 = vmul.f32 %v3959, 0.2
  %v3992 = vmul.f32 %v3960, 0.2
  %v3993 = vsel %vm3961, %v3945, %v3977
  %v3994 = vsel %vm3962, %v3946, %v3978
  %v3995 = vsel %vm3963, %v3947, %v3979
  %v3996 = vsel %vm3964, %v3948, %v3980
  %v3997 = vsel %vm3965, %v3949, %v3981
  %v3998 = vsel %vm3966, %v3950, %v3982
  %v3999 = vsel %vm3967, %v3951, %v3983
  %v4000 = vsel %vm3968, %v3952, %v3984
  %v4001 = vsel %vm3969, %v3953, %v3985
  %v4002 = vsel %vm3970, %v3954, %v3986
  %v4003 = vsel %vm3971, %v3955, %v3987
  %v4004 = vsel %vm3972, %v3956, %v3988
  %v4005 = vsel %vm3973, %v3957, %v3989
  %v4006 = vsel %vm3974, %v3958, %v3990
  %v4007 = vsel %vm3975, %v3959, %v3991
  %v4008 = vsel %vm3976, %v3960, %v3992
  %vm4009 = vcmask 64512
  %4010 = vst.msk [vmem:[#allocation2] sm:$0xff] %vm4009, 0.0
  %vm4011 = vcmask 58368
  %4012 = vst.msk [vmem:[#allocation2 + $0x8] sm:$0x3] %vm4011, 0.0
  %4013 = vst.msk [vmem:[#allocation2 + $0x10] sm:$0xff] %vm4009, 0.0
  %4014 = vst.msk [vmem:[#allocation2 + $0x18] sm:$0x3] %vm4011, 0.0
  %4015 = vst.msk [vmem:[#allocation2 + $0x20] sm:$0xff] %vm4009, 0.0
  %4016 = vst.msk [vmem:[#allocation2 + $0x28] sm:$0x3] %vm4011, 0.0
  %4017 = vst.msk [vmem:[#allocation2 + $0x30] sm:$0xff] %vm4009, 0.0
  %4018 = vst.msk [vmem:[#allocation2 + $0x38] sm:$0x3] %vm4011, 0.0
  %4019 = vst.msk [vmem:[#allocation2 + $0x40] sm:$0xff] %vm4009, 0.0
  %4020 = vst.msk [vmem:[#allocation2 + $0x48] sm:$0x3] %vm4011, 0.0
  %4021 = vst.msk [vmem:[#allocation2 + $0x50] sm:$0xff] %vm4009, 0.0
  %4022 = vst.msk [vmem:[#allocation2 + $0x58] sm:$0x3] %vm4011, 0.0
  %4023 = vst.msk [vmem:[#allocation2 + $0x60] sm:$0xff] %vm4009, 0.0
  %4024 = vst.msk [vmem:[#allocation2 + $0x68] sm:$0x3] %vm4011, 0.0
  %4025 = vst.msk [vmem:[#allocation2 + $0x70] sm:$0xff] %vm4009, 0.0
  %4026 = vst.msk [vmem:[#allocation2 + $0x78] sm:$0x3] %vm4011, 0.0
  %4027 = vst.msk [vmem:[#allocation2 + $0x80] sm:$0xff] %vm4009, 0.0
  %4028 = vst.msk [vmem:[#allocation2 + $0x88] sm:$0x3] %vm4011, 0.0
  %4029 = vst.msk [vmem:[#allocation2 + $0x90] sm:$0xff] %vm4009, 0.0
  %4030 = vst.msk [vmem:[#allocation2 + $0x98] sm:$0x3] %vm4011, 0.0
  %4031 = vst.msk [vmem:[#allocation2 + $0xa0] sm:$0xff] %vm4009, 0.0
  %4032 = vst.msk [vmem:[#allocation2 + $0xa8] sm:$0x3] %vm4011, 0.0
  %4033 = vst.msk [vmem:[#allocation2 + $0xb0] sm:$0xff] %vm4009, 0.0
  %4034 = vst.msk [vmem:[#allocation2 + $0xb8] sm:$0x3] %vm4011, 0.0
  %4035 = vst.msk [vmem:[#allocation2 + $0xc0] sm:$0xff] %vm4009, 0.0
  %4036 = vst.msk [vmem:[#allocation2 + $0xc8] sm:$0x3] %vm4011, 0.0
  %4037 = vst.msk [vmem:[#allocation2 + $0xd0] sm:$0xff] %vm4009, 0.0
  %4038 = vst.msk [vmem:[#allocation2 + $0xd8] sm:$0x3] %vm4011, 0.0
  %4039 = vst.msk [vmem:[#allocation2 + $0xe0] sm:$0xff] %vm4009, 0.0
  %4040 = vst.msk [vmem:[#allocation2 + $0xe8] sm:$0x3] %vm4011, 0.0
  %4041 = vst.msk [vmem:[#allocation2 + $0xf0] sm:$0xff] %vm4009, 0.0
  %4042 = vst.msk [vmem:[#allocation2 + $0xf8] sm:$0x3] %vm4011, 0.0
  %4043 = vst.msk [vmem:[#allocation2 + $0x100] sm:$0xff] %vm4009, 0.0
  %4044 = vst.msk [vmem:[#allocation2 + $0x108] sm:$0x3] %vm4011, 0.0
  %4045 = vst.msk [vmem:[#allocation2 + $0x110] sm:$0xff] %vm4009, 0.0
  %4046 = vst.msk [vmem:[#allocation2 + $0x118] sm:$0x3] %vm4011, 0.0
  %4047 = vst.msk [vmem:[#allocation2 + $0x120] sm:$0xff] %vm4009, 0.0
  %4048 = vst.msk [vmem:[#allocation2 + $0x128] sm:$0x3] %vm4011, 0.0
  %4049 = vst.msk [vmem:[#allocation2 + $0x130] sm:$0xff] %vm4009, 0.0
  %4050 = vst.msk [vmem:[#allocation2 + $0x138] sm:$0x3] %vm4011, 0.0
  %s4051 = scalar_lea.vmem [#allocation2], 16
  %4052 = vst.msk [vmem:[%s4051 + $0x1] sm:$0xff] %vm4009, %v3993
  %4053 = vst.msk [vmem:[%s4051 + $0x11] sm:$0xff] %vm4009, %v3994
  %4054 = vst.msk [vmem:[%s4051 + $0x21] sm:$0xff] %vm4009, %v3995
  %4055 = vst.msk [vmem:[%s4051 + $0x31] sm:$0xff] %vm4009, %v3996
  %4056 = vst.msk [vmem:[%s4051 + $0x41] sm:$0xff] %vm4009, %v3997
  %4057 = vst.msk [vmem:[%s4051 + $0x51] sm:$0xff] %vm4009, %v3998
  %4058 = vst.msk [vmem:[%s4051 + $0x61] sm:$0xff] %vm4009, %v3999
  %4059 = vst.msk [vmem:[%s4051 + $0x71] sm:$0xff] %vm4009, %v4000
  %4060 = vst.msk [vmem:[%s4051 + $0xa1] sm:$0xff] %vm4009, %v4001
  %4061 = vst.msk [vmem:[%s4051 + $0xb1] sm:$0xff] %vm4009, %v4002
  %4062 = vst.msk [vmem:[%s4051 + $0xc1] sm:$0xff] %vm4009, %v4003
  %4063 = vst.msk [vmem:[%s4051 + $0xd1] sm:$0xff] %vm4009, %v4004
  %4064 = vst.msk [vmem:[%s4051 + $0xe1] sm:$0xff] %vm4009, %v4005
  %4065 = vst.msk [vmem:[%s4051 + $0xf1] sm:$0xff] %vm4009, %v4006
  %4066 = vst.msk [vmem:[%s4051 + $0x101] sm:$0xff] %vm4009, %v4007
  %4067 = vst.msk [vmem:[%s4051 + $0x111] sm:$0xff] %vm4009, %v4008
  %v4068 = vld [vmem:[#allocation2] ss:$2 sm:$0xf]
  %s4069 = scalar_lea.vmem [#allocation2], 32
  %v4070 = vld [vmem:[%s4069] ss:$2 sm:$0xf]
  %s4071 = scalar_lea.vmem [#allocation2], 64
  %v4072 = vld [vmem:[%s4071] ss:$2 sm:$0xf]
  %s4073 = scalar_lea.vmem [#allocation2], 96
  %v4074 = vld [vmem:[%s4073] ss:$2 sm:$0xf]
  %s4075 = scalar_lea.vmem [#allocation2], 160
  %v4076 = vld [vmem:[%s4075] ss:$2 sm:$0xf]
  %s4077 = scalar_lea.vmem [#allocation2], 192
  %v4078 = vld [vmem:[%s4077] ss:$2 sm:$0xf]
  %s4079 = scalar_lea.vmem [#allocation2], 224
  %v4080 = vld [vmem:[%s4079] ss:$2 sm:$0xf]
  %s4081 = scalar_lea.vmem [#allocation2], 256
  %v4082 = vld [vmem:[%s4081] ss:$2 sm:$0xf]
  %v4083 = vld [vmem:[%s3] sm:$0xff]
  %s4084 = scalar_lea.vmem [#allocation2], 1
  %v4085 = vld [vmem:[%s4084] ss:$2 sm:$0xf]
  %s4086 = scalar_lea.vmem [#allocation2], 33
  %v4087 = vld [vmem:[%s4086] ss:$2 sm:$0xf]
  %s4088 = scalar_lea.vmem [#allocation2], 65
  %v4089 = vld [vmem:[%s4088] ss:$2 sm:$0xf]
  %s4090 = scalar_lea.vmem [#allocation2], 97
  %v4091 = vld [vmem:[%s4090] ss:$2 sm:$0xf]
  %s4092 = scalar_lea.vmem [#allocation2], 161
  %v4093 = vld [vmem:[%s4092] ss:$2 sm:$0xf]
  %s4094 = scalar_lea.vmem [#allocation2], 193
  %v4095 = vld [vmem:[%s4094] ss:$2 sm:$0xf]
  %s4096 = scalar_lea.vmem [#allocation2], 225
  %v4097 = vld [vmem:[%s4096] ss:$2 sm:$0xf]
  %s4098 = scalar_lea.vmem [#allocation2], 257
  %v4099 = vld [vmem:[%s4098] ss:$2 sm:$0xf]
  %s4100 = scalar_lea.vmem %s3, 8
  %v4101 = vld [vmem:[%s4100] sm:$0xff]
  %v4110 = vcombine.low %v4085, %v4087
  %v4111 = vcombine.low %v4089, %v4091
  %v4112 = vcombine.low %v4093, %v4095
  %v4113 = vcombine.low %v4097, %v4099
  %v4114 = vsel %vm4009, %v4110, 0
  %v4116 = vsel %vm4009, %v4111, 0
  %v4118 = vsel %vm4009, %v4112, 0
  %v4120 = vsel %vm4009, %v4113, 0
  %4122 = vmatprep.subr.mxu0 0.0
  %4123 = vmatpush1.msra.mxu0 0.0
  %4124 = vmatprep.subr.mxu0 0.0
  %4125 = vmatpush1.msra.mxu0 0.0
  %4126 = vmatprep.subr.mxu0 0.0
  %4127 = vmatpush1.msra.mxu0 0.0
  %4128 = vmatprep.subr.mxu0 0.0
  %4129 = vmatpush1.msra.mxu0 0.0
  %4130 = vmatprep.subr.mxu0 0.0
  %4131 = vmatpush1.msra.mxu0 0.0
  %4132 = vmatprep.subr.mxu0 0.0
  %4133 = vmatpush1.msra.mxu0 0.0
  %4134 = vmatprep.subr.mxu0 0.0
  %4135 = vmatpush1.msra.mxu0 0.0
  %4136 = vmatprep.subr.mxu0 0.0
  %4137 = vmatpush1.msra.mxu0 0.0
  %4138 = vmatprep.subr.mxu0 0.0
  %4139 = vmatpush1.msra.mxu0 0.0
  %4140 = vmatprep.subr.mxu0 0.0
  %4141 = vmatpush1.msra.mxu0 0.0
  %4142 = vmatprep.subr.mxu0 0.0
  %4143 = vmatpush1.msra.mxu0 0.0
  %4144 = vmatprep.subr.mxu0 0.0
  %4145 = vmatpush1.msra.mxu0 0.0
  %4146 = vmatprep.subr.mxu0 0.0
  %4147 = vmatpush1.msra.mxu0 0.0
  %4148 = vmatprep.subr.mxu0 0.0
  %4149 = vmatpush1.msra.mxu0 0.0
  %4150 = vmatprep.subr.mxu0 0.0
  %4151 = vmatpush1.msra.mxu0 0.0
  %4152 = vmatprep.subr.mxu0 0.0
  %4153 = vmatpush1.msra.mxu0 %v4101
  %4154 = vmatprep.subr.mxu0 0.0
  %4155 = vmatpush2.msra.mxu0 0.0
  %4156 = vmatprep.subr.mxu0 0.0
  %4157 = vmatpush2.msra.mxu0 0.0
  %4158 = vmatprep.subr.mxu0 0.0
  %4159 = vmatpush2.msra.mxu0 0.0
  %4160 = vmatprep.subr.mxu0 0.0
  %4161 = vmatpush2.msra.mxu0 0.0
  %4162 = vmatprep.subr.mxu0 0.0
  %4163 = vmatpush2.msra.mxu0 0.0
  %4164 = vmatprep.subr.mxu0 0.0
  %4165 = vmatpush2.msra.mxu0 0.0
  %4166 = vmatprep.subr.mxu0 0.0
  %4167 = vmatpush2.msra.mxu0 0.0
  %4168 = vmatprep.subr.mxu0 0.0
  %4169 = vmatpush2.msra.mxu0 0.0
  %4170 = vmatprep.subr.mxu0 0.0
  %4171 = vmatpush2.msra.mxu0 0.0
  %4172 = vmatprep.subr.mxu0 0.0
  %4173 = vmatpush2.msra.mxu0 0.0
  %4174 = vmatprep.subr.mxu0 0.0
  %4175 = vmatpush2.msra.mxu0 0.0
  %4176 = vmatprep.subr.mxu0 0.0
  %4177 = vmatpush2.msra.mxu0 0.0
  %4178 = vmatprep.subr.mxu0 0.0
  %4179 = vmatpush2.msra.mxu0 0.0
  %4180 = vmatprep.subr.mxu0 0.0
  %4181 = vmatpush2.msra.mxu0 0.0
  %4182 = vmatprep.subr.mxu0 0.0
  %4183 = vmatpush2.msra.mxu0 0.0
  %4184 = vmatprep.subr.mxu0 0.0
  %4185 = vmatpush2.msra.mxu0 0.0
  %4186 = vmatprep.mubr.f32.mxu0 0.0
  %4187 = vmatmul.mubr.f32.gmra.mxu0 %v4114
  %v4188 = vpop.f32.mrf.mxu0
  %v4189 = vadd.f32 0.0, %v4188
  %v4190 = vpop.f32.mrf.mxu0
  %4191 = vmatprep.mubr.f32.mxu0 0.0
  %4192 = vmatmul.mubr.f32.gmra.mxu0 %v4116
  %v4193 = vpop.f32.mrf.mxu0
  %v4194 = vadd.f32 0.0, %v4193
  %v4195 = vpop.f32.mrf.mxu0
  %4196 = vmatprep.mubr.f32.mxu0 0.0
  %4197 = vmatmul.mubr.f32.gmra.mxu0 %v4118
  %v4198 = vpop.f32.mrf.mxu0
  %v4199 = vadd.f32 0.0, %v4198
  %v4200 = vpop.f32.mrf.mxu0
  %4201 = vmatprep.mubr.f32.mxu0 0.0
  %4202 = vmatmul.mubr.f32.gmra.mxu0 %v4120
  %v4203 = vpop.f32.mrf.mxu0
  %v4204 = vadd.f32 0.0, %v4203
  %v4205 = vpop.f32.mrf.mxu0
  %4206 = vdwg.mxu0
  %v4215 = vcombine.low %v4068, %v4070
  %v4216 = vcombine.low %v4072, %v4074
  %v4217 = vcombine.low %v4076, %v4078
  %v4218 = vcombine.low %v4080, %v4082
  %v4219 = vsel %vm4009, %v4215, 0
  %v4221 = vsel %vm4009, %v4216, 0
  %v4223 = vsel %vm4009, %v4217, 0
  %v4225 = vsel %vm4009, %v4218, 0
  %4227 = vmatprep.subr.mxu0 0.0
  %4228 = vmatpush1.msra.mxu0 0.0
  %4229 = vmatprep.subr.mxu0 0.0
  %4230 = vmatpush1.msra.mxu0 0.0
  %4231 = vmatprep.subr.mxu0 0.0
  %4232 = vmatpush1.msra.mxu0 0.0
  %4233 = vmatprep.subr.mxu0 0.0
  %4234 = vmatpush1.msra.mxu0 0.0
  %4235 = vmatprep.subr.mxu0 0.0
  %4236 = vmatpush1.msra.mxu0 0.0
  %4237 = vmatprep.subr.mxu0 0.0
  %4238 = vmatpush1.msra.mxu0 0.0
  %4239 = vmatprep.subr.mxu0 0.0
  %4240 = vmatpush1.msra.mxu0 0.0
  %4241 = vmatprep.subr.mxu0 0.0
  %4242 = vmatpush1.msra.mxu0 0.0
  %4243 = vmatprep.subr.mxu0 0.0
  %4244 = vmatpush1.msra.mxu0 0.0
  %4245 = vmatprep.subr.mxu0 0.0
  %4246 = vmatpush1.msra.mxu0 0.0
  %4247 = vmatprep.subr.mxu0 0.0
  %4248 = vmatpush1.msra.mxu0 0.0
  %4249 = vmatprep.subr.mxu0 0.0
  %4250 = vmatpush1.msra.mxu0 0.0
  %4251 = vmatprep.subr.mxu0 0.0
  %4252 = vmatpush1.msra.mxu0 0.0
  %4253 = vmatprep.subr.mxu0 0.0
  %4254 = vmatpush1.msra.mxu0 0.0
  %4255 = vmatprep.subr.mxu0 0.0
  %4256 = vmatpush1.msra.mxu0 0.0
  %4257 = vmatprep.subr.mxu0 0.0
  %4258 = vmatpush1.msra.mxu0 %v4083
  %4259 = vmatprep.subr.mxu0 0.0
  %4260 = vmatpush2.msra.mxu0 0.0
  %4261 = vmatprep.subr.mxu0 0.0
  %4262 = vmatpush2.msra.mxu0 0.0
  %4263 = vmatprep.subr.mxu0 0.0
  %4264 = vmatpush2.msra.mxu0 0.0
  %4265 = vmatprep.subr.mxu0 0.0
  %4266 = vmatpush2.msra.mxu0 0.0
  %4267 = vmatprep.subr.mxu0 0.0
  %4268 = vmatpush2.msra.mxu0 0.0
  %4269 = vmatprep.subr.mxu0 0.0
  %4270 = vmatpush2.msra.mxu0 0.0
  %4271 = vmatprep.subr.mxu0 0.0
  %4272 = vmatpush2.msra.mxu0 0.0
  %4273 = vmatprep.subr.mxu0 0.0
  %4274 = vmatpush2.msra.mxu0 0.0
  %4275 = vmatprep.subr.mxu0 0.0
  %4276 = vmatpush2.msra.mxu0 0.0
  %4277 = vmatprep.subr.mxu0 0.0
  %4278 = vmatpush2.msra.mxu0 0.0
  %4279 = vmatprep.subr.mxu0 0.0
  %4280 = vmatpush2.msra.mxu0 0.0
  %4281 = vmatprep.subr.mxu0 0.0
  %4282 = vmatpush2.msra.mxu0 0.0
  %4283 = vmatprep.subr.mxu0 0.0
  %4284 = vmatpush2.msra.mxu0 0.0
  %4285 = vmatprep.subr.mxu0 0.0
  %4286 = vmatpush2.msra.mxu0 0.0
  %4287 = vmatprep.subr.mxu0 0.0
  %4288 = vmatpush2.msra.mxu0 0.0
  %4289 = vmatprep.subr.mxu0 0.0
  %4290 = vmatpush2.msra.mxu0 0.0
  %4291 = vmatprep.mubr.f32.mxu0 0.0
  %4292 = vmatmul.mubr.f32.gmra.mxu0 %v4219
  %v4293 = vpop.f32.mrf.mxu0
  %v4294 = vadd.f32 %v4189, %v4293
  %v4295 = vpop.f32.mrf.mxu0
  %4296 = vmatprep.mubr.f32.mxu0 0.0
  %4297 = vmatmul.mubr.f32.gmra.mxu0 %v4221
  %v4298 = vpop.f32.mrf.mxu0
  %v4299 = vadd.f32 %v4194, %v4298
  %v4300 = vpop.f32.mrf.mxu0
  %4301 = vmatprep.mubr.f32.mxu0 0.0
  %4302 = vmatmul.mubr.f32.gmra.mxu0 %v4223
  %v4303 = vpop.f32.mrf.mxu0
  %v4304 = vadd.f32 %v4199, %v4303
  %v4305 = vpop.f32.mrf.mxu0
  %4306 = vmatprep.mubr.f32.mxu0 0.0
  %4307 = vmatmul.mubr.f32.gmra.mxu0 %v4225
  %v4308 = vpop.f32.mrf.mxu0
  %v4309 = vadd.f32 %v4204, %v4308
  %v4310 = vpop.f32.mrf.mxu0
  %4311 = vdwg.mxu0
  %s4312 = scalar_lea.vmem [#allocation2], 2
  %v4313 = vld [vmem:[%s4312] ss:$2 sm:$0xf]
  %s4314 = scalar_lea.vmem [#allocation2], 34
  %v4315 = vld [vmem:[%s4314] ss:$2 sm:$0xf]
  %s4316 = scalar_lea.vmem [#allocation2], 66
  %v4317 = vld [vmem:[%s4316] ss:$2 sm:$0xf]
  %s4318 = scalar_lea.vmem [#allocation2], 98
  %v4319 = vld [vmem:[%s4318] ss:$2 sm:$0xf]
  %s4320 = scalar_lea.vmem [#allocation2], 162
  %v4321 = vld [vmem:[%s4320] ss:$2 sm:$0xf]
  %s4322 = scalar_lea.vmem [#allocation2], 194
  %v4323 = vld [vmem:[%s4322] ss:$2 sm:$0xf]
  %s4324 = scalar_lea.vmem [#allocation2], 226
  %v4325 = vld [vmem:[%s4324] ss:$2 sm:$0xf]
  %s4326 = scalar_lea.vmem [#allocation2], 258
  %v4327 = vld [vmem:[%s4326] ss:$2 sm:$0xf]
  %s4328 = scalar_lea.vmem %s3, 16
  %v4329 = vld [vmem:[%s4328] sm:$0xff]
  %v4338 = vcombine.low %v4313, %v4315
  %v4339 = vcombine.low %v4317, %v4319
  %v4340 = vcombine.low %v4321, %v4323
  %v4341 = vcombine.low %v4325, %v4327
  %v4342 = vsel %vm4009, %v4338, 0
  %v4344 = vsel %vm4009, %v4339, 0
  %v4346 = vsel %vm4009, %v4340, 0
  %v4348 = vsel %vm4009, %v4341, 0
  %4350 = vmatprep.subr.mxu0 0.0
  %4351 = vmatpush1.msra.mxu0 0.0
  %4352 = vmatprep.subr.mxu0 0.0
  %4353 = vmatpush1.msra.mxu0 0.0
  %4354 = vmatprep.subr.mxu0 0.0
  %4355 = vmatpush1.msra.mxu0 0.0
  %4356 = vmatprep.subr.mxu0 0.0
  %4357 = vmatpush1.msra.mxu0 0.0
  %4358 = vmatprep.subr.mxu0 0.0
  %4359 = vmatpush1.msra.mxu0 0.0
  %4360 = vmatprep.subr.mxu0 0.0
  %4361 = vmatpush1.msra.mxu0 0.0
  %4362 = vmatprep.subr.mxu0 0.0
  %4363 = vmatpush1.msra.mxu0 0.0
  %4364 = vmatprep.subr.mxu0 0.0
  %4365 = vmatpush1.msra.mxu0 0.0
  %4366 = vmatprep.subr.mxu0 0.0
  %4367 = vmatpush1.msra.mxu0 0.0
  %4368 = vmatprep.subr.mxu0 0.0
  %4369 = vmatpush1.msra.mxu0 0.0
  %4370 = vmatprep.subr.mxu0 0.0
  %4371 = vmatpush1.msra.mxu0 0.0
  %4372 = vmatprep.subr.mxu0 0.0
  %4373 = vmatpush1.msra.mxu0 0.0
  %4374 = vmatprep.subr.mxu0 0.0
  %4375 = vmatpush1.msra.mxu0 0.0
  %4376 = vmatprep.subr.mxu0 0.0
  %4377 = vmatpush1.msra.mxu0 0.0
  %4378 = vmatprep.subr.mxu0 0.0
  %4379 = vmatpush1.msra.mxu0 0.0
  %4380 = vmatprep.subr.mxu0 0.0
  %4381 = vmatpush1.msra.mxu0 %v4329
  %4382 = vmatprep.subr.mxu0 0.0
  %4383 = vmatpush2.msra.mxu0 0.0
  %4384 = vmatprep.subr.mxu0 0.0
  %4385 = vmatpush2.msra.mxu0 0.0
  %4386 = vmatprep.subr.mxu0 0.0
  %4387 = vmatpush2.msra.mxu0 0.0
  %4388 = vmatprep.subr.mxu0 0.0
  %4389 = vmatpush2.msra.mxu0 0.0
  %4390 = vmatprep.subr.mxu0 0.0
  %4391 = vmatpush2.msra.mxu0 0.0
  %4392 = vmatprep.subr.mxu0 0.0
  %4393 = vmatpush2.msra.mxu0 0.0
  %4394 = vmatprep.subr.mxu0 0.0
  %4395 = vmatpush2.msra.mxu0 0.0
  %4396 = vmatprep.subr.mxu0 0.0
  %4397 = vmatpush2.msra.mxu0 0.0
  %4398 = vmatprep.subr.mxu0 0.0
  %4399 = vmatpush2.msra.mxu0 0.0
  %4400 = vmatprep.subr.mxu0 0.0
  %4401 = vmatpush2.msra.mxu0 0.0
  %4402 = vmatprep.subr.mxu0 0.0
  %4403 = vmatpush2.msra.mxu0 0.0
  %4404 = vmatprep.subr.mxu0 0.0
  %4405 = vmatpush2.msra.mxu0 0.0
  %4406 = vmatprep.subr.mxu0 0.0
  %4407 = vmatpush2.msra.mxu0 0.0
  %4408 = vmatprep.subr.mxu0 0.0
  %4409 = vmatpush2.msra.mxu0 0.0
  %4410 = vmatprep.subr.mxu0 0.0
  %4411 = vmatpush2.msra.mxu0 0.0
  %4412 = vmatprep.subr.mxu0 0.0
  %4413 = vmatpush2.msra.mxu0 0.0
  %4414 = vmatprep.mubr.f32.mxu0 0.0
  %4415 = vmatmul.mubr.f32.gmra.mxu0 %v4342
  %v4416 = vpop.f32.mrf.mxu0
  %v4417 = vadd.f32 0.0, %v4416
  %v4418 = vpop.f32.mrf.mxu0
  %4419 = vmatprep.mubr.f32.mxu0 0.0
  %4420 = vmatmul.mubr.f32.gmra.mxu0 %v4344
  %v4421 = vpop.f32.mrf.mxu0
  %v4422 = vadd.f32 0.0, %v4421
  %v4423 = vpop.f32.mrf.mxu0
  %4424 = vmatprep.mubr.f32.mxu0 0.0
  %4425 = vmatmul.mubr.f32.gmra.mxu0 %v4346
  %v4426 = vpop.f32.mrf.mxu0
  %v4427 = vadd.f32 0.0, %v4426
  %v4428 = vpop.f32.mrf.mxu0
  %4429 = vmatprep.mubr.f32.mxu0 0.0
  %4430 = vmatmul.mubr.f32.gmra.mxu0 %v4348
  %v4431 = vpop.f32.mrf.mxu0
  %v4432 = vadd.f32 0.0, %v4431
  %v4433 = vpop.f32.mrf.mxu0
  %4434 = vdwg.mxu0
  %v4435 = vadd.f32 %v4294, %v4417
  %v4436 = vadd.f32 %v4299, %v4422
  %v4437 = vadd.f32 %v4304, %v4427
  %v4438 = vadd.f32 %v4309, %v4432
  %s4439 = scalar_lea.vmem [#allocation2], 3
  %v4440 = vld [vmem:[%s4439] ss:$2 sm:$0xf]
  %s4441 = scalar_lea.vmem [#allocation2], 35
  %v4442 = vld [vmem:[%s4441] ss:$2 sm:$0xf]
  %s4443 = scalar_lea.vmem [#allocation2], 67
  %v4444 = vld [vmem:[%s4443] ss:$2 sm:$0xf]
  %s4445 = scalar_lea.vmem [#allocation2], 99
  %v4446 = vld [vmem:[%s4445] ss:$2 sm:$0xf]
  %s4447 = scalar_lea.vmem [#allocation2], 163
  %v4448 = vld [vmem:[%s4447] ss:$2 sm:$0xf]
  %s4449 = scalar_lea.vmem [#allocation2], 195
  %v4450 = vld [vmem:[%s4449] ss:$2 sm:$0xf]
  %s4451 = scalar_lea.vmem [#allocation2], 227
  %v4452 = vld [vmem:[%s4451] ss:$2 sm:$0xf]
  %s4453 = scalar_lea.vmem [#allocation2], 259
  %v4454 = vld [vmem:[%s4453] ss:$2 sm:$0xf]
  %s4455 = scalar_lea.vmem %s3, 24
  %v4456 = vld [vmem:[%s4455] sm:$0xff]
  %v4465 = vcombine.low %v4440, %v4442
  %v4466 = vcombine.low %v4444, %v4446
  %v4467 = vcombine.low %v4448, %v4450
  %v4468 = vcombine.low %v4452, %v4454
  %v4469 = vsel %vm4009, %v4465, 0
  %v4471 = vsel %vm4009, %v4466, 0
  %v4473 = vsel %vm4009, %v4467, 0
  %v4475 = vsel %vm4009, %v4468, 0
  %4477 = vmatprep.subr.mxu0 0.0
  %4478 = vmatpush1.msra.mxu0 0.0
  %4479 = vmatprep.subr.mxu0 0.0
  %4480 = vmatpush1.msra.mxu0 0.0
  %4481 = vmatprep.subr.mxu0 0.0
  %4482 = vmatpush1.msra.mxu0 0.0
  %4483 = vmatprep.subr.mxu0 0.0
  %4484 = vmatpush1.msra.mxu0 0.0
  %4485 = vmatprep.subr.mxu0 0.0
  %4486 = vmatpush1.msra.mxu0 0.0
  %4487 = vmatprep.subr.mxu0 0.0
  %4488 = vmatpush1.msra.mxu0 0.0
  %4489 = vmatprep.subr.mxu0 0.0
  %4490 = vmatpush1.msra.mxu0 0.0
  %4491 = vmatprep.subr.mxu0 0.0
  %4492 = vmatpush1.msra.mxu0 0.0
  %4493 = vmatprep.subr.mxu0 0.0
  %4494 = vmatpush1.msra.mxu0 0.0
  %4495 = vmatprep.subr.mxu0 0.0
  %4496 = vmatpush1.msra.mxu0 0.0
  %4497 = vmatprep.subr.mxu0 0.0
  %4498 = vmatpush1.msra.mxu0 0.0
  %4499 = vmatprep.subr.mxu0 0.0
  %4500 = vmatpush1.msra.mxu0 0.0
  %4501 = vmatprep.subr.mxu0 0.0
  %4502 = vmatpush1.msra.mxu0 0.0
  %4503 = vmatprep.subr.mxu0 0.0
  %4504 = vmatpush1.msra.mxu0 0.0
  %4505 = vmatprep.subr.mxu0 0.0
  %4506 = vmatpush1.msra.mxu0 0.0
  %4507 = vmatprep.subr.mxu0 0.0
  %4508 = vmatpush1.msra.mxu0 %v4456
  %4509 = vmatprep.subr.mxu0 0.0
  %4510 = vmatpush2.msra.mxu0 0.0
  %4511 = vmatprep.subr.mxu0 0.0
  %4512 = vmatpush2.msra.mxu0 0.0
  %4513 = vmatprep.subr.mxu0 0.0
  %4514 = vmatpush2.msra.mxu0 0.0
  %4515 = vmatprep.subr.mxu0 0.0
  %4516 = vmatpush2.msra.mxu0 0.0
  %4517 = vmatprep.subr.mxu0 0.0
  %4518 = vmatpush2.msra.mxu0 0.0
  %4519 = vmatprep.subr.mxu0 0.0
  %4520 = vmatpush2.msra.mxu0 0.0
  %4521 = vmatprep.subr.mxu0 0.0
  %4522 = vmatpush2.msra.mxu0 0.0
  %4523 = vmatprep.subr.mxu0 0.0
  %4524 = vmatpush2.msra.mxu0 0.0
  %4525 = vmatprep.subr.mxu0 0.0
  %4526 = vmatpush2.msra.mxu0 0.0
  %4527 = vmatprep.subr.mxu0 0.0
  %4528 = vmatpush2.msra.mxu0 0.0
  %4529 = vmatprep.subr.mxu0 0.0
  %4530 = vmatpush2.msra.mxu0 0.0
  %4531 = vmatprep.subr.mxu0 0.0
  %4532 = vmatpush2.msra.mxu0 0.0
  %4533 = vmatprep.subr.mxu0 0.0
  %4534 = vmatpush2.msra.mxu0 0.0
  %4535 = vmatprep.subr.mxu0 0.0
  %4536 = vmatpush2.msra.mxu0 0.0
  %4537 = vmatprep.subr.mxu0 0.0
  %4538 = vmatpush2.msra.mxu0 0.0
  %4539 = vmatprep.subr.mxu0 0.0
  %4540 = vmatpush2.msra.mxu0 0.0
  %4541 = vmatprep.mubr.f32.mxu0 0.0
  %4542 = vmatmul.mubr.f32.gmra.mxu0 %v4469
  %v4543 = vpop.f32.mrf.mxu0
  %v4544 = vadd.f32 0.0, %v4543
  %v4545 = vpop.f32.mrf.mxu0
  %4546 = vmatprep.mubr.f32.mxu0 0.0
  %4547 = vmatmul.mubr.f32.gmra.mxu0 %v4471
  %v4548 = vpop.f32.mrf.mxu0
  %v4549 = vadd.f32 0.0, %v4548
  %v4550 = vpop.f32.mrf.mxu0
  %4551 = vmatprep.mubr.f32.mxu0 0.0
  %4552 = vmatmul.mubr.f32.gmra.mxu0 %v4473
  %v4553 = vpop.f32.mrf.mxu0
  %v4554 = vadd.f32 0.0, %v4553
  %v4555 = vpop.f32.mrf.mxu0
  %4556 = vmatprep.mubr.f32.mxu0 0.0
  %4557 = vmatmul.mubr.f32.gmra.mxu0 %v4475
  %v4558 = vpop.f32.mrf.mxu0
  %v4559 = vadd.f32 0.0, %v4558
  %v4560 = vpop.f32.mrf.mxu0
  %4561 = vdwg.mxu0
  %v4562 = vadd.f32 %v4435, %v4544
  %v4563 = vadd.f32 %v4436, %v4549
  %v4564 = vadd.f32 %v4437, %v4554
  %v4565 = vadd.f32 %v4438, %v4559
  %v4566 = vld [vmem:[%s4051] ss:$2 sm:$0xf]
  %s4567 = scalar_lea.vmem %s4051, 32 [#allocation2]
  %v4568 = vld [vmem:[%s4567] ss:$2 sm:$0xf]
  %s4569 = scalar_lea.vmem %s4051, 64 [#allocation2]
  %v4570 = vld [vmem:[%s4569] ss:$2 sm:$0xf]
  %s4571 = scalar_lea.vmem %s4051, 96 [#allocation2]
  %v4572 = vld [vmem:[%s4571] ss:$2 sm:$0xf]
  %s4573 = scalar_lea.vmem %s4051, 160 [#allocation2]
  %v4574 = vld [vmem:[%s4573] ss:$2 sm:$0xf]
  %s4575 = scalar_lea.vmem %s4051, 192 [#allocation2]
  %v4576 = vld [vmem:[%s4575] ss:$2 sm:$0xf]
  %s4577 = scalar_lea.vmem %s4051, 224 [#allocation2]
  %v4578 = vld [vmem:[%s4577] ss:$2 sm:$0xf]
  %s4579 = scalar_lea.vmem %s4051, 256 [#allocation2]
  %v4580 = vld [vmem:[%s4579] ss:$2 sm:$0xf]
  %s4581 = scalar_lea.vmem %s3, 32
  %v4582 = vld [vmem:[%s4581] sm:$0xff]
  %v4591 = vcombine.low %v4566, %v4568
  %v4592 = vcombine.low %v4570, %v4572
  %v4593 = vcombine.low %v4574, %v4576
  %v4594 = vcombine.low %v4578, %v4580
  %v4595 = vsel %vm4009, %v4591, 0
  %v4597 = vsel %vm4009, %v4592, 0
  %v4599 = vsel %vm4009, %v4593, 0
  %v4601 = vsel %vm4009, %v4594, 0
  %4603 = vmatprep.subr.mxu0 0.0
  %4604 = vmatpush1.msra.mxu0 0.0
  %4605 = vmatprep.subr.mxu0 0.0
  %4606 = vmatpush1.msra.mxu0 0.0
  %4607 = vmatprep.subr.mxu0 0.0
  %4608 = vmatpush1.msra.mxu0 0.0
  %4609 = vmatprep.subr.mxu0 0.0
  %4610 = vmatpush1.msra.mxu0 0.0
  %4611 = vmatprep.subr.mxu0 0.0
  %4612 = vmatpush1.msra.mxu0 0.0
  %4613 = vmatprep.subr.mxu0 0.0
  %4614 = vmatpush1.msra.mxu0 0.0
  %4615 = vmatprep.subr.mxu0 0.0
  %4616 = vmatpush1.msra.mxu0 0.0
  %4617 = vmatprep.subr.mxu0 0.0
  %4618 = vmatpush1.msra.mxu0 0.0
  %4619 = vmatprep.subr.mxu0 0.0
  %4620 = vmatpush1.msra.mxu0 0.0
  %4621 = vmatprep.subr.mxu0 0.0
  %4622 = vmatpush1.msra.mxu0 0.0
  %4623 = vmatprep.subr.mxu0 0.0
  %4624 = vmatpush1.msra.mxu0 0.0
  %4625 = vmatprep.subr.mxu0 0.0
  %4626 = vmatpush1.msra.mxu0 0.0
  %4627 = vmatprep.subr.mxu0 0.0
  %4628 = vmatpush1.msra.mxu0 0.0
  %4629 = vmatprep.subr.mxu0 0.0
  %4630 = vmatpush1.msra.mxu0 0.0
  %4631 = vmatprep.subr.mxu0 0.0
  %4632 = vmatpush1.msra.mxu0 0.0
  %4633 = vmatprep.subr.mxu0 0.0
  %4634 = vmatpush1.msra.mxu0 %v4582
  %4635 = vmatprep.subr.mxu0 0.0
  %4636 = vmatpush2.msra.mxu0 0.0
  %4637 = vmatprep.subr.mxu0 0.0
  %4638 = vmatpush2.msra.mxu0 0.0
  %4639 = vmatprep.subr.mxu0 0.0
  %4640 = vmatpush2.msra.mxu0 0.0
  %4641 = vmatprep.subr.mxu0 0.0
  %4642 = vmatpush2.msra.mxu0 0.0
  %4643 = vmatprep.subr.mxu0 0.0
  %4644 = vmatpush2.msra.mxu0 0.0
  %4645 = vmatprep.subr.mxu0 0.0
  %4646 = vmatpush2.msra.mxu0 0.0
  %4647 = vmatprep.subr.mxu0 0.0
  %4648 = vmatpush2.msra.mxu0 0.0
  %4649 = vmatprep.subr.mxu0 0.0
  %4650 = vmatpush2.msra.mxu0 0.0
  %4651 = vmatprep.subr.mxu0 0.0
  %4652 = vmatpush2.msra.mxu0 0.0
  %4653 = vmatprep.subr.mxu0 0.0
  %4654 = vmatpush2.msra.mxu0 0.0
  %4655 = vmatprep.subr.mxu0 0.0
  %4656 = vmatpush2.msra.mxu0 0.0
  %4657 = vmatprep.subr.mxu0 0.0
  %4658 = vmatpush2.msra.mxu0 0.0
  %4659 = vmatprep.subr.mxu0 0.0
  %4660 = vmatpush2.msra.mxu0 0.0
  %4661 = vmatprep.subr.mxu0 0.0
  %4662 = vmatpush2.msra.mxu0 0.0
  %4663 = vmatprep.subr.mxu0 0.0
  %4664 = vmatpush2.msra.mxu0 0.0
  %4665 = vmatprep.subr.mxu0 0.0
  %4666 = vmatpush2.msra.mxu0 0.0
  %4667 = vmatprep.mubr.f32.mxu0 0.0
  %4668 = vmatmul.mubr.f32.gmra.mxu0 %v4595
  %v4669 = vpop.f32.mrf.mxu0
  %v4670 = vadd.f32 0.0, %v4669
  %v4671 = vpop.f32.mrf.mxu0
  %4672 = vmatprep.mubr.f32.mxu0 0.0
  %4673 = vmatmul.mubr.f32.gmra.mxu0 %v4597
  %v4674 = vpop.f32.mrf.mxu0
  %v4675 = vadd.f32 0.0, %v4674
  %v4676 = vpop.f32.mrf.mxu0
  %4677 = vmatprep.mubr.f32.mxu0 0.0
  %4678 = vmatmul.mubr.f32.gmra.mxu0 %v4599
  %v4679 = vpop.f32.mrf.mxu0
  %v4680 = vadd.f32 0.0, %v4679
  %v4681 = vpop.f32.mrf.mxu0
  %4682 = vmatprep.mubr.f32.mxu0 0.0
  %4683 = vmatmul.mubr.f32.gmra.mxu0 %v4601
  %v4684 = vpop.f32.mrf.mxu0
  %v4685 = vadd.f32 0.0, %v4684
  %v4686 = vpop.f32.mrf.mxu0
  %4687 = vdwg.mxu0
  %v4688 = vadd.f32 %v4562, %v4670
  %v4689 = vadd.f32 %v4563, %v4675
  %v4690 = vadd.f32 %v4564, %v4680
  %v4691 = vadd.f32 %v4565, %v4685
  %s4692 = scalar_lea.vmem %s4051, 1 [#allocation2]
  %v4693 = vld [vmem:[%s4692] ss:$2 sm:$0xf]
  %s4694 = scalar_lea.vmem %s4051, 33 [#allocation2]
  %v4695 = vld [vmem:[%s4694] ss:$2 sm:$0xf]
  %s4696 = scalar_lea.vmem %s4051, 65 [#allocation2]
  %v4697 = vld [vmem:[%s4696] ss:$2 sm:$0xf]
  %s4698 = scalar_lea.vmem %s4051, 97 [#allocation2]
  %v4699 = vld [vmem:[%s4698] ss:$2 sm:$0xf]
  %s4700 = scalar_lea.vmem %s4051, 161 [#allocation2]
  %v4701 = vld [vmem:[%s4700] ss:$2 sm:$0xf]
  %s4702 = scalar_lea.vmem %s4051, 193 [#allocation2]
  %v4703 = vld [vmem:[%s4702] ss:$2 sm:$0xf]
  %s4704 = scalar_lea.vmem %s4051, 225 [#allocation2]
  %v4705 = vld [vmem:[%s4704] ss:$2 sm:$0xf]
  %s4706 = scalar_lea.vmem %s4051, 257 [#allocation2]
  %v4707 = vld [vmem:[%s4706] ss:$2 sm:$0xf]
  %s4708 = scalar_lea.vmem %s3, 40
  %v4709 = vld [vmem:[%s4708] sm:$0xff]
  %v4718 = vcombine.low %v4693, %v4695
  %v4719 = vcombine.low %v4697, %v4699
  %v4720 = vcombine.low %v4701, %v4703
  %v4721 = vcombine.low %v4705, %v4707
  %v4722 = vsel %vm4009, %v4718, 0
  %v4724 = vsel %vm4009, %v4719, 0
  %v4726 = vsel %vm4009, %v4720, 0
  %v4728 = vsel %vm4009, %v4721, 0
  %4730 = vmatprep.subr.mxu0 0.0
  %4731 = vmatpush1.msra.mxu0 0.0
  %4732 = vmatprep.subr.mxu0 0.0
  %4733 = vmatpush1.msra.mxu0 0.0
  %4734 = vmatprep.subr.mxu0 0.0
  %4735 = vmatpush1.msra.mxu0 0.0
  %4736 = vmatprep.subr.mxu0 0.0
  %4737 = vmatpush1.msra.mxu0 0.0
  %4738 = vmatprep.subr.mxu0 0.0
  %4739 = vmatpush1.msra.mxu0 0.0
  %4740 = vmatprep.subr.mxu0 0.0
  %4741 = vmatpush1.msra.mxu0 0.0
  %4742 = vmatprep.subr.mxu0 0.0
  %4743 = vmatpush1.msra.mxu0 0.0
  %4744 = vmatprep.subr.mxu0 0.0
  %4745 = vmatpush1.msra.mxu0 0.0
  %4746 = vmatprep.subr.mxu0 0.0
  %4747 = vmatpush1.msra.mxu0 0.0
  %4748 = vmatprep.subr.mxu0 0.0
  %4749 = vmatpush1.msra.mxu0 0.0
  %4750 = vmatprep.subr.mxu0 0.0
  %4751 = vmatpush1.msra.mxu0 0.0
  %4752 = vmatprep.subr.mxu0 0.0
  %4753 = vmatpush1.msra.mxu0 0.0
  %4754 = vmatprep.subr.mxu0 0.0
  %4755 = vmatpush1.msra.mxu0 0.0
  %4756 = vmatprep.subr.mxu0 0.0
  %4757 = vmatpush1.msra.mxu0 0.0
  %4758 = vmatprep.subr.mxu0 0.0
  %4759 = vmatpush1.msra.mxu0 0.0
  %4760 = vmatprep.subr.mxu0 0.0
  %4761 = vmatpush1.msra.mxu0 %v4709
  %4762 = vmatprep.subr.mxu0 0.0
  %4763 = vmatpush2.msra.mxu0 0.0
  %4764 = vmatprep.subr.mxu0 0.0
  %4765 = vmatpush2.msra.mxu0 0.0
  %4766 = vmatprep.subr.mxu0 0.0
  %4767 = vmatpush2.msra.mxu0 0.0
  %4768 = vmatprep.subr.mxu0 0.0
  %4769 = vmatpush2.msra.mxu0 0.0
  %4770 = vmatprep.subr.mxu0 0.0
  %4771 = vmatpush2.msra.mxu0 0.0
  %4772 = vmatprep.subr.mxu0 0.0
  %4773 = vmatpush2.msra.mxu0 0.0
  %4774 = vmatprep.subr.mxu0 0.0
  %4775 = vmatpush2.msra.mxu0 0.0
  %4776 = vmatprep.subr.mxu0 0.0
  %4777 = vmatpush2.msra.mxu0 0.0
  %4778 = vmatprep.subr.mxu0 0.0
  %4779 = vmatpush2.msra.mxu0 0.0
  %4780 = vmatprep.subr.mxu0 0.0
  %4781 = vmatpush2.msra.mxu0 0.0
  %4782 = vmatprep.subr.mxu0 0.0
  %4783 = vmatpush2.msra.mxu0 0.0
  %4784 = vmatprep.subr.mxu0 0.0
  %4785 = vmatpush2.msra.mxu0 0.0
  %4786 = vmatprep.subr.mxu0 0.0
  %4787 = vmatpush2.msra.mxu0 0.0
  %4788 = vmatprep.subr.mxu0 0.0
  %4789 = vmatpush2.msra.mxu0 0.0
  %4790 = vmatprep.subr.mxu0 0.0
  %4791 = vmatpush2.msra.mxu0 0.0
  %4792 = vmatprep.subr.mxu0 0.0
  %4793 = vmatpush2.msra.mxu0 0.0
  %4794 = vmatprep.mubr.f32.mxu0 0.0
  %4795 = vmatmul.mubr.f32.gmra.mxu0 %v4722
  %v4796 = vpop.f32.mrf.mxu0
  %v4797 = vadd.f32 0.0, %v4796
  %v4798 = vpop.f32.mrf.mxu0
  %4799 = vmatprep.mubr.f32.mxu0 0.0
  %4800 = vmatmul.mubr.f32.gmra.mxu0 %v4724
  %v4801 = vpop.f32.mrf.mxu0
  %v4802 = vadd.f32 0.0, %v4801
  %v4803 = vpop.f32.mrf.mxu0
  %4804 = vmatprep.mubr.f32.mxu0 0.0
  %4805 = vmatmul.mubr.f32.gmra.mxu0 %v4726
  %v4806 = vpop.f32.mrf.mxu0
  %v4807 = vadd.f32 0.0, %v4806
  %v4808 = vpop.f32.mrf.mxu0
  %4809 = vmatprep.mubr.f32.mxu0 0.0
  %4810 = vmatmul.mubr.f32.gmra.mxu0 %v4728
  %v4811 = vpop.f32.mrf.mxu0
  %v4812 = vadd.f32 0.0, %v4811
  %v4813 = vpop.f32.mrf.mxu0
  %4814 = vdwg.mxu0
  %v4815 = vadd.f32 %v4688, %v4797
  %v4816 = vadd.f32 %v4689, %v4802
  %v4817 = vadd.f32 %v4690, %v4807
  %v4818 = vadd.f32 %v4691, %v4812
  %s4819 = scalar_lea.vmem %s4051, 2 [#allocation2]
  %v4820 = vld [vmem:[%s4819] ss:$2 sm:$0xf]
  %s4821 = scalar_lea.vmem %s4051, 34 [#allocation2]
  %v4822 = vld [vmem:[%s4821] ss:$2 sm:$0xf]
  %s4823 = scalar_lea.vmem %s4051, 66 [#allocation2]
  %v4824 = vld [vmem:[%s4823] ss:$2 sm:$0xf]
  %s4825 = scalar_lea.vmem %s4051, 98 [#allocation2]
  %v4826 = vld [vmem:[%s4825] ss:$2 sm:$0xf]
  %s4827 = scalar_lea.vmem %s4051, 162 [#allocation2]
  %v4828 = vld [vmem:[%s4827] ss:$2 sm:$0xf]
  %s4829 = scalar_lea.vmem %s4051, 194 [#allocation2]
  %v4830 = vld [vmem:[%s4829] ss:$2 sm:$0xf]
  %s4831 = scalar_lea.vmem %s4051, 226 [#allocation2]
  %v4832 = vld [vmem:[%s4831] ss:$2 sm:$0xf]
  %s4833 = scalar_lea.vmem %s4051, 258 [#allocation2]
  %v4834 = vld [vmem:[%s4833] ss:$2 sm:$0xf]
  %s4835 = scalar_lea.vmem %s3, 48
  %v4836 = vld [vmem:[%s4835] sm:$0xff]
  %v4845 = vcombine.low %v4820, %v4822
  %v4846 = vcombine.low %v4824, %v4826
  %v4847 = vcombine.low %v4828, %v4830
  %v4848 = vcombine.low %v4832, %v4834
  %v4849 = vsel %vm4009, %v4845, 0
  %v4851 = vsel %vm4009, %v4846, 0
  %v4853 = vsel %vm4009, %v4847, 0
  %v4855 = vsel %vm4009, %v4848, 0
  %4857 = vmatprep.subr.mxu0 0.0
  %4858 = vmatpush1.msra.mxu0 0.0
  %4859 = vmatprep.subr.mxu0 0.0
  %4860 = vmatpush1.msra.mxu0 0.0
  %4861 = vmatprep.subr.mxu0 0.0
  %4862 = vmatpush1.msra.mxu0 0.0
  %4863 = vmatprep.subr.mxu0 0.0
  %4864 = vmatpush1.msra.mxu0 0.0
  %4865 = vmatprep.subr.mxu0 0.0
  %4866 = vmatpush1.msra.mxu0 0.0
  %4867 = vmatprep.subr.mxu0 0.0
  %4868 = vmatpush1.msra.mxu0 0.0
  %4869 = vmatprep.subr.mxu0 0.0
  %4870 = vmatpush1.msra.mxu0 0.0
  %4871 = vmatprep.subr.mxu0 0.0
  %4872 = vmatpush1.msra.mxu0 0.0
  %4873 = vmatprep.subr.mxu0 0.0
  %4874 = vmatpush1.msra.mxu0 0.0
  %4875 = vmatprep.subr.mxu0 0.0
  %4876 = vmatpush1.msra.mxu0 0.0
  %4877 = vmatprep.subr.mxu0 0.0
  %4878 = vmatpush1.msra.mxu0 0.0
  %4879 = vmatprep.subr.mxu0 0.0
  %4880 = vmatpush1.msra.mxu0 0.0
  %4881 = vmatprep.subr.mxu0 0.0
  %4882 = vmatpush1.msra.mxu0 0.0
  %4883 = vmatprep.subr.mxu0 0.0
  %4884 = vmatpush1.msra.mxu0 0.0
  %4885 = vmatprep.subr.mxu0 0.0
  %4886 = vmatpush1.msra.mxu0 0.0
  %4887 = vmatprep.subr.mxu0 0.0
  %4888 = vmatpush1.msra.mxu0 %v4836
  %4889 = vmatprep.subr.mxu0 0.0
  %4890 = vmatpush2.msra.mxu0 0.0
  %4891 = vmatprep.subr.mxu0 0.0
  %4892 = vmatpush2.msra.mxu0 0.0
  %4893 = vmatprep.subr.mxu0 0.0
  %4894 = vmatpush2.msra.mxu0 0.0
  %4895 = vmatprep.subr.mxu0 0.0
  %4896 = vmatpush2.msra.mxu0 0.0
  %4897 = vmatprep.subr.mxu0 0.0
  %4898 = vmatpush2.msra.mxu0 0.0
  %4899 = vmatprep.subr.mxu0 0.0
  %4900 = vmatpush2.msra.mxu0 0.0
  %4901 = vmatprep.subr.mxu0 0.0
  %4902 = vmatpush2.msra.mxu0 0.0
  %4903 = vmatprep.subr.mxu0 0.0
  %4904 = vmatpush2.msra.mxu0 0.0
  %4905 = vmatprep.subr.mxu0 0.0
  %4906 = vmatpush2.msra.mxu0 0.0
  %4907 = vmatprep.subr.mxu0 0.0
  %4908 = vmatpush2.msra.mxu0 0.0
  %4909 = vmatprep.subr.mxu0 0.0
  %4910 = vmatpush2.msra.mxu0 0.0
  %4911 = vmatprep.subr.mxu0 0.0
  %4912 = vmatpush2.msra.mxu0 0.0
  %4913 = vmatprep.subr.mxu0 0.0
  %4914 = vmatpush2.msra.mxu0 0.0
  %4915 = vmatprep.subr.mxu0 0.0
  %4916 = vmatpush2.msra.mxu0 0.0
  %4917 = vmatprep.subr.mxu0 0.0
  %4918 = vmatpush2.msra.mxu0 0.0
  %4919 = vmatprep.subr.mxu0 0.0
  %4920 = vmatpush2.msra.mxu0 0.0
  %4921 = vmatprep.mubr.f32.mxu0 0.0
  %4922 = vmatmul.mubr.f32.gmra.mxu0 %v4849
  %v4923 = vpop.f32.mrf.mxu0
  %v4924 = vadd.f32 0.0, %v4923
  %v4925 = vpop.f32.mrf.mxu0
  %4926 = vmatprep.mubr.f32.mxu0 0.0
  %4927 = vmatmul.mubr.f32.gmra.mxu0 %v4851
  %v4928 = vpop.f32.mrf.mxu0
  %v4929 = vadd.f32 0.0, %v4928
  %v4930 = vpop.f32.mrf.mxu0
  %4931 = vmatprep.mubr.f32.mxu0 0.0
  %4932 = vmatmul.mubr.f32.gmra.mxu0 %v4853
  %v4933 = vpop.f32.mrf.mxu0
  %v4934 = vadd.f32 0.0, %v4933
  %v4935 = vpop.f32.mrf.mxu0
  %4936 = vmatprep.mubr.f32.mxu0 0.0
  %4937 = vmatmul.mubr.f32.gmra.mxu0 %v4855
  %v4938 = vpop.f32.mrf.mxu0
  %v4939 = vadd.f32 0.0, %v4938
  %v4940 = vpop.f32.mrf.mxu0
  %4941 = vdwg.mxu0
  %v4942 = vadd.f32 %v4815, %v4924
  %v4943 = vadd.f32 %v4816, %v4929
  %v4944 = vadd.f32 %v4817, %v4934
  %v4945 = vadd.f32 %v4818, %v4939
  %s4946 = scalar_lea.vmem %s4051, 3 [#allocation2]
  %v4947 = vld [vmem:[%s4946] ss:$2 sm:$0xf]
  %s4948 = scalar_lea.vmem %s4051, 35 [#allocation2]
  %v4949 = vld [vmem:[%s4948] ss:$2 sm:$0xf]
  %s4950 = scalar_lea.vmem %s4051, 67 [#allocation2]
  %v4951 = vld [vmem:[%s4950] ss:$2 sm:$0xf]
  %s4952 = scalar_lea.vmem %s4051, 99 [#allocation2]
  %v4953 = vld [vmem:[%s4952] ss:$2 sm:$0xf]
  %s4954 = scalar_lea.vmem %s4051, 163 [#allocation2]
  %v4955 = vld [vmem:[%s4954] ss:$2 sm:$0xf]
  %s4956 = scalar_lea.vmem %s4051, 195 [#allocation2]
  %v4957 = vld [vmem:[%s4956] ss:$2 sm:$0xf]
  %s4958 = scalar_lea.vmem %s4051, 227 [#allocation2]
  %v4959 = vld [vmem:[%s4958] ss:$2 sm:$0xf]
  %s4960 = scalar_lea.vmem %s4051, 259 [#allocation2]
  %v4961 = vld [vmem:[%s4960] ss:$2 sm:$0xf]
  %s4962 = scalar_lea.vmem %s3, 56
  %v4963 = vld [vmem:[%s4962] sm:$0xff]
  %v4972 = vcombine.low %v4947, %v4949
  %v4973 = vcombine.low %v4951, %v4953
  %v4974 = vcombine.low %v4955, %v4957
  %v4975 = vcombine.low %v4959, %v4961
  %v4976 = vsel %vm4009, %v4972, 0
  %v4978 = vsel %vm4009, %v4973, 0
  %v4980 = vsel %vm4009, %v4974, 0
  %v4982 = vsel %vm4009, %v4975, 0
  %4984 = vmatprep.subr.mxu0 0.0
  %4985 = vmatpush1.msra.mxu0 0.0
  %4986 = vmatprep.subr.mxu0 0.0
  %4987 = vmatpush1.msra.mxu0 0.0
  %4988 = vmatprep.subr.mxu0 0.0
  %4989 = vmatpush1.msra.mxu0 0.0
  %4990 = vmatprep.subr.mxu0 0.0
  %4991 = vmatpush1.msra.mxu0 0.0
  %4992 = vmatprep.subr.mxu0 0.0
  %4993 = vmatpush1.msra.mxu0 0.0
  %4994 = vmatprep.subr.mxu0 0.0
  %4995 = vmatpush1.msra.mxu0 0.0
  %4996 = vmatprep.subr.mxu0 0.0
  %4997 = vmatpush1.msra.mxu0 0.0
  %4998 = vmatprep.subr.mxu0 0.0
  %4999 = vmatpush1.msra.mxu0 0.0
  %5000 = vmatprep.subr.mxu0 0.0
  %5001 = vmatpush1.msra.mxu0 0.0
  %5002 = vmatprep.subr.mxu0 0.0
  %5003 = vmatpush1.msra.mxu0 0.0
  %5004 = vmatprep.subr.mxu0 0.0
  %5005 = vmatpush1.msra.mxu0 0.0
  %5006 = vmatprep.subr.mxu0 0.0
  %5007 = vmatpush1.msra.mxu0 0.0
  %5008 = vmatprep.subr.mxu0 0.0
  %5009 = vmatpush1.msra.mxu0 0.0
  %5010 = vmatprep.subr.mxu0 0.0
  %5011 = vmatpush1.msra.mxu0 0.0
  %5012 = vmatprep.subr.mxu0 0.0
  %5013 = vmatpush1.msra.mxu0 0.0
  %5014 = vmatprep.subr.mxu0 0.0
  %5015 = vmatpush1.msra.mxu0 %v4963
  %5016 = vmatprep.subr.mxu0 0.0
  %5017 = vmatpush2.msra.mxu0 0.0
  %5018 = vmatprep.subr.mxu0 0.0
  %5019 = vmatpush2.msra.mxu0 0.0
  %5020 = vmatprep.subr.mxu0 0.0
  %5021 = vmatpush2.msra.mxu0 0.0
  %5022 = vmatprep.subr.mxu0 0.0
  %5023 = vmatpush2.msra.mxu0 0.0
  %5024 = vmatprep.subr.mxu0 0.0
  %5025 = vmatpush2.msra.mxu0 0.0
  %5026 = vmatprep.subr.mxu0 0.0
  %5027 = vmatpush2.msra.mxu0 0.0
  %5028 = vmatprep.subr.mxu0 0.0
  %5029 = vmatpush2.msra.mxu0 0.0
  %5030 = vmatprep.subr.mxu0 0.0
  %5031 = vmatpush2.msra.mxu0 0.0
  %5032 = vmatprep.subr.mxu0 0.0
  %5033 = vmatpush2.msra.mxu0 0.0
  %5034 = vmatprep.subr.mxu0 0.0
  %5035 = vmatpush2.msra.mxu0 0.0
  %5036 = vmatprep.subr.mxu0 0.0
  %5037 = vmatpush2.msra.mxu0 0.0
  %5038 = vmatprep.subr.mxu0 0.0
  %5039 = vmatpush2.msra.mxu0 0.0
  %5040 = vmatprep.subr.mxu0 0.0
  %5041 = vmatpush2.msra.mxu0 0.0
  %5042 = vmatprep.subr.mxu0 0.0
  %5043 = vmatpush2.msra.mxu0 0.0
  %5044 = vmatprep.subr.mxu0 0.0
  %5045 = vmatpush2.msra.mxu0 0.0
  %5046 = vmatprep.subr.mxu0 0.0
  %5047 = vmatpush2.msra.mxu0 0.0
  %5048 = vmatprep.mubr.f32.mxu0 0.0
  %5049 = vmatmul.mubr.f32.gmra.mxu0 %v4976
  %v5050 = vpop.f32.mrf.mxu0
  %v5051 = vadd.f32 0.0, %v5050
  %v5052 = vpop.f32.mrf.mxu0
  %5053 = vmatprep.mubr.f32.mxu0 0.0
  %5054 = vmatmul.mubr.f32.gmra.mxu0 %v4978
  %v5055 = vpop.f32.mrf.mxu0
  %v5056 = vadd.f32 0.0, %v5055
  %v5057 = vpop.f32.mrf.mxu0
  %5058 = vmatprep.mubr.f32.mxu0 0.0
  %5059 = vmatmul.mubr.f32.gmra.mxu0 %v4980
  %v5060 = vpop.f32.mrf.mxu0
  %v5061 = vadd.f32 0.0, %v5060
  %v5062 = vpop.f32.mrf.mxu0
  %5063 = vmatprep.mubr.f32.mxu0 0.0
  %5064 = vmatmul.mubr.f32.gmra.mxu0 %v4982
  %v5065 = vpop.f32.mrf.mxu0
  %v5066 = vadd.f32 0.0, %v5065
  %v5067 = vpop.f32.mrf.mxu0
  %5068 = vdwg.mxu0
  %v5069 = vadd.f32 %v4942, %v5051
  %v5070 = vadd.f32 %v4943, %v5056
  %v5071 = vadd.f32 %v4944, %v5061
  %v5072 = vadd.f32 %v4945, %v5066
  %s5073 = scalar_lea.vmem [#allocation2], 32
  %v5074 = vld [vmem:[%s5073] ss:$2 sm:$0xf]
  %s5075 = scalar_lea.vmem %s5073, 32 [#allocation2]
  %v5076 = vld [vmem:[%s5075] ss:$2 sm:$0xf]
  %s5077 = scalar_lea.vmem %s5073, 64 [#allocation2]
  %v5078 = vld [vmem:[%s5077] ss:$2 sm:$0xf]
  %s5079 = scalar_lea.vmem %s5073, 96 [#allocation2]
  %v5080 = vld [vmem:[%s5079] ss:$2 sm:$0xf]
  %s5081 = scalar_lea.vmem %s5073, 160 [#allocation2]
  %v5082 = vld [vmem:[%s5081] ss:$2 sm:$0xf]
  %s5083 = scalar_lea.vmem %s5073, 192 [#allocation2]
  %v5084 = vld [vmem:[%s5083] ss:$2 sm:$0xf]
  %s5085 = scalar_lea.vmem %s5073, 224 [#allocation2]
  %v5086 = vld [vmem:[%s5085] ss:$2 sm:$0xf]
  %s5087 = scalar_lea.vmem %s5073, 256 [#allocation2]
  %v5088 = vld [vmem:[%s5087] ss:$2 sm:$0xf]
  %s5089 = scalar_lea.vmem %s3, 64
  %v5090 = vld [vmem:[%s5089] sm:$0xff]
  %v5099 = vcombine.low %v5074, %v5076
  %v5100 = vcombine.low %v5078, %v5080
  %v5101 = vcombine.low %v5082, %v5084
  %v5102 = vcombine.low %v5086, %v5088
  %v5103 = vsel %vm4009, %v5099, 0
  %v5105 = vsel %vm4009, %v5100, 0
  %v5107 = vsel %vm4009, %v5101, 0
  %v5109 = vsel %vm4009, %v5102, 0
  %5111 = vmatprep.subr.mxu0 0.0
  %5112 = vmatpush1.msra.mxu0 0.0
  %5113 = vmatprep.subr.mxu0 0.0
  %5114 = vmatpush1.msra.mxu0 0.0
  %5115 = vmatprep.subr.mxu0 0.0
  %5116 = vmatpush1.msra.mxu0 0.0
  %5117 = vmatprep.subr.mxu0 0.0
  %5118 = vmatpush1.msra.mxu0 0.0
  %5119 = vmatprep.subr.mxu0 0.0
  %5120 = vmatpush1.msra.mxu0 0.0
  %5121 = vmatprep.subr.mxu0 0.0
  %5122 = vmatpush1.msra.mxu0 0.0
  %5123 = vmatprep.subr.mxu0 0.0
  %5124 = vmatpush1.msra.mxu0 0.0
  %5125 = vmatprep.subr.mxu0 0.0
  %5126 = vmatpush1.msra.mxu0 0.0
  %5127 = vmatprep.subr.mxu0 0.0
  %5128 = vmatpush1.msra.mxu0 0.0
  %5129 = vmatprep.subr.mxu0 0.0
  %5130 = vmatpush1.msra.mxu0 0.0
  %5131 = vmatprep.subr.mxu0 0.0
  %5132 = vmatpush1.msra.mxu0 0.0
  %5133 = vmatprep.subr.mxu0 0.0
  %5134 = vmatpush1.msra.mxu0 0.0
  %5135 = vmatprep.subr.mxu0 0.0
  %5136 = vmatpush1.msra.mxu0 0.0
  %5137 = vmatprep.subr.mxu0 0.0
  %5138 = vmatpush1.msra.mxu0 0.0
  %5139 = vmatprep.subr.mxu0 0.0
  %5140 = vmatpush1.msra.mxu0 0.0
  %5141 = vmatprep.subr.mxu0 0.0
  %5142 = vmatpush1.msra.mxu0 %v5090
  %5143 = vmatprep.subr.mxu0 0.0
  %5144 = vmatpush2.msra.mxu0 0.0
  %5145 = vmatprep.subr.mxu0 0.0
  %5146 = vmatpush2.msra.mxu0 0.0
  %5147 = vmatprep.subr.mxu0 0.0
  %5148 = vmatpush2.msra.mxu0 0.0
  %5149 = vmatprep.subr.mxu0 0.0
  %5150 = vmatpush2.msra.mxu0 0.0
  %5151 = vmatprep.subr.mxu0 0.0
  %5152 = vmatpush2.msra.mxu0 0.0
  %5153 = vmatprep.subr.mxu0 0.0
  %5154 = vmatpush2.msra.mxu0 0.0
  %5155 = vmatprep.subr.mxu0 0.0
  %5156 = vmatpush2.msra.mxu0 0.0
  %5157 = vmatprep.subr.mxu0 0.0
  %5158 = vmatpush2.msra.mxu0 0.0
  %5159 = vmatprep.subr.mxu0 0.0
  %5160 = vmatpush2.msra.mxu0 0.0
  %5161 = vmatprep.subr.mxu0 0.0
  %5162 = vmatpush2.msra.mxu0 0.0
  %5163 = vmatprep.subr.mxu0 0.0
  %5164 = vmatpush2.msra.mxu0 0.0
  %5165 = vmatprep.subr.mxu0 0.0
  %5166 = vmatpush2.msra.mxu0 0.0
  %5167 = vmatprep.subr.mxu0 0.0
  %5168 = vmatpush2.msra.mxu0 0.0
  %5169 = vmatprep.subr.mxu0 0.0
  %5170 = vmatpush2.msra.mxu0 0.0
  %5171 = vmatprep.subr.mxu0 0.0
  %5172 = vmatpush2.msra.mxu0 0.0
  %5173 = vmatprep.subr.mxu0 0.0
  %5174 = vmatpush2.msra.mxu0 0.0
  %5175 = vmatprep.mubr.f32.mxu0 0.0
  %5176 = vmatmul.mubr.f32.gmra.mxu0 %v5103
  %v5177 = vpop.f32.mrf.mxu0
  %v5178 = vadd.f32 0.0, %v5177
  %v5179 = vpop.f32.mrf.mxu0
  %5180 = vmatprep.mubr.f32.mxu0 0.0
  %5181 = vmatmul.mubr.f32.gmra.mxu0 %v5105
  %v5182 = vpop.f32.mrf.mxu0
  %v5183 = vadd.f32 0.0, %v5182
  %v5184 = vpop.f32.mrf.mxu0
  %5185 = vmatprep.mubr.f32.mxu0 0.0
  %5186 = vmatmul.mubr.f32.gmra.mxu0 %v5107
  %v5187 = vpop.f32.mrf.mxu0
  %v5188 = vadd.f32 0.0, %v5187
  %v5189 = vpop.f32.mrf.mxu0
  %5190 = vmatprep.mubr.f32.mxu0 0.0
  %5191 = vmatmul.mubr.f32.gmra.mxu0 %v5109
  %v5192 = vpop.f32.mrf.mxu0
  %v5193 = vadd.f32 0.0, %v5192
  %v5194 = vpop.f32.mrf.mxu0
  %5195 = vdwg.mxu0
  %v5196 = vadd.f32 %v5069, %v5178
  %v5197 = vadd.f32 %v5070, %v5183
  %v5198 = vadd.f32 %v5071, %v5188
  %v5199 = vadd.f32 %v5072, %v5193
  %s5200 = scalar_lea.vmem %s5073, 1 [#allocation2]
  %v5201 = vld [vmem:[%s5200] ss:$2 sm:$0xf]
  %s5202 = scalar_lea.vmem %s5073, 33 [#allocation2]
  %v5203 = vld [vmem:[%s5202] ss:$2 sm:$0xf]
  %s5204 = scalar_lea.vmem %s5073, 65 [#allocation2]
  %v5205 = vld [vmem:[%s5204] ss:$2 sm:$0xf]
  %s5206 = scalar_lea.vmem %s5073, 97 [#allocation2]
  %v5207 = vld [vmem:[%s5206] ss:$2 sm:$0xf]
  %s5208 = scalar_lea.vmem %s5073, 161 [#allocation2]
  %v5209 = vld [vmem:[%s5208] ss:$2 sm:$0xf]
  %s5210 = scalar_lea.vmem %s5073, 193 [#allocation2]
  %v5211 = vld [vmem:[%s5210] ss:$2 sm:$0xf]
  %s5212 = scalar_lea.vmem %s5073, 225 [#allocation2]
  %v5213 = vld [vmem:[%s5212] ss:$2 sm:$0xf]
  %s5214 = scalar_lea.vmem %s5073, 257 [#allocation2]
  %v5215 = vld [vmem:[%s5214] ss:$2 sm:$0xf]
  %s5216 = scalar_lea.vmem %s3, 72
  %v5217 = vld [vmem:[%s5216] sm:$0xff]
  %v5226 = vcombine.low %v5201, %v5203
  %v5227 = vcombine.low %v5205, %v5207
  %v5228 = vcombine.low %v5209, %v5211
  %v5229 = vcombine.low %v5213, %v5215
  %v5230 = vsel %vm4009, %v5226, 0
  %v5232 = vsel %vm4009, %v5227, 0
  %v5234 = vsel %vm4009, %v5228, 0
  %v5236 = vsel %vm4009, %v5229, 0
  %5238 = vmatprep.subr.mxu0 0.0
  %5239 = vmatpush1.msra.mxu0 0.0
  %5240 = vmatprep.subr.mxu0 0.0
  %5241 = vmatpush1.msra.mxu0 0.0
  %5242 = vmatprep.subr.mxu0 0.0
  %5243 = vmatpush1.msra.mxu0 0.0
  %5244 = vmatprep.subr.mxu0 0.0
  %5245 = vmatpush1.msra.mxu0 0.0
  %5246 = vmatprep.subr.mxu0 0.0
  %5247 = vmatpush1.msra.mxu0 0.0
  %5248 = vmatprep.subr.mxu0 0.0
  %5249 = vmatpush1.msra.mxu0 0.0
  %5250 = vmatprep.subr.mxu0 0.0
  %5251 = vmatpush1.msra.mxu0 0.0
  %5252 = vmatprep.subr.mxu0 0.0
  %5253 = vmatpush1.msra.mxu0 0.0
  %5254 = vmatprep.subr.mxu0 0.0
  %5255 = vmatpush1.msra.mxu0 0.0
  %5256 = vmatprep.subr.mxu0 0.0
  %5257 = vmatpush1.msra.mxu0 0.0
  %5258 = vmatprep.subr.mxu0 0.0
  %5259 = vmatpush1.msra.mxu0 0.0
  %5260 = vmatprep.subr.mxu0 0.0
  %5261 = vmatpush1.msra.mxu0 0.0
  %5262 = vmatprep.subr.mxu0 0.0
  %5263 = vmatpush1.msra.mxu0 0.0
  %5264 = vmatprep.subr.mxu0 0.0
  %5265 = vmatpush1.msra.mxu0 0.0
  %5266 = vmatprep.subr.mxu0 0.0
  %5267 = vmatpush1.msra.mxu0 0.0
  %5268 = vmatprep.subr.mxu0 0.0
  %5269 = vmatpush1.msra.mxu0 %v5217
  %5270 = vmatprep.subr.mxu0 0.0
  %5271 = vmatpush2.msra.mxu0 0.0
  %5272 = vmatprep.subr.mxu0 0.0
  %5273 = vmatpush2.msra.mxu0 0.0
  %5274 = vmatprep.subr.mxu0 0.0
  %5275 = vmatpush2.msra.mxu0 0.0
  %5276 = vmatprep.subr.mxu0 0.0
  %5277 = vmatpush2.msra.mxu0 0.0
  %5278 = vmatprep.subr.mxu0 0.0
  %5279 = vmatpush2.msra.mxu0 0.0
  %5280 = vmatprep.subr.mxu0 0.0
  %5281 = vmatpush2.msra.mxu0 0.0
  %5282 = vmatprep.subr.mxu0 0.0
  %5283 = vmatpush2.msra.mxu0 0.0
  %5284 = vmatprep.subr.mxu0 0.0
  %5285 = vmatpush2.msra.mxu0 0.0
  %5286 = vmatprep.subr.mxu0 0.0
  %5287 = vmatpush2.msra.mxu0 0.0
  %5288 = vmatprep.subr.mxu0 0.0
  %5289 = vmatpush2.msra.mxu0 0.0
  %5290 = vmatprep.subr.mxu0 0.0
  %5291 = vmatpush2.msra.mxu0 0.0
  %5292 = vmatprep.subr.mxu0 0.0
  %5293 = vmatpush2.msra.mxu0 0.0
  %5294 = vmatprep.subr.mxu0 0.0
  %5295 = vmatpush2.msra.mxu0 0.0
  %5296 = vmatprep.subr.mxu0 0.0
  %5297 = vmatpush2.msra.mxu0 0.0
  %5298 = vmatprep.subr.mxu0 0.0
  %5299 = vmatpush2.msra.mxu0 0.0
  %5300 = vmatprep.subr.mxu0 0.0
  %5301 = vmatpush2.msra.mxu0 0.0
  %5302 = vmatprep.mubr.f32.mxu0 0.0
  %5303 = vmatmul.mubr.f32.gmra.mxu0 %v5230
  %v5304 = vpop.f32.mrf.mxu0
  %v5305 = vadd.f32 0.0, %v5304
  %v5306 = vpop.f32.mrf.mxu0
  %5307 = vmatprep.mubr.f32.mxu0 0.0
  %5308 = vmatmul.mubr.f32.gmra.mxu0 %v5232
  %v5309 = vpop.f32.mrf.mxu0
  %v5310 = vadd.f32 0.0, %v5309
  %v5311 = vpop.f32.mrf.mxu0
  %5312 = vmatprep.mubr.f32.mxu0 0.0
  %5313 = vmatmul.mubr.f32.gmra.mxu0 %v5234
  %v5314 = vpop.f32.mrf.mxu0
  %v5315 = vadd.f32 0.0, %v5314
  %v5316 = vpop.f32.mrf.mxu0
  %5317 = vmatprep.mubr.f32.mxu0 0.0
  %5318 = vmatmul.mubr.f32.gmra.mxu0 %v5236
  %v5319 = vpop.f32.mrf.mxu0
  %v5320 = vadd.f32 0.0, %v5319
  %v5321 = vpop.f32.mrf.mxu0
  %5322 = vdwg.mxu0
  %v5323 = vadd.f32 %v5196, %v5305
  %v5324 = vadd.f32 %v5197, %v5310
  %v5325 = vadd.f32 %v5198, %v5315
  %v5326 = vadd.f32 %v5199, %v5320
  %s5327 = scalar_lea.vmem %s5073, 2 [#allocation2]
  %v5328 = vld [vmem:[%s5327] ss:$2 sm:$0xf]
  %s5329 = scalar_lea.vmem %s5073, 34 [#allocation2]
  %v5330 = vld [vmem:[%s5329] ss:$2 sm:$0xf]
  %s5331 = scalar_lea.vmem %s5073, 66 [#allocation2]
  %v5332 = vld [vmem:[%s5331] ss:$2 sm:$0xf]
  %s5333 = scalar_lea.vmem %s5073, 98 [#allocation2]
  %v5334 = vld [vmem:[%s5333] ss:$2 sm:$0xf]
  %s5335 = scalar_lea.vmem %s5073, 162 [#allocation2]
  %v5336 = vld [vmem:[%s5335] ss:$2 sm:$0xf]
  %s5337 = scalar_lea.vmem %s5073, 194 [#allocation2]
  %v5338 = vld [vmem:[%s5337] ss:$2 sm:$0xf]
  %s5339 = scalar_lea.vmem %s5073, 226 [#allocation2]
  %v5340 = vld [vmem:[%s5339] ss:$2 sm:$0xf]
  %s5341 = scalar_lea.vmem %s5073, 258 [#allocation2]
  %v5342 = vld [vmem:[%s5341] ss:$2 sm:$0xf]
  %s5343 = scalar_lea.vmem %s3, 80
  %v5344 = vld [vmem:[%s5343] sm:$0xff]
  %v5353 = vcombine.low %v5328, %v5330
  %v5354 = vcombine.low %v5332, %v5334
  %v5355 = vcombine.low %v5336, %v5338
  %v5356 = vcombine.low %v5340, %v5342
  %v5357 = vsel %vm4009, %v5353, 0
  %v5359 = vsel %vm4009, %v5354, 0
  %v5361 = vsel %vm4009, %v5355, 0
  %v5363 = vsel %vm4009, %v5356, 0
  %5365 = vmatprep.subr.mxu0 0.0
  %5366 = vmatpush1.msra.mxu0 0.0
  %5367 = vmatprep.subr.mxu0 0.0
  %5368 = vmatpush1.msra.mxu0 0.0
  %5369 = vmatprep.subr.mxu0 0.0
  %5370 = vmatpush1.msra.mxu0 0.0
  %5371 = vmatprep.subr.mxu0 0.0
  %5372 = vmatpush1.msra.mxu0 0.0
  %5373 = vmatprep.subr.mxu0 0.0
  %5374 = vmatpush1.msra.mxu0 0.0
  %5375 = vmatprep.subr.mxu0 0.0
  %5376 = vmatpush1.msra.mxu0 0.0
  %5377 = vmatprep.subr.mxu0 0.0
  %5378 = vmatpush1.msra.mxu0 0.0
  %5379 = vmatprep.subr.mxu0 0.0
  %5380 = vmatpush1.msra.mxu0 0.0
  %5381 = vmatprep.subr.mxu0 0.0
  %5382 = vmatpush1.msra.mxu0 0.0
  %5383 = vmatprep.subr.mxu0 0.0
  %5384 = vmatpush1.msra.mxu0 0.0
  %5385 = vmatprep.subr.mxu0 0.0
  %5386 = vmatpush1.msra.mxu0 0.0
  %5387 = vmatprep.subr.mxu0 0.0
  %5388 = vmatpush1.msra.mxu0 0.0
  %5389 = vmatprep.subr.mxu0 0.0
  %5390 = vmatpush1.msra.mxu0 0.0
  %5391 = vmatprep.subr.mxu0 0.0
  %5392 = vmatpush1.msra.mxu0 0.0
  %5393 = vmatprep.subr.mxu0 0.0
  %5394 = vmatpush1.msra.mxu0 0.0
  %5395 = vmatprep.subr.mxu0 0.0
  %5396 = vmatpush1.msra.mxu0 %v5344
  %5397 = vmatprep.subr.mxu0 0.0
  %5398 = vmatpush2.msra.mxu0 0.0
  %5399 = vmatprep.subr.mxu0 0.0
  %5400 = vmatpush2.msra.mxu0 0.0
  %5401 = vmatprep.subr.mxu0 0.0
  %5402 = vmatpush2.msra.mxu0 0.0
  %5403 = vmatprep.subr.mxu0 0.0
  %5404 = vmatpush2.msra.mxu0 0.0
  %5405 = vmatprep.subr.mxu0 0.0
  %5406 = vmatpush2.msra.mxu0 0.0
  %5407 = vmatprep.subr.mxu0 0.0
  %5408 = vmatpush2.msra.mxu0 0.0
  %5409 = vmatprep.subr.mxu0 0.0
  %5410 = vmatpush2.msra.mxu0 0.0
  %5411 = vmatprep.subr.mxu0 0.0
  %5412 = vmatpush2.msra.mxu0 0.0
  %5413 = vmatprep.subr.mxu0 0.0
  %5414 = vmatpush2.msra.mxu0 0.0
  %5415 = vmatprep.subr.mxu0 0.0
  %5416 = vmatpush2.msra.mxu0 0.0
  %5417 = vmatprep.subr.mxu0 0.0
  %5418 = vmatpush2.msra.mxu0 0.0
  %5419 = vmatprep.subr.mxu0 0.0
  %5420 = vmatpush2.msra.mxu0 0.0
  %5421 = vmatprep.subr.mxu0 0.0
  %5422 = vmatpush2.msra.mxu0 0.0
  %5423 = vmatprep.subr.mxu0 0.0
  %5424 = vmatpush2.msra.mxu0 0.0
  %5425 = vmatprep.subr.mxu0 0.0
  %5426 = vmatpush2.msra.mxu0 0.0
  %5427 = vmatprep.subr.mxu0 0.0
  %5428 = vmatpush2.msra.mxu0 0.0
  %5429 = vmatprep.mubr.f32.mxu0 0.0
  %5430 = vmatmul.mubr.f32.gmra.mxu0 %v5357
  %v5431 = vpop.f32.mrf.mxu0
  %v5432 = vadd.f32 0.0, %v5431
  %v5433 = vpop.f32.mrf.mxu0
  %5434 = vmatprep.mubr.f32.mxu0 0.0
  %5435 = vmatmul.mubr.f32.gmra.mxu0 %v5359
  %v5436 = vpop.f32.mrf.mxu0
  %v5437 = vadd.f32 0.0, %v5436
  %v5438 = vpop.f32.mrf.mxu0
  %5439 = vmatprep.mubr.f32.mxu0 0.0
  %5440 = vmatmul.mubr.f32.gmra.mxu0 %v5361
  %v5441 = vpop.f32.mrf.mxu0
  %v5442 = vadd.f32 0.0, %v5441
  %v5443 = vpop.f32.mrf.mxu0
  %5444 = vmatprep.mubr.f32.mxu0 0.0
  %5445 = vmatmul.mubr.f32.gmra.mxu0 %v5363
  %v5446 = vpop.f32.mrf.mxu0
  %v5447 = vadd.f32 0.0, %v5446
  %v5448 = vpop.f32.mrf.mxu0
  %5449 = vdwg.mxu0
  %v5450 = vadd.f32 %v5323, %v5432
  %v5451 = vadd.f32 %v5324, %v5437
  %v5452 = vadd.f32 %v5325, %v5442
  %v5453 = vadd.f32 %v5326, %v5447
  %s5454 = scalar_lea.vmem %s5073, 3 [#allocation2]
  %v5455 = vld [vmem:[%s5454] ss:$2 sm:$0xf]
  %s5456 = scalar_lea.vmem %s5073, 35 [#allocation2]
  %v5457 = vld [vmem:[%s5456] ss:$2 sm:$0xf]
  %s5458 = scalar_lea.vmem %s5073, 67 [#allocation2]
  %v5459 = vld [vmem:[%s5458] ss:$2 sm:$0xf]
  %s5460 = scalar_lea.vmem %s5073, 99 [#allocation2]
  %v5461 = vld [vmem:[%s5460] ss:$2 sm:$0xf]
  %s5462 = scalar_lea.vmem %s5073, 163 [#allocation2]
  %v5463 = vld [vmem:[%s5462] ss:$2 sm:$0xf]
  %s5464 = scalar_lea.vmem %s5073, 195 [#allocation2]
  %v5465 = vld [vmem:[%s5464] ss:$2 sm:$0xf]
  %s5466 = scalar_lea.vmem %s5073, 227 [#allocation2]
  %v5467 = vld [vmem:[%s5466] ss:$2 sm:$0xf]
  %s5468 = scalar_lea.vmem %s5073, 259 [#allocation2]
  %v5469 = vld [vmem:[%s5468] ss:$2 sm:$0xf]
  %s5470 = scalar_lea.vmem %s3, 88
  %v5471 = vld [vmem:[%s5470] sm:$0xff]
  %v5480 = vcombine.low %v5455, %v5457
  %v5481 = vcombine.low %v5459, %v5461
  %v5482 = vcombine.low %v5463, %v5465
  %v5483 = vcombine.low %v5467, %v5469
  %v5484 = vsel %vm4009, %v5480, 0
  %v5486 = vsel %vm4009, %v5481, 0
  %v5488 = vsel %vm4009, %v5482, 0
  %v5490 = vsel %vm4009, %v5483, 0
  %5492 = vmatprep.subr.mxu0 0.0
  %5493 = vmatpush1.msra.mxu0 0.0
  %5494 = vmatprep.subr.mxu0 0.0
  %5495 = vmatpush1.msra.mxu0 0.0
  %5496 = vmatprep.subr.mxu0 0.0
  %5497 = vmatpush1.msra.mxu0 0.0
  %5498 = vmatprep.subr.mxu0 0.0
  %5499 = vmatpush1.msra.mxu0 0.0
  %5500 = vmatprep.subr.mxu0 0.0
  %5501 = vmatpush1.msra.mxu0 0.0
  %5502 = vmatprep.subr.mxu0 0.0
  %5503 = vmatpush1.msra.mxu0 0.0
  %5504 = vmatprep.subr.mxu0 0.0
  %5505 = vmatpush1.msra.mxu0 0.0
  %5506 = vmatprep.subr.mxu0 0.0
  %5507 = vmatpush1.msra.mxu0 0.0
  %5508 = vmatprep.subr.mxu0 0.0
  %5509 = vmatpush1.msra.mxu0 0.0
  %5510 = vmatprep.subr.mxu0 0.0
  %5511 = vmatpush1.msra.mxu0 0.0
  %5512 = vmatprep.subr.mxu0 0.0
  %5513 = vmatpush1.msra.mxu0 0.0
  %5514 = vmatprep.subr.mxu0 0.0
  %5515 = vmatpush1.msra.mxu0 0.0
  %5516 = vmatprep.subr.mxu0 0.0
  %5517 = vmatpush1.msra.mxu0 0.0
  %5518 = vmatprep.subr.mxu0 0.0
  %5519 = vmatpush1.msra.mxu0 0.0
  %5520 = vmatprep.subr.mxu0 0.0
  %5521 = vmatpush1.msra.mxu0 0.0
  %5522 = vmatprep.subr.mxu0 0.0
  %5523 = vmatpush1.msra.mxu0 %v5471
  %5524 = vmatprep.subr.mxu0 0.0
  %5525 = vmatpush2.msra.mxu0 0.0
  %5526 = vmatprep.subr.mxu0 0.0
  %5527 = vmatpush2.msra.mxu0 0.0
  %5528 = vmatprep.subr.mxu0 0.0
  %5529 = vmatpush2.msra.mxu0 0.0
  %5530 = vmatprep.subr.mxu0 0.0
  %5531 = vmatpush2.msra.mxu0 0.0
  %5532 = vmatprep.subr.mxu0 0.0
  %5533 = vmatpush2.msra.mxu0 0.0
  %5534 = vmatprep.subr.mxu0 0.0
  %5535 = vmatpush2.msra.mxu0 0.0
  %5536 = vmatprep.subr.mxu0 0.0
  %5537 = vmatpush2.msra.mxu0 0.0
  %5538 = vmatprep.subr.mxu0 0.0
  %5539 = vmatpush2.msra.mxu0 0.0
  %5540 = vmatprep.subr.mxu0 0.0
  %5541 = vmatpush2.msra.mxu0 0.0
  %5542 = vmatprep.subr.mxu0 0.0
  %5543 = vmatpush2.msra.mxu0 0.0
  %5544 = vmatprep.subr.mxu0 0.0
  %5545 = vmatpush2.msra.mxu0 0.0
  %5546 = vmatprep.subr.mxu0 0.0
  %5547 = vmatpush2.msra.mxu0 0.0
  %5548 = vmatprep.subr.mxu0 0.0
  %5549 = vmatpush2.msra.mxu0 0.0
  %5550 = vmatprep.subr.mxu0 0.0
  %5551 = vmatpush2.msra.mxu0 0.0
  %5552 = vmatprep.subr.mxu0 0.0
  %5553 = vmatpush2.msra.mxu0 0.0
  %5554 = vmatprep.subr.mxu0 0.0
  %5555 = vmatpush2.msra.mxu0 0.0
  %5556 = vmatprep.mubr.f32.mxu0 0.0
  %5557 = vmatmul.mubr.f32.gmra.mxu0 %v5484
  %v5558 = vpop.f32.mrf.mxu0
  %v5559 = vadd.f32 0.0, %v5558
  %v5560 = vpop.f32.mrf.mxu0
  %5561 = vmatprep.mubr.f32.mxu0 0.0
  %5562 = vmatmul.mubr.f32.gmra.mxu0 %v5486
  %v5563 = vpop.f32.mrf.mxu0
  %v5564 = vadd.f32 0.0, %v5563
  %v5565 = vpop.f32.mrf.mxu0
  %5566 = vmatprep.mubr.f32.mxu0 0.0
  %5567 = vmatmul.mubr.f32.gmra.mxu0 %v5488
  %v5568 = vpop.f32.mrf.mxu0
  %v5569 = vadd.f32 0.0, %v5568
  %v5570 = vpop.f32.mrf.mxu0
  %5571 = vmatprep.mubr.f32.mxu0 0.0
  %5572 = vmatmul.mubr.f32.gmra.mxu0 %v5490
  %v5573 = vpop.f32.mrf.mxu0
  %v5574 = vadd.f32 0.0, %v5573
  %v5575 = vpop.f32.mrf.mxu0
  %5576 = vdwg.mxu0
  %v5577 = vadd.f32 %v5450, %v5559
  %v5578 = vadd.f32 %v5451, %v5564
  %v5579 = vadd.f32 %v5452, %v5569
  %v5580 = vadd.f32 %v5453, %v5574
  %s5581 = scalar_lea.vmem [#allocation2], 48
  %v5582 = vld [vmem:[%s5581] ss:$2 sm:$0xf]
  %s5583 = scalar_lea.vmem %s5581, 32 [#allocation2]
  %v5584 = vld [vmem:[%s5583] ss:$2 sm:$0xf]
  %s5585 = scalar_lea.vmem %s5581, 64 [#allocation2]
  %v5586 = vld [vmem:[%s5585] ss:$2 sm:$0xf]
  %s5587 = scalar_lea.vmem %s5581, 96 [#allocation2]
  %v5588 = vld [vmem:[%s5587] ss:$2 sm:$0xf]
  %s5589 = scalar_lea.vmem %s5581, 160 [#allocation2]
  %v5590 = vld [vmem:[%s5589] ss:$2 sm:$0xf]
  %s5591 = scalar_lea.vmem %s5581, 192 [#allocation2]
  %v5592 = vld [vmem:[%s5591] ss:$2 sm:$0xf]
  %s5593 = scalar_lea.vmem %s5581, 224 [#allocation2]
  %v5594 = vld [vmem:[%s5593] ss:$2 sm:$0xf]
  %s5595 = scalar_lea.vmem %s5581, 256 [#allocation2]
  %v5596 = vld [vmem:[%s5595] ss:$2 sm:$0xf]
  %s5597 = scalar_lea.vmem %s3, 96
  %v5598 = vld [vmem:[%s5597] sm:$0xff]
  %v5607 = vcombine.low %v5582, %v5584
  %v5608 = vcombine.low %v5586, %v5588
  %v5609 = vcombine.low %v5590, %v5592
  %v5610 = vcombine.low %v5594, %v5596
  %v5611 = vsel %vm4009, %v5607, 0
  %v5613 = vsel %vm4009, %v5608, 0
  %v5615 = vsel %vm4009, %v5609, 0
  %v5617 = vsel %vm4009, %v5610, 0
  %5619 = vmatprep.subr.mxu0 0.0
  %5620 = vmatpush1.msra.mxu0 0.0
  %5621 = vmatprep.subr.mxu0 0.0
  %5622 = vmatpush1.msra.mxu0 0.0
  %5623 = vmatprep.subr.mxu0 0.0
  %5624 = vmatpush1.msra.mxu0 0.0
  %5625 = vmatprep.subr.mxu0 0.0
  %5626 = vmatpush1.msra.mxu0 0.0
  %5627 = vmatprep.subr.mxu0 0.0
  %5628 = vmatpush1.msra.mxu0 0.0
  %5629 = vmatprep.subr.mxu0 0.0
  %5630 = vmatpush1.msra.mxu0 0.0
  %5631 = vmatprep.subr.mxu0 0.0
  %5632 = vmatpush1.msra.mxu0 0.0
  %5633 = vmatprep.subr.mxu0 0.0
  %5634 = vmatpush1.msra.mxu0 0.0
  %5635 = vmatprep.subr.mxu0 0.0
  %5636 = vmatpush1.msra.mxu0 0.0
  %5637 = vmatprep.subr.mxu0 0.0
  %5638 = vmatpush1.msra.mxu0 0.0
  %5639 = vmatprep.subr.mxu0 0.0
  %5640 = vmatpush1.msra.mxu0 0.0
  %5641 = vmatprep.subr.mxu0 0.0
  %5642 = vmatpush1.msra.mxu0 0.0
  %5643 = vmatprep.subr.mxu0 0.0
  %5644 = vmatpush1.msra.mxu0 0.0
  %5645 = vmatprep.subr.mxu0 0.0
  %5646 = vmatpush1.msra.mxu0 0.0
  %5647 = vmatprep.subr.mxu0 0.0
  %5648 = vmatpush1.msra.mxu0 0.0
  %5649 = vmatprep.subr.mxu0 0.0
  %5650 = vmatpush1.msra.mxu0 %v5598
  %5651 = vmatprep.subr.mxu0 0.0
  %5652 = vmatpush2.msra.mxu0 0.0
  %5653 = vmatprep.subr.mxu0 0.0
  %5654 = vmatpush2.msra.mxu0 0.0
  %5655 = vmatprep.subr.mxu0 0.0
  %5656 = vmatpush2.msra.mxu0 0.0
  %5657 = vmatprep.subr.mxu0 0.0
  %5658 = vmatpush2.msra.mxu0 0.0
  %5659 = vmatprep.subr.mxu0 0.0
  %5660 = vmatpush2.msra.mxu0 0.0
  %5661 = vmatprep.subr.mxu0 0.0
  %5662 = vmatpush2.msra.mxu0 0.0
  %5663 = vmatprep.subr.mxu0 0.0
  %5664 = vmatpush2.msra.mxu0 0.0
  %5665 = vmatprep.subr.mxu0 0.0
  %5666 = vmatpush2.msra.mxu0 0.0
  %5667 = vmatprep.subr.mxu0 0.0
  %5668 = vmatpush2.msra.mxu0 0.0
  %5669 = vmatprep.subr.mxu0 0.0
  %5670 = vmatpush2.msra.mxu0 0.0
  %5671 = vmatprep.subr.mxu0 0.0
  %5672 = vmatpush2.msra.mxu0 0.0
  %5673 = vmatprep.subr.mxu0 0.0
  %5674 = vmatpush2.msra.mxu0 0.0
  %5675 = vmatprep.subr.mxu0 0.0
  %5676 = vmatpush2.msra.mxu0 0.0
  %5677 = vmatprep.subr.mxu0 0.0
  %5678 = vmatpush2.msra.mxu0 0.0
  %5679 = vmatprep.subr.mxu0 0.0
  %5680 = vmatpush2.msra.mxu0 0.0
  %5681 = vmatprep.subr.mxu0 0.0
  %5682 = vmatpush2.msra.mxu0 0.0
  %5683 = vmatprep.mubr.f32.mxu0 0.0
  %5684 = vmatmul.mubr.f32.gmra.mxu0 %v5611
  %v5685 = vpop.f32.mrf.mxu0
  %v5686 = vadd.f32 0.0, %v5685
  %v5687 = vpop.f32.mrf.mxu0
  %5688 = vmatprep.mubr.f32.mxu0 0.0
  %5689 = vmatmul.mubr.f32.gmra.mxu0 %v5613
  %v5690 = vpop.f32.mrf.mxu0
  %v5691 = vadd.f32 0.0, %v5690
  %v5692 = vpop.f32.mrf.mxu0
  %5693 = vmatprep.mubr.f32.mxu0 0.0
  %5694 = vmatmul.mubr.f32.gmra.mxu0 %v5615
  %v5695 = vpop.f32.mrf.mxu0
  %v5696 = vadd.f32 0.0, %v5695
  %v5697 = vpop.f32.mrf.mxu0
  %5698 = vmatprep.mubr.f32.mxu0 0.0
  %5699 = vmatmul.mubr.f32.gmra.mxu0 %v5617
  %v5700 = vpop.f32.mrf.mxu0
  %v5701 = vadd.f32 0.0, %v5700
  %v5702 = vpop.f32.mrf.mxu0
  %5703 = vdwg.mxu0
  %v5704 = vadd.f32 %v5577, %v5686
  %v5705 = vadd.f32 %v5578, %v5691
  %v5706 = vadd.f32 %v5579, %v5696
  %v5707 = vadd.f32 %v5580, %v5701
  %s5708 = scalar_lea.vmem %s5581, 1 [#allocation2]
  %v5709 = vld [vmem:[%s5708] ss:$2 sm:$0xf]
  %s5710 = scalar_lea.vmem %s5581, 33 [#allocation2]
  %v5711 = vld [vmem:[%s5710] ss:$2 sm:$0xf]
  %s5712 = scalar_lea.vmem %s5581, 65 [#allocation2]
  %v5713 = vld [vmem:[%s5712] ss:$2 sm:$0xf]
  %s5714 = scalar_lea.vmem %s5581, 97 [#allocation2]
  %v5715 = vld [vmem:[%s5714] ss:$2 sm:$0xf]
  %s5716 = scalar_lea.vmem %s5581, 161 [#allocation2]
  %v5717 = vld [vmem:[%s5716] ss:$2 sm:$0xf]
  %s5718 = scalar_lea.vmem %s5581, 193 [#allocation2]
  %v5719 = vld [vmem:[%s5718] ss:$2 sm:$0xf]
  %s5720 = scalar_lea.vmem %s5581, 225 [#allocation2]
  %v5721 = vld [vmem:[%s5720] ss:$2 sm:$0xf]
  %s5722 = scalar_lea.vmem %s5581, 257 [#allocation2]
  %v5723 = vld [vmem:[%s5722] ss:$2 sm:$0xf]
  %s5724 = scalar_lea.vmem %s3, 104
  %v5725 = vld [vmem:[%s5724] sm:$0xff]
  %v5734 = vcombine.low %v5709, %v5711
  %v5735 = vcombine.low %v5713, %v5715
  %v5736 = vcombine.low %v5717, %v5719
  %v5737 = vcombine.low %v5721, %v5723
  %v5738 = vsel %vm4009, %v5734, 0
  %v5740 = vsel %vm4009, %v5735, 0
  %v5742 = vsel %vm4009, %v5736, 0
  %v5744 = vsel %vm4009, %v5737, 0
  %5746 = vmatprep.subr.mxu0 0.0
  %5747 = vmatpush1.msra.mxu0 0.0
  %5748 = vmatprep.subr.mxu0 0.0
  %5749 = vmatpush1.msra.mxu0 0.0
  %5750 = vmatprep.subr.mxu0 0.0
  %5751 = vmatpush1.msra.mxu0 0.0
  %5752 = vmatprep.subr.mxu0 0.0
  %5753 = vmatpush1.msra.mxu0 0.0
  %5754 = vmatprep.subr.mxu0 0.0
  %5755 = vmatpush1.msra.mxu0 0.0
  %5756 = vmatprep.subr.mxu0 0.0
  %5757 = vmatpush1.msra.mxu0 0.0
  %5758 = vmatprep.subr.mxu0 0.0
  %5759 = vmatpush1.msra.mxu0 0.0
  %5760 = vmatprep.subr.mxu0 0.0
  %5761 = vmatpush1.msra.mxu0 0.0
  %5762 = vmatprep.subr.mxu0 0.0
  %5763 = vmatpush1.msra.mxu0 0.0
  %5764 = vmatprep.subr.mxu0 0.0
  %5765 = vmatpush1.msra.mxu0 0.0
  %5766 = vmatprep.subr.mxu0 0.0
  %5767 = vmatpush1.msra.mxu0 0.0
  %5768 = vmatprep.subr.mxu0 0.0
  %5769 = vmatpush1.msra.mxu0 0.0
  %5770 = vmatprep.subr.mxu0 0.0
  %5771 = vmatpush1.msra.mxu0 0.0
  %5772 = vmatprep.subr.mxu0 0.0
  %5773 = vmatpush1.msra.mxu0 0.0
  %5774 = vmatprep.subr.mxu0 0.0
  %5775 = vmatpush1.msra.mxu0 0.0
  %5776 = vmatprep.subr.mxu0 0.0
  %5777 = vmatpush1.msra.mxu0 %v5725
  %5778 = vmatprep.subr.mxu0 0.0
  %5779 = vmatpush2.msra.mxu0 0.0
  %5780 = vmatprep.subr.mxu0 0.0
  %5781 = vmatpush2.msra.mxu0 0.0
  %5782 = vmatprep.subr.mxu0 0.0
  %5783 = vmatpush2.msra.mxu0 0.0
  %5784 = vmatprep.subr.mxu0 0.0
  %5785 = vmatpush2.msra.mxu0 0.0
  %5786 = vmatprep.subr.mxu0 0.0
  %5787 = vmatpush2.msra.mxu0 0.0
  %5788 = vmatprep.subr.mxu0 0.0
  %5789 = vmatpush2.msra.mxu0 0.0
  %5790 = vmatprep.subr.mxu0 0.0
  %5791 = vmatpush2.msra.mxu0 0.0
  %5792 = vmatprep.subr.mxu0 0.0
  %5793 = vmatpush2.msra.mxu0 0.0
  %5794 = vmatprep.subr.mxu0 0.0
  %5795 = vmatpush2.msra.mxu0 0.0
  %5796 = vmatprep.subr.mxu0 0.0
  %5797 = vmatpush2.msra.mxu0 0.0
  %5798 = vmatprep.subr.mxu0 0.0
  %5799 = vmatpush2.msra.mxu0 0.0
  %5800 = vmatprep.subr.mxu0 0.0
  %5801 = vmatpush2.msra.mxu0 0.0
  %5802 = vmatprep.subr.mxu0 0.0
  %5803 = vmatpush2.msra.mxu0 0.0
  %5804 = vmatprep.subr.mxu0 0.0
  %5805 = vmatpush2.msra.mxu0 0.0
  %5806 = vmatprep.subr.mxu0 0.0
  %5807 = vmatpush2.msra.mxu0 0.0
  %5808 = vmatprep.subr.mxu0 0.0
  %5809 = vmatpush2.msra.mxu0 0.0
  %5810 = vmatprep.mubr.f32.mxu0 0.0
  %5811 = vmatmul.mubr.f32.gmra.mxu0 %v5738
  %v5812 = vpop.f32.mrf.mxu0
  %v5813 = vadd.f32 0.0, %v5812
  %v5814 = vpop.f32.mrf.mxu0
  %5815 = vmatprep.mubr.f32.mxu0 0.0
  %5816 = vmatmul.mubr.f32.gmra.mxu0 %v5740
  %v5817 = vpop.f32.mrf.mxu0
  %v5818 = vadd.f32 0.0, %v5817
  %v5819 = vpop.f32.mrf.mxu0
  %5820 = vmatprep.mubr.f32.mxu0 0.0
  %5821 = vmatmul.mubr.f32.gmra.mxu0 %v5742
  %v5822 = vpop.f32.mrf.mxu0
  %v5823 = vadd.f32 0.0, %v5822
  %v5824 = vpop.f32.mrf.mxu0
  %5825 = vmatprep.mubr.f32.mxu0 0.0
  %5826 = vmatmul.mubr.f32.gmra.mxu0 %v5744
  %v5827 = vpop.f32.mrf.mxu0
  %v5828 = vadd.f32 0.0, %v5827
  %v5829 = vpop.f32.mrf.mxu0
  %5830 = vdwg.mxu0
  %v5831 = vadd.f32 %v5704, %v5813
  %v5832 = vadd.f32 %v5705, %v5818
  %v5833 = vadd.f32 %v5706, %v5823
  %v5834 = vadd.f32 %v5707, %v5828
  %s5835 = scalar_lea.vmem %s5581, 2 [#allocation2]
  %v5836 = vld [vmem:[%s5835] ss:$2 sm:$0xf]
  %s5837 = scalar_lea.vmem %s5581, 34 [#allocation2]
  %v5838 = vld [vmem:[%s5837] ss:$2 sm:$0xf]
  %s5839 = scalar_lea.vmem %s5581, 66 [#allocation2]
  %v5840 = vld [vmem:[%s5839] ss:$2 sm:$0xf]
  %s5841 = scalar_lea.vmem %s5581, 98 [#allocation2]
  %v5842 = vld [vmem:[%s5841] ss:$2 sm:$0xf]
  %s5843 = scalar_lea.vmem %s5581, 162 [#allocation2]
  %v5844 = vld [vmem:[%s5843] ss:$2 sm:$0xf]
  %s5845 = scalar_lea.vmem %s5581, 194 [#allocation2]
  %v5846 = vld [vmem:[%s5845] ss:$2 sm:$0xf]
  %s5847 = scalar_lea.vmem %s5581, 226 [#allocation2]
  %v5848 = vld [vmem:[%s5847] ss:$2 sm:$0xf]
  %s5849 = scalar_lea.vmem %s5581, 258 [#allocation2]
  %v5850 = vld [vmem:[%s5849] ss:$2 sm:$0xf]
  %s5851 = scalar_lea.vmem %s3, 112
  %v5852 = vld [vmem:[%s5851] sm:$0xff]
  %v5861 = vcombine.low %v5836, %v5838
  %v5862 = vcombine.low %v5840, %v5842
  %v5863 = vcombine.low %v5844, %v5846
  %v5864 = vcombine.low %v5848, %v5850
  %v5865 = vsel %vm4009, %v5861, 0
  %v5867 = vsel %vm4009, %v5862, 0
  %v5869 = vsel %vm4009, %v5863, 0
  %v5871 = vsel %vm4009, %v5864, 0
  %5873 = vmatprep.subr.mxu0 0.0
  %5874 = vmatpush1.msra.mxu0 0.0
  %5875 = vmatprep.subr.mxu0 0.0
  %5876 = vmatpush1.msra.mxu0 0.0
  %5877 = vmatprep.subr.mxu0 0.0
  %5878 = vmatpush1.msra.mxu0 0.0
  %5879 = vmatprep.subr.mxu0 0.0
  %5880 = vmatpush1.msra.mxu0 0.0
  %5881 = vmatprep.subr.mxu0 0.0
  %5882 = vmatpush1.msra.mxu0 0.0
  %5883 = vmatprep.subr.mxu0 0.0
  %5884 = vmatpush1.msra.mxu0 0.0
  %5885 = vmatprep.subr.mxu0 0.0
  %5886 = vmatpush1.msra.mxu0 0.0
  %5887 = vmatprep.subr.mxu0 0.0
  %5888 = vmatpush1.msra.mxu0 0.0
  %5889 = vmatprep.subr.mxu0 0.0
  %5890 = vmatpush1.msra.mxu0 0.0
  %5891 = vmatprep.subr.mxu0 0.0
  %5892 = vmatpush1.msra.mxu0 0.0
  %5893 = vmatprep.subr.mxu0 0.0
  %5894 = vmatpush1.msra.mxu0 0.0
  %5895 = vmatprep.subr.mxu0 0.0
  %5896 = vmatpush1.msra.mxu0 0.0
  %5897 = vmatprep.subr.mxu0 0.0
  %5898 = vmatpush1.msra.mxu0 0.0
  %5899 = vmatprep.subr.mxu0 0.0
  %5900 = vmatpush1.msra.mxu0 0.0
  %5901 = vmatprep.subr.mxu0 0.0
  %5902 = vmatpush1.msra.mxu0 0.0
  %5903 = vmatprep.subr.mxu0 0.0
  %5904 = vmatpush1.msra.mxu0 %v5852
  %5905 = vmatprep.subr.mxu0 0.0
  %5906 = vmatpush2.msra.mxu0 0.0
  %5907 = vmatprep.subr.mxu0 0.0
  %5908 = vmatpush2.msra.mxu0 0.0
  %5909 = vmatprep.subr.mxu0 0.0
  %5910 = vmatpush2.msra.mxu0 0.0
  %5911 = vmatprep.subr.mxu0 0.0
  %5912 = vmatpush2.msra.mxu0 0.0
  %5913 = vmatprep.subr.mxu0 0.0
  %5914 = vmatpush2.msra.mxu0 0.0
  %5915 = vmatprep.subr.mxu0 0.0
  %5916 = vmatpush2.msra.mxu0 0.0
  %5917 = vmatprep.subr.mxu0 0.0
  %5918 = vmatpush2.msra.mxu0 0.0
  %5919 = vmatprep.subr.mxu0 0.0
  %5920 = vmatpush2.msra.mxu0 0.0
  %5921 = vmatprep.subr.mxu0 0.0
  %5922 = vmatpush2.msra.mxu0 0.0
  %5923 = vmatprep.subr.mxu0 0.0
  %5924 = vmatpush2.msra.mxu0 0.0
  %5925 = vmatprep.subr.mxu0 0.0
  %5926 = vmatpush2.msra.mxu0 0.0
  %5927 = vmatprep.subr.mxu0 0.0
  %5928 = vmatpush2.msra.mxu0 0.0
  %5929 = vmatprep.subr.mxu0 0.0
  %5930 = vmatpush2.msra.mxu0 0.0
  %5931 = vmatprep.subr.mxu0 0.0
  %5932 = vmatpush2.msra.mxu0 0.0
  %5933 = vmatprep.subr.mxu0 0.0
  %5934 = vmatpush2.msra.mxu0 0.0
  %5935 = vmatprep.subr.mxu0 0.0
  %5936 = vmatpush2.msra.mxu0 0.0
  %5937 = vmatprep.mubr.f32.mxu0 0.0
  %5938 = vmatmul.mubr.f32.gmra.mxu0 %v5865
  %v5939 = vpop.f32.mrf.mxu0
  %v5940 = vadd.f32 0.0, %v5939
  %v5941 = vpop.f32.mrf.mxu0
  %5942 = vmatprep.mubr.f32.mxu0 0.0
  %5943 = vmatmul.mubr.f32.gmra.mxu0 %v5867
  %v5944 = vpop.f32.mrf.mxu0
  %v5945 = vadd.f32 0.0, %v5944
  %v5946 = vpop.f32.mrf.mxu0
  %5947 = vmatprep.mubr.f32.mxu0 0.0
  %5948 = vmatmul.mubr.f32.gmra.mxu0 %v5869
  %v5949 = vpop.f32.mrf.mxu0
  %v5950 = vadd.f32 0.0, %v5949
  %v5951 = vpop.f32.mrf.mxu0
  %5952 = vmatprep.mubr.f32.mxu0 0.0
  %5953 = vmatmul.mubr.f32.gmra.mxu0 %v5871
  %v5954 = vpop.f32.mrf.mxu0
  %v5955 = vadd.f32 0.0, %v5954
  %v5956 = vpop.f32.mrf.mxu0
  %5957 = vdwg.mxu0
  %v5958 = vadd.f32 %v5831, %v5940
  %v5959 = vadd.f32 %v5832, %v5945
  %v5960 = vadd.f32 %v5833, %v5950
  %v5961 = vadd.f32 %v5834, %v5955
  %s5962 = scalar_lea.vmem %s5581, 3 [#allocation2]
  %v5963 = vld [vmem:[%s5962] ss:$2 sm:$0xf]
  %s5964 = scalar_lea.vmem %s5581, 35 [#allocation2]
  %v5965 = vld [vmem:[%s5964] ss:$2 sm:$0xf]
  %s5966 = scalar_lea.vmem %s5581, 67 [#allocation2]
  %v5967 = vld [vmem:[%s5966] ss:$2 sm:$0xf]
  %s5968 = scalar_lea.vmem %s5581, 99 [#allocation2]
  %v5969 = vld [vmem:[%s5968] ss:$2 sm:$0xf]
  %s5970 = scalar_lea.vmem %s5581, 163 [#allocation2]
  %v5971 = vld [vmem:[%s5970] ss:$2 sm:$0xf]
  %s5972 = scalar_lea.vmem %s5581, 195 [#allocation2]
  %v5973 = vld [vmem:[%s5972] ss:$2 sm:$0xf]
  %s5974 = scalar_lea.vmem %s5581, 227 [#allocation2]
  %v5975 = vld [vmem:[%s5974] ss:$2 sm:$0xf]
  %s5976 = scalar_lea.vmem %s5581, 259 [#allocation2]
  %v5977 = vld [vmem:[%s5976] ss:$2 sm:$0xf]
  %s5978 = scalar_lea.vmem %s3, 120
  %v5979 = vld [vmem:[%s5978] sm:$0xff]
  %v5988 = vcombine.low %v5963, %v5965
  %v5989 = vcombine.low %v5967, %v5969
  %v5990 = vcombine.low %v5971, %v5973
  %v5991 = vcombine.low %v5975, %v5977
  %v5992 = vsel %vm4009, %v5988, 0
  %v5994 = vsel %vm4009, %v5989, 0
  %v5996 = vsel %vm4009, %v5990, 0
  %v5998 = vsel %vm4009, %v5991, 0
  %6000 = vmatprep.subr.mxu0 0.0
  %6001 = vmatpush1.msra.mxu0 0.0
  %6002 = vmatprep.subr.mxu0 0.0
  %6003 = vmatpush1.msra.mxu0 0.0
  %6004 = vmatprep.subr.mxu0 0.0
  %6005 = vmatpush1.msra.mxu0 0.0
  %6006 = vmatprep.subr.mxu0 0.0
  %6007 = vmatpush1.msra.mxu0 0.0
  %6008 = vmatprep.subr.mxu0 0.0
  %6009 = vmatpush1.msra.mxu0 0.0
  %6010 = vmatprep.subr.mxu0 0.0
  %6011 = vmatpush1.msra.mxu0 0.0
  %6012 = vmatprep.subr.mxu0 0.0
  %6013 = vmatpush1.msra.mxu0 0.0
  %6014 = vmatprep.subr.mxu0 0.0
  %6015 = vmatpush1.msra.mxu0 0.0
  %6016 = vmatprep.subr.mxu0 0.0
  %6017 = vmatpush1.msra.mxu0 0.0
  %6018 = vmatprep.subr.mxu0 0.0
  %6019 = vmatpush1.msra.mxu0 0.0
  %6020 = vmatprep.subr.mxu0 0.0
  %6021 = vmatpush1.msra.mxu0 0.0
  %6022 = vmatprep.subr.mxu0 0.0
  %6023 = vmatpush1.msra.mxu0 0.0
  %6024 = vmatprep.subr.mxu0 0.0
  %6025 = vmatpush1.msra.mxu0 0.0
  %6026 = vmatprep.subr.mxu0 0.0
  %6027 = vmatpush1.msra.mxu0 0.0
  %6028 = vmatprep.subr.mxu0 0.0
  %6029 = vmatpush1.msra.mxu0 0.0
  %6030 = vmatprep.subr.mxu0 0.0
  %6031 = vmatpush1.msra.mxu0 %v5979
  %6032 = vmatprep.subr.mxu0 0.0
  %6033 = vmatpush2.msra.mxu0 0.0
  %6034 = vmatprep.subr.mxu0 0.0
  %6035 = vmatpush2.msra.mxu0 0.0
  %6036 = vmatprep.subr.mxu0 0.0
  %6037 = vmatpush2.msra.mxu0 0.0
  %6038 = vmatprep.subr.mxu0 0.0
  %6039 = vmatpush2.msra.mxu0 0.0
  %6040 = vmatprep.subr.mxu0 0.0
  %6041 = vmatpush2.msra.mxu0 0.0
  %6042 = vmatprep.subr.mxu0 0.0
  %6043 = vmatpush2.msra.mxu0 0.0
  %6044 = vmatprep.subr.mxu0 0.0
  %6045 = vmatpush2.msra.mxu0 0.0
  %6046 = vmatprep.subr.mxu0 0.0
  %6047 = vmatpush2.msra.mxu0 0.0
  %6048 = vmatprep.subr.mxu0 0.0
  %6049 = vmatpush2.msra.mxu0 0.0
  %6050 = vmatprep.subr.mxu0 0.0
  %6051 = vmatpush2.msra.mxu0 0.0
  %6052 = vmatprep.subr.mxu0 0.0
  %6053 = vmatpush2.msra.mxu0 0.0
  %6054 = vmatprep.subr.mxu0 0.0
  %6055 = vmatpush2.msra.mxu0 0.0
  %6056 = vmatprep.subr.mxu0 0.0
  %6057 = vmatpush2.msra.mxu0 0.0
  %6058 = vmatprep.subr.mxu0 0.0
  %6059 = vmatpush2.msra.mxu0 0.0
  %6060 = vmatprep.subr.mxu0 0.0
  %6061 = vmatpush2.msra.mxu0 0.0
  %6062 = vmatprep.subr.mxu0 0.0
  %6063 = vmatpush2.msra.mxu0 0.0
  %6064 = vmatprep.mubr.f32.mxu0 0.0
  %6065 = vmatmul.mubr.f32.gmra.mxu0 %v5992
  %v6066 = vpop.f32.mrf.mxu0
  %v6067 = vadd.f32 0.0, %v6066
  %v6068 = vpop.f32.mrf.mxu0
  %6069 = vmatprep.mubr.f32.mxu0 0.0
  %6070 = vmatmul.mubr.f32.gmra.mxu0 %v5994
  %v6071 = vpop.f32.mrf.mxu0
  %v6072 = vadd.f32 0.0, %v6071
  %v6073 = vpop.f32.mrf.mxu0
  %6074 = vmatprep.mubr.f32.mxu0 0.0
  %6075 = vmatmul.mubr.f32.gmra.mxu0 %v5996
  %v6076 = vpop.f32.mrf.mxu0
  %v6077 = vadd.f32 0.0, %v6076
  %v6078 = vpop.f32.mrf.mxu0
  %6079 = vmatprep.mubr.f32.mxu0 0.0
  %6080 = vmatmul.mubr.f32.gmra.mxu0 %v5998
  %v6081 = vpop.f32.mrf.mxu0
  %v6082 = vadd.f32 0.0, %v6081
  %v6083 = vpop.f32.mrf.mxu0
  %6084 = vdwg.mxu0
  %v6085 = vadd.f32 %v5958, %v6067
  %v6086 = vadd.f32 %v5959, %v6072
  %v6087 = vadd.f32 %v5960, %v6077
  %v6088 = vadd.f32 %v5961, %v6082
  %v6089 = vld [vmem:[%s4] sm:$0x1]
  %v6091 = vlaneseq
  %v6092 = vshrl.u32 %v6091, 7
  %v6093 = vsub.s32 0, %v6092
  %v6094 = vrot.slane %v6089, %v6093
  %v6096 = vadd.f32 %v6085, %v6094
  %v6097 = vadd.f32 %v6086, %v6094
  %v6098 = vadd.f32 %v6087, %v6094
  %v6099 = vadd.f32 %v6088, %v6094
  %vm6100 = vcmp.ge.f32.partialorder %v6096, 0.0
  %vm6101 = vcmp.ge.f32.partialorder %v6097, 0.0
  %vm6102 = vcmp.ge.f32.partialorder %v6098, 0.0
  %vm6103 = vcmp.ge.f32.partialorder %v6099, 0.0
  %v6104 = vmul.f32 %v6096, 0.2
  %v6105 = vmul.f32 %v6097, 0.2
  %v6106 = vmul.f32 %v6098, 0.2
  %v6107 = vmul.f32 %v6099, 0.2
  %v6108 = vsel %vm6100, %v6096, %v6104
  %v6109 = vsel %vm6101, %v6097, %v6105
  %v6110 = vsel %vm6102, %v6098, %v6106
  %v6111 = vsel %vm6103, %v6099, %v6107
  %vm6112 = vcmask 130048
  %v6113 = vsel %vm6112, %v6108, 0.0
  %v6114 = vsel %vm6112, %v6109, 0.0
  %v6115 = vadd.f32 %v6113, %v6114
  %v6116 = vrot.slane %v6115, 4
  %v6117 = vadd.f32 %v6115, %v6116
  %v6118 = vrot.slane %v6117, 2
  %v6119 = vadd.f32 %v6117, %v6118
  %v6120 = vrot.slane %v6119, 1
  %v6121 = vadd.f32 %v6119, %v6120
  %v6122 = vsel %vm6112, %v6110, 0.0
  %v6123 = vsel %vm6112, %v6111, 0.0
  %v6124 = vadd.f32 %v6122, %v6123
  %v6125 = vrot.slane %v6124, 4
  %v6126 = vadd.f32 %v6124, %v6125
  %v6127 = vrot.slane %v6126, 2
  %v6128 = vadd.f32 %v6126, %v6127
  %v6129 = vrot.slane %v6128, 1
  %v6130 = vadd.f32 %v6128, %v6129
  %v6131 = vrcp.pop 16.0
  %v6132 = vmul.f32 %v6121, %v6131
  %v6133 = vmul.f32 %v6130, %v6131
  %v6134 = vmul.f32 %v6108, %v6108
  %v6135 = vmul.f32 %v6109, %v6109
  %v6136 = vmul.f32 %v6110, %v6110
  %v6137 = vmul.f32 %v6111, %v6111
  %v6138 = vsel %vm6112, %v6134, 0.0
  %v6139 = vsel %vm6112, %v6135, 0.0
  %v6140 = vadd.f32 %v6138, %v6139
  %v6141 = vrot.slane %v6140, 4
  %v6142 = vadd.f32 %v6140, %v6141
  %v6143 = vrot.slane %v6142, 2
  %v6144 = vadd.f32 %v6142, %v6143
  %v6145 = vrot.slane %v6144, 1
  %v6146 = vadd.f32 %v6144, %v6145
  %v6147 = vsel %vm6112, %v6136, 0.0
  %v6148 = vsel %vm6112, %v6137, 0.0
  %v6149 = vadd.f32 %v6147, %v6148
  %v6150 = vrot.slane %v6149, 4
  %v6151 = vadd.f32 %v6149, %v6150
  %v6152 = vrot.slane %v6151, 2
  %v6153 = vadd.f32 %v6151, %v6152
  %v6154 = vrot.slane %v6153, 1
  %v6155 = vadd.f32 %v6153, %v6154
  %v6156 = vmul.f32 %v6146, %v6131
  %v6157 = vmul.f32 %v6155, %v6131
  %v6158 = vmul.f32 %v6132, %v6132
  %v6159 = vmul.f32 %v6133, %v6133
  %v6160 = vsub.f32 %v6156, %v6158
  %v6161 = vsub.f32 %v6157, %v6159
  %v6162 = vsub.f32 %v6108, %v6132
  %v6163 = vsub.f32 %v6109, %v6132
  %v6164 = vsub.f32 %v6110, %v6133
  %v6165 = vsub.f32 %v6111, %v6133
  %v6166 = vadd.f32 %v6160, 1e-05
  %v6167 = vadd.f32 %v6161, 1e-05
  %v6168 = vrsqrt.pop %v6166
  %v6169 = vrsqrt.pop %v6167
  %v6170 = vmul.f32 %v6162, %v6168
  %v6171 = vmul.f32 %v6163, %v6168
  %v6172 = vmul.f32 %v6164, %v6169
  %v6173 = vmul.f32 %v6165, %v6169
  %v6178 = vcombine.high %v6170, %v6170
  %v6179 = vcombine.high %v6171, %v6171
  %v6180 = vcombine.high %v6172, %v6172
  %v6181 = vcombine.high %v6173, %v6173
  %vm6186 = vcmask 128000
  %6187 = vst.msk [vmem:[#allocation3] sm:$0x3f] %vm6186, 0.0
  %6188 = vst.msk [vmem:[#allocation3 + $0x8] sm:$0x3f] %vm6186, 0.0
  %6189 = vst.msk [vmem:[#allocation3 + $0x10] sm:$0x3f] %vm6186, 0.0
  %6190 = vst.msk [vmem:[#allocation3 + $0x18] sm:$0x3f] %vm6186, 0.0
  %6191 = vst.msk [vmem:[#allocation3 + $0x20] sm:$0x3f] %vm6186, 0.0
  %6192 = vst.msk [vmem:[#allocation3 + $0x28] sm:$0x3f] %vm6186, 0.0
  %6193 = vst.msk [vmem:[#allocation3 + $0x30] sm:$0x3f] %vm6186, 0.0
  %6194 = vst.msk [vmem:[#allocation3 + $0x38] sm:$0x3f] %vm6186, 0.0
  %6195 = vst.msk [vmem:[#allocation3 + $0x40] sm:$0x3f] %vm6186, 0.0
  %6196 = vst.msk [vmem:[#allocation3 + $0x48] sm:$0x3f] %vm6186, 0.0
  %6197 = vst.msk [vmem:[#allocation3 + $0x50] sm:$0x3f] %vm6186, 0.0
  %6198 = vst.msk [vmem:[#allocation3 + $0x58] sm:$0x3f] %vm6186, 0.0
  %s6199 = scalar_lea.vmem [#allocation3], 8
  %vm6200 = vcmask 125952
  %6201 = vst.msk [vmem:[%s6199 + $0x1] sm:$0xf] %vm6200, %v6170
  %6202 = vst.msk [vmem:[%s6199 + $0x9] sm:$0xf] %vm6200, %v6178
  %6203 = vst.msk [vmem:[%s6199 + $0x11] sm:$0xf] %vm6200, %v6171
  %6204 = vst.msk [vmem:[%s6199 + $0x19] sm:$0xf] %vm6200, %v6179
  %6205 = vst.msk [vmem:[%s6199 + $0x31] sm:$0xf] %vm6200, %v6172
  %6206 = vst.msk [vmem:[%s6199 + $0x39] sm:$0xf] %vm6200, %v6180
  %6207 = vst.msk [vmem:[%s6199 + $0x41] sm:$0xf] %vm6200, %v6173
  %6208 = vst.msk [vmem:[%s6199 + $0x49] sm:$0xf] %vm6200, %v6181
  %v6209 = vld [vmem:[#allocation3] ss:$2 sm:$0x3]
  %s6210 = scalar_lea.vmem [#allocation3], 16
  %v6211 = vld [vmem:[%s6210] ss:$2 sm:$0x3]
  %s6212 = scalar_lea.vmem [#allocation3], 48
  %v6213 = vld [vmem:[%s6212] ss:$2 sm:$0x3]
  %s6214 = scalar_lea.vmem [#allocation3], 64
  %v6215 = vld [vmem:[%s6214] ss:$2 sm:$0x3]
  %v6216 = vld [vmem:[%s5] sm:$0xff]
  %v6217 = vld [vmem:[%s5 + $0x8] sm:$0xff]
  %s6218 = scalar_lea.vmem [#allocation3], 1
  %v6219 = vld [vmem:[%s6218] ss:$2 sm:$0x3]
  %s6220 = scalar_lea.vmem [#allocation3], 17
  %v6221 = vld [vmem:[%s6220] ss:$2 sm:$0x3]
  %s6222 = scalar_lea.vmem [#allocation3], 49
  %v6223 = vld [vmem:[%s6222] ss:$2 sm:$0x3]
  %s6224 = scalar_lea.vmem [#allocation3], 65
  %v6225 = vld [vmem:[%s6224] ss:$2 sm:$0x3]
  %s6226 = scalar_lea.vmem %s5, 16
  %v6227 = vld [vmem:[%s6226] sm:$0xff]
  %v6228 = vld [vmem:[%s6226 + $0x8] sm:$0xff]
  %v6233 = vcombine.low %v6219, %v6221
  %v6234 = vcombine.low %v6223, %v6225
  %v6236 = vunpack.c.l.s4 1983009808
  %v6237 = vunpack.c.0.s8 %v6236
  %v6238 = vlaneseq
  %v6239 = vshrl.u32 %v6238, 7
  %v6240 = vsub.s32 %v6237, %v6239
  %v6241 = vrot.slane %v6233, %v6240
  %v6243 = vunpack.c.l.s4 1983009808
  %v6244 = vunpack.c.0.s8 %v6243
  %v6245 = vlaneseq
  %v6246 = vshrl.u32 %v6245, 7
  %v6247 = vsub.s32 %v6244, %v6246
  %v6248 = vrot.slane %v6234, %v6247
  %v6249 = vcombine.low %v6241, %v6248
  %v6250 = vsel %vm6112, %v6249, 0
  %6252 = vmatprep.subr.mxu0 0.0
  %6253 = vmatpush1.msra.mxu0 0.0
  %6254 = vmatprep.subr.mxu0 0.0
  %6255 = vmatpush1.msra.mxu0 0.0
  %6256 = vmatprep.subr.mxu0 0.0
  %6257 = vmatpush1.msra.mxu0 0.0
  %6258 = vmatprep.subr.mxu0 0.0
  %6259 = vmatpush1.msra.mxu0 0.0
  %6260 = vmatprep.subr.mxu0 0.0
  %6261 = vmatpush1.msra.mxu0 0.0
  %6262 = vmatprep.subr.mxu0 0.0
  %6263 = vmatpush1.msra.mxu0 0.0
  %6264 = vmatprep.subr.mxu0 0.0
  %6265 = vmatpush1.msra.mxu0 0.0
  %6266 = vmatprep.subr.mxu0 0.0
  %6267 = vmatpush1.msra.mxu0 0.0
  %6268 = vmatprep.subr.mxu0 0.0
  %6269 = vmatpush1.msra.mxu0 0.0
  %6270 = vmatprep.subr.mxu0 0.0
  %6271 = vmatpush1.msra.mxu0 0.0
  %6272 = vmatprep.subr.mxu0 0.0
  %6273 = vmatpush1.msra.mxu0 0.0
  %6274 = vmatprep.subr.mxu0 0.0
  %6275 = vmatpush1.msra.mxu0 0.0
  %6276 = vmatprep.subr.mxu0 0.0
  %6277 = vmatpush1.msra.mxu0 0.0
  %6278 = vmatprep.subr.mxu0 0.0
  %6279 = vmatpush1.msra.mxu0 0.0
  %6280 = vmatprep.subr.mxu0 0.0
  %6281 = vmatpush1.msra.mxu0 %v6228
  %6282 = vmatprep.subr.mxu0 0.0
  %6283 = vmatpush1.msra.mxu0 %v6227
  %6284 = vmatprep.subr.mxu0 0.0
  %6285 = vmatpush2.msra.mxu0 0.0
  %6286 = vmatprep.subr.mxu0 0.0
  %6287 = vmatpush2.msra.mxu0 0.0
  %6288 = vmatprep.subr.mxu0 0.0
  %6289 = vmatpush2.msra.mxu0 0.0
  %6290 = vmatprep.subr.mxu0 0.0
  %6291 = vmatpush2.msra.mxu0 0.0
  %6292 = vmatprep.subr.mxu0 0.0
  %6293 = vmatpush2.msra.mxu0 0.0
  %6294 = vmatprep.subr.mxu0 0.0
  %6295 = vmatpush2.msra.mxu0 0.0
  %6296 = vmatprep.subr.mxu0 0.0
  %6297 = vmatpush2.msra.mxu0 0.0
  %6298 = vmatprep.subr.mxu0 0.0
  %6299 = vmatpush2.msra.mxu0 0.0
  %6300 = vmatprep.subr.mxu0 0.0
  %6301 = vmatpush2.msra.mxu0 0.0
  %6302 = vmatprep.subr.mxu0 0.0
  %6303 = vmatpush2.msra.mxu0 0.0
  %6304 = vmatprep.subr.mxu0 0.0
  %6305 = vmatpush2.msra.mxu0 0.0
  %6306 = vmatprep.subr.mxu0 0.0
  %6307 = vmatpush2.msra.mxu0 0.0
  %6308 = vmatprep.subr.mxu0 0.0
  %6309 = vmatpush2.msra.mxu0 0.0
  %6310 = vmatprep.subr.mxu0 0.0
  %6311 = vmatpush2.msra.mxu0 0.0
  %6312 = vmatprep.subr.mxu0 0.0
  %6313 = vmatpush2.msra.mxu0 0.0
  %6314 = vmatprep.subr.mxu0 0.0
  %6315 = vmatpush2.msra.mxu0 0.0
  %6316 = vmatprep.mubr.f32.mxu0 0.0
  %6317 = vmatmul.mubr.f32.gmra.mxu0 %v6250
  %v6318 = vpop.f32.mrf.mxu0
  %v6319 = vadd.f32 0.0, %v6318
  %v6320 = vpop.f32.mrf.mxu0
  %6321 = vdwg.mxu0
  %v6326 = vcombine.low %v6209, %v6211
  %v6327 = vcombine.low %v6213, %v6215
  %v6329 = vunpack.c.l.s4 1983009808
  %v6330 = vunpack.c.0.s8 %v6329
  %v6331 = vlaneseq
  %v6332 = vshrl.u32 %v6331, 7
  %v6333 = vsub.s32 %v6330, %v6332
  %v6334 = vrot.slane %v6326, %v6333
  %v6336 = vunpack.c.l.s4 1983009808
  %v6337 = vunpack.c.0.s8 %v6336
  %v6338 = vlaneseq
  %v6339 = vshrl.u32 %v6338, 7
  %v6340 = vsub.s32 %v6337, %v6339
  %v6341 = vrot.slane %v6327, %v6340
  %v6342 = vcombine.low %v6334, %v6341
  %v6343 = vsel %vm6112, %v6342, 0
  %6345 = vmatprep.subr.mxu0 0.0
  %6346 = vmatpush1.msra.mxu0 0.0
  %6347 = vmatprep.subr.mxu0 0.0
  %6348 = vmatpush1.msra.mxu0 0.0
  %6349 = vmatprep.subr.mxu0 0.0
  %6350 = vmatpush1.msra.mxu0 0.0
  %6351 = vmatprep.subr.mxu0 0.0
  %6352 = vmatpush1.msra.mxu0 0.0
  %6353 = vmatprep.subr.mxu0 0.0
  %6354 = vmatpush1.msra.mxu0 0.0
  %6355 = vmatprep.subr.mxu0 0.0
  %6356 = vmatpush1.msra.mxu0 0.0
  %6357 = vmatprep.subr.mxu0 0.0
  %6358 = vmatpush1.msra.mxu0 0.0
  %6359 = vmatprep.subr.mxu0 0.0
  %6360 = vmatpush1.msra.mxu0 0.0
  %6361 = vmatprep.subr.mxu0 0.0
  %6362 = vmatpush1.msra.mxu0 0.0
  %6363 = vmatprep.subr.mxu0 0.0
  %6364 = vmatpush1.msra.mxu0 0.0
  %6365 = vmatprep.subr.mxu0 0.0
  %6366 = vmatpush1.msra.mxu0 0.0
  %6367 = vmatprep.subr.mxu0 0.0
  %6368 = vmatpush1.msra.mxu0 0.0
  %6369 = vmatprep.subr.mxu0 0.0
  %6370 = vmatpush1.msra.mxu0 0.0
  %6371 = vmatprep.subr.mxu0 0.0
  %6372 = vmatpush1.msra.mxu0 0.0
  %6373 = vmatprep.subr.mxu0 0.0
  %6374 = vmatpush1.msra.mxu0 %v6217
  %6375 = vmatprep.subr.mxu0 0.0
  %6376 = vmatpush1.msra.mxu0 %v6216
  %6377 = vmatprep.subr.mxu0 0.0
  %6378 = vmatpush2.msra.mxu0 0.0
  %6379 = vmatprep.subr.mxu0 0.0
  %6380 = vmatpush2.msra.mxu0 0.0
  %6381 = vmatprep.subr.mxu0 0.0
  %6382 = vmatpush2.msra.mxu0 0.0
  %6383 = vmatprep.subr.mxu0 0.0
  %6384 = vmatpush2.msra.mxu0 0.0
  %6385 = vmatprep.subr.mxu0 0.0
  %6386 = vmatpush2.msra.mxu0 0.0
  %6387 = vmatprep.subr.mxu0 0.0
  %6388 = vmatpush2.msra.mxu0 0.0
  %6389 = vmatprep.subr.mxu0 0.0
  %6390 = vmatpush2.msra.mxu0 0.0
  %6391 = vmatprep.subr.mxu0 0.0
  %6392 = vmatpush2.msra.mxu0 0.0
  %6393 = vmatprep.subr.mxu0 0.0
  %6394 = vmatpush2.msra.mxu0 0.0
  %6395 = vmatprep.subr.mxu0 0.0
  %6396 = vmatpush2.msra.mxu0 0.0
  %6397 = vmatprep.subr.mxu0 0.0
  %6398 = vmatpush2.msra.mxu0 0.0
  %6399 = vmatprep.subr.mxu0 0.0
  %6400 = vmatpush2.msra.mxu0 0.0
  %6401 = vmatprep.subr.mxu0 0.0
  %6402 = vmatpush2.msra.mxu0 0.0
  %6403 = vmatprep.subr.mxu0 0.0
  %6404 = vmatpush2.msra.mxu0 0.0
  %6405 = vmatprep.subr.mxu0 0.0
  %6406 = vmatpush2.msra.mxu0 0.0
  %6407 = vmatprep.subr.mxu0 0.0
  %6408 = vmatpush2.msra.mxu0 0.0
  %6409 = vmatprep.mubr.f32.mxu0 0.0
  %6410 = vmatmul.mubr.f32.gmra.mxu0 %v6343
  %v6411 = vpop.f32.mrf.mxu0
  %v6412 = vadd.f32 %v6319, %v6411
  %v6413 = vpop.f32.mrf.mxu0
  %6414 = vdwg.mxu0
  %s6415 = scalar_lea.vmem [#allocation3], 2
  %v6416 = vld [vmem:[%s6415] ss:$2 sm:$0x3]
  %s6417 = scalar_lea.vmem [#allocation3], 18
  %v6418 = vld [vmem:[%s6417] ss:$2 sm:$0x3]
  %s6419 = scalar_lea.vmem [#allocation3], 50
  %v6420 = vld [vmem:[%s6419] ss:$2 sm:$0x3]
  %s6421 = scalar_lea.vmem [#allocation3], 66
  %v6422 = vld [vmem:[%s6421] ss:$2 sm:$0x3]
  %s6423 = scalar_lea.vmem %s5, 32
  %v6424 = vld [vmem:[%s6423] sm:$0xff]
  %v6425 = vld [vmem:[%s6423 + $0x8] sm:$0xff]
  %v6430 = vcombine.low %v6416, %v6418
  %v6431 = vcombine.low %v6420, %v6422
  %v6433 = vunpack.c.l.s4 1983009808
  %v6434 = vunpack.c.0.s8 %v6433
  %v6435 = vlaneseq
  %v6436 = vshrl.u32 %v6435, 7
  %v6437 = vsub.s32 %v6434, %v6436
  %v6438 = vrot.slane %v6430, %v6437
  %v6440 = vunpack.c.l.s4 1983009808
  %v6441 = vunpack.c.0.s8 %v6440
  %v6442 = vlaneseq
  %v6443 = vshrl.u32 %v6442, 7
  %v6444 = vsub.s32 %v6441, %v6443
  %v6445 = vrot.slane %v6431, %v6444
  %v6446 = vcombine.low %v6438, %v6445
  %v6447 = vsel %vm6112, %v6446, 0
  %6449 = vmatprep.subr.mxu0 0.0
  %6450 = vmatpush1.msra.mxu0 0.0
  %6451 = vmatprep.subr.mxu0 0.0
  %6452 = vmatpush1.msra.mxu0 0.0
  %6453 = vmatprep.subr.mxu0 0.0
  %6454 = vmatpush1.msra.mxu0 0.0
  %6455 = vmatprep.subr.mxu0 0.0
  %6456 = vmatpush1.msra.mxu0 0.0
  %6457 = vmatprep.subr.mxu0 0.0
  %6458 = vmatpush1.msra.mxu0 0.0
  %6459 = vmatprep.subr.mxu0 0.0
  %6460 = vmatpush1.msra.mxu0 0.0
  %6461 = vmatprep.subr.mxu0 0.0
  %6462 = vmatpush1.msra.mxu0 0.0
  %6463 = vmatprep.subr.mxu0 0.0
  %6464 = vmatpush1.msra.mxu0 0.0
  %6465 = vmatprep.subr.mxu0 0.0
  %6466 = vmatpush1.msra.mxu0 0.0
  %6467 = vmatprep.subr.mxu0 0.0
  %6468 = vmatpush1.msra.mxu0 0.0
  %6469 = vmatprep.subr.mxu0 0.0
  %6470 = vmatpush1.msra.mxu0 0.0
  %6471 = vmatprep.subr.mxu0 0.0
  %6472 = vmatpush1.msra.mxu0 0.0
  %6473 = vmatprep.subr.mxu0 0.0
  %6474 = vmatpush1.msra.mxu0 0.0
  %6475 = vmatprep.subr.mxu0 0.0
  %6476 = vmatpush1.msra.mxu0 0.0
  %6477 = vmatprep.subr.mxu0 0.0
  %6478 = vmatpush1.msra.mxu0 %v6425
  %6479 = vmatprep.subr.mxu0 0.0
  %6480 = vmatpush1.msra.mxu0 %v6424
  %6481 = vmatprep.subr.mxu0 0.0
  %6482 = vmatpush2.msra.mxu0 0.0
  %6483 = vmatprep.subr.mxu0 0.0
  %6484 = vmatpush2.msra.mxu0 0.0
  %6485 = vmatprep.subr.mxu0 0.0
  %6486 = vmatpush2.msra.mxu0 0.0
  %6487 = vmatprep.subr.mxu0 0.0
  %6488 = vmatpush2.msra.mxu0 0.0
  %6489 = vmatprep.subr.mxu0 0.0
  %6490 = vmatpush2.msra.mxu0 0.0
  %6491 = vmatprep.subr.mxu0 0.0
  %6492 = vmatpush2.msra.mxu0 0.0
  %6493 = vmatprep.subr.mxu0 0.0
  %6494 = vmatpush2.msra.mxu0 0.0
  %6495 = vmatprep.subr.mxu0 0.0
  %6496 = vmatpush2.msra.mxu0 0.0
  %6497 = vmatprep.subr.mxu0 0.0
  %6498 = vmatpush2.msra.mxu0 0.0
  %6499 = vmatprep.subr.mxu0 0.0
  %6500 = vmatpush2.msra.mxu0 0.0
  %6501 = vmatprep.subr.mxu0 0.0
  %6502 = vmatpush2.msra.mxu0 0.0
  %6503 = vmatprep.subr.mxu0 0.0
  %6504 = vmatpush2.msra.mxu0 0.0
  %6505 = vmatprep.subr.mxu0 0.0
  %6506 = vmatpush2.msra.mxu0 0.0
  %6507 = vmatprep.subr.mxu0 0.0
  %6508 = vmatpush2.msra.mxu0 0.0
  %6509 = vmatprep.subr.mxu0 0.0
  %6510 = vmatpush2.msra.mxu0 0.0
  %6511 = vmatprep.subr.mxu0 0.0
  %6512 = vmatpush2.msra.mxu0 0.0
  %6513 = vmatprep.mubr.f32.mxu0 0.0
  %6514 = vmatmul.mubr.f32.gmra.mxu0 %v6447
  %v6515 = vpop.f32.mrf.mxu0
  %v6516 = vadd.f32 0.0, %v6515
  %v6517 = vpop.f32.mrf.mxu0
  %6518 = vdwg.mxu0
  %v6519 = vadd.f32 %v6412, %v6516
  %s6520 = scalar_lea.vmem [#allocation3], 3
  %v6521 = vld [vmem:[%s6520] ss:$2 sm:$0x3]
  %s6522 = scalar_lea.vmem [#allocation3], 19
  %v6523 = vld [vmem:[%s6522] ss:$2 sm:$0x3]
  %s6524 = scalar_lea.vmem [#allocation3], 51
  %v6525 = vld [vmem:[%s6524] ss:$2 sm:$0x3]
  %s6526 = scalar_lea.vmem [#allocation3], 67
  %v6527 = vld [vmem:[%s6526] ss:$2 sm:$0x3]
  %s6528 = scalar_lea.vmem %s5, 48
  %v6529 = vld [vmem:[%s6528] sm:$0xff]
  %v6530 = vld [vmem:[%s6528 + $0x8] sm:$0xff]
  %v6535 = vcombine.low %v6521, %v6523
  %v6536 = vcombine.low %v6525, %v6527
  %v6538 = vunpack.c.l.s4 1983009808
  %v6539 = vunpack.c.0.s8 %v6538
  %v6540 = vlaneseq
  %v6541 = vshrl.u32 %v6540, 7
  %v6542 = vsub.s32 %v6539, %v6541
  %v6543 = vrot.slane %v6535, %v6542
  %v6545 = vunpack.c.l.s4 1983009808
  %v6546 = vunpack.c.0.s8 %v6545
  %v6547 = vlaneseq
  %v6548 = vshrl.u32 %v6547, 7
  %v6549 = vsub.s32 %v6546, %v6548
  %v6550 = vrot.slane %v6536, %v6549
  %v6551 = vcombine.low %v6543, %v6550
  %v6552 = vsel %vm6112, %v6551, 0
  %6554 = vmatprep.subr.mxu0 0.0
  %6555 = vmatpush1.msra.mxu0 0.0
  %6556 = vmatprep.subr.mxu0 0.0
  %6557 = vmatpush1.msra.mxu0 0.0
  %6558 = vmatprep.subr.mxu0 0.0
  %6559 = vmatpush1.msra.mxu0 0.0
  %6560 = vmatprep.subr.mxu0 0.0
  %6561 = vmatpush1.msra.mxu0 0.0
  %6562 = vmatprep.subr.mxu0 0.0
  %6563 = vmatpush1.msra.mxu0 0.0
  %6564 = vmatprep.subr.mxu0 0.0
  %6565 = vmatpush1.msra.mxu0 0.0
  %6566 = vmatprep.subr.mxu0 0.0
  %6567 = vmatpush1.msra.mxu0 0.0
  %6568 = vmatprep.subr.mxu0 0.0
  %6569 = vmatpush1.msra.mxu0 0.0
  %6570 = vmatprep.subr.mxu0 0.0
  %6571 = vmatpush1.msra.mxu0 0.0
  %6572 = vmatprep.subr.mxu0 0.0
  %6573 = vmatpush1.msra.mxu0 0.0
  %6574 = vmatprep.subr.mxu0 0.0
  %6575 = vmatpush1.msra.mxu0 0.0
  %6576 = vmatprep.subr.mxu0 0.0
  %6577 = vmatpush1.msra.mxu0 0.0
  %6578 = vmatprep.subr.mxu0 0.0
  %6579 = vmatpush1.msra.mxu0 0.0
  %6580 = vmatprep.subr.mxu0 0.0
  %6581 = vmatpush1.msra.mxu0 0.0
  %6582 = vmatprep.subr.mxu0 0.0
  %6583 = vmatpush1.msra.mxu0 %v6530
  %6584 = vmatprep.subr.mxu0 0.0
  %6585 = vmatpush1.msra.mxu0 %v6529
  %6586 = vmatprep.subr.mxu0 0.0
  %6587 = vmatpush2.msra.mxu0 0.0
  %6588 = vmatprep.subr.mxu0 0.0
  %6589 = vmatpush2.msra.mxu0 0.0
  %6590 = vmatprep.subr.mxu0 0.0
  %6591 = vmatpush2.msra.mxu0 0.0
  %6592 = vmatprep.subr.mxu0 0.0
  %6593 = vmatpush2.msra.mxu0 0.0
  %6594 = vmatprep.subr.mxu0 0.0
  %6595 = vmatpush2.msra.mxu0 0.0
  %6596 = vmatprep.subr.mxu0 0.0
  %6597 = vmatpush2.msra.mxu0 0.0
  %6598 = vmatprep.subr.mxu0 0.0
  %6599 = vmatpush2.msra.mxu0 0.0
  %6600 = vmatprep.subr.mxu0 0.0
  %6601 = vmatpush2.msra.mxu0 0.0
  %6602 = vmatprep.subr.mxu0 0.0
  %6603 = vmatpush2.msra.mxu0 0.0
  %6604 = vmatprep.subr.mxu0 0.0
  %6605 = vmatpush2.msra.mxu0 0.0
  %6606 = vmatprep.subr.mxu0 0.0
  %6607 = vmatpush2.msra.mxu0 0.0
  %6608 = vmatprep.subr.mxu0 0.0
  %6609 = vmatpush2.msra.mxu0 0.0
  %6610 = vmatprep.subr.mxu0 0.0
  %6611 = vmatpush2.msra.mxu0 0.0
  %6612 = vmatprep.subr.mxu0 0.0
  %6613 = vmatpush2.msra.mxu0 0.0
  %6614 = vmatprep.subr.mxu0 0.0
  %6615 = vmatpush2.msra.mxu0 0.0
  %6616 = vmatprep.subr.mxu0 0.0
  %6617 = vmatpush2.msra.mxu0 0.0
  %6618 = vmatprep.mubr.f32.mxu0 0.0
  %6619 = vmatmul.mubr.f32.gmra.mxu0 %v6552
  %v6620 = vpop.f32.mrf.mxu0
  %v6621 = vadd.f32 0.0, %v6620
  %v6622 = vpop.f32.mrf.mxu0
  %6623 = vdwg.mxu0
  %v6624 = vadd.f32 %v6519, %v6621
  %v6625 = vld [vmem:[%s6199] ss:$2 sm:$0x3]
  %s6626 = scalar_lea.vmem %s6199, 16 [#allocation3]
  %v6627 = vld [vmem:[%s6626] ss:$2 sm:$0x3]
  %s6628 = scalar_lea.vmem %s6199, 48 [#allocation3]
  %v6629 = vld [vmem:[%s6628] ss:$2 sm:$0x3]
  %s6630 = scalar_lea.vmem %s6199, 64 [#allocation3]
  %v6631 = vld [vmem:[%s6630] ss:$2 sm:$0x3]
  %s6632 = scalar_lea.vmem %s5, 64
  %v6633 = vld [vmem:[%s6632] sm:$0xff]
  %v6634 = vld [vmem:[%s6632 + $0x8] sm:$0xff]
  %v6639 = vcombine.low %v6625, %v6627
  %v6640 = vcombine.low %v6629, %v6631
  %v6642 = vunpack.c.l.s4 1983009808
  %v6643 = vunpack.c.0.s8 %v6642
  %v6644 = vlaneseq
  %v6645 = vshrl.u32 %v6644, 7
  %v6646 = vsub.s32 %v6643, %v6645
  %v6647 = vrot.slane %v6639, %v6646
  %v6649 = vunpack.c.l.s4 1983009808
  %v6650 = vunpack.c.0.s8 %v6649
  %v6651 = vlaneseq
  %v6652 = vshrl.u32 %v6651, 7
  %v6653 = vsub.s32 %v6650, %v6652
  %v6654 = vrot.slane %v6640, %v6653
  %v6655 = vcombine.low %v6647, %v6654
  %v6656 = vsel %vm6112, %v6655, 0
  %6658 = vmatprep.subr.mxu0 0.0
  %6659 = vmatpush1.msra.mxu0 0.0
  %6660 = vmatprep.subr.mxu0 0.0
  %6661 = vmatpush1.msra.mxu0 0.0
  %6662 = vmatprep.subr.mxu0 0.0
  %6663 = vmatpush1.msra.mxu0 0.0
  %6664 = vmatprep.subr.mxu0 0.0
  %6665 = vmatpush1.msra.mxu0 0.0
  %6666 = vmatprep.subr.mxu0 0.0
  %6667 = vmatpush1.msra.mxu0 0.0
  %6668 = vmatprep.subr.mxu0 0.0
  %6669 = vmatpush1.msra.mxu0 0.0
  %6670 = vmatprep.subr.mxu0 0.0
  %6671 = vmatpush1.msra.mxu0 0.0
  %6672 = vmatprep.subr.mxu0 0.0
  %6673 = vmatpush1.msra.mxu0 0.0
  %6674 = vmatprep.subr.mxu0 0.0
  %6675 = vmatpush1.msra.mxu0 0.0
  %6676 = vmatprep.subr.mxu0 0.0
  %6677 = vmatpush1.msra.mxu0 0.0
  %6678 = vmatprep.subr.mxu0 0.0
  %6679 = vmatpush1.msra.mxu0 0.0
  %6680 = vmatprep.subr.mxu0 0.0
  %6681 = vmatpush1.msra.mxu0 0.0
  %6682 = vmatprep.subr.mxu0 0.0
  %6683 = vmatpush1.msra.mxu0 0.0
  %6684 = vmatprep.subr.mxu0 0.0
  %6685 = vmatpush1.msra.mxu0 0.0
  %6686 = vmatprep.subr.mxu0 0.0
  %6687 = vmatpush1.msra.mxu0 %v6634
  %6688 = vmatprep.subr.mxu0 0.0
  %6689 = vmatpush1.msra.mxu0 %v6633
  %6690 = vmatprep.subr.mxu0 0.0
  %6691 = vmatpush2.msra.mxu0 0.0
  %6692 = vmatprep.subr.mxu0 0.0
  %6693 = vmatpush2.msra.mxu0 0.0
  %6694 = vmatprep.subr.mxu0 0.0
  %6695 = vmatpush2.msra.mxu0 0.0
  %6696 = vmatprep.subr.mxu0 0.0
  %6697 = vmatpush2.msra.mxu0 0.0
  %6698 = vmatprep.subr.mxu0 0.0
  %6699 = vmatpush2.msra.mxu0 0.0
  %6700 = vmatprep.subr.mxu0 0.0
  %6701 = vmatpush2.msra.mxu0 0.0
  %6702 = vmatprep.subr.mxu0 0.0
  %6703 = vmatpush2.msra.mxu0 0.0
  %6704 = vmatprep.subr.mxu0 0.0
  %6705 = vmatpush2.msra.mxu0 0.0
  %6706 = vmatprep.subr.mxu0 0.0
  %6707 = vmatpush2.msra.mxu0 0.0
  %6708 = vmatprep.subr.mxu0 0.0
  %6709 = vmatpush2.msra.mxu0 0.0
  %6710 = vmatprep.subr.mxu0 0.0
  %6711 = vmatpush2.msra.mxu0 0.0
  %6712 = vmatprep.subr.mxu0 0.0
  %6713 = vmatpush2.msra.mxu0 0.0
  %6714 = vmatprep.subr.mxu0 0.0
  %6715 = vmatpush2.msra.mxu0 0.0
  %6716 = vmatprep.subr.mxu0 0.0
  %6717 = vmatpush2.msra.mxu0 0.0
  %6718 = vmatprep.subr.mxu0 0.0
  %6719 = vmatpush2.msra.mxu0 0.0
  %6720 = vmatprep.subr.mxu0 0.0
  %6721 = vmatpush2.msra.mxu0 0.0
  %6722 = vmatprep.mubr.f32.mxu0 0.0
  %6723 = vmatmul.mubr.f32.gmra.mxu0 %v6656
  %v6724 = vpop.f32.mrf.mxu0
  %v6725 = vadd.f32 0.0, %v6724
  %v6726 = vpop.f32.mrf.mxu0
  %6727 = vdwg.mxu0
  %v6728 = vadd.f32 %v6624, %v6725
  %s6729 = scalar_lea.vmem %s6199, 1 [#allocation3]
  %v6730 = vld [vmem:[%s6729] ss:$2 sm:$0x3]
  %s6731 = scalar_lea.vmem %s6199, 17 [#allocation3]
  %v6732 = vld [vmem:[%s6731] ss:$2 sm:$0x3]
  %s6733 = scalar_lea.vmem %s6199, 49 [#allocation3]
  %v6734 = vld [vmem:[%s6733] ss:$2 sm:$0x3]
  %s6735 = scalar_lea.vmem %s6199, 65 [#allocation3]
  %v6736 = vld [vmem:[%s6735] ss:$2 sm:$0x3]
  %s6737 = scalar_lea.vmem %s5, 80
  %v6738 = vld [vmem:[%s6737] sm:$0xff]
  %v6739 = vld [vmem:[%s6737 + $0x8] sm:$0xff]
  %v6744 = vcombine.low %v6730, %v6732
  %v6745 = vcombine.low %v6734, %v6736
  %v6747 = vunpack.c.l.s4 1983009808
  %v6748 = vunpack.c.0.s8 %v6747
  %v6749 = vlaneseq
  %v6750 = vshrl.u32 %v6749, 7
  %v6751 = vsub.s32 %v6748, %v6750
  %v6752 = vrot.slane %v6744, %v6751
  %v6754 = vunpack.c.l.s4 1983009808
  %v6755 = vunpack.c.0.s8 %v6754
  %v6756 = vlaneseq
  %v6757 = vshrl.u32 %v6756, 7
  %v6758 = vsub.s32 %v6755, %v6757
  %v6759 = vrot.slane %v6745, %v6758
  %v6760 = vcombine.low %v6752, %v6759
  %v6761 = vsel %vm6112, %v6760, 0
  %6763 = vmatprep.subr.mxu0 0.0
  %6764 = vmatpush1.msra.mxu0 0.0
  %6765 = vmatprep.subr.mxu0 0.0
  %6766 = vmatpush1.msra.mxu0 0.0
  %6767 = vmatprep.subr.mxu0 0.0
  %6768 = vmatpush1.msra.mxu0 0.0
  %6769 = vmatprep.subr.mxu0 0.0
  %6770 = vmatpush1.msra.mxu0 0.0
  %6771 = vmatprep.subr.mxu0 0.0
  %6772 = vmatpush1.msra.mxu0 0.0
  %6773 = vmatprep.subr.mxu0 0.0
  %6774 = vmatpush1.msra.mxu0 0.0
  %6775 = vmatprep.subr.mxu0 0.0
  %6776 = vmatpush1.msra.mxu0 0.0
  %6777 = vmatprep.subr.mxu0 0.0
  %6778 = vmatpush1.msra.mxu0 0.0
  %6779 = vmatprep.subr.mxu0 0.0
  %6780 = vmatpush1.msra.mxu0 0.0
  %6781 = vmatprep.subr.mxu0 0.0
  %6782 = vmatpush1.msra.mxu0 0.0
  %6783 = vmatprep.subr.mxu0 0.0
  %6784 = vmatpush1.msra.mxu0 0.0
  %6785 = vmatprep.subr.mxu0 0.0
  %6786 = vmatpush1.msra.mxu0 0.0
  %6787 = vmatprep.subr.mxu0 0.0
  %6788 = vmatpush1.msra.mxu0 0.0
  %6789 = vmatprep.subr.mxu0 0.0
  %6790 = vmatpush1.msra.mxu0 0.0
  %6791 = vmatprep.subr.mxu0 0.0
  %6792 = vmatpush1.msra.mxu0 %v6739
  %6793 = vmatprep.subr.mxu0 0.0
  %6794 = vmatpush1.msra.mxu0 %v6738
  %6795 = vmatprep.subr.mxu0 0.0
  %6796 = vmatpush2.msra.mxu0 0.0
  %6797 = vmatprep.subr.mxu0 0.0
  %6798 = vmatpush2.msra.mxu0 0.0
  %6799 = vmatprep.subr.mxu0 0.0
  %6800 = vmatpush2.msra.mxu0 0.0
  %6801 = vmatprep.subr.mxu0 0.0
  %6802 = vmatpush2.msra.mxu0 0.0
  %6803 = vmatprep.subr.mxu0 0.0
  %6804 = vmatpush2.msra.mxu0 0.0
  %6805 = vmatprep.subr.mxu0 0.0
  %6806 = vmatpush2.msra.mxu0 0.0
  %6807 = vmatprep.subr.mxu0 0.0
  %6808 = vmatpush2.msra.mxu0 0.0
  %6809 = vmatprep.subr.mxu0 0.0
  %6810 = vmatpush2.msra.mxu0 0.0
  %6811 = vmatprep.subr.mxu0 0.0
  %6812 = vmatpush2.msra.mxu0 0.0
  %6813 = vmatprep.subr.mxu0 0.0
  %6814 = vmatpush2.msra.mxu0 0.0
  %6815 = vmatprep.subr.mxu0 0.0
  %6816 = vmatpush2.msra.mxu0 0.0
  %6817 = vmatprep.subr.mxu0 0.0
  %6818 = vmatpush2.msra.mxu0 0.0
  %6819 = vmatprep.subr.mxu0 0.0
  %6820 = vmatpush2.msra.mxu0 0.0
  %6821 = vmatprep.subr.mxu0 0.0
  %6822 = vmatpush2.msra.mxu0 0.0
  %6823 = vmatprep.subr.mxu0 0.0
  %6824 = vmatpush2.msra.mxu0 0.0
  %6825 = vmatprep.subr.mxu0 0.0
  %6826 = vmatpush2.msra.mxu0 0.0
  %6827 = vmatprep.mubr.f32.mxu0 0.0
  %6828 = vmatmul.mubr.f32.gmra.mxu0 %v6761
  %v6829 = vpop.f32.mrf.mxu0
  %v6830 = vadd.f32 0.0, %v6829
  %v6831 = vpop.f32.mrf.mxu0
  %6832 = vdwg.mxu0
  %v6833 = vadd.f32 %v6728, %v6830
  %s6834 = scalar_lea.vmem %s6199, 2 [#allocation3]
  %v6835 = vld [vmem:[%s6834] ss:$2 sm:$0x3]
  %s6836 = scalar_lea.vmem %s6199, 18 [#allocation3]
  %v6837 = vld [vmem:[%s6836] ss:$2 sm:$0x3]
  %s6838 = scalar_lea.vmem %s6199, 50 [#allocation3]
  %v6839 = vld [vmem:[%s6838] ss:$2 sm:$0x3]
  %s6840 = scalar_lea.vmem %s6199, 66 [#allocation3]
  %v6841 = vld [vmem:[%s6840] ss:$2 sm:$0x3]
  %s6842 = scalar_lea.vmem %s5, 96
  %v6843 = vld [vmem:[%s6842] sm:$0xff]
  %v6844 = vld [vmem:[%s6842 + $0x8] sm:$0xff]
  %v6849 = vcombine.low %v6835, %v6837
  %v6850 = vcombine.low %v6839, %v6841
  %v6852 = vunpack.c.l.s4 1983009808
  %v6853 = vunpack.c.0.s8 %v6852
  %v6854 = vlaneseq
  %v6855 = vshrl.u32 %v6854, 7
  %v6856 = vsub.s32 %v6853, %v6855
  %v6857 = vrot.slane %v6849, %v6856
  %v6859 = vunpack.c.l.s4 1983009808
  %v6860 = vunpack.c.0.s8 %v6859
  %v6861 = vlaneseq
  %v6862 = vshrl.u32 %v6861, 7
  %v6863 = vsub.s32 %v6860, %v6862
  %v6864 = vrot.slane %v6850, %v6863
  %v6865 = vcombine.low %v6857, %v6864
  %v6866 = vsel %vm6112, %v6865, 0
  %6868 = vmatprep.subr.mxu0 0.0
  %6869 = vmatpush1.msra.mxu0 0.0
  %6870 = vmatprep.subr.mxu0 0.0
  %6871 = vmatpush1.msra.mxu0 0.0
  %6872 = vmatprep.subr.mxu0 0.0
  %6873 = vmatpush1.msra.mxu0 0.0
  %6874 = vmatprep.subr.mxu0 0.0
  %6875 = vmatpush1.msra.mxu0 0.0
  %6876 = vmatprep.subr.mxu0 0.0
  %6877 = vmatpush1.msra.mxu0 0.0
  %6878 = vmatprep.subr.mxu0 0.0
  %6879 = vmatpush1.msra.mxu0 0.0
  %6880 = vmatprep.subr.mxu0 0.0
  %6881 = vmatpush1.msra.mxu0 0.0
  %6882 = vmatprep.subr.mxu0 0.0
  %6883 = vmatpush1.msra.mxu0 0.0
  %6884 = vmatprep.subr.mxu0 0.0
  %6885 = vmatpush1.msra.mxu0 0.0
  %6886 = vmatprep.subr.mxu0 0.0
  %6887 = vmatpush1.msra.mxu0 0.0
  %6888 = vmatprep.subr.mxu0 0.0
  %6889 = vmatpush1.msra.mxu0 0.0
  %6890 = vmatprep.subr.mxu0 0.0
  %6891 = vmatpush1.msra.mxu0 0.0
  %6892 = vmatprep.subr.mxu0 0.0
  %6893 = vmatpush1.msra.mxu0 0.0
  %6894 = vmatprep.subr.mxu0 0.0
  %6895 = vmatpush1.msra.mxu0 0.0
  %6896 = vmatprep.subr.mxu0 0.0
  %6897 = vmatpush1.msra.mxu0 %v6844
  %6898 = vmatprep.subr.mxu0 0.0
  %6899 = vmatpush1.msra.mxu0 %v6843
  %6900 = vmatprep.subr.mxu0 0.0
  %6901 = vmatpush2.msra.mxu0 0.0
  %6902 = vmatprep.subr.mxu0 0.0
  %6903 = vmatpush2.msra.mxu0 0.0
  %6904 = vmatprep.subr.mxu0 0.0
  %6905 = vmatpush2.msra.mxu0 0.0
  %6906 = vmatprep.subr.mxu0 0.0
  %6907 = vmatpush2.msra.mxu0 0.0
  %6908 = vmatprep.subr.mxu0 0.0
  %6909 = vmatpush2.msra.mxu0 0.0
  %6910 = vmatprep.subr.mxu0 0.0
  %6911 = vmatpush2.msra.mxu0 0.0
  %6912 = vmatprep.subr.mxu0 0.0
  %6913 = vmatpush2.msra.mxu0 0.0
  %6914 = vmatprep.subr.mxu0 0.0
  %6915 = vmatpush2.msra.mxu0 0.0
  %6916 = vmatprep.subr.mxu0 0.0
  %6917 = vmatpush2.msra.mxu0 0.0
  %6918 = vmatprep.subr.mxu0 0.0
  %6919 = vmatpush2.msra.mxu0 0.0
  %6920 = vmatprep.subr.mxu0 0.0
  %6921 = vmatpush2.msra.mxu0 0.0
  %6922 = vmatprep.subr.mxu0 0.0
  %6923 = vmatpush2.msra.mxu0 0.0
  %6924 = vmatprep.subr.mxu0 0.0
  %6925 = vmatpush2.msra.mxu0 0.0
  %6926 = vmatprep.subr.mxu0 0.0
  %6927 = vmatpush2.msra.mxu0 0.0
  %6928 = vmatprep.subr.mxu0 0.0
  %6929 = vmatpush2.msra.mxu0 0.0
  %6930 = vmatprep.subr.mxu0 0.0
  %6931 = vmatpush2.msra.mxu0 0.0
  %6932 = vmatprep.mubr.f32.mxu0 0.0
  %6933 = vmatmul.mubr.f32.gmra.mxu0 %v6866
  %v6934 = vpop.f32.mrf.mxu0
  %v6935 = vadd.f32 0.0, %v6934
  %v6936 = vpop.f32.mrf.mxu0
  %6937 = vdwg.mxu0
  %v6938 = vadd.f32 %v6833, %v6935
  %s6939 = scalar_lea.vmem %s6199, 3 [#allocation3]
  %v6940 = vld [vmem:[%s6939] ss:$2 sm:$0x3]
  %s6941 = scalar_lea.vmem %s6199, 19 [#allocation3]
  %v6942 = vld [vmem:[%s6941] ss:$2 sm:$0x3]
  %s6943 = scalar_lea.vmem %s6199, 51 [#allocation3]
  %v6944 = vld [vmem:[%s6943] ss:$2 sm:$0x3]
  %s6945 = scalar_lea.vmem %s6199, 67 [#allocation3]
  %v6946 = vld [vmem:[%s6945] ss:$2 sm:$0x3]
  %s6947 = scalar_lea.vmem %s5, 112
  %v6948 = vld [vmem:[%s6947] sm:$0xff]
  %v6949 = vld [vmem:[%s6947 + $0x8] sm:$0xff]
  %v6954 = vcombine.low %v6940, %v6942
  %v6955 = vcombine.low %v6944, %v6946
  %v6957 = vunpack.c.l.s4 1983009808
  %v6958 = vunpack.c.0.s8 %v6957
  %v6959 = vlaneseq
  %v6960 = vshrl.u32 %v6959, 7
  %v6961 = vsub.s32 %v6958, %v6960
  %v6962 = vrot.slane %v6954, %v6961
  %v6964 = vunpack.c.l.s4 1983009808
  %v6965 = vunpack.c.0.s8 %v6964
  %v6966 = vlaneseq
  %v6967 = vshrl.u32 %v6966, 7
  %v6968 = vsub.s32 %v6965, %v6967
  %v6969 = vrot.slane %v6955, %v6968
  %v6970 = vcombine.low %v6962, %v6969
  %v6971 = vsel %vm6112, %v6970, 0
  %6973 = vmatprep.subr.mxu0 0.0
  %6974 = vmatpush1.msra.mxu0 0.0
  %6975 = vmatprep.subr.mxu0 0.0
  %6976 = vmatpush1.msra.mxu0 0.0
  %6977 = vmatprep.subr.mxu0 0.0
  %6978 = vmatpush1.msra.mxu0 0.0
  %6979 = vmatprep.subr.mxu0 0.0
  %6980 = vmatpush1.msra.mxu0 0.0
  %6981 = vmatprep.subr.mxu0 0.0
  %6982 = vmatpush1.msra.mxu0 0.0
  %6983 = vmatprep.subr.mxu0 0.0
  %6984 = vmatpush1.msra.mxu0 0.0
  %6985 = vmatprep.subr.mxu0 0.0
  %6986 = vmatpush1.msra.mxu0 0.0
  %6987 = vmatprep.subr.mxu0 0.0
  %6988 = vmatpush1.msra.mxu0 0.0
  %6989 = vmatprep.subr.mxu0 0.0
  %6990 = vmatpush1.msra.mxu0 0.0
  %6991 = vmatprep.subr.mxu0 0.0
  %6992 = vmatpush1.msra.mxu0 0.0
  %6993 = vmatprep.subr.mxu0 0.0
  %6994 = vmatpush1.msra.mxu0 0.0
  %6995 = vmatprep.subr.mxu0 0.0
  %6996 = vmatpush1.msra.mxu0 0.0
  %6997 = vmatprep.subr.mxu0 0.0
  %6998 = vmatpush1.msra.mxu0 0.0
  %6999 = vmatprep.subr.mxu0 0.0
  %7000 = vmatpush1.msra.mxu0 0.0
  %7001 = vmatprep.subr.mxu0 0.0
  %7002 = vmatpush1.msra.mxu0 %v6949
  %7003 = vmatprep.subr.mxu0 0.0
  %7004 = vmatpush1.msra.mxu0 %v6948
  %7005 = vmatprep.subr.mxu0 0.0
  %7006 = vmatpush2.msra.mxu0 0.0
  %7007 = vmatprep.subr.mxu0 0.0
  %7008 = vmatpush2.msra.mxu0 0.0
  %7009 = vmatprep.subr.mxu0 0.0
  %7010 = vmatpush2.msra.mxu0 0.0
  %7011 = vmatprep.subr.mxu0 0.0
  %7012 = vmatpush2.msra.mxu0 0.0
  %7013 = vmatprep.subr.mxu0 0.0
  %7014 = vmatpush2.msra.mxu0 0.0
  %7015 = vmatprep.subr.mxu0 0.0
  %7016 = vmatpush2.msra.mxu0 0.0
  %7017 = vmatprep.subr.mxu0 0.0
  %7018 = vmatpush2.msra.mxu0 0.0
  %7019 = vmatprep.subr.mxu0 0.0
  %7020 = vmatpush2.msra.mxu0 0.0
  %7021 = vmatprep.subr.mxu0 0.0
  %7022 = vmatpush2.msra.mxu0 0.0
  %7023 = vmatprep.subr.mxu0 0.0
  %7024 = vmatpush2.msra.mxu0 0.0
  %7025 = vmatprep.subr.mxu0 0.0
  %7026 = vmatpush2.msra.mxu0 0.0
  %7027 = vmatprep.subr.mxu0 0.0
  %7028 = vmatpush2.msra.mxu0 0.0
  %7029 = vmatprep.subr.mxu0 0.0
  %7030 = vmatpush2.msra.mxu0 0.0
  %7031 = vmatprep.subr.mxu0 0.0
  %7032 = vmatpush2.msra.mxu0 0.0
  %7033 = vmatprep.subr.mxu0 0.0
  %7034 = vmatpush2.msra.mxu0 0.0
  %7035 = vmatprep.subr.mxu0 0.0
  %7036 = vmatpush2.msra.mxu0 0.0
  %7037 = vmatprep.mubr.f32.mxu0 0.0
  %7038 = vmatmul.mubr.f32.gmra.mxu0 %v6971
  %v7039 = vpop.f32.mrf.mxu0
  %v7040 = vadd.f32 0.0, %v7039
  %v7041 = vpop.f32.mrf.mxu0
  %7042 = vdwg.mxu0
  %v7043 = vadd.f32 %v6938, %v7040
  %s7044 = scalar_lea.vmem [#allocation3], 16
  %v7045 = vld [vmem:[%s7044] ss:$2 sm:$0x3]
  %s7046 = scalar_lea.vmem %s7044, 16 [#allocation3]
  %v7047 = vld [vmem:[%s7046] ss:$2 sm:$0x3]
  %s7048 = scalar_lea.vmem %s7044, 48 [#allocation3]
  %v7049 = vld [vmem:[%s7048] ss:$2 sm:$0x3]
  %s7050 = scalar_lea.vmem %s7044, 64 [#allocation3]
  %v7051 = vld [vmem:[%s7050] ss:$2 sm:$0x3]
  %s7052 = scalar_lea.vmem %s5, 128
  %v7053 = vld [vmem:[%s7052] sm:$0xff]
  %v7054 = vld [vmem:[%s7052 + $0x8] sm:$0xff]
  %v7059 = vcombine.low %v7045, %v7047
  %v7060 = vcombine.low %v7049, %v7051
  %v7062 = vunpack.c.l.s4 1983009808
  %v7063 = vunpack.c.0.s8 %v7062
  %v7064 = vlaneseq
  %v7065 = vshrl.u32 %v7064, 7
  %v7066 = vsub.s32 %v7063, %v7065
  %v7067 = vrot.slane %v7059, %v7066
  %v7069 = vunpack.c.l.s4 1983009808
  %v7070 = vunpack.c.0.s8 %v7069
  %v7071 = vlaneseq
  %v7072 = vshrl.u32 %v7071, 7
  %v7073 = vsub.s32 %v7070, %v7072
  %v7074 = vrot.slane %v7060, %v7073
  %v7075 = vcombine.low %v7067, %v7074
  %v7076 = vsel %vm6112, %v7075, 0
  %7078 = vmatprep.subr.mxu0 0.0
  %7079 = vmatpush1.msra.mxu0 0.0
  %7080 = vmatprep.subr.mxu0 0.0
  %7081 = vmatpush1.msra.mxu0 0.0
  %7082 = vmatprep.subr.mxu0 0.0
  %7083 = vmatpush1.msra.mxu0 0.0
  %7084 = vmatprep.subr.mxu0 0.0
  %7085 = vmatpush1.msra.mxu0 0.0
  %7086 = vmatprep.subr.mxu0 0.0
  %7087 = vmatpush1.msra.mxu0 0.0
  %7088 = vmatprep.subr.mxu0 0.0
  %7089 = vmatpush1.msra.mxu0 0.0
  %7090 = vmatprep.subr.mxu0 0.0
  %7091 = vmatpush1.msra.mxu0 0.0
  %7092 = vmatprep.subr.mxu0 0.0
  %7093 = vmatpush1.msra.mxu0 0.0
  %7094 = vmatprep.subr.mxu0 0.0
  %7095 = vmatpush1.msra.mxu0 0.0
  %7096 = vmatprep.subr.mxu0 0.0
  %7097 = vmatpush1.msra.mxu0 0.0
  %7098 = vmatprep.subr.mxu0 0.0
  %7099 = vmatpush1.msra.mxu0 0.0
  %7100 = vmatprep.subr.mxu0 0.0
  %7101 = vmatpush1.msra.mxu0 0.0
  %7102 = vmatprep.subr.mxu0 0.0
  %7103 = vmatpush1.msra.mxu0 0.0
  %7104 = vmatprep.subr.mxu0 0.0
  %7105 = vmatpush1.msra.mxu0 0.0
  %7106 = vmatprep.subr.mxu0 0.0
  %7107 = vmatpush1.msra.mxu0 %v7054
  %7108 = vmatprep.subr.mxu0 0.0
  %7109 = vmatpush1.msra.mxu0 %v7053
  %7110 = vmatprep.subr.mxu0 0.0
  %7111 = vmatpush2.msra.mxu0 0.0
  %7112 = vmatprep.subr.mxu0 0.0
  %7113 = vmatpush2.msra.mxu0 0.0
  %7114 = vmatprep.subr.mxu0 0.0
  %7115 = vmatpush2.msra.mxu0 0.0
  %7116 = vmatprep.subr.mxu0 0.0
  %7117 = vmatpush2.msra.mxu0 0.0
  %7118 = vmatprep.subr.mxu0 0.0
  %7119 = vmatpush2.msra.mxu0 0.0
  %7120 = vmatprep.subr.mxu0 0.0
  %7121 = vmatpush2.msra.mxu0 0.0
  %7122 = vmatprep.subr.mxu0 0.0
  %7123 = vmatpush2.msra.mxu0 0.0
  %7124 = vmatprep.subr.mxu0 0.0
  %7125 = vmatpush2.msra.mxu0 0.0
  %7126 = vmatprep.subr.mxu0 0.0
  %7127 = vmatpush2.msra.mxu0 0.0
  %7128 = vmatprep.subr.mxu0 0.0
  %7129 = vmatpush2.msra.mxu0 0.0
  %7130 = vmatprep.subr.mxu0 0.0
  %7131 = vmatpush2.msra.mxu0 0.0
  %7132 = vmatprep.subr.mxu0 0.0
  %7133 = vmatpush2.msra.mxu0 0.0
  %7134 = vmatprep.subr.mxu0 0.0
  %7135 = vmatpush2.msra.mxu0 0.0
  %7136 = vmatprep.subr.mxu0 0.0
  %7137 = vmatpush2.msra.mxu0 0.0
  %7138 = vmatprep.subr.mxu0 0.0
  %7139 = vmatpush2.msra.mxu0 0.0
  %7140 = vmatprep.subr.mxu0 0.0
  %7141 = vmatpush2.msra.mxu0 0.0
  %7142 = vmatprep.mubr.f32.mxu0 0.0
  %7143 = vmatmul.mubr.f32.gmra.mxu0 %v7076
  %v7144 = vpop.f32.mrf.mxu0
  %v7145 = vadd.f32 0.0, %v7144
  %v7146 = vpop.f32.mrf.mxu0
  %7147 = vdwg.mxu0
  %v7148 = vadd.f32 %v7043, %v7145
  %s7149 = scalar_lea.vmem %s7044, 1 [#allocation3]
  %v7150 = vld [vmem:[%s7149] ss:$2 sm:$0x3]
  %s7151 = scalar_lea.vmem %s7044, 17 [#allocation3]
  %v7152 = vld [vmem:[%s7151] ss:$2 sm:$0x3]
  %s7153 = scalar_lea.vmem %s7044, 49 [#allocation3]
  %v7154 = vld [vmem:[%s7153] ss:$2 sm:$0x3]
  %s7155 = scalar_lea.vmem %s7044, 65 [#allocation3]
  %v7156 = vld [vmem:[%s7155] ss:$2 sm:$0x3]
  %s7157 = scalar_lea.vmem %s5, 144
  %v7158 = vld [vmem:[%s7157] sm:$0xff]
  %v7159 = vld [vmem:[%s7157 + $0x8] sm:$0xff]
  %v7164 = vcombine.low %v7150, %v7152
  %v7165 = vcombine.low %v7154, %v7156
  %v7167 = vunpack.c.l.s4 1983009808
  %v7168 = vunpack.c.0.s8 %v7167
  %v7169 = vlaneseq
  %v7170 = vshrl.u32 %v7169, 7
  %v7171 = vsub.s32 %v7168, %v7170
  %v7172 = vrot.slane %v7164, %v7171
  %v7174 = vunpack.c.l.s4 1983009808
  %v7175 = vunpack.c.0.s8 %v7174
  %v7176 = vlaneseq
  %v7177 = vshrl.u32 %v7176, 7
  %v7178 = vsub.s32 %v7175, %v7177
  %v7179 = vrot.slane %v7165, %v7178
  %v7180 = vcombine.low %v7172, %v7179
  %v7181 = vsel %vm6112, %v7180, 0
  %7183 = vmatprep.subr.mxu0 0.0
  %7184 = vmatpush1.msra.mxu0 0.0
  %7185 = vmatprep.subr.mxu0 0.0
  %7186 = vmatpush1.msra.mxu0 0.0
  %7187 = vmatprep.subr.mxu0 0.0
  %7188 = vmatpush1.msra.mxu0 0.0
  %7189 = vmatprep.subr.mxu0 0.0
  %7190 = vmatpush1.msra.mxu0 0.0
  %7191 = vmatprep.subr.mxu0 0.0
  %7192 = vmatpush1.msra.mxu0 0.0
  %7193 = vmatprep.subr.mxu0 0.0
  %7194 = vmatpush1.msra.mxu0 0.0
  %7195 = vmatprep.subr.mxu0 0.0
  %7196 = vmatpush1.msra.mxu0 0.0
  %7197 = vmatprep.subr.mxu0 0.0
  %7198 = vmatpush1.msra.mxu0 0.0
  %7199 = vmatprep.subr.mxu0 0.0
  %7200 = vmatpush1.msra.mxu0 0.0
  %7201 = vmatprep.subr.mxu0 0.0
  %7202 = vmatpush1.msra.mxu0 0.0
  %7203 = vmatprep.subr.mxu0 0.0
  %7204 = vmatpush1.msra.mxu0 0.0
  %7205 = vmatprep.subr.mxu0 0.0
  %7206 = vmatpush1.msra.mxu0 0.0
  %7207 = vmatprep.subr.mxu0 0.0
  %7208 = vmatpush1.msra.mxu0 0.0
  %7209 = vmatprep.subr.mxu0 0.0
  %7210 = vmatpush1.msra.mxu0 0.0
  %7211 = vmatprep.subr.mxu0 0.0
  %7212 = vmatpush1.msra.mxu0 %v7159
  %7213 = vmatprep.subr.mxu0 0.0
  %7214 = vmatpush1.msra.mxu0 %v7158
  %7215 = vmatprep.subr.mxu0 0.0
  %7216 = vmatpush2.msra.mxu0 0.0
  %7217 = vmatprep.subr.mxu0 0.0
  %7218 = vmatpush2.msra.mxu0 0.0
  %7219 = vmatprep.subr.mxu0 0.0
  %7220 = vmatpush2.msra.mxu0 0.0
  %7221 = vmatprep.subr.mxu0 0.0
  %7222 = vmatpush2.msra.mxu0 0.0
  %7223 = vmatprep.subr.mxu0 0.0
  %7224 = vmatpush2.msra.mxu0 0.0
  %7225 = vmatprep.subr.mxu0 0.0
  %7226 = vmatpush2.msra.mxu0 0.0
  %7227 = vmatprep.subr.mxu0 0.0
  %7228 = vmatpush2.msra.mxu0 0.0
  %7229 = vmatprep.subr.mxu0 0.0
  %7230 = vmatpush2.msra.mxu0 0.0
  %7231 = vmatprep.subr.mxu0 0.0
  %7232 = vmatpush2.msra.mxu0 0.0
  %7233 = vmatprep.subr.mxu0 0.0
  %7234 = vmatpush2.msra.mxu0 0.0
  %7235 = vmatprep.subr.mxu0 0.0
  %7236 = vmatpush2.msra.mxu0 0.0
  %7237 = vmatprep.subr.mxu0 0.0
  %7238 = vmatpush2.msra.mxu0 0.0
  %7239 = vmatprep.subr.mxu0 0.0
  %7240 = vmatpush2.msra.mxu0 0.0
  %7241 = vmatprep.subr.mxu0 0.0
  %7242 = vmatpush2.msra.mxu0 0.0
  %7243 = vmatprep.subr.mxu0 0.0
  %7244 = vmatpush2.msra.mxu0 0.0
  %7245 = vmatprep.subr.mxu0 0.0
  %7246 = vmatpush2.msra.mxu0 0.0
  %7247 = vmatprep.mubr.f32.mxu0 0.0
  %7248 = vmatmul.mubr.f32.gmra.mxu0 %v7181
  %v7249 = vpop.f32.mrf.mxu0
  %v7250 = vadd.f32 0.0, %v7249
  %v7251 = vpop.f32.mrf.mxu0
  %7252 = vdwg.mxu0
  %v7253 = vadd.f32 %v7148, %v7250
  %s7254 = scalar_lea.vmem %s7044, 2 [#allocation3]
  %v7255 = vld [vmem:[%s7254] ss:$2 sm:$0x3]
  %s7256 = scalar_lea.vmem %s7044, 18 [#allocation3]
  %v7257 = vld [vmem:[%s7256] ss:$2 sm:$0x3]
  %s7258 = scalar_lea.vmem %s7044, 50 [#allocation3]
  %v7259 = vld [vmem:[%s7258] ss:$2 sm:$0x3]
  %s7260 = scalar_lea.vmem %s7044, 66 [#allocation3]
  %v7261 = vld [vmem:[%s7260] ss:$2 sm:$0x3]
  %s7262 = scalar_lea.vmem %s5, 160
  %v7263 = vld [vmem:[%s7262] sm:$0xff]
  %v7264 = vld [vmem:[%s7262 + $0x8] sm:$0xff]
  %v7269 = vcombine.low %v7255, %v7257
  %v7270 = vcombine.low %v7259, %v7261
  %v7272 = vunpack.c.l.s4 1983009808
  %v7273 = vunpack.c.0.s8 %v7272
  %v7274 = vlaneseq
  %v7275 = vshrl.u32 %v7274, 7
  %v7276 = vsub.s32 %v7273, %v7275
  %v7277 = vrot.slane %v7269, %v7276
  %v7279 = vunpack.c.l.s4 1983009808
  %v7280 = vunpack.c.0.s8 %v7279
  %v7281 = vlaneseq
  %v7282 = vshrl.u32 %v7281, 7
  %v7283 = vsub.s32 %v7280, %v7282
  %v7284 = vrot.slane %v7270, %v7283
  %v7285 = vcombine.low %v7277, %v7284
  %v7286 = vsel %vm6112, %v7285, 0
  %7288 = vmatprep.subr.mxu0 0.0
  %7289 = vmatpush1.msra.mxu0 0.0
  %7290 = vmatprep.subr.mxu0 0.0
  %7291 = vmatpush1.msra.mxu0 0.0
  %7292 = vmatprep.subr.mxu0 0.0
  %7293 = vmatpush1.msra.mxu0 0.0
  %7294 = vmatprep.subr.mxu0 0.0
  %7295 = vmatpush1.msra.mxu0 0.0
  %7296 = vmatprep.subr.mxu0 0.0
  %7297 = vmatpush1.msra.mxu0 0.0
  %7298 = vmatprep.subr.mxu0 0.0
  %7299 = vmatpush1.msra.mxu0 0.0
  %7300 = vmatprep.subr.mxu0 0.0
  %7301 = vmatpush1.msra.mxu0 0.0
  %7302 = vmatprep.subr.mxu0 0.0
  %7303 = vmatpush1.msra.mxu0 0.0
  %7304 = vmatprep.subr.mxu0 0.0
  %7305 = vmatpush1.msra.mxu0 0.0
  %7306 = vmatprep.subr.mxu0 0.0
  %7307 = vmatpush1.msra.mxu0 0.0
  %7308 = vmatprep.subr.mxu0 0.0
  %7309 = vmatpush1.msra.mxu0 0.0
  %7310 = vmatprep.subr.mxu0 0.0
  %7311 = vmatpush1.msra.mxu0 0.0
  %7312 = vmatprep.subr.mxu0 0.0
  %7313 = vmatpush1.msra.mxu0 0.0
  %7314 = vmatprep.subr.mxu0 0.0
  %7315 = vmatpush1.msra.mxu0 0.0
  %7316 = vmatprep.subr.mxu0 0.0
  %7317 = vmatpush1.msra.mxu0 %v7264
  %7318 = vmatprep.subr.mxu0 0.0
  %7319 = vmatpush1.msra.mxu0 %v7263
  %7320 = vmatprep.subr.mxu0 0.0
  %7321 = vmatpush2.msra.mxu0 0.0
  %7322 = vmatprep.subr.mxu0 0.0
  %7323 = vmatpush2.msra.mxu0 0.0
  %7324 = vmatprep.subr.mxu0 0.0
  %7325 = vmatpush2.msra.mxu0 0.0
  %7326 = vmatprep.subr.mxu0 0.0
  %7327 = vmatpush2.msra.mxu0 0.0
  %7328 = vmatprep.subr.mxu0 0.0
  %7329 = vmatpush2.msra.mxu0 0.0
  %7330 = vmatprep.subr.mxu0 0.0
  %7331 = vmatpush2.msra.mxu0 0.0
  %7332 = vmatprep.subr.mxu0 0.0
  %7333 = vmatpush2.msra.mxu0 0.0
  %7334 = vmatprep.subr.mxu0 0.0
  %7335 = vmatpush2.msra.mxu0 0.0
  %7336 = vmatprep.subr.mxu0 0.0
  %7337 = vmatpush2.msra.mxu0 0.0
  %7338 = vmatprep.subr.mxu0 0.0
  %7339 = vmatpush2.msra.mxu0 0.0
  %7340 = vmatprep.subr.mxu0 0.0
  %7341 = vmatpush2.msra.mxu0 0.0
  %7342 = vmatprep.subr.mxu0 0.0
  %7343 = vmatpush2.msra.mxu0 0.0
  %7344 = vmatprep.subr.mxu0 0.0
  %7345 = vmatpush2.msra.mxu0 0.0
  %7346 = vmatprep.subr.mxu0 0.0
  %7347 = vmatpush2.msra.mxu0 0.0
  %7348 = vmatprep.subr.mxu0 0.0
  %7349 = vmatpush2.msra.mxu0 0.0
  %7350 = vmatprep.subr.mxu0 0.0
  %7351 = vmatpush2.msra.mxu0 0.0
  %7352 = vmatprep.mubr.f32.mxu0 0.0
  %7353 = vmatmul.mubr.f32.gmra.mxu0 %v7286
  %v7354 = vpop.f32.mrf.mxu0
  %v7355 = vadd.f32 0.0, %v7354
  %v7356 = vpop.f32.mrf.mxu0
  %7357 = vdwg.mxu0
  %v7358 = vadd.f32 %v7253, %v7355
  %s7359 = scalar_lea.vmem %s7044, 3 [#allocation3]
  %v7360 = vld [vmem:[%s7359] ss:$2 sm:$0x3]
  %s7361 = scalar_lea.vmem %s7044, 19 [#allocation3]
  %v7362 = vld [vmem:[%s7361] ss:$2 sm:$0x3]
  %s7363 = scalar_lea.vmem %s7044, 51 [#allocation3]
  %v7364 = vld [vmem:[%s7363] ss:$2 sm:$0x3]
  %s7365 = scalar_lea.vmem %s7044, 67 [#allocation3]
  %v7366 = vld [vmem:[%s7365] ss:$2 sm:$0x3]
  %s7367 = scalar_lea.vmem %s5, 176
  %v7368 = vld [vmem:[%s7367] sm:$0xff]
  %v7369 = vld [vmem:[%s7367 + $0x8] sm:$0xff]
  %v7374 = vcombine.low %v7360, %v7362
  %v7375 = vcombine.low %v7364, %v7366
  %v7377 = vunpack.c.l.s4 1983009808
  %v7378 = vunpack.c.0.s8 %v7377
  %v7379 = vlaneseq
  %v7380 = vshrl.u32 %v7379, 7
  %v7381 = vsub.s32 %v7378, %v7380
  %v7382 = vrot.slane %v7374, %v7381
  %v7384 = vunpack.c.l.s4 1983009808
  %v7385 = vunpack.c.0.s8 %v7384
  %v7386 = vlaneseq
  %v7387 = vshrl.u32 %v7386, 7
  %v7388 = vsub.s32 %v7385, %v7387
  %v7389 = vrot.slane %v7375, %v7388
  %v7390 = vcombine.low %v7382, %v7389
  %v7391 = vsel %vm6112, %v7390, 0
  %7393 = vmatprep.subr.mxu0 0.0
  %7394 = vmatpush1.msra.mxu0 0.0
  %7395 = vmatprep.subr.mxu0 0.0
  %7396 = vmatpush1.msra.mxu0 0.0
  %7397 = vmatprep.subr.mxu0 0.0
  %7398 = vmatpush1.msra.mxu0 0.0
  %7399 = vmatprep.subr.mxu0 0.0
  %7400 = vmatpush1.msra.mxu0 0.0
  %7401 = vmatprep.subr.mxu0 0.0
  %7402 = vmatpush1.msra.mxu0 0.0
  %7403 = vmatprep.subr.mxu0 0.0
  %7404 = vmatpush1.msra.mxu0 0.0
  %7405 = vmatprep.subr.mxu0 0.0
  %7406 = vmatpush1.msra.mxu0 0.0
  %7407 = vmatprep.subr.mxu0 0.0
  %7408 = vmatpush1.msra.mxu0 0.0
  %7409 = vmatprep.subr.mxu0 0.0
  %7410 = vmatpush1.msra.mxu0 0.0
  %7411 = vmatprep.subr.mxu0 0.0
  %7412 = vmatpush1.msra.mxu0 0.0
  %7413 = vmatprep.subr.mxu0 0.0
  %7414 = vmatpush1.msra.mxu0 0.0
  %7415 = vmatprep.subr.mxu0 0.0
  %7416 = vmatpush1.msra.mxu0 0.0
  %7417 = vmatprep.subr.mxu0 0.0
  %7418 = vmatpush1.msra.mxu0 0.0
  %7419 = vmatprep.subr.mxu0 0.0
  %7420 = vmatpush1.msra.mxu0 0.0
  %7421 = vmatprep.subr.mxu0 0.0
  %7422 = vmatpush1.msra.mxu0 %v7369
  %7423 = vmatprep.subr.mxu0 0.0
  %7424 = vmatpush1.msra.mxu0 %v7368
  %7425 = vmatprep.subr.mxu0 0.0
  %7426 = vmatpush2.msra.mxu0 0.0
  %7427 = vmatprep.subr.mxu0 0.0
  %7428 = vmatpush2.msra.mxu0 0.0
  %7429 = vmatprep.subr.mxu0 0.0
  %7430 = vmatpush2.msra.mxu0 0.0
  %7431 = vmatprep.subr.mxu0 0.0
  %7432 = vmatpush2.msra.mxu0 0.0
  %7433 = vmatprep.subr.mxu0 0.0
  %7434 = vmatpush2.msra.mxu0 0.0
  %7435 = vmatprep.subr.mxu0 0.0
  %7436 = vmatpush2.msra.mxu0 0.0
  %7437 = vmatprep.subr.mxu0 0.0
  %7438 = vmatpush2.msra.mxu0 0.0
  %7439 = vmatprep.subr.mxu0 0.0
  %7440 = vmatpush2.msra.mxu0 0.0
  %7441 = vmatprep.subr.mxu0 0.0
  %7442 = vmatpush2.msra.mxu0 0.0
  %7443 = vmatprep.subr.mxu0 0.0
  %7444 = vmatpush2.msra.mxu0 0.0
  %7445 = vmatprep.subr.mxu0 0.0
  %7446 = vmatpush2.msra.mxu0 0.0
  %7447 = vmatprep.subr.mxu0 0.0
  %7448 = vmatpush2.msra.mxu0 0.0
  %7449 = vmatprep.subr.mxu0 0.0
  %7450 = vmatpush2.msra.mxu0 0.0
  %7451 = vmatprep.subr.mxu0 0.0
  %7452 = vmatpush2.msra.mxu0 0.0
  %7453 = vmatprep.subr.mxu0 0.0
  %7454 = vmatpush2.msra.mxu0 0.0
  %7455 = vmatprep.subr.mxu0 0.0
  %7456 = vmatpush2.msra.mxu0 0.0
  %7457 = vmatprep.mubr.f32.mxu0 0.0
  %7458 = vmatmul.mubr.f32.gmra.mxu0 %v7391
  %v7459 = vpop.f32.mrf.mxu0
  %v7460 = vadd.f32 0.0, %v7459
  %v7461 = vpop.f32.mrf.mxu0
  %7462 = vdwg.mxu0
  %v7463 = vadd.f32 %v7358, %v7460
  %s7464 = scalar_lea.vmem [#allocation3], 24
  %v7465 = vld [vmem:[%s7464] ss:$2 sm:$0x3]
  %s7466 = scalar_lea.vmem %s7464, 16 [#allocation3]
  %v7467 = vld [vmem:[%s7466] ss:$2 sm:$0x3]
  %s7468 = scalar_lea.vmem %s7464, 48 [#allocation3]
  %v7469 = vld [vmem:[%s7468] ss:$2 sm:$0x3]
  %s7470 = scalar_lea.vmem %s7464, 64 [#allocation3]
  %v7471 = vld [vmem:[%s7470] ss:$2 sm:$0x3]
  %s7472 = scalar_lea.vmem %s5, 192
  %v7473 = vld [vmem:[%s7472] sm:$0xff]
  %v7474 = vld [vmem:[%s7472 + $0x8] sm:$0xff]
  %v7479 = vcombine.low %v7465, %v7467
  %v7480 = vcombine.low %v7469, %v7471
  %v7482 = vunpack.c.l.s4 1983009808
  %v7483 = vunpack.c.0.s8 %v7482
  %v7484 = vlaneseq
  %v7485 = vshrl.u32 %v7484, 7
  %v7486 = vsub.s32 %v7483, %v7485
  %v7487 = vrot.slane %v7479, %v7486
  %v7489 = vunpack.c.l.s4 1983009808
  %v7490 = vunpack.c.0.s8 %v7489
  %v7491 = vlaneseq
  %v7492 = vshrl.u32 %v7491, 7
  %v7493 = vsub.s32 %v7490, %v7492
  %v7494 = vrot.slane %v7480, %v7493
  %v7495 = vcombine.low %v7487, %v7494
  %v7496 = vsel %vm6112, %v7495, 0
  %7498 = vmatprep.subr.mxu0 0.0
  %7499 = vmatpush1.msra.mxu0 0.0
  %7500 = vmatprep.subr.mxu0 0.0
  %7501 = vmatpush1.msra.mxu0 0.0
  %7502 = vmatprep.subr.mxu0 0.0
  %7503 = vmatpush1.msra.mxu0 0.0
  %7504 = vmatprep.subr.mxu0 0.0
  %7505 = vmatpush1.msra.mxu0 0.0
  %7506 = vmatprep.subr.mxu0 0.0
  %7507 = vmatpush1.msra.mxu0 0.0
  %7508 = vmatprep.subr.mxu0 0.0
  %7509 = vmatpush1.msra.mxu0 0.0
  %7510 = vmatprep.subr.mxu0 0.0
  %7511 = vmatpush1.msra.mxu0 0.0
  %7512 = vmatprep.subr.mxu0 0.0
  %7513 = vmatpush1.msra.mxu0 0.0
  %7514 = vmatprep.subr.mxu0 0.0
  %7515 = vmatpush1.msra.mxu0 0.0
  %7516 = vmatprep.subr.mxu0 0.0
  %7517 = vmatpush1.msra.mxu0 0.0
  %7518 = vmatprep.subr.mxu0 0.0
  %7519 = vmatpush1.msra.mxu0 0.0
  %7520 = vmatprep.subr.mxu0 0.0
  %7521 = vmatpush1.msra.mxu0 0.0
  %7522 = vmatprep.subr.mxu0 0.0
  %7523 = vmatpush1.msra.mxu0 0.0
  %7524 = vmatprep.subr.mxu0 0.0
  %7525 = vmatpush1.msra.mxu0 0.0
  %7526 = vmatprep.subr.mxu0 0.0
  %7527 = vmatpush1.msra.mxu0 %v7474
  %7528 = vmatprep.subr.mxu0 0.0
  %7529 = vmatpush1.msra.mxu0 %v7473
  %7530 = vmatprep.subr.mxu0 0.0
  %7531 = vmatpush2.msra.mxu0 0.0
  %7532 = vmatprep.subr.mxu0 0.0
  %7533 = vmatpush2.msra.mxu0 0.0
  %7534 = vmatprep.subr.mxu0 0.0
  %7535 = vmatpush2.msra.mxu0 0.0
  %7536 = vmatprep.subr.mxu0 0.0
  %7537 = vmatpush2.msra.mxu0 0.0
  %7538 = vmatprep.subr.mxu0 0.0
  %7539 = vmatpush2.msra.mxu0 0.0
  %7540 = vmatprep.subr.mxu0 0.0
  %7541 = vmatpush2.msra.mxu0 0.0
  %7542 = vmatprep.subr.mxu0 0.0
  %7543 = vmatpush2.msra.mxu0 0.0
  %7544 = vmatprep.subr.mxu0 0.0
  %7545 = vmatpush2.msra.mxu0 0.0
  %7546 = vmatprep.subr.mxu0 0.0
  %7547 = vmatpush2.msra.mxu0 0.0
  %7548 = vmatprep.subr.mxu0 0.0
  %7549 = vmatpush2.msra.mxu0 0.0
  %7550 = vmatprep.subr.mxu0 0.0
  %7551 = vmatpush2.msra.mxu0 0.0
  %7552 = vmatprep.subr.mxu0 0.0
  %7553 = vmatpush2.msra.mxu0 0.0
  %7554 = vmatprep.subr.mxu0 0.0
  %7555 = vmatpush2.msra.mxu0 0.0
  %7556 = vmatprep.subr.mxu0 0.0
  %7557 = vmatpush2.msra.mxu0 0.0
  %7558 = vmatprep.subr.mxu0 0.0
  %7559 = vmatpush2.msra.mxu0 0.0
  %7560 = vmatprep.subr.mxu0 0.0
  %7561 = vmatpush2.msra.mxu0 0.0
  %7562 = vmatprep.mubr.f32.mxu0 0.0
  %7563 = vmatmul.mubr.f32.gmra.mxu0 %v7496
  %v7564 = vpop.f32.mrf.mxu0
  %v7565 = vadd.f32 0.0, %v7564
  %v7566 = vpop.f32.mrf.mxu0
  %7567 = vdwg.mxu0
  %v7568 = vadd.f32 %v7463, %v7565
  %s7569 = scalar_lea.vmem %s7464, 1 [#allocation3]
  %v7570 = vld [vmem:[%s7569] ss:$2 sm:$0x3]
  %s7571 = scalar_lea.vmem %s7464, 17 [#allocation3]
  %v7572 = vld [vmem:[%s7571] ss:$2 sm:$0x3]
  %s7573 = scalar_lea.vmem %s7464, 49 [#allocation3]
  %v7574 = vld [vmem:[%s7573] ss:$2 sm:$0x3]
  %s7575 = scalar_lea.vmem %s7464, 65 [#allocation3]
  %v7576 = vld [vmem:[%s7575] ss:$2 sm:$0x3]
  %s7577 = scalar_lea.vmem %s5, 208
  %v7578 = vld [vmem:[%s7577] sm:$0xff]
  %v7579 = vld [vmem:[%s7577 + $0x8] sm:$0xff]
  %v7584 = vcombine.low %v7570, %v7572
  %v7585 = vcombine.low %v7574, %v7576
  %v7587 = vunpack.c.l.s4 1983009808
  %v7588 = vunpack.c.0.s8 %v7587
  %v7589 = vlaneseq
  %v7590 = vshrl.u32 %v7589, 7
  %v7591 = vsub.s32 %v7588, %v7590
  %v7592 = vrot.slane %v7584, %v7591
  %v7594 = vunpack.c.l.s4 1983009808
  %v7595 = vunpack.c.0.s8 %v7594
  %v7596 = vlaneseq
  %v7597 = vshrl.u32 %v7596, 7
  %v7598 = vsub.s32 %v7595, %v7597
  %v7599 = vrot.slane %v7585, %v7598
  %v7600 = vcombine.low %v7592, %v7599
  %v7601 = vsel %vm6112, %v7600, 0
  %7603 = vmatprep.subr.mxu0 0.0
  %7604 = vmatpush1.msra.mxu0 0.0
  %7605 = vmatprep.subr.mxu0 0.0
  %7606 = vmatpush1.msra.mxu0 0.0
  %7607 = vmatprep.subr.mxu0 0.0
  %7608 = vmatpush1.msra.mxu0 0.0
  %7609 = vmatprep.subr.mxu0 0.0
  %7610 = vmatpush1.msra.mxu0 0.0
  %7611 = vmatprep.subr.mxu0 0.0
  %7612 = vmatpush1.msra.mxu0 0.0
  %7613 = vmatprep.subr.mxu0 0.0
  %7614 = vmatpush1.msra.mxu0 0.0
  %7615 = vmatprep.subr.mxu0 0.0
  %7616 = vmatpush1.msra.mxu0 0.0
  %7617 = vmatprep.subr.mxu0 0.0
  %7618 = vmatpush1.msra.mxu0 0.0
  %7619 = vmatprep.subr.mxu0 0.0
  %7620 = vmatpush1.msra.mxu0 0.0
  %7621 = vmatprep.subr.mxu0 0.0
  %7622 = vmatpush1.msra.mxu0 0.0
  %7623 = vmatprep.subr.mxu0 0.0
  %7624 = vmatpush1.msra.mxu0 0.0
  %7625 = vmatprep.subr.mxu0 0.0
  %7626 = vmatpush1.msra.mxu0 0.0
  %7627 = vmatprep.subr.mxu0 0.0
  %7628 = vmatpush1.msra.mxu0 0.0
  %7629 = vmatprep.subr.mxu0 0.0
  %7630 = vmatpush1.msra.mxu0 0.0
  %7631 = vmatprep.subr.mxu0 0.0
  %7632 = vmatpush1.msra.mxu0 %v7579
  %7633 = vmatprep.subr.mxu0 0.0
  %7634 = vmatpush1.msra.mxu0 %v7578
  %7635 = vmatprep.subr.mxu0 0.0
  %7636 = vmatpush2.msra.mxu0 0.0
  %7637 = vmatprep.subr.mxu0 0.0
  %7638 = vmatpush2.msra.mxu0 0.0
  %7639 = vmatprep.subr.mxu0 0.0
  %7640 = vmatpush2.msra.mxu0 0.0
  %7641 = vmatprep.subr.mxu0 0.0
  %7642 = vmatpush2.msra.mxu0 0.0
  %7643 = vmatprep.subr.mxu0 0.0
  %7644 = vmatpush2.msra.mxu0 0.0
  %7645 = vmatprep.subr.mxu0 0.0
  %7646 = vmatpush2.msra.mxu0 0.0
  %7647 = vmatprep.subr.mxu0 0.0
  %7648 = vmatpush2.msra.mxu0 0.0
  %7649 = vmatprep.subr.mxu0 0.0
  %7650 = vmatpush2.msra.mxu0 0.0
  %7651 = vmatprep.subr.mxu0 0.0
  %7652 = vmatpush2.msra.mxu0 0.0
  %7653 = vmatprep.subr.mxu0 0.0
  %7654 = vmatpush2.msra.mxu0 0.0
  %7655 = vmatprep.subr.mxu0 0.0
  %7656 = vmatpush2.msra.mxu0 0.0
  %7657 = vmatprep.subr.mxu0 0.0
  %7658 = vmatpush2.msra.mxu0 0.0
  %7659 = vmatprep.subr.mxu0 0.0
  %7660 = vmatpush2.msra.mxu0 0.0
  %7661 = vmatprep.subr.mxu0 0.0
  %7662 = vmatpush2.msra.mxu0 0.0
  %7663 = vmatprep.subr.mxu0 0.0
  %7664 = vmatpush2.msra.mxu0 0.0
  %7665 = vmatprep.subr.mxu0 0.0
  %7666 = vmatpush2.msra.mxu0 0.0
  %7667 = vmatprep.mubr.f32.mxu0 0.0
  %7668 = vmatmul.mubr.f32.gmra.mxu0 %v7601
  %v7669 = vpop.f32.mrf.mxu0
  %v7670 = vadd.f32 0.0, %v7669
  %v7671 = vpop.f32.mrf.mxu0
  %7672 = vdwg.mxu0
  %v7673 = vadd.f32 %v7568, %v7670
  %s7674 = scalar_lea.vmem %s7464, 2 [#allocation3]
  %v7675 = vld [vmem:[%s7674] ss:$2 sm:$0x3]
  %s7676 = scalar_lea.vmem %s7464, 18 [#allocation3]
  %v7677 = vld [vmem:[%s7676] ss:$2 sm:$0x3]
  %s7678 = scalar_lea.vmem %s7464, 50 [#allocation3]
  %v7679 = vld [vmem:[%s7678] ss:$2 sm:$0x3]
  %s7680 = scalar_lea.vmem %s7464, 66 [#allocation3]
  %v7681 = vld [vmem:[%s7680] ss:$2 sm:$0x3]
  %s7682 = scalar_lea.vmem %s5, 224
  %v7683 = vld [vmem:[%s7682] sm:$0xff]
  %v7684 = vld [vmem:[%s7682 + $0x8] sm:$0xff]
  %v7689 = vcombine.low %v7675, %v7677
  %v7690 = vcombine.low %v7679, %v7681
  %v7692 = vunpack.c.l.s4 1983009808
  %v7693 = vunpack.c.0.s8 %v7692
  %v7694 = vlaneseq
  %v7695 = vshrl.u32 %v7694, 7
  %v7696 = vsub.s32 %v7693, %v7695
  %v7697 = vrot.slane %v7689, %v7696
  %v7699 = vunpack.c.l.s4 1983009808
  %v7700 = vunpack.c.0.s8 %v7699
  %v7701 = vlaneseq
  %v7702 = vshrl.u32 %v7701, 7
  %v7703 = vsub.s32 %v7700, %v7702
  %v7704 = vrot.slane %v7690, %v7703
  %v7705 = vcombine.low %v7697, %v7704
  %v7706 = vsel %vm6112, %v7705, 0
  %7708 = vmatprep.subr.mxu0 0.0
  %7709 = vmatpush1.msra.mxu0 0.0
  %7710 = vmatprep.subr.mxu0 0.0
  %7711 = vmatpush1.msra.mxu0 0.0
  %7712 = vmatprep.subr.mxu0 0.0
  %7713 = vmatpush1.msra.mxu0 0.0
  %7714 = vmatprep.subr.mxu0 0.0
  %7715 = vmatpush1.msra.mxu0 0.0
  %7716 = vmatprep.subr.mxu0 0.0
  %7717 = vmatpush1.msra.mxu0 0.0
  %7718 = vmatprep.subr.mxu0 0.0
  %7719 = vmatpush1.msra.mxu0 0.0
  %7720 = vmatprep.subr.mxu0 0.0
  %7721 = vmatpush1.msra.mxu0 0.0
  %7722 = vmatprep.subr.mxu0 0.0
  %7723 = vmatpush1.msra.mxu0 0.0
  %7724 = vmatprep.subr.mxu0 0.0
  %7725 = vmatpush1.msra.mxu0 0.0
  %7726 = vmatprep.subr.mxu0 0.0
  %7727 = vmatpush1.msra.mxu0 0.0
  %7728 = vmatprep.subr.mxu0 0.0
  %7729 = vmatpush1.msra.mxu0 0.0
  %7730 = vmatprep.subr.mxu0 0.0
  %7731 = vmatpush1.msra.mxu0 0.0
  %7732 = vmatprep.subr.mxu0 0.0
  %7733 = vmatpush1.msra.mxu0 0.0
  %7734 = vmatprep.subr.mxu0 0.0
  %7735 = vmatpush1.msra.mxu0 0.0
  %7736 = vmatprep.subr.mxu0 0.0
  %7737 = vmatpush1.msra.mxu0 %v7684
  %7738 = vmatprep.subr.mxu0 0.0
  %7739 = vmatpush1.msra.mxu0 %v7683
  %7740 = vmatprep.subr.mxu0 0.0
  %7741 = vmatpush2.msra.mxu0 0.0
  %7742 = vmatprep.subr.mxu0 0.0
  %7743 = vmatpush2.msra.mxu0 0.0
  %7744 = vmatprep.subr.mxu0 0.0
  %7745 = vmatpush2.msra.mxu0 0.0
  %7746 = vmatprep.subr.mxu0 0.0
  %7747 = vmatpush2.msra.mxu0 0.0
  %7748 = vmatprep.subr.mxu0 0.0
  %7749 = vmatpush2.msra.mxu0 0.0
  %7750 = vmatprep.subr.mxu0 0.0
  %7751 = vmatpush2.msra.mxu0 0.0
  %7752 = vmatprep.subr.mxu0 0.0
  %7753 = vmatpush2.msra.mxu0 0.0
  %7754 = vmatprep.subr.mxu0 0.0
  %7755 = vmatpush2.msra.mxu0 0.0
  %7756 = vmatprep.subr.mxu0 0.0
  %7757 = vmatpush2.msra.mxu0 0.0
  %7758 = vmatprep.subr.mxu0 0.0
  %7759 = vmatpush2.msra.mxu0 0.0
  %7760 = vmatprep.subr.mxu0 0.0
  %7761 = vmatpush2.msra.mxu0 0.0
  %7762 = vmatprep.subr.mxu0 0.0
  %7763 = vmatpush2.msra.mxu0 0.0
  %7764 = vmatprep.subr.mxu0 0.0
  %7765 = vmatpush2.msra.mxu0 0.0
  %7766 = vmatprep.subr.mxu0 0.0
  %7767 = vmatpush2.msra.mxu0 0.0
  %7768 = vmatprep.subr.mxu0 0.0
  %7769 = vmatpush2.msra.mxu0 0.0
  %7770 = vmatprep.subr.mxu0 0.0
  %7771 = vmatpush2.msra.mxu0 0.0
  %7772 = vmatprep.mubr.f32.mxu0 0.0
  %7773 = vmatmul.mubr.f32.gmra.mxu0 %v7706
  %v7774 = vpop.f32.mrf.mxu0
  %v7775 = vadd.f32 0.0, %v7774
  %v7776 = vpop.f32.mrf.mxu0
  %7777 = vdwg.mxu0
  %v7778 = vadd.f32 %v7673, %v7775
  %s7779 = scalar_lea.vmem %s7464, 3 [#allocation3]
  %v7780 = vld [vmem:[%s7779] ss:$2 sm:$0x3]
  %s7781 = scalar_lea.vmem %s7464, 19 [#allocation3]
  %v7782 = vld [vmem:[%s7781] ss:$2 sm:$0x3]
  %s7783 = scalar_lea.vmem %s7464, 51 [#allocation3]
  %v7784 = vld [vmem:[%s7783] ss:$2 sm:$0x3]
  %s7785 = scalar_lea.vmem %s7464, 67 [#allocation3]
  %v7786 = vld [vmem:[%s7785] ss:$2 sm:$0x3]
  %s7787 = scalar_lea.vmem %s5, 240
  %v7788 = vld [vmem:[%s7787] sm:$0xff]
  %v7789 = vld [vmem:[%s7787 + $0x8] sm:$0xff]
  %v7794 = vcombine.low %v7780, %v7782
  %v7795 = vcombine.low %v7784, %v7786
  %v7797 = vunpack.c.l.s4 1983009808
  %v7798 = vunpack.c.0.s8 %v7797
  %v7799 = vlaneseq
  %v7800 = vshrl.u32 %v7799, 7
  %v7801 = vsub.s32 %v7798, %v7800
  %v7802 = vrot.slane %v7794, %v7801
  %v7804 = vunpack.c.l.s4 1983009808
  %v7805 = vunpack.c.0.s8 %v7804
  %v7806 = vlaneseq
  %v7807 = vshrl.u32 %v7806, 7
  %v7808 = vsub.s32 %v7805, %v7807
  %v7809 = vrot.slane %v7795, %v7808
  %v7810 = vcombine.low %v7802, %v7809
  %v7811 = vsel %vm6112, %v7810, 0
  %7813 = vmatprep.subr.mxu0 0.0
  %7814 = vmatpush1.msra.mxu0 0.0
  %7815 = vmatprep.subr.mxu0 0.0
  %7816 = vmatpush1.msra.mxu0 0.0
  %7817 = vmatprep.subr.mxu0 0.0
  %7818 = vmatpush1.msra.mxu0 0.0
  %7819 = vmatprep.subr.mxu0 0.0
  %7820 = vmatpush1.msra.mxu0 0.0
  %7821 = vmatprep.subr.mxu0 0.0
  %7822 = vmatpush1.msra.mxu0 0.0
  %7823 = vmatprep.subr.mxu0 0.0
  %7824 = vmatpush1.msra.mxu0 0.0
  %7825 = vmatprep.subr.mxu0 0.0
  %7826 = vmatpush1.msra.mxu0 0.0
  %7827 = vmatprep.subr.mxu0 0.0
  %7828 = vmatpush1.msra.mxu0 0.0
  %7829 = vmatprep.subr.mxu0 0.0
  %7830 = vmatpush1.msra.mxu0 0.0
  %7831 = vmatprep.subr.mxu0 0.0
  %7832 = vmatpush1.msra.mxu0 0.0
  %7833 = vmatprep.subr.mxu0 0.0
  %7834 = vmatpush1.msra.mxu0 0.0
  %7835 = vmatprep.subr.mxu0 0.0
  %7836 = vmatpush1.msra.mxu0 0.0
  %7837 = vmatprep.subr.mxu0 0.0
  %7838 = vmatpush1.msra.mxu0 0.0
  %7839 = vmatprep.subr.mxu0 0.0
  %7840 = vmatpush1.msra.mxu0 0.0
  %7841 = vmatprep.subr.mxu0 0.0
  %7842 = vmatpush1.msra.mxu0 %v7789
  %7843 = vmatprep.subr.mxu0 0.0
  %7844 = vmatpush1.msra.mxu0 %v7788
  %7845 = vmatprep.subr.mxu0 0.0
  %7846 = vmatpush2.msra.mxu0 0.0
  %7847 = vmatprep.subr.mxu0 0.0
  %7848 = vmatpush2.msra.mxu0 0.0
  %7849 = vmatprep.subr.mxu0 0.0
  %7850 = vmatpush2.msra.mxu0 0.0
  %7851 = vmatprep.subr.mxu0 0.0
  %7852 = vmatpush2.msra.mxu0 0.0
  %7853 = vmatprep.subr.mxu0 0.0
  %7854 = vmatpush2.msra.mxu0 0.0
  %7855 = vmatprep.subr.mxu0 0.0
  %7856 = vmatpush2.msra.mxu0 0.0
  %7857 = vmatprep.subr.mxu0 0.0
  %7858 = vmatpush2.msra.mxu0 0.0
  %7859 = vmatprep.subr.mxu0 0.0
  %7860 = vmatpush2.msra.mxu0 0.0
  %7861 = vmatprep.subr.mxu0 0.0
  %7862 = vmatpush2.msra.mxu0 0.0
  %7863 = vmatprep.subr.mxu0 0.0
  %7864 = vmatpush2.msra.mxu0 0.0
  %7865 = vmatprep.subr.mxu0 0.0
  %7866 = vmatpush2.msra.mxu0 0.0
  %7867 = vmatprep.subr.mxu0 0.0
  %7868 = vmatpush2.msra.mxu0 0.0
  %7869 = vmatprep.subr.mxu0 0.0
  %7870 = vmatpush2.msra.mxu0 0.0
  %7871 = vmatprep.subr.mxu0 0.0
  %7872 = vmatpush2.msra.mxu0 0.0
  %7873 = vmatprep.subr.mxu0 0.0
  %7874 = vmatpush2.msra.mxu0 0.0
  %7875 = vmatprep.subr.mxu0 0.0
  %7876 = vmatpush2.msra.mxu0 0.0
  %7877 = vmatprep.mubr.f32.mxu0 0.0
  %7878 = vmatmul.mubr.f32.gmra.mxu0 %v7811
  %v7879 = vpop.f32.mrf.mxu0
  %v7880 = vadd.f32 0.0, %v7879
  %v7881 = vpop.f32.mrf.mxu0
  %7882 = vdwg.mxu0
  %v7883 = vadd.f32 %v7778, %v7880
  %v7884 = vld [vmem:[%s6] sm:$0x1]
  %v7886 = vlaneseq
  %v7887 = vshrl.u32 %v7886, 7
  %v7888 = vsub.s32 0, %v7887
  %v7889 = vrot.slane %v7884, %v7888
  %v7891 = vadd.f32 %v7883, %v7889
  %vm7892 = vcmp.ge.f32.partialorder %v7891, 0.0
  %v7893 = vmul.f32 %v7891, 0.2
  %v7894 = vsel %vm7892, %v7891, %v7893
  %v7896 = vcombine.high %v7894, %v7894
  %vm7898 = vcmask 257024
  %v7899 = vsel %vm7898, %v7894, 0.0
  %v7900 = vrot.slane %v7899, 4
  %v7901 = vadd.f32 %v7899, %v7900
  %v7902 = vrot.slane %v7901, 2
  %v7903 = vadd.f32 %v7901, %v7902
  %v7904 = vrot.slane %v7903, 1
  %v7905 = vadd.f32 %v7903, %v7904
  %v7906 = vsel %vm7898, %v7896, 0.0
  %v7907 = vrot.slane %v7906, 4
  %v7908 = vadd.f32 %v7906, %v7907
  %v7909 = vrot.slane %v7908, 2
  %v7910 = vadd.f32 %v7908, %v7909
  %v7911 = vrot.slane %v7910, 1
  %v7912 = vadd.f32 %v7910, %v7911
  %v7913 = vrcp.pop 4.0
  %v7914 = vmul.f32 %v7905, %v7913
  %v7915 = vmul.f32 %v7912, %v7913
  %v7916 = vmul.f32 %v7894, %v7894
  %v7917 = vmul.f32 %v7896, %v7896
  %v7918 = vsel %vm7898, %v7916, 0.0
  %v7919 = vrot.slane %v7918, 4
  %v7920 = vadd.f32 %v7918, %v7919
  %v7921 = vrot.slane %v7920, 2
  %v7922 = vadd.f32 %v7920, %v7921
  %v7923 = vrot.slane %v7922, 1
  %v7924 = vadd.f32 %v7922, %v7923
  %v7925 = vsel %vm7898, %v7917, 0.0
  %v7926 = vrot.slane %v7925, 4
  %v7927 = vadd.f32 %v7925, %v7926
  %v7928 = vrot.slane %v7927, 2
  %v7929 = vadd.f32 %v7927, %v7928
  %v7930 = vrot.slane %v7929, 1
  %v7931 = vadd.f32 %v7929, %v7930
  %v7932 = vmul.f32 %v7924, %v7913
  %v7933 = vmul.f32 %v7931, %v7913
  %v7934 = vmul.f32 %v7914, %v7914
  %v7935 = vmul.f32 %v7915, %v7915
  %v7936 = vsub.f32 %v7932, %v7934
  %v7937 = vsub.f32 %v7933, %v7935
  %v7938 = vsub.f32 %v7894, %v7914
  %v7939 = vsub.f32 %v7896, %v7915
  %v7940 = vadd.f32 %v7936, 1e-05
  %v7941 = vadd.f32 %v7937, 1e-05
  %v7942 = vrsqrt.pop %v7940
  %v7943 = vrsqrt.pop %v7941
  %v7944 = vmul.f32 %v7938, %v7942
  %v7945 = vmul.f32 %v7939, %v7943
  %v7949 = vunpack.c.l.s4 1983009808
  %v7950 = vunpack.c.0.s8 %v7949
  %v7951 = vlaneseq
  %v7952 = vshrl.u32 %v7951, 7
  %v7953 = vsub.s32 %v7950, %v7952
  %v7954 = vrot.slane %v7944, %v7953
  %v7955 = vcombine.high %v7954, %v7954
  %v7957 = vunpack.c.l.s4 1983009808
  %v7958 = vunpack.c.0.s8 %v7957
  %v7959 = vlaneseq
  %v7960 = vshrl.u32 %v7959, 7
  %v7961 = vsub.s32 %v7958, %v7960
  %v7962 = vrot.slane %v7945, %v7961
  %v7963 = vcombine.high %v7962, %v7962
  %7968 = vst.msk [vmem:[#allocation4] sm:$0xf] %vm7898, 0.0
  %7969 = vst.msk [vmem:[#allocation4 + $0x4] sm:$0xf] %vm7898, 0.0
  %7970 = vst.msk [vmem:[#allocation4 + $0x8] sm:$0xf] %vm7898, 0.0
  %7971 = vst.msk [vmem:[#allocation4 + $0xc] sm:$0xf] %vm7898, 0.0
  %7972 = vst.msk [vmem:[#allocation4 + $0x10] sm:$0xf] %vm7898, 0.0
  %7973 = vst.msk [vmem:[#allocation4 + $0x14] sm:$0xf] %vm7898, 0.0
  %7974 = vst.msk [vmem:[#allocation4 + $0x18] sm:$0xf] %vm7898, 0.0
  %7975 = vst.msk [vmem:[#allocation4 + $0x1c] sm:$0xf] %vm7898, 0.0
  %s7976 = scalar_lea.vmem [#allocation4], 4
  %vm7977 = vcmask 254976
  %7978 = vst.msk [vmem:[%s7976 + $0x1] sm:$0x3] %vm7977, %v7954
  %7979 = vst.msk [vmem:[%s7976 + $0x5] sm:$0x3] %vm7977, %v7955
  %7980 = vst.msk [vmem:[%s7976 + $0x11] sm:$0x3] %vm7977, %v7962
  %7981 = vst.msk [vmem:[%s7976 + $0x15] sm:$0x3] %vm7977, %v7963
  %v7982 = vld [vmem:[#allocation4] sm:$0x1]
  %v7983 = vld [vmem:[#allocation4 + $0x10] sm:$0x1]
  %v7984 = vld [vmem:[%s7] sm:$0xff]
  %v7985 = vld [vmem:[%s7 + $0x8] sm:$0xff]
  %v7986 = vld [vmem:[%s7 + $0x10] sm:$0xff]
  %v7987 = vld [vmem:[%s7 + $0x18] sm:$0xff]
  %v7988 = vld [vmem:[#allocation4 + $0x1] sm:$0x1]
  %v7989 = vld [vmem:[#allocation4 + $0x11] sm:$0x1]
  %s7990 = scalar_lea.vmem %s7, 32
  %v7991 = vld [vmem:[%s7990] sm:$0xff]
  %v7992 = vld [vmem:[%s7990 + $0x8] sm:$0xff]
  %v7993 = vld [vmem:[%s7990 + $0x10] sm:$0xff]
  %v7994 = vld [vmem:[%s7990 + $0x18] sm:$0xff]
  %v7997 = vrot.slane %v7989, 7
  %vm7998 = vcmask 1041409
  %v7999 = vsel %vm7998, %v7997, %v7988
  %vm8000 = vcmask 261120
  %v8001 = vsel %vm8000, %v7999, 0
  %8003 = vmatprep.subr.mxu0 0.0
  %8004 = vmatpush1.msra.mxu0 0.0
  %8005 = vmatprep.subr.mxu0 0.0
  %8006 = vmatpush1.msra.mxu0 0.0
  %8007 = vmatprep.subr.mxu0 0.0
  %8008 = vmatpush1.msra.mxu0 0.0
  %8009 = vmatprep.subr.mxu0 0.0
  %8010 = vmatpush1.msra.mxu0 0.0
  %8011 = vmatprep.subr.mxu0 0.0
  %8012 = vmatpush1.msra.mxu0 0.0
  %8013 = vmatprep.subr.mxu0 0.0
  %8014 = vmatpush1.msra.mxu0 0.0
  %8015 = vmatprep.subr.mxu0 0.0
  %8016 = vmatpush1.msra.mxu0 0.0
  %8017 = vmatprep.subr.mxu0 0.0
  %8018 = vmatpush1.msra.mxu0 0.0
  %8019 = vmatprep.subr.mxu0 0.0
  %8020 = vmatpush1.msra.mxu0 0.0
  %8021 = vmatprep.subr.mxu0 0.0
  %8022 = vmatpush1.msra.mxu0 0.0
  %8023 = vmatprep.subr.mxu0 0.0
  %8024 = vmatpush1.msra.mxu0 0.0
  %8025 = vmatprep.subr.mxu0 0.0
  %8026 = vmatpush1.msra.mxu0 0.0
  %8027 = vmatprep.subr.mxu0 0.0
  %8028 = vmatpush1.msra.mxu0 %v7994
  %8029 = vmatprep.subr.mxu0 0.0
  %8030 = vmatpush1.msra.mxu0 %v7993
  %8031 = vmatprep.subr.mxu0 0.0
  %8032 = vmatpush1.msra.mxu0 %v7992
  %8033 = vmatprep.subr.mxu0 0.0
  %8034 = vmatpush1.msra.mxu0 %v7991
  %8035 = vmatprep.subr.mxu0 0.0
  %8036 = vmatpush2.msra.mxu0 0.0
  %8037 = vmatprep.subr.mxu0 0.0
  %8038 = vmatpush2.msra.mxu0 0.0
  %8039 = vmatprep.subr.mxu0 0.0
  %8040 = vmatpush2.msra.mxu0 0.0
  %8041 = vmatprep.subr.mxu0 0.0
  %8042 = vmatpush2.msra.mxu0 0.0
  %8043 = vmatprep.subr.mxu0 0.0
  %8044 = vmatpush2.msra.mxu0 0.0
  %8045 = vmatprep.subr.mxu0 0.0
  %8046 = vmatpush2.msra.mxu0 0.0
  %8047 = vmatprep.subr.mxu0 0.0
  %8048 = vmatpush2.msra.mxu0 0.0
  %8049 = vmatprep.subr.mxu0 0.0
  %8050 = vmatpush2.msra.mxu0 0.0
  %8051 = vmatprep.subr.mxu0 0.0
  %8052 = vmatpush2.msra.mxu0 0.0
  %8053 = vmatprep.subr.mxu0 0.0
  %8054 = vmatpush2.msra.mxu0 0.0
  %8055 = vmatprep.subr.mxu0 0.0
  %8056 = vmatpush2.msra.mxu0 0.0
  %8057 = vmatprep.subr.mxu0 0.0
  %8058 = vmatpush2.msra.mxu0 0.0
  %8059 = vmatprep.subr.mxu0 0.0
  %8060 = vmatpush2.msra.mxu0 0.0
  %8061 = vmatprep.subr.mxu0 0.0
  %8062 = vmatpush2.msra.mxu0 0.0
  %8063 = vmatprep.subr.mxu0 0.0
  %8064 = vmatpush2.msra.mxu0 0.0
  %8065 = vmatprep.subr.mxu0 0.0
  %8066 = vmatpush2.msra.mxu0 0.0
  %8067 = vmatprep.mubr.f32.mxu0 0.0
  %8068 = vmatmul.mubr.f32.gmra.mxu0 %v8001
  %v8069 = vpop.f32.mrf.mxu0
  %v8070 = vadd.f32 0.0, %v8069
  %v8071 = vpop.f32.mrf.mxu0
  %8072 = vdwg.mxu0
  %v8075 = vrot.slane %v7983, 7
  %v8076 = vsel %vm7998, %v8075, %v7982
  %v8077 = vsel %vm8000, %v8076, 0
  %8079 = vmatprep.subr.mxu0 0.0
  %8080 = vmatpush1.msra.mxu0 0.0
  %8081 = vmatprep.subr.mxu0 0.0
  %8082 = vmatpush1.msra.mxu0 0.0
  %8083 = vmatprep.subr.mxu0 0.0
  %8084 = vmatpush1.msra.mxu0 0.0
  %8085 = vmatprep.subr.mxu0 0.0
  %8086 = vmatpush1.msra.mxu0 0.0
  %8087 = vmatprep.subr.mxu0 0.0
  %8088 = vmatpush1.msra.mxu0 0.0
  %8089 = vmatprep.subr.mxu0 0.0
  %8090 = vmatpush1.msra.mxu0 0.0
  %8091 = vmatprep.subr.mxu0 0.0
  %8092 = vmatpush1.msra.mxu0 0.0
  %8093 = vmatprep.subr.mxu0 0.0
  %8094 = vmatpush1.msra.mxu0 0.0
  %8095 = vmatprep.subr.mxu0 0.0
  %8096 = vmatpush1.msra.mxu0 0.0
  %8097 = vmatprep.subr.mxu0 0.0
  %8098 = vmatpush1.msra.mxu0 0.0
  %8099 = vmatprep.subr.mxu0 0.0
  %8100 = vmatpush1.msra.mxu0 0.0
  %8101 = vmatprep.subr.mxu0 0.0
  %8102 = vmatpush1.msra.mxu0 0.0
  %8103 = vmatprep.subr.mxu0 0.0
  %8104 = vmatpush1.msra.mxu0 %v7987
  %8105 = vmatprep.subr.mxu0 0.0
  %8106 = vmatpush1.msra.mxu0 %v7986
  %8107 = vmatprep.subr.mxu0 0.0
  %8108 = vmatpush1.msra.mxu0 %v7985
  %8109 = vmatprep.subr.mxu0 0.0
  %8110 = vmatpush1.msra.mxu0 %v7984
  %8111 = vmatprep.subr.mxu0 0.0
  %8112 = vmatpush2.msra.mxu0 0.0
  %8113 = vmatprep.subr.mxu0 0.0
  %8114 = vmatpush2.msra.mxu0 0.0
  %8115 = vmatprep.subr.mxu0 0.0
  %8116 = vmatpush2.msra.mxu0 0.0
  %8117 = vmatprep.subr.mxu0 0.0
  %8118 = vmatpush2.msra.mxu0 0.0
  %8119 = vmatprep.subr.mxu0 0.0
  %8120 = vmatpush2.msra.mxu0 0.0
  %8121 = vmatprep.subr.mxu0 0.0
  %8122 = vmatpush2.msra.mxu0 0.0
  %8123 = vmatprep.subr.mxu0 0.0
  %8124 = vmatpush2.msra.mxu0 0.0
  %8125 = vmatprep.subr.mxu0 0.0
  %8126 = vmatpush2.msra.mxu0 0.0
  %8127 = vmatprep.subr.mxu0 0.0
  %8128 = vmatpush2.msra.mxu0 0.0
  %8129 = vmatprep.subr.mxu0 0.0
  %8130 = vmatpush2.msra.mxu0 0.0
  %8131 = vmatprep.subr.mxu0 0.0
  %8132 = vmatpush2.msra.mxu0 0.0
  %8133 = vmatprep.subr.mxu0 0.0
  %8134 = vmatpush2.msra.mxu0 0.0
  %8135 = vmatprep.subr.mxu0 0.0
  %8136 = vmatpush2.msra.mxu0 0.0
  %8137 = vmatprep.subr.mxu0 0.0
  %8138 = vmatpush2.msra.mxu0 0.0
  %8139 = vmatprep.subr.mxu0 0.0
  %8140 = vmatpush2.msra.mxu0 0.0
  %8141 = vmatprep.subr.mxu0 0.0
  %8142 = vmatpush2.msra.mxu0 0.0
  %8143 = vmatprep.mubr.f32.mxu0 0.0
  %8144 = vmatmul.mubr.f32.gmra.mxu0 %v8077
  %v8145 = vpop.f32.mrf.mxu0
  %v8146 = vadd.f32 %v8070, %v8145
  %v8147 = vpop.f32.mrf.mxu0
  %8148 = vdwg.mxu0
  %v8149 = vld [vmem:[#allocation4 + $0x2] sm:$0x1]
  %v8150 = vld [vmem:[#allocation4 + $0x12] sm:$0x1]
  %s8151 = scalar_lea.vmem %s7, 64
  %v8152 = vld [vmem:[%s8151] sm:$0xff]
  %v8153 = vld [vmem:[%s8151 + $0x8] sm:$0xff]
  %v8154 = vld [vmem:[%s8151 + $0x10] sm:$0xff]
  %v8155 = vld [vmem:[%s8151 + $0x18] sm:$0xff]
  %v8158 = vrot.slane %v8150, 7
  %v8159 = vsel %vm7998, %v8158, %v8149
  %v8160 = vsel %vm8000, %v8159, 0
  %8162 = vmatprep.subr.mxu0 0.0
  %8163 = vmatpush1.msra.mxu0 0.0
  %8164 = vmatprep.subr.mxu0 0.0
  %8165 = vmatpush1.msra.mxu0 0.0
  %8166 = vmatprep.subr.mxu0 0.0
  %8167 = vmatpush1.msra.mxu0 0.0
  %8168 = vmatprep.subr.mxu0 0.0
  %8169 = vmatpush1.msra.mxu0 0.0
  %8170 = vmatprep.subr.mxu0 0.0
  %8171 = vmatpush1.msra.mxu0 0.0
  %8172 = vmatprep.subr.mxu0 0.0
  %8173 = vmatpush1.msra.mxu0 0.0
  %8174 = vmatprep.subr.mxu0 0.0
  %8175 = vmatpush1.msra.mxu0 0.0
  %8176 = vmatprep.subr.mxu0 0.0
  %8177 = vmatpush1.msra.mxu0 0.0
  %8178 = vmatprep.subr.mxu0 0.0
  %8179 = vmatpush1.msra.mxu0 0.0
  %8180 = vmatprep.subr.mxu0 0.0
  %8181 = vmatpush1.msra.mxu0 0.0
  %8182 = vmatprep.subr.mxu0 0.0
  %8183 = vmatpush1.msra.mxu0 0.0
  %8184 = vmatprep.subr.mxu0 0.0
  %8185 = vmatpush1.msra.mxu0 0.0
  %8186 = vmatprep.subr.mxu0 0.0
  %8187 = vmatpush1.msra.mxu0 %v8155
  %8188 = vmatprep.subr.mxu0 0.0
  %8189 = vmatpush1.msra.mxu0 %v8154
  %8190 = vmatprep.subr.mxu0 0.0
  %8191 = vmatpush1.msra.mxu0 %v8153
  %8192 = vmatprep.subr.mxu0 0.0
  %8193 = vmatpush1.msra.mxu0 %v8152
  %8194 = vmatprep.subr.mxu0 0.0
  %8195 = vmatpush2.msra.mxu0 0.0
  %8196 = vmatprep.subr.mxu0 0.0
  %8197 = vmatpush2.msra.mxu0 0.0
  %8198 = vmatprep.subr.mxu0 0.0
  %8199 = vmatpush2.msra.mxu0 0.0
  %8200 = vmatprep.subr.mxu0 0.0
  %8201 = vmatpush2.msra.mxu0 0.0
  %8202 = vmatprep.subr.mxu0 0.0
  %8203 = vmatpush2.msra.mxu0 0.0
  %8204 = vmatprep.subr.mxu0 0.0
  %8205 = vmatpush2.msra.mxu0 0.0
  %8206 = vmatprep.subr.mxu0 0.0
  %8207 = vmatpush2.msra.mxu0 0.0
  %8208 = vmatprep.subr.mxu0 0.0
  %8209 = vmatpush2.msra.mxu0 0.0
  %8210 = vmatprep.subr.mxu0 0.0
  %8211 = vmatpush2.msra.mxu0 0.0
  %8212 = vmatprep.subr.mxu0 0.0
  %8213 = vmatpush2.msra.mxu0 0.0
  %8214 = vmatprep.subr.mxu0 0.0
  %8215 = vmatpush2.msra.mxu0 0.0
  %8216 = vmatprep.subr.mxu0 0.0
  %8217 = vmatpush2.msra.mxu0 0.0
  %8218 = vmatprep.subr.mxu0 0.0
  %8219 = vmatpush2.msra.mxu0 0.0
  %8220 = vmatprep.subr.mxu0 0.0
  %8221 = vmatpush2.msra.mxu0 0.0
  %8222 = vmatprep.subr.mxu0 0.0
  %8223 = vmatpush2.msra.mxu0 0.0
  %8224 = vmatprep.subr.mxu0 0.0
  %8225 = vmatpush2.msra.mxu0 0.0
  %8226 = vmatprep.mubr.f32.mxu0 0.0
  %8227 = vmatmul.mubr.f32.gmra.mxu0 %v8160
  %v8228 = vpop.f32.mrf.mxu0
  %v8229 = vadd.f32 0.0, %v8228
  %v8230 = vpop.f32.mrf.mxu0
  %8231 = vdwg.mxu0
  %v8232 = vadd.f32 %v8146, %v8229
  %v8233 = vld [vmem:[#allocation4 + $0x3] sm:$0x1]
  %v8234 = vld [vmem:[#allocation4 + $0x13] sm:$0x1]
  %s8235 = scalar_lea.vmem %s7, 96
  %v8236 = vld [vmem:[%s8235] sm:$0xff]
  %v8237 = vld [vmem:[%s8235 + $0x8] sm:$0xff]
  %v8238 = vld [vmem:[%s8235 + $0x10] sm:$0xff]
  %v8239 = vld [vmem:[%s8235 + $0x18] sm:$0xff]
  %v8242 = vrot.slane %v8234, 7
  %v8243 = vsel %vm7998, %v8242, %v8233
  %v8244 = vsel %vm8000, %v8243, 0
  %8246 = vmatprep.subr.mxu0 0.0
  %8247 = vmatpush1.msra.mxu0 0.0
  %8248 = vmatprep.subr.mxu0 0.0
  %8249 = vmatpush1.msra.mxu0 0.0
  %8250 = vmatprep.subr.mxu0 0.0
  %8251 = vmatpush1.msra.mxu0 0.0
  %8252 = vmatprep.subr.mxu0 0.0
  %8253 = vmatpush1.msra.mxu0 0.0
  %8254 = vmatprep.subr.mxu0 0.0
  %8255 = vmatpush1.msra.mxu0 0.0
  %8256 = vmatprep.subr.mxu0 0.0
  %8257 = vmatpush1.msra.mxu0 0.0
  %8258 = vmatprep.subr.mxu0 0.0
  %8259 = vmatpush1.msra.mxu0 0.0
  %8260 = vmatprep.subr.mxu0 0.0
  %8261 = vmatpush1.msra.mxu0 0.0
  %8262 = vmatprep.subr.mxu0 0.0
  %8263 = vmatpush1.msra.mxu0 0.0
  %8264 = vmatprep.subr.mxu0 0.0
  %8265 = vmatpush1.msra.mxu0 0.0
  %8266 = vmatprep.subr.mxu0 0.0
  %8267 = vmatpush1.msra.mxu0 0.0
  %8268 = vmatprep.subr.mxu0 0.0
  %8269 = vmatpush1.msra.mxu0 0.0
  %8270 = vmatprep.subr.mxu0 0.0
  %8271 = vmatpush1.msra.mxu0 %v8239
  %8272 = vmatprep.subr.mxu0 0.0
  %8273 = vmatpush1.msra.mxu0 %v8238
  %8274 = vmatprep.subr.mxu0 0.0
  %8275 = vmatpush1.msra.mxu0 %v8237
  %8276 = vmatprep.subr.mxu0 0.0
  %8277 = vmatpush1.msra.mxu0 %v8236
  %8278 = vmatprep.subr.mxu0 0.0
  %8279 = vmatpush2.msra.mxu0 0.0
  %8280 = vmatprep.subr.mxu0 0.0
  %8281 = vmatpush2.msra.mxu0 0.0
  %8282 = vmatprep.subr.mxu0 0.0
  %8283 = vmatpush2.msra.mxu0 0.0
  %8284 = vmatprep.subr.mxu0 0.0
  %8285 = vmatpush2.msra.mxu0 0.0
  %8286 = vmatprep.subr.mxu0 0.0
  %8287 = vmatpush2.msra.mxu0 0.0
  %8288 = vmatprep.subr.mxu0 0.0
  %8289 = vmatpush2.msra.mxu0 0.0
  %8290 = vmatprep.subr.mxu0 0.0
  %8291 = vmatpush2.msra.mxu0 0.0
  %8292 = vmatprep.subr.mxu0 0.0
  %8293 = vmatpush2.msra.mxu0 0.0
  %8294 = vmatprep.subr.mxu0 0.0
  %8295 = vmatpush2.msra.mxu0 0.0
  %8296 = vmatprep.subr.mxu0 0.0
  %8297 = vmatpush2.msra.mxu0 0.0
  %8298 = vmatprep.subr.mxu0 0.0
  %8299 = vmatpush2.msra.mxu0 0.0
  %8300 = vmatprep.subr.mxu0 0.0
  %8301 = vmatpush2.msra.mxu0 0.0
  %8302 = vmatprep.subr.mxu0 0.0
  %8303 = vmatpush2.msra.mxu0 0.0
  %8304 = vmatprep.subr.mxu0 0.0
  %8305 = vmatpush2.msra.mxu0 0.0
  %8306 = vmatprep.subr.mxu0 0.0
  %8307 = vmatpush2.msra.mxu0 0.0
  %8308 = vmatprep.subr.mxu0 0.0
  %8309 = vmatpush2.msra.mxu0 0.0
  %8310 = vmatprep.mubr.f32.mxu0 0.0
  %8311 = vmatmul.mubr.f32.gmra.mxu0 %v8244
  %v8312 = vpop.f32.mrf.mxu0
  %v8313 = vadd.f32 0.0, %v8312
  %v8314 = vpop.f32.mrf.mxu0
  %8315 = vdwg.mxu0
  %v8316 = vadd.f32 %v8232, %v8313
  %v8317 = vld [vmem:[%s7976] sm:$0x1]
  %v8318 = vld [vmem:[%s7976 + $0x10] sm:$0x1]
  %s8319 = scalar_lea.vmem %s7, 128
  %v8320 = vld [vmem:[%s8319] sm:$0xff]
  %v8321 = vld [vmem:[%s8319 + $0x8] sm:$0xff]
  %v8322 = vld [vmem:[%s8319 + $0x10] sm:$0xff]
  %v8323 = vld [vmem:[%s8319 + $0x18] sm:$0xff]
  %v8326 = vrot.slane %v8318, 7
  %v8327 = vsel %vm7998, %v8326, %v8317
  %v8328 = vsel %vm8000, %v8327, 0
  %8330 = vmatprep.subr.mxu0 0.0
  %8331 = vmatpush1.msra.mxu0 0.0
  %8332 = vmatprep.subr.mxu0 0.0
  %8333 = vmatpush1.msra.mxu0 0.0
  %8334 = vmatprep.subr.mxu0 0.0
  %8335 = vmatpush1.msra.mxu0 0.0
  %8336 = vmatprep.subr.mxu0 0.0
  %8337 = vmatpush1.msra.mxu0 0.0
  %8338 = vmatprep.subr.mxu0 0.0
  %8339 = vmatpush1.msra.mxu0 0.0
  %8340 = vmatprep.subr.mxu0 0.0
  %8341 = vmatpush1.msra.mxu0 0.0
  %8342 = vmatprep.subr.mxu0 0.0
  %8343 = vmatpush1.msra.mxu0 0.0
  %8344 = vmatprep.subr.mxu0 0.0
  %8345 = vmatpush1.msra.mxu0 0.0
  %8346 = vmatprep.subr.mxu0 0.0
  %8347 = vmatpush1.msra.mxu0 0.0
  %8348 = vmatprep.subr.mxu0 0.0
  %8349 = vmatpush1.msra.mxu0 0.0
  %8350 = vmatprep.subr.mxu0 0.0
  %8351 = vmatpush1.msra.mxu0 0.0
  %8352 = vmatprep.subr.mxu0 0.0
  %8353 = vmatpush1.msra.mxu0 0.0
  %8354 = vmatprep.subr.mxu0 0.0
  %8355 = vmatpush1.msra.mxu0 %v8323
  %8356 = vmatprep.subr.mxu0 0.0
  %8357 = vmatpush1.msra.mxu0 %v8322
  %8358 = vmatprep.subr.mxu0 0.0
  %8359 = vmatpush1.msra.mxu0 %v8321
  %8360 = vmatprep.subr.mxu0 0.0
  %8361 = vmatpush1.msra.mxu0 %v8320
  %8362 = vmatprep.subr.mxu0 0.0
  %8363 = vmatpush2.msra.mxu0 0.0
  %8364 = vmatprep.subr.mxu0 0.0
  %8365 = vmatpush2.msra.mxu0 0.0
  %8366 = vmatprep.subr.mxu0 0.0
  %8367 = vmatpush2.msra.mxu0 0.0
  %8368 = vmatprep.subr.mxu0 0.0
  %8369 = vmatpush2.msra.mxu0 0.0
  %8370 = vmatprep.subr.mxu0 0.0
  %8371 = vmatpush2.msra.mxu0 0.0
  %8372 = vmatprep.subr.mxu0 0.0
  %8373 = vmatpush2.msra.mxu0 0.0
  %8374 = vmatprep.subr.mxu0 0.0
  %8375 = vmatpush2.msra.mxu0 0.0
  %8376 = vmatprep.subr.mxu0 0.0
  %8377 = vmatpush2.msra.mxu0 0.0
  %8378 = vmatprep.subr.mxu0 0.0
  %8379 = vmatpush2.msra.mxu0 0.0
  %8380 = vmatprep.subr.mxu0 0.0
  %8381 = vmatpush2.msra.mxu0 0.0
  %8382 = vmatprep.subr.mxu0 0.0
  %8383 = vmatpush2.msra.mxu0 0.0
  %8384 = vmatprep.subr.mxu0 0.0
  %8385 = vmatpush2.msra.mxu0 0.0
  %8386 = vmatprep.subr.mxu0 0.0
  %8387 = vmatpush2.msra.mxu0 0.0
  %8388 = vmatprep.subr.mxu0 0.0
  %8389 = vmatpush2.msra.mxu0 0.0
  %8390 = vmatprep.subr.mxu0 0.0
  %8391 = vmatpush2.msra.mxu0 0.0
  %8392 = vmatprep.subr.mxu0 0.0
  %8393 = vmatpush2.msra.mxu0 0.0
  %8394 = vmatprep.mubr.f32.mxu0 0.0
  %8395 = vmatmul.mubr.f32.gmra.mxu0 %v8328
  %v8396 = vpop.f32.mrf.mxu0
  %v8397 = vadd.f32 0.0, %v8396
  %v8398 = vpop.f32.mrf.mxu0
  %8399 = vdwg.mxu0
  %v8400 = vadd.f32 %v8316, %v8397
  %v8401 = vld [vmem:[%s7976 + $0x1] sm:$0x1]
  %v8402 = vld [vmem:[%s7976 + $0x11] sm:$0x1]
  %s8403 = scalar_lea.vmem %s7, 160
  %v8404 = vld [vmem:[%s8403] sm:$0xff]
  %v8405 = vld [vmem:[%s8403 + $0x8] sm:$0xff]
  %v8406 = vld [vmem:[%s8403 + $0x10] sm:$0xff]
  %v8407 = vld [vmem:[%s8403 + $0x18] sm:$0xff]
  %v8410 = vrot.slane %v8402, 7
  %v8411 = vsel %vm7998, %v8410, %v8401
  %v8412 = vsel %vm8000, %v8411, 0
  %8414 = vmatprep.subr.mxu0 0.0
  %8415 = vmatpush1.msra.mxu0 0.0
  %8416 = vmatprep.subr.mxu0 0.0
  %8417 = vmatpush1.msra.mxu0 0.0
  %8418 = vmatprep.subr.mxu0 0.0
  %8419 = vmatpush1.msra.mxu0 0.0
  %8420 = vmatprep.subr.mxu0 0.0
  %8421 = vmatpush1.msra.mxu0 0.0
  %8422 = vmatprep.subr.mxu0 0.0
  %8423 = vmatpush1.msra.mxu0 0.0
  %8424 = vmatprep.subr.mxu0 0.0
  %8425 = vmatpush1.msra.mxu0 0.0
  %8426 = vmatprep.subr.mxu0 0.0
  %8427 = vmatpush1.msra.mxu0 0.0
  %8428 = vmatprep.subr.mxu0 0.0
  %8429 = vmatpush1.msra.mxu0 0.0
  %8430 = vmatprep.subr.mxu0 0.0
  %8431 = vmatpush1.msra.mxu0 0.0
  %8432 = vmatprep.subr.mxu0 0.0
  %8433 = vmatpush1.msra.mxu0 0.0
  %8434 = vmatprep.subr.mxu0 0.0
  %8435 = vmatpush1.msra.mxu0 0.0
  %8436 = vmatprep.subr.mxu0 0.0
  %8437 = vmatpush1.msra.mxu0 0.0
  %8438 = vmatprep.subr.mxu0 0.0
  %8439 = vmatpush1.msra.mxu0 %v8407
  %8440 = vmatprep.subr.mxu0 0.0
  %8441 = vmatpush1.msra.mxu0 %v8406
  %8442 = vmatprep.subr.mxu0 0.0
  %8443 = vmatpush1.msra.mxu0 %v8405
  %8444 = vmatprep.subr.mxu0 0.0
  %8445 = vmatpush1.msra.mxu0 %v8404
  %8446 = vmatprep.subr.mxu0 0.0
  %8447 = vmatpush2.msra.mxu0 0.0
  %8448 = vmatprep.subr.mxu0 0.0
  %8449 = vmatpush2.msra.mxu0 0.0
  %8450 = vmatprep.subr.mxu0 0.0
  %8451 = vmatpush2.msra.mxu0 0.0
  %8452 = vmatprep.subr.mxu0 0.0
  %8453 = vmatpush2.msra.mxu0 0.0
  %8454 = vmatprep.subr.mxu0 0.0
  %8455 = vmatpush2.msra.mxu0 0.0
  %8456 = vmatprep.subr.mxu0 0.0
  %8457 = vmatpush2.msra.mxu0 0.0
  %8458 = vmatprep.subr.mxu0 0.0
  %8459 = vmatpush2.msra.mxu0 0.0
  %8460 = vmatprep.subr.mxu0 0.0
  %8461 = vmatpush2.msra.mxu0 0.0
  %8462 = vmatprep.subr.mxu0 0.0
  %8463 = vmatpush2.msra.mxu0 0.0
  %8464 = vmatprep.subr.mxu0 0.0
  %8465 = vmatpush2.msra.mxu0 0.0
  %8466 = vmatprep.subr.mxu0 0.0
  %8467 = vmatpush2.msra.mxu0 0.0
  %8468 = vmatprep.subr.mxu0 0.0
  %8469 = vmatpush2.msra.mxu0 0.0
  %8470 = vmatprep.subr.mxu0 0.0
  %8471 = vmatpush2.msra.mxu0 0.0
  %8472 = vmatprep.subr.mxu0 0.0
  %8473 = vmatpush2.msra.mxu0 0.0
  %8474 = vmatprep.subr.mxu0 0.0
  %8475 = vmatpush2.msra.mxu0 0.0
  %8476 = vmatprep.subr.mxu0 0.0
  %8477 = vmatpush2.msra.mxu0 0.0
  %8478 = vmatprep.mubr.f32.mxu0 0.0
  %8479 = vmatmul.mubr.f32.gmra.mxu0 %v8412
  %v8480 = vpop.f32.mrf.mxu0
  %v8481 = vadd.f32 0.0, %v8480
  %v8482 = vpop.f32.mrf.mxu0
  %8483 = vdwg.mxu0
  %v8484 = vadd.f32 %v8400, %v8481
  %v8485 = vld [vmem:[%s7976 + $0x2] sm:$0x1]
  %v8486 = vld [vmem:[%s7976 + $0x12] sm:$0x1]
  %s8487 = scalar_lea.vmem %s7, 192
  %v8488 = vld [vmem:[%s8487] sm:$0xff]
  %v8489 = vld [vmem:[%s8487 + $0x8] sm:$0xff]
  %v8490 = vld [vmem:[%s8487 + $0x10] sm:$0xff]
  %v8491 = vld [vmem:[%s8487 + $0x18] sm:$0xff]
  %v8494 = vrot.slane %v8486, 7
  %v8495 = vsel %vm7998, %v8494, %v8485
  %v8496 = vsel %vm8000, %v8495, 0
  %8498 = vmatprep.subr.mxu0 0.0
  %8499 = vmatpush1.msra.mxu0 0.0
  %8500 = vmatprep.subr.mxu0 0.0
  %8501 = vmatpush1.msra.mxu0 0.0
  %8502 = vmatprep.subr.mxu0 0.0
  %8503 = vmatpush1.msra.mxu0 0.0
  %8504 = vmatprep.subr.mxu0 0.0
  %8505 = vmatpush1.msra.mxu0 0.0
  %8506 = vmatprep.subr.mxu0 0.0
  %8507 = vmatpush1.msra.mxu0 0.0
  %8508 = vmatprep.subr.mxu0 0.0
  %8509 = vmatpush1.msra.mxu0 0.0
  %8510 = vmatprep.subr.mxu0 0.0
  %8511 = vmatpush1.msra.mxu0 0.0
  %8512 = vmatprep.subr.mxu0 0.0
  %8513 = vmatpush1.msra.mxu0 0.0
  %8514 = vmatprep.subr.mxu0 0.0
  %8515 = vmatpush1.msra.mxu0 0.0
  %8516 = vmatprep.subr.mxu0 0.0
  %8517 = vmatpush1.msra.mxu0 0.0
  %8518 = vmatprep.subr.mxu0 0.0
  %8519 = vmatpush1.msra.mxu0 0.0
  %8520 = vmatprep.subr.mxu0 0.0
  %8521 = vmatpush1.msra.mxu0 0.0
  %8522 = vmatprep.subr.mxu0 0.0
  %8523 = vmatpush1.msra.mxu0 %v8491
  %8524 = vmatprep.subr.mxu0 0.0
  %8525 = vmatpush1.msra.mxu0 %v8490
  %8526 = vmatprep.subr.mxu0 0.0
  %8527 = vmatpush1.msra.mxu0 %v8489
  %8528 = vmatprep.subr.mxu0 0.0
  %8529 = vmatpush1.msra.mxu0 %v8488
  %8530 = vmatprep.subr.mxu0 0.0
  %8531 = vmatpush2.msra.mxu0 0.0
  %8532 = vmatprep.subr.mxu0 0.0
  %8533 = vmatpush2.msra.mxu0 0.0
  %8534 = vmatprep.subr.mxu0 0.0
  %8535 = vmatpush2.msra.mxu0 0.0
  %8536 = vmatprep.subr.mxu0 0.0
  %8537 = vmatpush2.msra.mxu0 0.0
  %8538 = vmatprep.subr.mxu0 0.0
  %8539 = vmatpush2.msra.mxu0 0.0
  %8540 = vmatprep.subr.mxu0 0.0
  %8541 = vmatpush2.msra.mxu0 0.0
  %8542 = vmatprep.subr.mxu0 0.0
  %8543 = vmatpush2.msra.mxu0 0.0
  %8544 = vmatprep.subr.mxu0 0.0
  %8545 = vmatpush2.msra.mxu0 0.0
  %8546 = vmatprep.subr.mxu0 0.0
  %8547 = vmatpush2.msra.mxu0 0.0
  %8548 = vmatprep.subr.mxu0 0.0
  %8549 = vmatpush2.msra.mxu0 0.0
  %8550 = vmatprep.subr.mxu0 0.0
  %8551 = vmatpush2.msra.mxu0 0.0
  %8552 = vmatprep.subr.mxu0 0.0
  %8553 = vmatpush2.msra.mxu0 0.0
  %8554 = vmatprep.subr.mxu0 0.0
  %8555 = vmatpush2.msra.mxu0 0.0
  %8556 = vmatprep.subr.mxu0 0.0
  %8557 = vmatpush2.msra.mxu0 0.0
  %8558 = vmatprep.subr.mxu0 0.0
  %8559 = vmatpush2.msra.mxu0 0.0
  %8560 = vmatprep.subr.mxu0 0.0
  %8561 = vmatpush2.msra.mxu0 0.0
  %8562 = vmatprep.mubr.f32.mxu0 0.0
  %8563 = vmatmul.mubr.f32.gmra.mxu0 %v8496
  %v8564 = vpop.f32.mrf.mxu0
  %v8565 = vadd.f32 0.0, %v8564
  %v8566 = vpop.f32.mrf.mxu0
  %8567 = vdwg.mxu0
  %v8568 = vadd.f32 %v8484, %v8565
  %v8569 = vld [vmem:[%s7976 + $0x3] sm:$0x1]
  %v8570 = vld [vmem:[%s7976 + $0x13] sm:$0x1]
  %s8571 = scalar_lea.vmem %s7, 224
  %v8572 = vld [vmem:[%s8571] sm:$0xff]
  %v8573 = vld [vmem:[%s8571 + $0x8] sm:$0xff]
  %v8574 = vld [vmem:[%s8571 + $0x10] sm:$0xff]
  %v8575 = vld [vmem:[%s8571 + $0x18] sm:$0xff]
  %v8578 = vrot.slane %v8570, 7
  %v8579 = vsel %vm7998, %v8578, %v8569
  %v8580 = vsel %vm8000, %v8579, 0
  %8582 = vmatprep.subr.mxu0 0.0
  %8583 = vmatpush1.msra.mxu0 0.0
  %8584 = vmatprep.subr.mxu0 0.0
  %8585 = vmatpush1.msra.mxu0 0.0
  %8586 = vmatprep.subr.mxu0 0.0
  %8587 = vmatpush1.msra.mxu0 0.0
  %8588 = vmatprep.subr.mxu0 0.0
  %8589 = vmatpush1.msra.mxu0 0.0
  %8590 = vmatprep.subr.mxu0 0.0
  %8591 = vmatpush1.msra.mxu0 0.0
  %8592 = vmatprep.subr.mxu0 0.0
  %8593 = vmatpush1.msra.mxu0 0.0
  %8594 = vmatprep.subr.mxu0 0.0
  %8595 = vmatpush1.msra.mxu0 0.0
  %8596 = vmatprep.subr.mxu0 0.0
  %8597 = vmatpush1.msra.mxu0 0.0
  %8598 = vmatprep.subr.mxu0 0.0
  %8599 = vmatpush1.msra.mxu0 0.0
  %8600 = vmatprep.subr.mxu0 0.0
  %8601 = vmatpush1.msra.mxu0 0.0
  %8602 = vmatprep.subr.mxu0 0.0
  %8603 = vmatpush1.msra.mxu0 0.0
  %8604 = vmatprep.subr.mxu0 0.0
  %8605 = vmatpush1.msra.mxu0 0.0
  %8606 = vmatprep.subr.mxu0 0.0
  %8607 = vmatpush1.msra.mxu0 %v8575
  %8608 = vmatprep.subr.mxu0 0.0
  %8609 = vmatpush1.msra.mxu0 %v8574
  %8610 = vmatprep.subr.mxu0 0.0
  %8611 = vmatpush1.msra.mxu0 %v8573
  %8612 = vmatprep.subr.mxu0 0.0
  %8613 = vmatpush1.msra.mxu0 %v8572
  %8614 = vmatprep.subr.mxu0 0.0
  %8615 = vmatpush2.msra.mxu0 0.0
  %8616 = vmatprep.subr.mxu0 0.0
  %8617 = vmatpush2.msra.mxu0 0.0
  %8618 = vmatprep.subr.mxu0 0.0
  %8619 = vmatpush2.msra.mxu0 0.0
  %8620 = vmatprep.subr.mxu0 0.0
  %8621 = vmatpush2.msra.mxu0 0.0
  %8622 = vmatprep.subr.mxu0 0.0
  %8623 = vmatpush2.msra.mxu0 0.0
  %8624 = vmatprep.subr.mxu0 0.0
  %8625 = vmatpush2.msra.mxu0 0.0
  %8626 = vmatprep.subr.mxu0 0.0
  %8627 = vmatpush2.msra.mxu0 0.0
  %8628 = vmatprep.subr.mxu0 0.0
  %8629 = vmatpush2.msra.mxu0 0.0
  %8630 = vmatprep.subr.mxu0 0.0
  %8631 = vmatpush2.msra.mxu0 0.0
  %8632 = vmatprep.subr.mxu0 0.0
  %8633 = vmatpush2.msra.mxu0 0.0
  %8634 = vmatprep.subr.mxu0 0.0
  %8635 = vmatpush2.msra.mxu0 0.0
  %8636 = vmatprep.subr.mxu0 0.0
  %8637 = vmatpush2.msra.mxu0 0.0
  %8638 = vmatprep.subr.mxu0 0.0
  %8639 = vmatpush2.msra.mxu0 0.0
  %8640 = vmatprep.subr.mxu0 0.0
  %8641 = vmatpush2.msra.mxu0 0.0
  %8642 = vmatprep.subr.mxu0 0.0
  %8643 = vmatpush2.msra.mxu0 0.0
  %8644 = vmatprep.subr.mxu0 0.0
  %8645 = vmatpush2.msra.mxu0 0.0
  %8646 = vmatprep.mubr.f32.mxu0 0.0
  %8647 = vmatmul.mubr.f32.gmra.mxu0 %v8580
  %v8648 = vpop.f32.mrf.mxu0
  %v8649 = vadd.f32 0.0, %v8648
  %v8650 = vpop.f32.mrf.mxu0
  %8651 = vdwg.mxu0
  %v8652 = vadd.f32 %v8568, %v8649
  %s8653 = scalar_lea.vmem [#allocation4], 8
  %v8654 = vld [vmem:[%s8653] sm:$0x1]
  %v8655 = vld [vmem:[%s8653 + $0x10] sm:$0x1]
  %s8656 = scalar_lea.vmem %s7, 256
  %v8657 = vld [vmem:[%s8656] sm:$0xff]
  %v8658 = vld [vmem:[%s8656 + $0x8] sm:$0xff]
  %v8659 = vld [vmem:[%s8656 + $0x10] sm:$0xff]
  %v8660 = vld [vmem:[%s8656 + $0x18] sm:$0xff]
  %v8663 = vrot.slane %v8655, 7
  %v8664 = vsel %vm7998, %v8663, %v8654
  %v8665 = vsel %vm8000, %v8664, 0
  %8667 = vmatprep.subr.mxu0 0.0
  %8668 = vmatpush1.msra.mxu0 0.0
  %8669 = vmatprep.subr.mxu0 0.0
  %8670 = vmatpush1.msra.mxu0 0.0
  %8671 = vmatprep.subr.mxu0 0.0
  %8672 = vmatpush1.msra.mxu0 0.0
  %8673 = vmatprep.subr.mxu0 0.0
  %8674 = vmatpush1.msra.mxu0 0.0
  %8675 = vmatprep.subr.mxu0 0.0
  %8676 = vmatpush1.msra.mxu0 0.0
  %8677 = vmatprep.subr.mxu0 0.0
  %8678 = vmatpush1.msra.mxu0 0.0
  %8679 = vmatprep.subr.mxu0 0.0
  %8680 = vmatpush1.msra.mxu0 0.0
  %8681 = vmatprep.subr.mxu0 0.0
  %8682 = vmatpush1.msra.mxu0 0.0
  %8683 = vmatprep.subr.mxu0 0.0
  %8684 = vmatpush1.msra.mxu0 0.0
  %8685 = vmatprep.subr.mxu0 0.0
  %8686 = vmatpush1.msra.mxu0 0.0
  %8687 = vmatprep.subr.mxu0 0.0
  %8688 = vmatpush1.msra.mxu0 0.0
  %8689 = vmatprep.subr.mxu0 0.0
  %8690 = vmatpush1.msra.mxu0 0.0
  %8691 = vmatprep.subr.mxu0 0.0
  %8692 = vmatpush1.msra.mxu0 %v8660
  %8693 = vmatprep.subr.mxu0 0.0
  %8694 = vmatpush1.msra.mxu0 %v8659
  %8695 = vmatprep.subr.mxu0 0.0
  %8696 = vmatpush1.msra.mxu0 %v8658
  %8697 = vmatprep.subr.mxu0 0.0
  %8698 = vmatpush1.msra.mxu0 %v8657
  %8699 = vmatprep.subr.mxu0 0.0
  %8700 = vmatpush2.msra.mxu0 0.0
  %8701 = vmatprep.subr.mxu0 0.0
  %8702 = vmatpush2.msra.mxu0 0.0
  %8703 = vmatprep.subr.mxu0 0.0
  %8704 = vmatpush2.msra.mxu0 0.0
  %8705 = vmatprep.subr.mxu0 0.0
  %8706 = vmatpush2.msra.mxu0 0.0
  %8707 = vmatprep.subr.mxu0 0.0
  %8708 = vmatpush2.msra.mxu0 0.0
  %8709 = vmatprep.subr.mxu0 0.0
  %8710 = vmatpush2.msra.mxu0 0.0
  %8711 = vmatprep.subr.mxu0 0.0
  %8712 = vmatpush2.msra.mxu0 0.0
  %8713 = vmatprep.subr.mxu0 0.0
  %8714 = vmatpush2.msra.mxu0 0.0
  %8715 = vmatprep.subr.mxu0 0.0
  %8716 = vmatpush2.msra.mxu0 0.0
  %8717 = vmatprep.subr.mxu0 0.0
  %8718 = vmatpush2.msra.mxu0 0.0
  %8719 = vmatprep.subr.mxu0 0.0
  %8720 = vmatpush2.msra.mxu0 0.0
  %8721 = vmatprep.subr.mxu0 0.0
  %8722 = vmatpush2.msra.mxu0 0.0
  %8723 = vmatprep.subr.mxu0 0.0
  %8724 = vmatpush2.msra.mxu0 0.0
  %8725 = vmatprep.subr.mxu0 0.0
  %8726 = vmatpush2.msra.mxu0 0.0
  %8727 = vmatprep.subr.mxu0 0.0
  %8728 = vmatpush2.msra.mxu0 0.0
  %8729 = vmatprep.subr.mxu0 0.0
  %8730 = vmatpush2.msra.mxu0 0.0
  %8731 = vmatprep.mubr.f32.mxu0 0.0
  %8732 = vmatmul.mubr.f32.gmra.mxu0 %v8665
  %v8733 = vpop.f32.mrf.mxu0
  %v8734 = vadd.f32 0.0, %v8733
  %v8735 = vpop.f32.mrf.mxu0
  %8736 = vdwg.mxu0
  %v8737 = vadd.f32 %v8652, %v8734
  %v8738 = vld [vmem:[%s8653 + $0x1] sm:$0x1]
  %v8739 = vld [vmem:[%s8653 + $0x11] sm:$0x1]
  %s8740 = scalar_lea.vmem %s7, 288
  %v8741 = vld [vmem:[%s8740] sm:$0xff]
  %v8742 = vld [vmem:[%s8740 + $0x8] sm:$0xff]
  %v8743 = vld [vmem:[%s8740 + $0x10] sm:$0xff]
  %v8744 = vld [vmem:[%s8740 + $0x18] sm:$0xff]
  %v8747 = vrot.slane %v8739, 7
  %v8748 = vsel %vm7998, %v8747, %v8738
  %v8749 = vsel %vm8000, %v8748, 0
  %8751 = vmatprep.subr.mxu0 0.0
  %8752 = vmatpush1.msra.mxu0 0.0
  %8753 = vmatprep.subr.mxu0 0.0
  %8754 = vmatpush1.msra.mxu0 0.0
  %8755 = vmatprep.subr.mxu0 0.0
  %8756 = vmatpush1.msra.mxu0 0.0
  %8757 = vmatprep.subr.mxu0 0.0
  %8758 = vmatpush1.msra.mxu0 0.0
  %8759 = vmatprep.subr.mxu0 0.0
  %8760 = vmatpush1.msra.mxu0 0.0
  %8761 = vmatprep.subr.mxu0 0.0
  %8762 = vmatpush1.msra.mxu0 0.0
  %8763 = vmatprep.subr.mxu0 0.0
  %8764 = vmatpush1.msra.mxu0 0.0
  %8765 = vmatprep.subr.mxu0 0.0
  %8766 = vmatpush1.msra.mxu0 0.0
  %8767 = vmatprep.subr.mxu0 0.0
  %8768 = vmatpush1.msra.mxu0 0.0
  %8769 = vmatprep.subr.mxu0 0.0
  %8770 = vmatpush1.msra.mxu0 0.0
  %8771 = vmatprep.subr.mxu0 0.0
  %8772 = vmatpush1.msra.mxu0 0.0
  %8773 = vmatprep.subr.mxu0 0.0
  %8774 = vmatpush1.msra.mxu0 0.0
  %8775 = vmatprep.subr.mxu0 0.0
  %8776 = vmatpush1.msra.mxu0 %v8744
  %8777 = vmatprep.subr.mxu0 0.0
  %8778 = vmatpush1.msra.mxu0 %v8743
  %8779 = vmatprep.subr.mxu0 0.0
  %8780 = vmatpush1.msra.mxu0 %v8742
  %8781 = vmatprep.subr.mxu0 0.0
  %8782 = vmatpush1.msra.mxu0 %v8741
  %8783 = vmatprep.subr.mxu0 0.0
  %8784 = vmatpush2.msra.mxu0 0.0
  %8785 = vmatprep.subr.mxu0 0.0
  %8786 = vmatpush2.msra.mxu0 0.0
  %8787 = vmatprep.subr.mxu0 0.0
  %8788 = vmatpush2.msra.mxu0 0.0
  %8789 = vmatprep.subr.mxu0 0.0
  %8790 = vmatpush2.msra.mxu0 0.0
  %8791 = vmatprep.subr.mxu0 0.0
  %8792 = vmatpush2.msra.mxu0 0.0
  %8793 = vmatprep.subr.mxu0 0.0
  %8794 = vmatpush2.msra.mxu0 0.0
  %8795 = vmatprep.subr.mxu0 0.0
  %8796 = vmatpush2.msra.mxu0 0.0
  %8797 = vmatprep.subr.mxu0 0.0
  %8798 = vmatpush2.msra.mxu0 0.0
  %8799 = vmatprep.subr.mxu0 0.0
  %8800 = vmatpush2.msra.mxu0 0.0
  %8801 = vmatprep.subr.mxu0 0.0
  %8802 = vmatpush2.msra.mxu0 0.0
  %8803 = vmatprep.subr.mxu0 0.0
  %8804 = vmatpush2.msra.mxu0 0.0
  %8805 = vmatprep.subr.mxu0 0.0
  %8806 = vmatpush2.msra.mxu0 0.0
  %8807 = vmatprep.subr.mxu0 0.0
  %8808 = vmatpush2.msra.mxu0 0.0
  %8809 = vmatprep.subr.mxu0 0.0
  %8810 = vmatpush2.msra.mxu0 0.0
  %8811 = vmatprep.subr.mxu0 0.0
  %8812 = vmatpush2.msra.mxu0 0.0
  %8813 = vmatprep.subr.mxu0 0.0
  %8814 = vmatpush2.msra.mxu0 0.0
  %8815 = vmatprep.mubr.f32.mxu0 0.0
  %8816 = vmatmul.mubr.f32.gmra.mxu0 %v8749
  %v8817 = vpop.f32.mrf.mxu0
  %v8818 = vadd.f32 0.0, %v8817
  %v8819 = vpop.f32.mrf.mxu0
  %8820 = vdwg.mxu0
  %v8821 = vadd.f32 %v8737, %v8818
  %v8822 = vld [vmem:[%s8653 + $0x2] sm:$0x1]
  %v8823 = vld [vmem:[%s8653 + $0x12] sm:$0x1]
  %s8824 = scalar_lea.vmem %s7, 320
  %v8825 = vld [vmem:[%s8824] sm:$0xff]
  %v8826 = vld [vmem:[%s8824 + $0x8] sm:$0xff]
  %v8827 = vld [vmem:[%s8824 + $0x10] sm:$0xff]
  %v8828 = vld [vmem:[%s8824 + $0x18] sm:$0xff]
  %v8831 = vrot.slane %v8823, 7
  %v8832 = vsel %vm7998, %v8831, %v8822
  %v8833 = vsel %vm8000, %v8832, 0
  %8835 = vmatprep.subr.mxu0 0.0
  %8836 = vmatpush1.msra.mxu0 0.0
  %8837 = vmatprep.subr.mxu0 0.0
  %8838 = vmatpush1.msra.mxu0 0.0
  %8839 = vmatprep.subr.mxu0 0.0
  %8840 = vmatpush1.msra.mxu0 0.0
  %8841 = vmatprep.subr.mxu0 0.0
  %8842 = vmatpush1.msra.mxu0 0.0
  %8843 = vmatprep.subr.mxu0 0.0
  %8844 = vmatpush1.msra.mxu0 0.0
  %8845 = vmatprep.subr.mxu0 0.0
  %8846 = vmatpush1.msra.mxu0 0.0
  %8847 = vmatprep.subr.mxu0 0.0
  %8848 = vmatpush1.msra.mxu0 0.0
  %8849 = vmatprep.subr.mxu0 0.0
  %8850 = vmatpush1.msra.mxu0 0.0
  %8851 = vmatprep.subr.mxu0 0.0
  %8852 = vmatpush1.msra.mxu0 0.0
  %8853 = vmatprep.subr.mxu0 0.0
  %8854 = vmatpush1.msra.mxu0 0.0
  %8855 = vmatprep.subr.mxu0 0.0
  %8856 = vmatpush1.msra.mxu0 0.0
  %8857 = vmatprep.subr.mxu0 0.0
  %8858 = vmatpush1.msra.mxu0 0.0
  %8859 = vmatprep.subr.mxu0 0.0
  %8860 = vmatpush1.msra.mxu0 %v8828
  %8861 = vmatprep.subr.mxu0 0.0
  %8862 = vmatpush1.msra.mxu0 %v8827
  %8863 = vmatprep.subr.mxu0 0.0
  %8864 = vmatpush1.msra.mxu0 %v8826
  %8865 = vmatprep.subr.mxu0 0.0
  %8866 = vmatpush1.msra.mxu0 %v8825
  %8867 = vmatprep.subr.mxu0 0.0
  %8868 = vmatpush2.msra.mxu0 0.0
  %8869 = vmatprep.subr.mxu0 0.0
  %8870 = vmatpush2.msra.mxu0 0.0
  %8871 = vmatprep.subr.mxu0 0.0
  %8872 = vmatpush2.msra.mxu0 0.0
  %8873 = vmatprep.subr.mxu0 0.0
  %8874 = vmatpush2.msra.mxu0 0.0
  %8875 = vmatprep.subr.mxu0 0.0
  %8876 = vmatpush2.msra.mxu0 0.0
  %8877 = vmatprep.subr.mxu0 0.0
  %8878 = vmatpush2.msra.mxu0 0.0
  %8879 = vmatprep.subr.mxu0 0.0
  %8880 = vmatpush2.msra.mxu0 0.0
  %8881 = vmatprep.subr.mxu0 0.0
  %8882 = vmatpush2.msra.mxu0 0.0
  %8883 = vmatprep.subr.mxu0 0.0
  %8884 = vmatpush2.msra.mxu0 0.0
  %8885 = vmatprep.subr.mxu0 0.0
  %8886 = vmatpush2.msra.mxu0 0.0
  %8887 = vmatprep.subr.mxu0 0.0
  %8888 = vmatpush2.msra.mxu0 0.0
  %8889 = vmatprep.subr.mxu0 0.0
  %8890 = vmatpush2.msra.mxu0 0.0
  %8891 = vmatprep.subr.mxu0 0.0
  %8892 = vmatpush2.msra.mxu0 0.0
  %8893 = vmatprep.subr.mxu0 0.0
  %8894 = vmatpush2.msra.mxu0 0.0
  %8895 = vmatprep.subr.mxu0 0.0
  %8896 = vmatpush2.msra.mxu0 0.0
  %8897 = vmatprep.subr.mxu0 0.0
  %8898 = vmatpush2.msra.mxu0 0.0
  %8899 = vmatprep.mubr.f32.mxu0 0.0
  %8900 = vmatmul.mubr.f32.gmra.mxu0 %v8833
  %v8901 = vpop.f32.mrf.mxu0
  %v8902 = vadd.f32 0.0, %v8901
  %v8903 = vpop.f32.mrf.mxu0
  %8904 = vdwg.mxu0
  %v8905 = vadd.f32 %v8821, %v8902
  %v8906 = vld [vmem:[%s8653 + $0x3] sm:$0x1]
  %v8907 = vld [vmem:[%s8653 + $0x13] sm:$0x1]
  %s8908 = scalar_lea.vmem %s7, 352
  %v8909 = vld [vmem:[%s8908] sm:$0xff]
  %v8910 = vld [vmem:[%s8908 + $0x8] sm:$0xff]
  %v8911 = vld [vmem:[%s8908 + $0x10] sm:$0xff]
  %v8912 = vld [vmem:[%s8908 + $0x18] sm:$0xff]
  %v8915 = vrot.slane %v8907, 7
  %v8916 = vsel %vm7998, %v8915, %v8906
  %v8917 = vsel %vm8000, %v8916, 0
  %8919 = vmatprep.subr.mxu0 0.0
  %8920 = vmatpush1.msra.mxu0 0.0
  %8921 = vmatprep.subr.mxu0 0.0
  %8922 = vmatpush1.msra.mxu0 0.0
  %8923 = vmatprep.subr.mxu0 0.0
  %8924 = vmatpush1.msra.mxu0 0.0
  %8925 = vmatprep.subr.mxu0 0.0
  %8926 = vmatpush1.msra.mxu0 0.0
  %8927 = vmatprep.subr.mxu0 0.0
  %8928 = vmatpush1.msra.mxu0 0.0
  %8929 = vmatprep.subr.mxu0 0.0
  %8930 = vmatpush1.msra.mxu0 0.0
  %8931 = vmatprep.subr.mxu0 0.0
  %8932 = vmatpush1.msra.mxu0 0.0
  %8933 = vmatprep.subr.mxu0 0.0
  %8934 = vmatpush1.msra.mxu0 0.0
  %8935 = vmatprep.subr.mxu0 0.0
  %8936 = vmatpush1.msra.mxu0 0.0
  %8937 = vmatprep.subr.mxu0 0.0
  %8938 = vmatpush1.msra.mxu0 0.0
  %8939 = vmatprep.subr.mxu0 0.0
  %8940 = vmatpush1.msra.mxu0 0.0
  %8941 = vmatprep.subr.mxu0 0.0
  %8942 = vmatpush1.msra.mxu0 0.0
  %8943 = vmatprep.subr.mxu0 0.0
  %8944 = vmatpush1.msra.mxu0 %v8912
  %8945 = vmatprep.subr.mxu0 0.0
  %8946 = vmatpush1.msra.mxu0 %v8911
  %8947 = vmatprep.subr.mxu0 0.0
  %8948 = vmatpush1.msra.mxu0 %v8910
  %8949 = vmatprep.subr.mxu0 0.0
  %8950 = vmatpush1.msra.mxu0 %v8909
  %8951 = vmatprep.subr.mxu0 0.0
  %8952 = vmatpush2.msra.mxu0 0.0
  %8953 = vmatprep.subr.mxu0 0.0
  %8954 = vmatpush2.msra.mxu0 0.0
  %8955 = vmatprep.subr.mxu0 0.0
  %8956 = vmatpush2.msra.mxu0 0.0
  %8957 = vmatprep.subr.mxu0 0.0
  %8958 = vmatpush2.msra.mxu0 0.0
  %8959 = vmatprep.subr.mxu0 0.0
  %8960 = vmatpush2.msra.mxu0 0.0
  %8961 = vmatprep.subr.mxu0 0.0
  %8962 = vmatpush2.msra.mxu0 0.0
  %8963 = vmatprep.subr.mxu0 0.0
  %8964 = vmatpush2.msra.mxu0 0.0
  %8965 = vmatprep.subr.mxu0 0.0
  %8966 = vmatpush2.msra.mxu0 0.0
  %8967 = vmatprep.subr.mxu0 0.0
  %8968 = vmatpush2.msra.mxu0 0.0
  %8969 = vmatprep.subr.mxu0 0.0
  %8970 = vmatpush2.msra.mxu0 0.0
  %8971 = vmatprep.subr.mxu0 0.0
  %8972 = vmatpush2.msra.mxu0 0.0
  %8973 = vmatprep.subr.mxu0 0.0
  %8974 = vmatpush2.msra.mxu0 0.0
  %8975 = vmatprep.subr.mxu0 0.0
  %8976 = vmatpush2.msra.mxu0 0.0
  %8977 = vmatprep.subr.mxu0 0.0
  %8978 = vmatpush2.msra.mxu0 0.0
  %8979 = vmatprep.subr.mxu0 0.0
  %8980 = vmatpush2.msra.mxu0 0.0
  %8981 = vmatprep.subr.mxu0 0.0
  %8982 = vmatpush2.msra.mxu0 0.0
  %8983 = vmatprep.mubr.f32.mxu0 0.0
  %8984 = vmatmul.mubr.f32.gmra.mxu0 %v8917
  %v8985 = vpop.f32.mrf.mxu0
  %v8986 = vadd.f32 0.0, %v8985
  %v8987 = vpop.f32.mrf.mxu0
  %8988 = vdwg.mxu0
  %v8989 = vadd.f32 %v8905, %v8986
  %s8990 = scalar_lea.vmem [#allocation4], 12
  %v8991 = vld [vmem:[%s8990] sm:$0x1]
  %v8992 = vld [vmem:[%s8990 + $0x10] sm:$0x1]
  %s8993 = scalar_lea.vmem %s7, 384
  %v8994 = vld [vmem:[%s8993] sm:$0xff]
  %v8995 = vld [vmem:[%s8993 + $0x8] sm:$0xff]
  %v8996 = vld [vmem:[%s8993 + $0x10] sm:$0xff]
  %v8997 = vld [vmem:[%s8993 + $0x18] sm:$0xff]
  %v9000 = vrot.slane %v8992, 7
  %v9001 = vsel %vm7998, %v9000, %v8991
  %v9002 = vsel %vm8000, %v9001, 0
  %9004 = vmatprep.subr.mxu0 0.0
  %9005 = vmatpush1.msra.mxu0 0.0
  %9006 = vmatprep.subr.mxu0 0.0
  %9007 = vmatpush1.msra.mxu0 0.0
  %9008 = vmatprep.subr.mxu0 0.0
  %9009 = vmatpush1.msra.mxu0 0.0
  %9010 = vmatprep.subr.mxu0 0.0
  %9011 = vmatpush1.msra.mxu0 0.0
  %9012 = vmatprep.subr.mxu0 0.0
  %9013 = vmatpush1.msra.mxu0 0.0
  %9014 = vmatprep.subr.mxu0 0.0
  %9015 = vmatpush1.msra.mxu0 0.0
  %9016 = vmatprep.subr.mxu0 0.0
  %9017 = vmatpush1.msra.mxu0 0.0
  %9018 = vmatprep.subr.mxu0 0.0
  %9019 = vmatpush1.msra.mxu0 0.0
  %9020 = vmatprep.subr.mxu0 0.0
  %9021 = vmatpush1.msra.mxu0 0.0
  %9022 = vmatprep.subr.mxu0 0.0
  %9023 = vmatpush1.msra.mxu0 0.0
  %9024 = vmatprep.subr.mxu0 0.0
  %9025 = vmatpush1.msra.mxu0 0.0
  %9026 = vmatprep.subr.mxu0 0.0
  %9027 = vmatpush1.msra.mxu0 0.0
  %9028 = vmatprep.subr.mxu0 0.0
  %9029 = vmatpush1.msra.mxu0 %v8997
  %9030 = vmatprep.subr.mxu0 0.0
  %9031 = vmatpush1.msra.mxu0 %v8996
  %9032 = vmatprep.subr.mxu0 0.0
  %9033 = vmatpush1.msra.mxu0 %v8995
  %9034 = vmatprep.subr.mxu0 0.0
  %9035 = vmatpush1.msra.mxu0 %v8994
  %9036 = vmatprep.subr.mxu0 0.0
  %9037 = vmatpush2.msra.mxu0 0.0
  %9038 = vmatprep.subr.mxu0 0.0
  %9039 = vmatpush2.msra.mxu0 0.0
  %9040 = vmatprep.subr.mxu0 0.0
  %9041 = vmatpush2.msra.mxu0 0.0
  %9042 = vmatprep.subr.mxu0 0.0
  %9043 = vmatpush2.msra.mxu0 0.0
  %9044 = vmatprep.subr.mxu0 0.0
  %9045 = vmatpush2.msra.mxu0 0.0
  %9046 = vmatprep.subr.mxu0 0.0
  %9047 = vmatpush2.msra.mxu0 0.0
  %9048 = vmatprep.subr.mxu0 0.0
  %9049 = vmatpush2.msra.mxu0 0.0
  %9050 = vmatprep.subr.mxu0 0.0
  %9051 = vmatpush2.msra.mxu0 0.0
  %9052 = vmatprep.subr.mxu0 0.0
  %9053 = vmatpush2.msra.mxu0 0.0
  %9054 = vmatprep.subr.mxu0 0.0
  %9055 = vmatpush2.msra.mxu0 0.0
  %9056 = vmatprep.subr.mxu0 0.0
  %9057 = vmatpush2.msra.mxu0 0.0
  %9058 = vmatprep.subr.mxu0 0.0
  %9059 = vmatpush2.msra.mxu0 0.0
  %9060 = vmatprep.subr.mxu0 0.0
  %9061 = vmatpush2.msra.mxu0 0.0
  %9062 = vmatprep.subr.mxu0 0.0
  %9063 = vmatpush2.msra.mxu0 0.0
  %9064 = vmatprep.subr.mxu0 0.0
  %9065 = vmatpush2.msra.mxu0 0.0
  %9066 = vmatprep.subr.mxu0 0.0
  %9067 = vmatpush2.msra.mxu0 0.0
  %9068 = vmatprep.mubr.f32.mxu0 0.0
  %9069 = vmatmul.mubr.f32.gmra.mxu0 %v9002
  %v9070 = vpop.f32.mrf.mxu0
  %v9071 = vadd.f32 0.0, %v9070
  %v9072 = vpop.f32.mrf.mxu0
  %9073 = vdwg.mxu0
  %v9074 = vadd.f32 %v8989, %v9071
  %v9075 = vld [vmem:[%s8990 + $0x1] sm:$0x1]
  %v9076 = vld [vmem:[%s8990 + $0x11] sm:$0x1]
  %s9077 = scalar_lea.vmem %s7, 416
  %v9078 = vld [vmem:[%s9077] sm:$0xff]
  %v9079 = vld [vmem:[%s9077 + $0x8] sm:$0xff]
  %v9080 = vld [vmem:[%s9077 + $0x10] sm:$0xff]
  %v9081 = vld [vmem:[%s9077 + $0x18] sm:$0xff]
  %v9084 = vrot.slane %v9076, 7
  %v9085 = vsel %vm7998, %v9084, %v9075
  %v9086 = vsel %vm8000, %v9085, 0
  %9088 = vmatprep.subr.mxu0 0.0
  %9089 = vmatpush1.msra.mxu0 0.0
  %9090 = vmatprep.subr.mxu0 0.0
  %9091 = vmatpush1.msra.mxu0 0.0
  %9092 = vmatprep.subr.mxu0 0.0
  %9093 = vmatpush1.msra.mxu0 0.0
  %9094 = vmatprep.subr.mxu0 0.0
  %9095 = vmatpush1.msra.mxu0 0.0
  %9096 = vmatprep.subr.mxu0 0.0
  %9097 = vmatpush1.msra.mxu0 0.0
  %9098 = vmatprep.subr.mxu0 0.0
  %9099 = vmatpush1.msra.mxu0 0.0
  %9100 = vmatprep.subr.mxu0 0.0
  %9101 = vmatpush1.msra.mxu0 0.0
  %9102 = vmatprep.subr.mxu0 0.0
  %9103 = vmatpush1.msra.mxu0 0.0
  %9104 = vmatprep.subr.mxu0 0.0
  %9105 = vmatpush1.msra.mxu0 0.0
  %9106 = vmatprep.subr.mxu0 0.0
  %9107 = vmatpush1.msra.mxu0 0.0
  %9108 = vmatprep.subr.mxu0 0.0
  %9109 = vmatpush1.msra.mxu0 0.0
  %9110 = vmatprep.subr.mxu0 0.0
  %9111 = vmatpush1.msra.mxu0 0.0
  %9112 = vmatprep.subr.mxu0 0.0
  %9113 = vmatpush1.msra.mxu0 %v9081
  %9114 = vmatprep.subr.mxu0 0.0
  %9115 = vmatpush1.msra.mxu0 %v9080
  %9116 = vmatprep.subr.mxu0 0.0
  %9117 = vmatpush1.msra.mxu0 %v9079
  %9118 = vmatprep.subr.mxu0 0.0
  %9119 = vmatpush1.msra.mxu0 %v9078
  %9120 = vmatprep.subr.mxu0 0.0
  %9121 = vmatpush2.msra.mxu0 0.0
  %9122 = vmatprep.subr.mxu0 0.0
  %9123 = vmatpush2.msra.mxu0 0.0
  %9124 = vmatprep.subr.mxu0 0.0
  %9125 = vmatpush2.msra.mxu0 0.0
  %9126 = vmatprep.subr.mxu0 0.0
  %9127 = vmatpush2.msra.mxu0 0.0
  %9128 = vmatprep.subr.mxu0 0.0
  %9129 = vmatpush2.msra.mxu0 0.0
  %9130 = vmatprep.subr.mxu0 0.0
  %9131 = vmatpush2.msra.mxu0 0.0
  %9132 = vmatprep.subr.mxu0 0.0
  %9133 = vmatpush2.msra.mxu0 0.0
  %9134 = vmatprep.subr.mxu0 0.0
  %9135 = vmatpush2.msra.mxu0 0.0
  %9136 = vmatprep.subr.mxu0 0.0
  %9137 = vmatpush2.msra.mxu0 0.0
  %9138 = vmatprep.subr.mxu0 0.0
  %9139 = vmatpush2.msra.mxu0 0.0
  %9140 = vmatprep.subr.mxu0 0.0
  %9141 = vmatpush2.msra.mxu0 0.0
  %9142 = vmatprep.subr.mxu0 0.0
  %9143 = vmatpush2.msra.mxu0 0.0
  %9144 = vmatprep.subr.mxu0 0.0
  %9145 = vmatpush2.msra.mxu0 0.0
  %9146 = vmatprep.subr.mxu0 0.0
  %9147 = vmatpush2.msra.mxu0 0.0
  %9148 = vmatprep.subr.mxu0 0.0
  %9149 = vmatpush2.msra.mxu0 0.0
  %9150 = vmatprep.subr.mxu0 0.0
  %9151 = vmatpush2.msra.mxu0 0.0
  %9152 = vmatprep.mubr.f32.mxu0 0.0
  %9153 = vmatmul.mubr.f32.gmra.mxu0 %v9086
  %v9154 = vpop.f32.mrf.mxu0
  %v9155 = vadd.f32 0.0, %v9154
  %v9156 = vpop.f32.mrf.mxu0
  %9157 = vdwg.mxu0
  %v9158 = vadd.f32 %v9074, %v9155
  %v9159 = vld [vmem:[%s8990 + $0x2] sm:$0x1]
  %v9160 = vld [vmem:[%s8990 + $0x12] sm:$0x1]
  %s9161 = scalar_lea.vmem %s7, 448
  %v9162 = vld [vmem:[%s9161] sm:$0xff]
  %v9163 = vld [vmem:[%s9161 + $0x8] sm:$0xff]
  %v9164 = vld [vmem:[%s9161 + $0x10] sm:$0xff]
  %v9165 = vld [vmem:[%s9161 + $0x18] sm:$0xff]
  %v9168 = vrot.slane %v9160, 7
  %v9169 = vsel %vm7998, %v9168, %v9159
  %v9170 = vsel %vm8000, %v9169, 0
  %9172 = vmatprep.subr.mxu0 0.0
  %9173 = vmatpush1.msra.mxu0 0.0
  %9174 = vmatprep.subr.mxu0 0.0
  %9175 = vmatpush1.msra.mxu0 0.0
  %9176 = vmatprep.subr.mxu0 0.0
  %9177 = vmatpush1.msra.mxu0 0.0
  %9178 = vmatprep.subr.mxu0 0.0
  %9179 = vmatpush1.msra.mxu0 0.0
  %9180 = vmatprep.subr.mxu0 0.0
  %9181 = vmatpush1.msra.mxu0 0.0
  %9182 = vmatprep.subr.mxu0 0.0
  %9183 = vmatpush1.msra.mxu0 0.0
  %9184 = vmatprep.subr.mxu0 0.0
  %9185 = vmatpush1.msra.mxu0 0.0
  %9186 = vmatprep.subr.mxu0 0.0
  %9187 = vmatpush1.msra.mxu0 0.0
  %9188 = vmatprep.subr.mxu0 0.0
  %9189 = vmatpush1.msra.mxu0 0.0
  %9190 = vmatprep.subr.mxu0 0.0
  %9191 = vmatpush1.msra.mxu0 0.0
  %9192 = vmatprep.subr.mxu0 0.0
  %9193 = vmatpush1.msra.mxu0 0.0
  %9194 = vmatprep.subr.mxu0 0.0
  %9195 = vmatpush1.msra.mxu0 0.0
  %9196 = vmatprep.subr.mxu0 0.0
  %9197 = vmatpush1.msra.mxu0 %v9165
  %9198 = vmatprep.subr.mxu0 0.0
  %9199 = vmatpush1.msra.mxu0 %v9164
  %9200 = vmatprep.subr.mxu0 0.0
  %9201 = vmatpush1.msra.mxu0 %v9163
  %9202 = vmatprep.subr.mxu0 0.0
  %9203 = vmatpush1.msra.mxu0 %v9162
  %9204 = vmatprep.subr.mxu0 0.0
  %9205 = vmatpush2.msra.mxu0 0.0
  %9206 = vmatprep.subr.mxu0 0.0
  %9207 = vmatpush2.msra.mxu0 0.0
  %9208 = vmatprep.subr.mxu0 0.0
  %9209 = vmatpush2.msra.mxu0 0.0
  %9210 = vmatprep.subr.mxu0 0.0
  %9211 = vmatpush2.msra.mxu0 0.0
  %9212 = vmatprep.subr.mxu0 0.0
  %9213 = vmatpush2.msra.mxu0 0.0
  %9214 = vmatprep.subr.mxu0 0.0
  %9215 = vmatpush2.msra.mxu0 0.0
  %9216 = vmatprep.subr.mxu0 0.0
  %9217 = vmatpush2.msra.mxu0 0.0
  %9218 = vmatprep.subr.mxu0 0.0
  %9219 = vmatpush2.msra.mxu0 0.0
  %9220 = vmatprep.subr.mxu0 0.0
  %9221 = vmatpush2.msra.mxu0 0.0
  %9222 = vmatprep.subr.mxu0 0.0
  %9223 = vmatpush2.msra.mxu0 0.0
  %9224 = vmatprep.subr.mxu0 0.0
  %9225 = vmatpush2.msra.mxu0 0.0
  %9226 = vmatprep.subr.mxu0 0.0
  %9227 = vmatpush2.msra.mxu0 0.0
  %9228 = vmatprep.subr.mxu0 0.0
  %9229 = vmatpush2.msra.mxu0 0.0
  %9230 = vmatprep.subr.mxu0 0.0
  %9231 = vmatpush2.msra.mxu0 0.0
  %9232 = vmatprep.subr.mxu0 0.0
  %9233 = vmatpush2.msra.mxu0 0.0
  %9234 = vmatprep.subr.mxu0 0.0
  %9235 = vmatpush2.msra.mxu0 0.0
  %9236 = vmatprep.mubr.f32.mxu0 0.0
  %9237 = vmatmul.mubr.f32.gmra.mxu0 %v9170
  %v9238 = vpop.f32.mrf.mxu0
  %v9239 = vadd.f32 0.0, %v9238
  %v9240 = vpop.f32.mrf.mxu0
  %9241 = vdwg.mxu0
  %v9242 = vadd.f32 %v9158, %v9239
  %v9243 = vld [vmem:[%s8990 + $0x3] sm:$0x1]
  %v9244 = vld [vmem:[%s8990 + $0x13] sm:$0x1]
  %s9245 = scalar_lea.vmem %s7, 480
  %v9246 = vld [vmem:[%s9245] sm:$0xff]
  %v9247 = vld [vmem:[%s9245 + $0x8] sm:$0xff]
  %v9248 = vld [vmem:[%s9245 + $0x10] sm:$0xff]
  %v9249 = vld [vmem:[%s9245 + $0x18] sm:$0xff]
  %v9252 = vrot.slane %v9244, 7
  %v9253 = vsel %vm7998, %v9252, %v9243
  %v9254 = vsel %vm8000, %v9253, 0
  %9256 = vmatprep.subr.mxu0 0.0
  %9257 = vmatpush1.msra.mxu0 0.0
  %9258 = vmatprep.subr.mxu0 0.0
  %9259 = vmatpush1.msra.mxu0 0.0
  %9260 = vmatprep.subr.mxu0 0.0
  %9261 = vmatpush1.msra.mxu0 0.0
  %9262 = vmatprep.subr.mxu0 0.0
  %9263 = vmatpush1.msra.mxu0 0.0
  %9264 = vmatprep.subr.mxu0 0.0
  %9265 = vmatpush1.msra.mxu0 0.0
  %9266 = vmatprep.subr.mxu0 0.0
  %9267 = vmatpush1.msra.mxu0 0.0
  %9268 = vmatprep.subr.mxu0 0.0
  %9269 = vmatpush1.msra.mxu0 0.0
  %9270 = vmatprep.subr.mxu0 0.0
  %9271 = vmatpush1.msra.mxu0 0.0
  %9272 = vmatprep.subr.mxu0 0.0
  %9273 = vmatpush1.msra.mxu0 0.0
  %9274 = vmatprep.subr.mxu0 0.0
  %9275 = vmatpush1.msra.mxu0 0.0
  %9276 = vmatprep.subr.mxu0 0.0
  %9277 = vmatpush1.msra.mxu0 0.0
  %9278 = vmatprep.subr.mxu0 0.0
  %9279 = vmatpush1.msra.mxu0 0.0
  %9280 = vmatprep.subr.mxu0 0.0
  %9281 = vmatpush1.msra.mxu0 %v9249
  %9282 = vmatprep.subr.mxu0 0.0
  %9283 = vmatpush1.msra.mxu0 %v9248
  %9284 = vmatprep.subr.mxu0 0.0
  %9285 = vmatpush1.msra.mxu0 %v9247
  %9286 = vmatprep.subr.mxu0 0.0
  %9287 = vmatpush1.msra.mxu0 %v9246
  %9288 = vmatprep.subr.mxu0 0.0
  %9289 = vmatpush2.msra.mxu0 0.0
  %9290 = vmatprep.subr.mxu0 0.0
  %9291 = vmatpush2.msra.mxu0 0.0
  %9292 = vmatprep.subr.mxu0 0.0
  %9293 = vmatpush2.msra.mxu0 0.0
  %9294 = vmatprep.subr.mxu0 0.0
  %9295 = vmatpush2.msra.mxu0 0.0
  %9296 = vmatprep.subr.mxu0 0.0
  %9297 = vmatpush2.msra.mxu0 0.0
  %9298 = vmatprep.subr.mxu0 0.0
  %9299 = vmatpush2.msra.mxu0 0.0
  %9300 = vmatprep.subr.mxu0 0.0
  %9301 = vmatpush2.msra.mxu0 0.0
  %9302 = vmatprep.subr.mxu0 0.0
  %9303 = vmatpush2.msra.mxu0 0.0
  %9304 = vmatprep.subr.mxu0 0.0
  %9305 = vmatpush2.msra.mxu0 0.0
  %9306 = vmatprep.subr.mxu0 0.0
  %9307 = vmatpush2.msra.mxu0 0.0
  %9308 = vmatprep.subr.mxu0 0.0
  %9309 = vmatpush2.msra.mxu0 0.0
  %9310 = vmatprep.subr.mxu0 0.0
  %9311 = vmatpush2.msra.mxu0 0.0
  %9312 = vmatprep.subr.mxu0 0.0
  %9313 = vmatpush2.msra.mxu0 0.0
  %9314 = vmatprep.subr.mxu0 0.0
  %9315 = vmatpush2.msra.mxu0 0.0
  %9316 = vmatprep.subr.mxu0 0.0
  %9317 = vmatpush2.msra.mxu0 0.0
  %9318 = vmatprep.subr.mxu0 0.0
  %9319 = vmatpush2.msra.mxu0 0.0
  %9320 = vmatprep.mubr.f32.mxu0 0.0
  %9321 = vmatmul.mubr.f32.gmra.mxu0 %v9254
  %v9322 = vpop.f32.mrf.mxu0
  %v9323 = vadd.f32 0.0, %v9322
  %v9324 = vpop.f32.mrf.mxu0
  %9325 = vdwg.mxu0
  %v9326 = vadd.f32 %v9242, %v9323
  %v9327 = vld [vmem:[#allocation5] sm:$0x1]
  %v9329 = vlaneseq
  %v9330 = vshrl.u32 %v9329, 7
  %v9331 = vsub.s32 0, %v9330
  %v9332 = vrot.slane %v9327, %v9331
  %v9334 = vadd.f32 %v9326, %v9332
  %v9335 = vadd.f32 %v9334, 0.0
  %vm9336 = vcmask 1024
  %9337 = vst.msk [vmem:[%s9] sm:$0x3] %vm9336, %v9335
  // Predicated region
  $region38: #{discriminator_forward.1} parent=0 // pred_check
    _
  $region39: #{discriminator_forward.1} parent=0 // pred_check_branch
    %9339 = sbr.rel (0) target = $region41
  $region40: #{discriminator_forward.1} parent=0 // pred_region
    _
  $region41: #{discriminator_forward.1} parent=0 // pred_fallthru
    _
  // Predicated region
  $region42: #{discriminator_forward.1} parent=0 // pred_check
    _
  $region43: #{discriminator_forward.1} parent=0 // pred_check_branch
    %9341 = sbr.rel (0) target = $region45
  $region44: #{discriminator_forward.1} parent=0 // pred_region
    _
  $region45: #{discriminator_forward.1} parent=0 // pred_fallthru
    _

</llo_original>
